<compile_context>
chip_gen: v7x
topology: tpu7x:2x2x1
jax: 0.10.0
libtpu: 0.0.40
codegen_flags: <defaults>
</compile_context>

<pallas_src>
import jax
import jax.numpy as jnp
from jax.experimental import pallas as pl
from jax.experimental.pallas import tpu as pltpu

FPN_FEATURE_DIM = 256
LANE = 128


# ------------------------------ host-side helpers ----------------------------

def _round_up(x, m):
    return ((x + m - 1) // m) * m


def _build_selection_T(hin, win, p_in, block):
    """Transposed, tap-stacked one-hot selection for a 2x2/stride-2 conv.

    Returns S of shape (p_in, 4*block) in bf16 such that, for an activation
    held channel-major as yT (C, p_in) with valid columns p = hi*win + wi,
      (yT @ S)[:, t*block + m] == yT[:, (2*(m//wo)+kh)*win + 2*(m%wo)+kw]
    with t = kh*2 + kw and m < (hin//2)*(win//2); all other columns are zero.
    Zero rows beyond hin*win make padded/garbage input columns contribute 0.
    """
    ho_, wo_ = hin // 2, win // 2
    m = jnp.arange(block)
    p = jnp.arange(p_in)
    valid = m < ho_ * wo_
    blocks = []
    for kh in range(2):
        for kw in range(2):
            src = (2 * (m // wo_) + kh) * win + (2 * (m % wo_) + kw)
            blocks.append((p[:, None] == src[None, :]) & valid[None, :])
    return jnp.concatenate(blocks, axis=1).astype(jnp.bfloat16)


def _layer1_im2col_T(x_nchw, k_pad):
    """Transposed im2col of the RAW input only (tiny one-time glue).

    Output (B, k_pad, M1) bf16 with K ordered (kh, kw, cin) to match
    w1.reshape(4*Cin, Cout), zero-padded to a lane-friendly K.
    """
    B, C, H, W = x_nchw.shape
    p = x_nchw.reshape(B, C, H // 2, 2, W // 2, 2)        # b c ho kh wo kw
    p = p.transpose(0, 3, 5, 1, 2, 4)                     # b kh kw c ho wo
    p = p.reshape(B, 4 * C, (H // 2) * (W // 2))
    p = jnp.pad(p, ((0, 0), (0, k_pad - 4 * C), (0, 0)))
    return p.astype(jnp.bfloat16)


def init_params(key, in_channels):
    params = {}
    cin = in_channels
    for i in range(1, 5):
        key, kw, kb = jax.random.split(key, 3)
        fan_in = 4 * cin
        w = jax.random.normal(kw, (2, 2, cin, FPN_FEATURE_DIM), jnp.float32)
        w = w * (1.0 / jnp.sqrt(jnp.float32(fan_in)))
        b = 0.01 * jax.random.normal(kb, (FPN_FEATURE_DIM,), jnp.float32)
        params[f"layer{i}"] = (w, b)
        cin = FPN_FEATURE_DIM
    return params


# ------------------------------ forward ---------------------------------------

def regression_fpn_forward(params, x_nchw):
    """Mirrors RegressionFPN.forward. Input NCHW; outputs are NCHW features."""
    B, C_in, H, W = x_nchw.shape
    assert H % 16 == 0 and W % 16 == 0, "need 4 stride-2 stages"
    C = FPN_FEATURE_DIM

    hs = [(H >> s, W >> s) for s in range(1, 5)]
    Ms = [h * w for h, w in hs]
    # Padded lane widths of the running (C, spatial) activation for stages 2..4.
    blks = [_round_up(max(m, LANE), LANE) for m in Ms[1:]]
    p_ins = [Ms[0], blks[0], blks[1]]

    # ---- host-side operand prep (tiny, one-time XLA glue) -------------------
    k1 = 4 * C_in
    k1_pad = _round_up(max(k1, LANE), LANE)
    x1t = _layer1_im2col_T(x_nchw, k1_pad)                         # (B,k1p,M1)

    w1, _ = params["layer1"]
    w1t = jnp.pad(w1.reshape(k1, C), ((0, k1_pad - k1), (0, 0))).T
    w1t = w1t.astype(jnp.bfloat16)                                 # (C, k1p)
    # Per-tap transposed weights W_t^T, t = kh*2 + kw.
    wts = [params[f"layer{i}"][0].transpose(0, 1, 3, 2).reshape(4, C, C)
           .astype(jnp.bfloat16) for i in range(2, 5)]
    bias_t = jnp.stack([params[f"layer{i}"][1] for i in range(1, 5)],
                       axis=1).astype(jnp.float32)                 # (C, 4)
    sels = [_build_selection_T(hs[i][0], hs[i][1], p_ins[i], blks[i])
            for i in range(3)]                                     # layers 2..4

    # ---- fused kernel: whole backbone + avg pool for one batch element ------
    def kernel(x1t_ref, w1t_ref, w2t_ref, w3t_ref, w4t_ref, bt_ref,
               s2_ref, s3_ref, s4_ref,
               o1_ref, o2_ref, o3_ref, o4_ref, pool_ref):
        bt = bt_ref[...]                                           # (C, 4) f32

        # Layer 1: one lane-dense MXU matmul; output already channel-major.
        y1 = jnp.dot(w1t_ref[...], x1t_ref[...],
                     preferred_element_type=jnp.float32)
        y1 = jnp.maximum(y1 + bt[:, 0:1], 0.0)                     # (C, M1) f32
        o1_ref[...] = y1.astype(o1_ref.dtype)

        def stage(y_prev, s_ref, wt_ref, b_col, blk):
            # 1 stacked tap-selection matmul (exact one-hot in bf16) + 4 weight
            # matmuls on 128-aligned lane slices, accumulated in f32.
            yb = y_prev.astype(jnp.bfloat16)
            taps = jnp.dot(yb, s_ref[...],
                           preferred_element_type=jnp.float32)     # (C, 4*blk)
            taps = taps.astype(jnp.bfloat16)
            acc = jnp.dot(wt_ref[0], taps[:, 0:blk],
                          preferred_element_type=jnp.float32)
            for t in range(1, 4):
                acc = acc + jnp.dot(wt_ref[t], taps[:, t * blk:(t + 1) * blk],
                                    preferred_element_type=jnp.float32)
            return jnp.maximum(acc + b_col, 0.0)                   # (C, blk) f32

        y2 = stage(y1, s2_ref, w2t_ref, bt[:, 1:2], blks[0])
        o2_ref[...] = y2[:, :Ms[1]].astype(o2_ref.dtype)
        y3 = stage(y2, s3_ref, w3t_ref, bt[:, 2:3], blks[1])
        o3_ref[...] = y3[:, :Ms[2]].astype(o3_ref.dtype)
        y4 = stage(y3, s4_ref, w4t_ref, bt[:, 3:4], blks[2])
        y4v = y4[:, :Ms[3]].astype(o4_ref.dtype)
        o4_ref[...] = y4v

        # Fused AdaptiveAvgPool2d(1) on the (returned, bf16) layer-4 map.
        pool_ref[...] = jnp.mean(y4v.astype(jnp.float32), axis=1, keepdims=True)

    # ---- single pallas_call, grid over batch ("parallel" => 2 TCs on v7x) ---
    out_shape = (
        jax.ShapeDtypeStruct((B, C, Ms[0]), jnp.bfloat16),
        jax.ShapeDtypeStruct((B, C, Ms[1]), jnp.bfloat16),
        jax.ShapeDtypeStruct((B, C, Ms[2]), jnp.bfloat16),
        jax.ShapeDtypeStruct((B, C, Ms[3]), jnp.bfloat16),
        jax.ShapeDtypeStruct((B, C, 1), jnp.float32),
    )

    def const(*shape):
        return pl.BlockSpec(shape, lambda b: (0,) * len(shape))

    in_specs = [
        pl.BlockSpec((None, k1_pad, Ms[0]), lambda b: (b, 0, 0)),  # x1 im2col^T
        const(C, k1_pad),                                          # w1^T
        const(4, C, C), const(4, C, C), const(4, C, C),            # W_t^T 2..4
        const(C, 4),                                               # biases
        const(p_ins[0], 4 * blks[0]),                              # sel layer2
        const(p_ins[1], 4 * blks[1]),                              # sel layer3
        const(p_ins[2], 4 * blks[2]),                              # sel layer4
    ]
    out_specs = (
        pl.BlockSpec((None, C, Ms[0]), lambda b: (b, 0, 0)),
        pl.BlockSpec((None, C, Ms[1]), lambda b: (b, 0, 0)),
        pl.BlockSpec((None, C, Ms[2]), lambda b: (b, 0, 0)),
        pl.BlockSpec((None, C, Ms[3]), lambda b: (b, 0, 0)),
        pl.BlockSpec((None, C, 1), lambda b: (b, 0, 0)),
    )

    o1, o2, o3, o4, pooled = pl.pallas_call(
        kernel,
        out_shape=out_shape,
        grid=(B,),
        in_specs=in_specs,
        out_specs=out_specs,
        compiler_params=pltpu.CompilerParams(
            dimension_semantics=("parallel",)),
    )(x1t, w1t, wts[0], wts[1], wts[2], bias_t, sels[0], sels[1], sels[2])

    # Kernel outputs are already channel-major: only free reshapes remain.
    feats = {}
    for i, o in enumerate([o1, o2, o3, o4]):
        h_i, w_i = hs[i]
        feats[f"body_layer{i + 1}"] = o.reshape(B, C, h_i, w_i)

    # `if self.pooling is not None: pass`  -> intentionally a no-op.
    # TODO(synk): SumAvgPooling / ConcatPooling are built in __init__ but never
    # invoked in RegressionFPN.forward, so they are not executed here.

    feats["avg_pooling"] = pooled.reshape(B, C, 1, 1)              # AvgPool2d(1)
    return feats


# ----------------------------- pure-JAX reference ----------------------------

def reference_forward(params, x_nchw):
    """Same math in plain JAX with the same bf16 operand quantization."""
    bf = lambda a: a.astype(jnp.bfloat16).astype(jnp.float32)
    h = jnp.transpose(x_nchw, (0, 2, 3, 1))
    feats = {}
    for i in range(1, 5):
        w, b = params[f"layer{i}"]
        B, H, W, C = h.shape
        p = h.reshape(B, H // 2, 2, W // 2, 2, C).transpose(0, 1, 3, 2, 4, 5)
        p = p.reshape(B, (H // 2) * (W // 2), 4 * C)
        y = jnp.einsum("bmk,kn->bmn", bf(p), bf(w.reshape(4 * C, FPN_FEATURE_DIM)),
                       precision=jax.lax.Precision.HIGHEST) + b
        y = jnp.maximum(y, 0.0)
        h = y.reshape(B, H // 2, W // 2, FPN_FEATURE_DIM)
        feats[f"body_layer{i}"] = jnp.transpose(h, (0, 3, 1, 2))
    feats["avg_pooling"] = jnp.mean(h, axis=(1, 2))[:, :, None, None]
    return feats


# --------------------------------- main ---------------------------------------

if __name__ == "__main__":
    key = jax.random.PRNGKey(0)
    key, kx = jax.random.split(key)

    B, C_in, H, W = 2, 3, 32, 32
    x = jax.random.normal(kx, (B, C_in, H, W), jnp.float32)       # NCHW input
    params = init_params(key, C_in)

    feats = jax.jit(regression_fpn_forward)(params, x)
    feats = jax.block_until_ready(feats)

    C = FPN_FEATURE_DIM
    assert feats["body_layer1"].shape == (B, C, H // 2, W // 2)
    assert feats["body_layer2"].shape == (B, C, H // 4, W // 4)
    assert feats["body_layer3"].shape == (B, C, H // 8, W // 8)
    assert feats["body_layer4"].shape == (B, C, H // 16, W // 16)
    assert feats["avg_pooling"].shape == (B, C, 1, 1)

    # Module invariant: avg_pooling == AdaptiveAvgPool2d(1)(body_layer4).
    pooled_ref = jnp.mean(feats["body_layer4"].astype(jnp.float32),
                          axis=(2, 3)).reshape(B, C, 1, 1)
    assert jnp.allclose(feats["avg_pooling"], pooled_ref, atol=1e-5, rtol=1e-5)

    # Cross-check against the pure-JAX (bf16-operand) reference.  Feature maps
    # are stored in bf16, so allow bf16 output-rounding error.
    ref = reference_forward(params, x)
    for k in ref:
        err = float(jnp.max(jnp.abs(feats[k].astype(jnp.float32) - ref[k])))
        assert err < 5e-2, (k, err)

    print("KERNEL_OK")
</pallas_src>

<mosaic_0001>
module attributes {stable_mosaic.version = 11 : i64} {
  func.func @kernel(%arg0: i32, %arg1: memref<1x128x256xbf16, #tpu.memory_space<vmem>>, %arg2: memref<256x128xbf16, #tpu.memory_space<vmem>>, %arg3: memref<4x256x256xbf16, #tpu.memory_space<vmem>>, %arg4: memref<4x256x256xbf16, #tpu.memory_space<vmem>>, %arg5: memref<4x256x256xbf16, #tpu.memory_space<vmem>>, %arg6: memref<256x4xf32, #tpu.memory_space<vmem>>, %arg7: memref<256x512xbf16, #tpu.memory_space<vmem>>, %arg8: memref<128x512xbf16, #tpu.memory_space<vmem>>, %arg9: memref<128x512xbf16, #tpu.memory_space<vmem>>, %arg10: memref<1x256x256xbf16, #tpu.memory_space<vmem>>, %arg11: memref<1x256x64xbf16, #tpu.memory_space<vmem>>, %arg12: memref<1x256x16xbf16, #tpu.memory_space<vmem>>, %arg13: memref<1x256x4xbf16, #tpu.memory_space<vmem>>, %arg14: memref<1x256x1xf32, #tpu.memory_space<vmem>>) attributes {dimension_semantics = [#tpu.dimension_semantics<parallel>], iteration_bounds = array<i64: 2>, scalar_prefetch = 0 : i64, scratch_operands = 0 : i64, tpu.core_type = #tpu.core_type<tc>, window_params = [{transform_indices = @transform_0, window_bounds = array<i64: 1, 128, 256>}, {pipeline_mode = #tpu.pipeline_mode<synchronous>, transform_indices = @transform_1, window_bounds = array<i64: 256, 128>}, {pipeline_mode = #tpu.pipeline_mode<synchronous>, transform_indices = @transform_2, window_bounds = array<i64: 4, 256, 256>}, {pipeline_mode = #tpu.pipeline_mode<synchronous>, transform_indices = @transform_3, window_bounds = array<i64: 4, 256, 256>}, {pipeline_mode = #tpu.pipeline_mode<synchronous>, transform_indices = @transform_4, window_bounds = array<i64: 4, 256, 256>}, {pipeline_mode = #tpu.pipeline_mode<synchronous>, transform_indices = @transform_5, window_bounds = array<i64: 256, 4>}, {pipeline_mode = #tpu.pipeline_mode<synchronous>, transform_indices = @transform_6, window_bounds = array<i64: 256, 512>}, {pipeline_mode = #tpu.pipeline_mode<synchronous>, transform_indices = @transform_7, window_bounds = array<i64: 128, 512>}, {pipeline_mode = #tpu.pipeline_mode<synchronous>, transform_indices = @transform_8, window_bounds = array<i64: 128, 512>}, {transform_indices = @transform_9, window_bounds = array<i64: 1, 256, 256>}, {transform_indices = @transform_10, window_bounds = array<i64: 1, 256, 64>}, {transform_indices = @transform_11, window_bounds = array<i64: 1, 256, 16>}, {transform_indices = @transform_12, window_bounds = array<i64: 1, 256, 4>}, {transform_indices = @transform_13, window_bounds = array<i64: 1, 256, 1>}]} {
    %c0 = arith.constant 0 : index
    %c0_0 = arith.constant 0 : index
    %0 = vector.load %arg6[%c0, %c0_0] : memref<256x4xf32, #tpu.memory_space<vmem>>, vector<256x4xf32>
    %c0_1 = arith.constant 0 : index
    %c0_2 = arith.constant 0 : index
    %1 = vector.load %arg2[%c0_1, %c0_2] : memref<256x128xbf16, #tpu.memory_space<vmem>>, vector<256x128xbf16>
    %c0_3 = arith.constant 0 : index
    %c0_4 = arith.constant 0 : index
    %c0_5 = arith.constant 0 : index
    %2 = vector.load %arg1[%c0_3, %c0_4, %c0_5] : memref<1x128x256xbf16, #tpu.memory_space<vmem>>, vector<1x128x256xbf16>
    %3 = vector.shape_cast %2 : vector<1x128x256xbf16> to vector<128x256xbf16>
    %cst = arith.constant dense<0.000000e+00> : vector<256x256xf32>
    %4 = tpu.matmul %1, %3, %cst {dimension_numbers = #tpu.dot_dimension_numbers<[1], [0], [0], [1], [0, 0, 1, 1], [], []>} : vector<256x128xbf16>, vector<128x256xbf16>, vector<256x256xf32> -> vector<256x256xf32>
    %5 = vector.extract_strided_slice %0 {offsets = [0, 0], sizes = [256, 1], strides = [1, 1]} : vector<256x4xf32> to vector<256x1xf32>
    %6 = vector.broadcast %5 : vector<256x1xf32> to vector<256x256xf32>
    %7 = arith.addf %4, %6 : vector<256x256xf32>
    %cst_6 = arith.constant 0.000000e+00 : f32
    %8 = vector.broadcast %cst_6 : f32 to vector<256x256xf32>
    %9 = arith.maximumf %7, %8 : vector<256x256xf32>
    %10 = arith.truncf %9 : vector<256x256xf32> to vector<256x256xbf16>
    %c0_7 = arith.constant 0 : index
    %c0_8 = arith.constant 0 : index
    %c0_9 = arith.constant 0 : index
    %11 = vector.load %arg10[%c0_7, %c0_8, %c0_9] : memref<1x256x256xbf16, #tpu.memory_space<vmem>>, vector<1x256x256xbf16>
    %12 = vector.shape_cast %11 : vector<1x256x256xbf16> to vector<256x256xbf16>
    %13 = vector.shape_cast %10 : vector<256x256xbf16> to vector<1x256x256xbf16>
    tpu.vector_store %arg10[%c0_7, %c0_8, %c0_9], %13 {strides = array<i32>} : memref<1x256x256xbf16, #tpu.memory_space<vmem>>, vector<1x256x256xbf16>,
    %14 = vector.extract_strided_slice %0 {offsets = [0, 1], sizes = [256, 1], strides = [1, 1]} : vector<256x4xf32> to vector<256x1xf32>
    %15 = arith.truncf %9 : vector<256x256xf32> to vector<256x256xbf16>
    %c0_10 = arith.constant 0 : index
    %c0_11 = arith.constant 0 : index
    %16 = vector.load %arg7[%c0_10, %c0_11] : memref<256x512xbf16, #tpu.memory_space<vmem>>, vector<256x512xbf16>
    %cst_12 = arith.constant dense<0.000000e+00> : vector<256x512xf32>
    %17 = tpu.matmul %15, %16, %cst_12 {dimension_numbers = #tpu.dot_dimension_numbers<[1], [0], [0], [1], [0, 0, 1, 1], [], []>} : vector<256x256xbf16>, vector<256x512xbf16>, vector<256x512xf32> -> vector<256x512xf32>
    %18 = arith.truncf %17 : vector<256x512xf32> to vector<256x512xbf16>
    %c0_13 = arith.constant 0 : index
    %c0_14 = arith.constant 0 : index
    %c0_15 = arith.constant 0 : index
    %19 = vector.load %arg3[%c0_13, %c0_14, %c0_15] : memref<4x256x256xbf16, #tpu.memory_space<vmem>>, vector<1x256x256xbf16>
    %20 = vector.shape_cast %19 : vector<1x256x256xbf16> to vector<256x256xbf16>
    %21 = vector.extract_strided_slice %18 {offsets = [0, 0], sizes = [256, 128], strides = [1, 1]} : vector<256x512xbf16> to vector<256x128xbf16>
    %cst_16 = arith.constant dense<0.000000e+00> : vector<256x128xf32>
    %22 = tpu.matmul %20, %21, %cst_16 {dimension_numbers = #tpu.dot_dimension_numbers<[1], [0], [0], [1], [0, 0, 1, 1], [], []>} : vector<256x256xbf16>, vector<256x128xbf16>, vector<256x128xf32> -> vector<256x128xf32>
    %c1 = arith.constant 1 : index
    %c0_17 = arith.constant 0 : index
    %c0_18 = arith.constant 0 : index
    %23 = vector.load %arg3[%c1, %c0_17, %c0_18] : memref<4x256x256xbf16, #tpu.memory_space<vmem>>, vector<1x256x256xbf16>
    %24 = vector.shape_cast %23 : vector<1x256x256xbf16> to vector<256x256xbf16>
    %25 = vector.extract_strided_slice %18 {offsets = [0, 128], sizes = [256, 128], strides = [1, 1]} : vector<256x512xbf16> to vector<256x128xbf16>
    %cst_19 = arith.constant dense<0.000000e+00> : vector<256x128xf32>
    %26 = tpu.matmul %24, %25, %cst_19 {dimension_numbers = #tpu.dot_dimension_numbers<[1], [0], [0], [1], [0, 0, 1, 1], [], []>} : vector<256x256xbf16>, vector<256x128xbf16>, vector<256x128xf32> -> vector<256x128xf32>
    %27 = arith.addf %22, %26 : vector<256x128xf32>
    %c2 = arith.constant 2 : index
    %c0_20 = arith.constant 0 : index
    %c0_21 = arith.constant 0 : index
    %28 = vector.load %arg3[%c2, %c0_20, %c0_21] : memref<4x256x256xbf16, #tpu.memory_space<vmem>>, vector<1x256x256xbf16>
    %29 = vector.shape_cast %28 : vector<1x256x256xbf16> to vector<256x256xbf16>
    %30 = vector.extract_strided_slice %18 {offsets = [0, 256], sizes = [256, 128], strides = [1, 1]} : vector<256x512xbf16> to vector<256x128xbf16>
    %cst_22 = arith.constant dense<0.000000e+00> : vector<256x128xf32>
    %31 = tpu.matmul %29, %30, %cst_22 {dimension_numbers = #tpu.dot_dimension_numbers<[1], [0], [0], [1], [0, 0, 1, 1], [], []>} : vector<256x256xbf16>, vector<256x128xbf16>, vector<256x128xf32> -> vector<256x128xf32>
    %32 = arith.addf %27, %31 : vector<256x128xf32>
    %c3 = arith.constant 3 : index
    %c0_23 = arith.constant 0 : index
    %c0_24 = arith.constant 0 : index
    %33 = vector.load %arg3[%c3, %c0_23, %c0_24] : memref<4x256x256xbf16, #tpu.memory_space<vmem>>, vector<1x256x256xbf16>
    %34 = vector.shape_cast %33 : vector<1x256x256xbf16> to vector<256x256xbf16>
    %35 = vector.extract_strided_slice %18 {offsets = [0, 384], sizes = [256, 128], strides = [1, 1]} : vector<256x512xbf16> to vector<256x128xbf16>
    %cst_25 = arith.constant dense<0.000000e+00> : vector<256x128xf32>
    %36 = tpu.matmul %34, %35, %cst_25 {dimension_numbers = #tpu.dot_dimension_numbers<[1], [0], [0], [1], [0, 0, 1, 1], [], []>} : vector<256x256xbf16>, vector<256x128xbf16>, vector<256x128xf32> -> vector<256x128xf32>
    %37 = arith.addf %32, %36 : vector<256x128xf32>
    %38 = vector.broadcast %14 : vector<256x1xf32> to vector<256x128xf32>
    %39 = arith.addf %37, %38 : vector<256x128xf32>
    %cst_26 = arith.constant 0.000000e+00 : f32
    %40 = vector.broadcast %cst_26 : f32 to vector<256x128xf32>
    %41 = arith.maximumf %39, %40 : vector<256x128xf32>
    %42 = vector.extract_strided_slice %41 {offsets = [0, 0], sizes = [256, 64], strides = [1, 1]} : vector<256x128xf32> to vector<256x64xf32>
    %43 = arith.truncf %42 : vector<256x64xf32> to vector<256x64xbf16>
    %c0_27 = arith.constant 0 : index
    %c0_28 = arith.constant 0 : index
    %c0_29 = arith.constant 0 : index
    %44 = vector.load %arg11[%c0_27, %c0_28, %c0_29] : memref<1x256x64xbf16, #tpu.memory_space<vmem>>, vector<1x256x64xbf16>
    %45 = vector.shape_cast %44 : vector<1x256x64xbf16> to vector<256x64xbf16>
    %46 = vector.shape_cast %43 : vector<256x64xbf16> to vector<1x256x64xbf16>
    tpu.vector_store %arg11[%c0_27, %c0_28, %c0_29], %46 {strides = array<i32>} : memref<1x256x64xbf16, #tpu.memory_space<vmem>>, vector<1x256x64xbf16>,
    %47 = vector.extract_strided_slice %0 {offsets = [0, 2], sizes = [256, 1], strides = [1, 1]} : vector<256x4xf32> to vector<256x1xf32>
    %48 = arith.truncf %41 : vector<256x128xf32> to vector<256x128xbf16>
    %c0_30 = arith.constant 0 : index
    %c0_31 = arith.constant 0 : index
    %49 = vector.load %arg8[%c0_30, %c0_31] : memref<128x512xbf16, #tpu.memory_space<vmem>>, vector<128x512xbf16>
    %cst_32 = arith.constant dense<0.000000e+00> : vector<256x512xf32>
    %50 = tpu.matmul %48, %49, %cst_32 {dimension_numbers = #tpu.dot_dimension_numbers<[1], [0], [0], [1], [0, 0, 1, 1], [], []>} : vector<256x128xbf16>, vector<128x512xbf16>, vector<256x512xf32> -> vector<256x512xf32>
    %51 = arith.truncf %50 : vector<256x512xf32> to vector<256x512xbf16>
    %c0_33 = arith.constant 0 : index
    %c0_34 = arith.constant 0 : index
    %c0_35 = arith.constant 0 : index
    %52 = vector.load %arg4[%c0_33, %c0_34, %c0_35] : memref<4x256x256xbf16, #tpu.memory_space<vmem>>, vector<1x256x256xbf16>
    %53 = vector.shape_cast %52 : vector<1x256x256xbf16> to vector<256x256xbf16>
    %54 = vector.extract_strided_slice %51 {offsets = [0, 0], sizes = [256, 128], strides = [1, 1]} : vector<256x512xbf16> to vector<256x128xbf16>
    %cst_36 = arith.constant dense<0.000000e+00> : vector<256x128xf32>
    %55 = tpu.matmul %53, %54, %cst_36 {dimension_numbers = #tpu.dot_dimension_numbers<[1], [0], [0], [1], [0, 0, 1, 1], [], []>} : vector<256x256xbf16>, vector<256x128xbf16>, vector<256x128xf32> -> vector<256x128xf32>
    %c1_37 = arith.constant 1 : index
    %c0_38 = arith.constant 0 : index
    %c0_39 = arith.constant 0 : index
    %56 = vector.load %arg4[%c1_37, %c0_38, %c0_39] : memref<4x256x256xbf16, #tpu.memory_space<vmem>>, vector<1x256x256xbf16>
    %57 = vector.shape_cast %56 : vector<1x256x256xbf16> to vector<256x256xbf16>
    %58 = vector.extract_strided_slice %51 {offsets = [0, 128], sizes = [256, 128], strides = [1, 1]} : vector<256x512xbf16> to vector<256x128xbf16>
    %cst_40 = arith.constant dense<0.000000e+00> : vector<256x128xf32>
    %59 = tpu.matmul %57, %58, %cst_40 {dimension_numbers = #tpu.dot_dimension_numbers<[1], [0], [0], [1], [0, 0, 1, 1], [], []>} : vector<256x256xbf16>, vector<256x128xbf16>, vector<256x128xf32> -> vector<256x128xf32>
    %60 = arith.addf %55, %59 : vector<256x128xf32>
    %c2_41 = arith.constant 2 : index
    %c0_42 = arith.constant 0 : index
    %c0_43 = arith.constant 0 : index
    %61 = vector.load %arg4[%c2_41, %c0_42, %c0_43] : memref<4x256x256xbf16, #tpu.memory_space<vmem>>, vector<1x256x256xbf16>
    %62 = vector.shape_cast %61 : vector<1x256x256xbf16> to vector<256x256xbf16>
    %63 = vector.extract_strided_slice %51 {offsets = [0, 256], sizes = [256, 128], strides = [1, 1]} : vector<256x512xbf16> to vector<256x128xbf16>
    %cst_44 = arith.constant dense<0.000000e+00> : vector<256x128xf32>
    %64 = tpu.matmul %62, %63, %cst_44 {dimension_numbers = #tpu.dot_dimension_numbers<[1], [0], [0], [1], [0, 0, 1, 1], [], []>} : vector<256x256xbf16>, vector<256x128xbf16>, vector<256x128xf32> -> vector<256x128xf32>
    %65 = arith.addf %60, %64 : vector<256x128xf32>
    %c3_45 = arith.constant 3 : index
    %c0_46 = arith.constant 0 : index
    %c0_47 = arith.constant 0 : index
    %66 = vector.load %arg4[%c3_45, %c0_46, %c0_47] : memref<4x256x256xbf16, #tpu.memory_space<vmem>>, vector<1x256x256xbf16>
    %67 = vector.shape_cast %66 : vector<1x256x256xbf16> to vector<256x256xbf16>
    %68 = vector.extract_strided_slice %51 {offsets = [0, 384], sizes = [256, 128], strides = [1, 1]} : vector<256x512xbf16> to vector<256x128xbf16>
    %cst_48 = arith.constant dense<0.000000e+00> : vector<256x128xf32>
    %69 = tpu.matmul %67, %68, %cst_48 {dimension_numbers = #tpu.dot_dimension_numbers<[1], [0], [0], [1], [0, 0, 1, 1], [], []>} : vector<256x256xbf16>, vector<256x128xbf16>, vector<256x128xf32> -> vector<256x128xf32>
    %70 = arith.addf %65, %69 : vector<256x128xf32>
    %71 = vector.broadcast %47 : vector<256x1xf32> to vector<256x128xf32>
    %72 = arith.addf %70, %71 : vector<256x128xf32>
    %cst_49 = arith.constant 0.000000e+00 : f32
    %73 = vector.broadcast %cst_49 : f32 to vector<256x128xf32>
    %74 = arith.maximumf %72, %73 : vector<256x128xf32>
    %75 = vector.extract_strided_slice %74 {offsets = [0, 0], sizes = [256, 16], strides = [1, 1]} : vector<256x128xf32> to vector<256x16xf32>
    %76 = arith.truncf %75 : vector<256x16xf32> to vector<256x16xbf16>
    %c0_50 = arith.constant 0 : index
    %c0_51 = arith.constant 0 : index
    %c0_52 = arith.constant 0 : index
    %77 = vector.load %arg12[%c0_50, %c0_51, %c0_52] : memref<1x256x16xbf16, #tpu.memory_space<vmem>>, vector<1x256x16xbf16>
    %78 = vector.shape_cast %77 : vector<1x256x16xbf16> to vector<256x16xbf16>
    %79 = vector.shape_cast %76 : vector<256x16xbf16> to vector<1x256x16xbf16>
    tpu.vector_store %arg12[%c0_50, %c0_51, %c0_52], %79 {strides = array<i32>} : memref<1x256x16xbf16, #tpu.memory_space<vmem>>, vector<1x256x16xbf16>,
    %80 = vector.extract_strided_slice %0 {offsets = [0, 3], sizes = [256, 1], strides = [1, 1]} : vector<256x4xf32> to vector<256x1xf32>
    %81 = arith.truncf %74 : vector<256x128xf32> to vector<256x128xbf16>
    %c0_53 = arith.constant 0 : index
    %c0_54 = arith.constant 0 : index
    %82 = vector.load %arg9[%c0_53, %c0_54] : memref<128x512xbf16, #tpu.memory_space<vmem>>, vector<128x512xbf16>
    %cst_55 = arith.constant dense<0.000000e+00> : vector<256x512xf32>
    %83 = tpu.matmul %81, %82, %cst_55 {dimension_numbers = #tpu.dot_dimension_numbers<[1], [0], [0], [1], [0, 0, 1, 1], [], []>} : vector<256x128xbf16>, vector<128x512xbf16>, vector<256x512xf32> -> vector<256x512xf32>
    %84 = arith.truncf %83 : vector<256x512xf32> to vector<256x512xbf16>
    %c0_56 = arith.constant 0 : index
    %c0_57 = arith.constant 0 : index
    %c0_58 = arith.constant 0 : index
    %85 = vector.load %arg5[%c0_56, %c0_57, %c0_58] : memref<4x256x256xbf16, #tpu.memory_space<vmem>>, vector<1x256x256xbf16>
    %86 = vector.shape_cast %85 : vector<1x256x256xbf16> to vector<256x256xbf16>
    %87 = vector.extract_strided_slice %84 {offsets = [0, 0], sizes = [256, 128], strides = [1, 1]} : vector<256x512xbf16> to vector<256x128xbf16>
    %cst_59 = arith.constant dense<0.000000e+00> : vector<256x128xf32>
    %88 = tpu.matmul %86, %87, %cst_59 {dimension_numbers = #tpu.dot_dimension_numbers<[1], [0], [0], [1], [0, 0, 1, 1], [], []>} : vector<256x256xbf16>, vector<256x128xbf16>, vector<256x128xf32> -> vector<256x128xf32>
    %c1_60 = arith.constant 1 : index
    %c0_61 = arith.constant 0 : index
    %c0_62 = arith.constant 0 : index
    %89 = vector.load %arg5[%c1_60, %c0_61, %c0_62] : memref<4x256x256xbf16, #tpu.memory_space<vmem>>, vector<1x256x256xbf16>
    %90 = vector.shape_cast %89 : vector<1x256x256xbf16> to vector<256x256xbf16>
    %91 = vector.extract_strided_slice %84 {offsets = [0, 128], sizes = [256, 128], strides = [1, 1]} : vector<256x512xbf16> to vector<256x128xbf16>
    %cst_63 = arith.constant dense<0.000000e+00> : vector<256x128xf32>
    %92 = tpu.matmul %90, %91, %cst_63 {dimension_numbers = #tpu.dot_dimension_numbers<[1], [0], [0], [1], [0, 0, 1, 1], [], []>} : vector<256x256xbf16>, vector<256x128xbf16>, vector<256x128xf32> -> vector<256x128xf32>
    %93 = arith.addf %88, %92 : vector<256x128xf32>
    %c2_64 = arith.constant 2 : index
    %c0_65 = arith.constant 0 : index
    %c0_66 = arith.constant 0 : index
    %94 = vector.load %arg5[%c2_64, %c0_65, %c0_66] : memref<4x256x256xbf16, #tpu.memory_space<vmem>>, vector<1x256x256xbf16>
    %95 = vector.shape_cast %94 : vector<1x256x256xbf16> to vector<256x256xbf16>
    %96 = vector.extract_strided_slice %84 {offsets = [0, 256], sizes = [256, 128], strides = [1, 1]} : vector<256x512xbf16> to vector<256x128xbf16>
    %cst_67 = arith.constant dense<0.000000e+00> : vector<256x128xf32>
    %97 = tpu.matmul %95, %96, %cst_67 {dimension_numbers = #tpu.dot_dimension_numbers<[1], [0], [0], [1], [0, 0, 1, 1], [], []>} : vector<256x256xbf16>, vector<256x128xbf16>, vector<256x128xf32> -> vector<256x128xf32>
    %98 = arith.addf %93, %97 : vector<256x128xf32>
    %c3_68 = arith.constant 3 : index
    %c0_69 = arith.constant 0 : index
    %c0_70 = arith.constant 0 : index
    %99 = vector.load %arg5[%c3_68, %c0_69, %c0_70] : memref<4x256x256xbf16, #tpu.memory_space<vmem>>, vector<1x256x256xbf16>
    %100 = vector.shape_cast %99 : vector<1x256x256xbf16> to vector<256x256xbf16>
    %101 = vector.extract_strided_slice %84 {offsets = [0, 384], sizes = [256, 128], strides = [1, 1]} : vector<256x512xbf16> to vector<256x128xbf16>
    %cst_71 = arith.constant dense<0.000000e+00> : vector<256x128xf32>
    %102 = tpu.matmul %100, %101, %cst_71 {dimension_numbers = #tpu.dot_dimension_numbers<[1], [0], [0], [1], [0, 0, 1, 1], [], []>} : vector<256x256xbf16>, vector<256x128xbf16>, vector<256x128xf32> -> vector<256x128xf32>
    %103 = arith.addf %98, %102 : vector<256x128xf32>
    %104 = vector.broadcast %80 : vector<256x1xf32> to vector<256x128xf32>
    %105 = arith.addf %103, %104 : vector<256x128xf32>
    %cst_72 = arith.constant 0.000000e+00 : f32
    %106 = vector.broadcast %cst_72 : f32 to vector<256x128xf32>
    %107 = arith.maximumf %105, %106 : vector<256x128xf32>
    %108 = vector.extract_strided_slice %107 {offsets = [0, 0], sizes = [256, 4], strides = [1, 1]} : vector<256x128xf32> to vector<256x4xf32>
    %109 = arith.truncf %108 : vector<256x4xf32> to vector<256x4xbf16>
    %c0_73 = arith.constant 0 : index
    %c0_74 = arith.constant 0 : index
    %c0_75 = arith.constant 0 : index
    %110 = vector.load %arg13[%c0_73, %c0_74, %c0_75] : memref<1x256x4xbf16, #tpu.memory_space<vmem>>, vector<1x256x4xbf16>
    %111 = vector.shape_cast %110 : vector<1x256x4xbf16> to vector<256x4xbf16>
    %112 = vector.shape_cast %109 : vector<256x4xbf16> to vector<1x256x4xbf16>
    tpu.vector_store %arg13[%c0_73, %c0_74, %c0_75], %112 {strides = array<i32>} : memref<1x256x4xbf16, #tpu.memory_space<vmem>>, vector<1x256x4xbf16>,
    %113 = arith.extf %109 : vector<256x4xbf16> to vector<256x4xf32>
    %cst_76 = arith.constant dense<0.000000e+00> : vector<256xf32>
    %114 = vector.multi_reduction <add>, %113, %cst_76 [1] : vector<256x4xf32> to vector<256xf32>
    %115 = vector.shape_cast %114 : vector<256xf32> to vector<256x1xf32>
    %cst_77 = arith.constant 4.000000e+00 : f32
    %116 = vector.broadcast %cst_77 : f32 to vector<256x1xf32>
    %117 = arith.divf %115, %116 : vector<256x1xf32>
    %c0_78 = arith.constant 0 : index
    %c0_79 = arith.constant 0 : index
    %c0_80 = arith.constant 0 : index
    %118 = vector.load %arg14[%c0_78, %c0_79, %c0_80] : memref<1x256x1xf32, #tpu.memory_space<vmem>>, vector<1x256x1xf32>
    %119 = vector.shape_cast %118 : vector<1x256x1xf32> to vector<256x1xf32>
    %120 = vector.shape_cast %117 : vector<256x1xf32> to vector<1x256x1xf32>
    tpu.vector_store %arg14[%c0_78, %c0_79, %c0_80], %120 {strides = array<i32>} : memref<1x256x1xf32, #tpu.memory_space<vmem>>, vector<1x256x1xf32>,
    return
  }
  func.func @transform_0(%arg0: i32) -> (i32, i32, i32) {
    %c0_i32 = arith.constant 0 : i32
    %c0_i32_0 = arith.constant 0 : i32
    %c0_i32_1 = arith.constant 0 : i32
    return %arg0, %c0_i32, %c0_i32_0 : i32, i32, i32
  }
  func.func @transform_1(%arg0: i32) -> (i32, i32) {
    %c0_i32 = arith.constant 0 : i32
    %c0_i32_0 = arith.constant 0 : i32
    %c0_i32_1 = arith.constant 0 : i32
    return %c0_i32, %c0_i32_0 : i32, i32
  }
  func.func @transform_2(%arg0: i32) -> (i32, i32, i32) {
    %c0_i32 = arith.constant 0 : i32
    %c0_i32_0 = arith.constant 0 : i32
    %c0_i32_1 = arith.constant 0 : i32
    %c0_i32_2 = arith.constant 0 : i32
    return %c0_i32, %c0_i32_0, %c0_i32_1 : i32, i32, i32
  }
  func.func @transform_3(%arg0: i32) -> (i32, i32, i32) {
    %c0_i32 = arith.constant 0 : i32
    %c0_i32_0 = arith.constant 0 : i32
    %c0_i32_1 = arith.constant 0 : i32
    %c0_i32_2 = arith.constant 0 : i32
    return %c0_i32, %c0_i32_0, %c0_i32_1 : i32, i32, i32
  }
  func.func @transform_4(%arg0: i32) -> (i32, i32, i32) {
    %c0_i32 = arith.constant 0 : i32
    %c0_i32_0 = arith.constant 0 : i32
    %c0_i32_1 = arith.constant 0 : i32
    %c0_i32_2 = arith.constant 0 : i32
    return %c0_i32, %c0_i32_0, %c0_i32_1 : i32, i32, i32
  }
  func.func @transform_5(%arg0: i32) -> (i32, i32) {
    %c0_i32 = arith.constant 0 : i32
    %c0_i32_0 = arith.constant 0 : i32
    %c0_i32_1 = arith.constant 0 : i32
    return %c0_i32, %c0_i32_0 : i32, i32
  }
  func.func @transform_6(%arg0: i32) -> (i32, i32) {
    %c0_i32 = arith.constant 0 : i32
    %c0_i32_0 = arith.constant 0 : i32
    %c0_i32_1 = arith.constant 0 : i32
    return %c0_i32, %c0_i32_0 : i32, i32
  }
  func.func @transform_7(%arg0: i32) -> (i32, i32) {
    %c0_i32 = arith.constant 0 : i32
    %c0_i32_0 = arith.constant 0 : i32
    %c0_i32_1 = arith.constant 0 : i32
    return %c0_i32, %c0_i32_0 : i32, i32
  }
  func.func @transform_8(%arg0: i32) -> (i32, i32) {
    %c0_i32 = arith.constant 0 : i32
    %c0_i32_0 = arith.constant 0 : i32
    %c0_i32_1 = arith.constant 0 : i32
    return %c0_i32, %c0_i32_0 : i32, i32
  }
  func.func @transform_9(%arg0: i32) -> (i32, i32, i32) {
    %c0_i32 = arith.constant 0 : i32
    %c0_i32_0 = arith.constant 0 : i32
    %c0_i32_1 = arith.constant 0 : i32
    return %arg0, %c0_i32, %c0_i32_0 : i32, i32, i32
  }
  func.func @transform_10(%arg0: i32) -> (i32, i32, i32) {
    %c0_i32 = arith.constant 0 : i32
    %c0_i32_0 = arith.constant 0 : i32
    %c0_i32_1 = arith.constant 0 : i32
    return %arg0, %c0_i32, %c0_i32_0 : i32, i32, i32
  }
  func.func @transform_11(%arg0: i32) -> (i32, i32, i32) {
    %c0_i32 = arith.constant 0 : i32
    %c0_i32_0 = arith.constant 0 : i32
    %c0_i32_1 = arith.constant 0 : i32
    return %arg0, %c0_i32, %c0_i32_0 : i32, i32, i32
  }
  func.func @transform_12(%arg0: i32) -> (i32, i32, i32) {
    %c0_i32 = arith.constant 0 : i32
    %c0_i32_0 = arith.constant 0 : i32
    %c0_i32_1 = arith.constant 0 : i32
    return %arg0, %c0_i32, %c0_i32_0 : i32, i32, i32
  }
  func.func @transform_13(%arg0: i32) -> (i32, i32, i32) {
    %c0_i32 = arith.constant 0 : i32
    %c0_i32_0 = arith.constant 0 : i32
    %c0_i32_1 = arith.constant 0 : i32
    return %arg0, %c0_i32, %c0_i32_0 : i32, i32, i32
  }
}

</mosaic_0001>

<llo_original>
// kernel: regression_fpn_forward.1
$region0: #{regression_fpn_forward.1}
  #allocation0 [shape = 'u32[]', space=smem, size = 0x4, offset = 0x4, fixed_abs, tag = 'smem constant byte address 0x4 - core index']
  #allocation1 [shape = 'u32[144,128]{1,0:T(1,128)}', space=vmem, size = 0x12000, scoped, tag = 'internal scratch']
  %s0 = inlined_call_operand.vmem [shape: bf16[2,128,256], index: 0, kind: input, shape index: {}]
  %s1 = inlined_call_operand.vmem [shape: bf16[256,128], index: 1, kind: input, shape index: {}]
  %s2 = inlined_call_operand.vmem [shape: bf16[4,256,256], index: 2, kind: input, shape index: {}]
  %s3 = inlined_call_operand.vmem [shape: bf16[4,256,256], index: 3, kind: input, shape index: {}]
  %s4 = inlined_call_operand.vmem [shape: bf16[4,256,256], index: 4, kind: input, shape index: {}]
  %s5 = inlined_call_operand.vmem [shape: f32[256,4], index: 5, kind: input, shape index: {}]
  %s6 = inlined_call_operand.vmem [shape: bf16[256,512], index: 6, kind: input, shape index: {}]
  %s7 = inlined_call_operand.vmem [shape: bf16[128,512], index: 7, kind: input, shape index: {}]
  %s8 = inlined_call_operand.vmem [shape: bf16[128,512], index: 8, kind: input, shape index: {}]
  %s9 = inlined_call_operand.vmem [shape: bf16[2,256,256], index: 9, kind: output, shape index: {0}]
  %s10 = inlined_call_operand.vmem [shape: bf16[2,256,64], index: 10, kind: output, shape index: {1}]
  %s11 = inlined_call_operand.vmem [shape: bf16[2,256,16], index: 11, kind: output, shape index: {2}]
  %s12 = inlined_call_operand.vmem [shape: bf16[2,256,4], index: 12, kind: output, shape index: {3}]
  %s13 = inlined_call_operand.vmem [shape: f32[2,256,1], index: 13, kind: output, shape index: {4}]
  %14 = xla_tuple %s9, %s10, %s11, %s12, %s13
  %s15 = sld [smem:[#allocation0]]
  $region101: #{regression_fpn_forward.1} parent=0
    _
  %s17 = ssub.s32 1, %s15
  %s18 = scalar_select 0, %s17, %s15
  loop: start=0, step=1, limit=4
  $region2: #{regression_fpn_forward.1} parent=0 // loop_pre_header
    _
  $region3: #{regression_fpn_forward.1} parent=0 // loop_header
    %s20 = sphi 0, %s24
    %p21 = scmp.ge.s32.totalorder %s20, 4
    %s30 = sphi 0, %s32
    %s33 = sphi 0, %s30
    %s34 = sphi 0, %s33
    %s50 = sphi 0, %s34
    %s54 = sphi 0, %s54
    %s56 = sphi 0, %s54
    %s57 = sphi 0, %s56
    %s71 = sphi 0, %s57
    %s75 = sphi 0, %s75
    %s77 = sphi 0, %s75
    %s78 = sphi 0, %s77
    %s92 = sphi 0, %s78
    %s96 = sphi 0, %s96
    %s98 = sphi 0, %s96
    %s99 = sphi 0, %s98
    %s113 = sphi 0, %s99
    %s117 = sphi 0, %s117
    %s119 = sphi 0, %s117
    %s120 = sphi 0, %s119
    %s134 = sphi 0, %s120
    %s138 = sphi 0, %s138
    %s140 = sphi 0, %s138
    %s141 = sphi 0, %s140
    %s155 = sphi 0, %s141
    %s159 = sphi 0, %s159
    %s161 = sphi 0, %s159
    %s162 = sphi 0, %s161
    %s176 = sphi 0, %s162
    %s180 = sphi 0, %s180
    %s182 = sphi 0, %s180
    %s183 = sphi 0, %s182
    %s197 = sphi 0, %s183
    %s201 = sphi 0, %s201
    %s203 = sphi 0, %s201
    %s204 = sphi 0, %s203
    %s218 = sphi 0, %s204
    %s224 = sphi 0, %s226
    %s227 = sphi 0, %s224
    %s228 = sphi 0, %s227
    %s244 = sphi 0, %s228
    %s250 = sphi 0, %s252
    %s253 = sphi 0, %s250
    %s254 = sphi 0, %s253
    %s270 = sphi 0, %s254
    %s276 = sphi 0, %s278
    %s279 = sphi 0, %s276
    %s280 = sphi 0, %s279
    %s296 = sphi 0, %s280
    %s302 = sphi 0, %s304
    %s305 = sphi 0, %s302
    %s306 = sphi 0, %s305
    %s322 = sphi 0, %s306
    %s328 = sphi 0, %s330
    %s331 = sphi 0, %s328
    %s332 = sphi 0, %s331
    %s348 = sphi 0, %s332
  $region4: #{regression_fpn_forward.1} parent=0 // loop_header_branch
    %23 = sbr.rel (%p21) target = $region8
  $region5: #{regression_fpn_forward.1} parent=0 // loop_body
    %s25 = ssub.s32 %s20, 1
    %s26 = ssub.s32 %s20, 2
    %s27 = sadd.s32 %s20, 1
    %s28 = ssub.s32 %s20, %s27
    %p29 = scmp.eq.s32.totalorder %s28, 0
    %s31 = sadd.s32 %s30, 1
    %s32 = scalar_select %p29, %s30, %s31
    %p35 = pneg %p29
    %p36 = scmp.eq.s32.totalorder %s20, 1
    %p37 = por %p35, %p36
    %p38 = scmp.ne.s32.totalorder %s30, %s33
    %p39 = scmp.eq.s32.totalorder %s20, 0
    %p40 = por %p38, %p39
    %p41 = scmp.ne.s32.totalorder %s30, %s33
    %p42 = scmp.eq.s32.totalorder %s25, 1
    %p43 = por %p41, %p42
    %p44 = scmp.ne.s32.totalorder %s33, %s34
    %p45 = scmp.eq.s32.totalorder %s25, 0
    %p46 = por %p44, %p45
    %p47 = scmp.ne.s32.totalorder %s33, %s34
    %p48 = scmp.eq.s32.totalorder %s26, 1
    %p49 = por %p47, %p48
    %p51 = scmp.ne.s32.totalorder %s34, %s50
    %p52 = scmp.eq.s32.totalorder %s26, 0
    %p53 = por %p51, %p52
    %s55 = sadd.s32 %s54, 1
    %p58 = scmp.eq.s32.totalorder %s20, 1
    %p59 = scmp.ne.s32.totalorder %s54, %s56
    %p60 = scmp.eq.s32.totalorder %s20, 0
    %p61 = por %p59, %p60
    %p62 = scmp.ne.s32.totalorder %s54, %s56
    %p63 = scmp.eq.s32.totalorder %s25, 1
    %p64 = por %p62, %p63
    %p65 = scmp.ne.s32.totalorder %s56, %s57
    %p66 = scmp.eq.s32.totalorder %s25, 0
    %p67 = por %p65, %p66
    %p68 = scmp.ne.s32.totalorder %s56, %s57
    %p69 = scmp.eq.s32.totalorder %s26, 1
    %p70 = por %p68, %p69
    %p72 = scmp.ne.s32.totalorder %s57, %s71
    %p73 = scmp.eq.s32.totalorder %s26, 0
    %p74 = por %p72, %p73
    %s76 = sadd.s32 %s75, 1
    %p79 = scmp.eq.s32.totalorder %s20, 1
    %p80 = scmp.ne.s32.totalorder %s75, %s77
    %p81 = scmp.eq.s32.totalorder %s20, 0
    %p82 = por %p80, %p81
    %p83 = scmp.ne.s32.totalorder %s75, %s77
    %p84 = scmp.eq.s32.totalorder %s25, 1
    %p85 = por %p83, %p84
    %p86 = scmp.ne.s32.totalorder %s77, %s78
    %p87 = scmp.eq.s32.totalorder %s25, 0
    %p88 = por %p86, %p87
    %p89 = scmp.ne.s32.totalorder %s77, %s78
    %p90 = scmp.eq.s32.totalorder %s26, 1
    %p91 = por %p89, %p90
    %p93 = scmp.ne.s32.totalorder %s78, %s92
    %p94 = scmp.eq.s32.totalorder %s26, 0
    %p95 = por %p93, %p94
    %s97 = sadd.s32 %s96, 1
    %p100 = scmp.eq.s32.totalorder %s20, 1
    %p101 = scmp.ne.s32.totalorder %s96, %s98
    %p102 = scmp.eq.s32.totalorder %s20, 0
    %p103 = por %p101, %p102
    %p104 = scmp.ne.s32.totalorder %s96, %s98
    %p105 = scmp.eq.s32.totalorder %s25, 1
    %p106 = por %p104, %p105
    %p107 = scmp.ne.s32.totalorder %s98, %s99
    %p108 = scmp.eq.s32.totalorder %s25, 0
    %p109 = por %p107, %p108
    %p110 = scmp.ne.s32.totalorder %s98, %s99
    %p111 = scmp.eq.s32.totalorder %s26, 1
    %p112 = por %p110, %p111
    %p114 = scmp.ne.s32.totalorder %s99, %s113
    %p115 = scmp.eq.s32.totalorder %s26, 0
    %p116 = por %p114, %p115
    %s118 = sadd.s32 %s117, 1
    %p121 = scmp.eq.s32.totalorder %s20, 1
    %p122 = scmp.ne.s32.totalorder %s117, %s119
    %p123 = scmp.eq.s32.totalorder %s20, 0
    %p124 = por %p122, %p123
    %p125 = scmp.ne.s32.totalorder %s117, %s119
    %p126 = scmp.eq.s32.totalorder %s25, 1
    %p127 = por %p125, %p126
    %p128 = scmp.ne.s32.totalorder %s119, %s120
    %p129 = scmp.eq.s32.totalorder %s25, 0
    %p130 = por %p128, %p129
    %p131 = scmp.ne.s32.totalorder %s119, %s120
    %p132 = scmp.eq.s32.totalorder %s26, 1
    %p133 = por %p131, %p132
    %p135 = scmp.ne.s32.totalorder %s120, %s134
    %p136 = scmp.eq.s32.totalorder %s26, 0
    %p137 = por %p135, %p136
    %s139 = sadd.s32 %s138, 1
    %p142 = scmp.eq.s32.totalorder %s20, 1
    %p143 = scmp.ne.s32.totalorder %s138, %s140
    %p144 = scmp.eq.s32.totalorder %s20, 0
    %p145 = por %p143, %p144
    %p146 = scmp.ne.s32.totalorder %s138, %s140
    %p147 = scmp.eq.s32.totalorder %s25, 1
    %p148 = por %p146, %p147
    %p149 = scmp.ne.s32.totalorder %s140, %s141
    %p150 = scmp.eq.s32.totalorder %s25, 0
    %p151 = por %p149, %p150
    %p152 = scmp.ne.s32.totalorder %s140, %s141
    %p153 = scmp.eq.s32.totalorder %s26, 1
    %p154 = por %p152, %p153
    %p156 = scmp.ne.s32.totalorder %s141, %s155
    %p157 = scmp.eq.s32.totalorder %s26, 0
    %p158 = por %p156, %p157
    %s160 = sadd.s32 %s159, 1
    %p163 = scmp.eq.s32.totalorder %s20, 1
    %p164 = scmp.ne.s32.totalorder %s159, %s161
    %p165 = scmp.eq.s32.totalorder %s20, 0
    %p166 = por %p164, %p165
    %p167 = scmp.ne.s32.totalorder %s159, %s161
    %p168 = scmp.eq.s32.totalorder %s25, 1
    %p169 = por %p167, %p168
    %p170 = scmp.ne.s32.totalorder %s161, %s162
    %p171 = scmp.eq.s32.totalorder %s25, 0
    %p172 = por %p170, %p171
    %p173 = scmp.ne.s32.totalorder %s161, %s162
    %p174 = scmp.eq.s32.totalorder %s26, 1
    %p175 = por %p173, %p174
    %p177 = scmp.ne.s32.totalorder %s162, %s176
    %p178 = scmp.eq.s32.totalorder %s26, 0
    %p179 = por %p177, %p178
    %s181 = sadd.s32 %s180, 1
    %p184 = scmp.eq.s32.totalorder %s20, 1
    %p185 = scmp.ne.s32.totalorder %s180, %s182
    %p186 = scmp.eq.s32.totalorder %s20, 0
    %p187 = por %p185, %p186
    %p188 = scmp.ne.s32.totalorder %s180, %s182
    %p189 = scmp.eq.s32.totalorder %s25, 1
    %p190 = por %p188, %p189
    %p191 = scmp.ne.s32.totalorder %s182, %s183
    %p192 = scmp.eq.s32.totalorder %s25, 0
    %p193 = por %p191, %p192
    %p194 = scmp.ne.s32.totalorder %s182, %s183
    %p195 = scmp.eq.s32.totalorder %s26, 1
    %p196 = por %p194, %p195
    %p198 = scmp.ne.s32.totalorder %s183, %s197
    %p199 = scmp.eq.s32.totalorder %s26, 0
    %p200 = por %p198, %p199
    %s202 = sadd.s32 %s201, 1
    %p205 = scmp.eq.s32.totalorder %s20, 1
    %p206 = scmp.ne.s32.totalorder %s201, %s203
    %p207 = scmp.eq.s32.totalorder %s20, 0
    %p208 = por %p206, %p207
    %p209 = scmp.ne.s32.totalorder %s201, %s203
    %p210 = scmp.eq.s32.totalorder %s25, 1
    %p211 = por %p209, %p210
    %p212 = scmp.ne.s32.totalorder %s203, %s204
    %p213 = scmp.eq.s32.totalorder %s25, 0
    %p214 = por %p212, %p213
    %p215 = scmp.ne.s32.totalorder %s203, %s204
    %p216 = scmp.eq.s32.totalorder %s26, 1
    %p217 = por %p215, %p216
    %p219 = scmp.ne.s32.totalorder %s204, %s218
    %p220 = scmp.eq.s32.totalorder %s26, 0
    %p221 = por %p219, %p220
    %s222 = ssub.s32 %s20, %s27
    %p223 = scmp.eq.s32.totalorder %s222, 0
    %s225 = sadd.s32 %s224, 1
    %s226 = scalar_select %p223, %s224, %s225
    %p229 = pneg %p223
    %p230 = scmp.eq.s32.totalorder %s20, 1
    %p231 = por %p229, %p230
    %p232 = scmp.ne.s32.totalorder %s224, %s227
    %p233 = scmp.eq.s32.totalorder %s20, 0
    %p234 = por %p232, %p233
    %p235 = scmp.ne.s32.totalorder %s224, %s227
    %p236 = scmp.eq.s32.totalorder %s25, 1
    %p237 = por %p235, %p236
    %p238 = scmp.ne.s32.totalorder %s227, %s228
    %p239 = scmp.eq.s32.totalorder %s25, 0
    %p240 = por %p238, %p239
    %p241 = scmp.ne.s32.totalorder %s227, %s228
    %p242 = scmp.eq.s32.totalorder %s26, 1
    %p243 = por %p241, %p242
    %p245 = scmp.ne.s32.totalorder %s228, %s244
    %p246 = scmp.eq.s32.totalorder %s26, 0
    %p247 = por %p245, %p246
    %s248 = ssub.s32 %s20, %s27
    %p249 = scmp.eq.s32.totalorder %s248, 0
    %s251 = sadd.s32 %s250, 1
    %s252 = scalar_select %p249, %s250, %s251
    %p255 = pneg %p249
    %p256 = scmp.eq.s32.totalorder %s20, 1
    %p257 = por %p255, %p256
    %p258 = scmp.ne.s32.totalorder %s250, %s253
    %p259 = scmp.eq.s32.totalorder %s20, 0
    %p260 = por %p258, %p259
    %p261 = scmp.ne.s32.totalorder %s250, %s253
    %p262 = scmp.eq.s32.totalorder %s25, 1
    %p263 = por %p261, %p262
    %p264 = scmp.ne.s32.totalorder %s253, %s254
    %p265 = scmp.eq.s32.totalorder %s25, 0
    %p266 = por %p264, %p265
    %p267 = scmp.ne.s32.totalorder %s253, %s254
    %p268 = scmp.eq.s32.totalorder %s26, 1
    %p269 = por %p267, %p268
    %p271 = scmp.ne.s32.totalorder %s254, %s270
    %p272 = scmp.eq.s32.totalorder %s26, 0
    %p273 = por %p271, %p272
    %s274 = ssub.s32 %s20, %s27
    %p275 = scmp.eq.s32.totalorder %s274, 0
    %s277 = sadd.s32 %s276, 1
    %s278 = scalar_select %p275, %s276, %s277
    %p281 = pneg %p275
    %p282 = scmp.eq.s32.totalorder %s20, 1
    %p283 = por %p281, %p282
    %p284 = scmp.ne.s32.totalorder %s276, %s279
    %p285 = scmp.eq.s32.totalorder %s20, 0
    %p286 = por %p284, %p285
    %p287 = scmp.ne.s32.totalorder %s276, %s279
    %p288 = scmp.eq.s32.totalorder %s25, 1
    %p289 = por %p287, %p288
    %p290 = scmp.ne.s32.totalorder %s279, %s280
    %p291 = scmp.eq.s32.totalorder %s25, 0
    %p292 = por %p290, %p291
    %p293 = scmp.ne.s32.totalorder %s279, %s280
    %p294 = scmp.eq.s32.totalorder %s26, 1
    %p295 = por %p293, %p294
    %p297 = scmp.ne.s32.totalorder %s280, %s296
    %p298 = scmp.eq.s32.totalorder %s26, 0
    %p299 = por %p297, %p298
    %s300 = ssub.s32 %s20, %s27
    %p301 = scmp.eq.s32.totalorder %s300, 0
    %s303 = sadd.s32 %s302, 1
    %s304 = scalar_select %p301, %s302, %s303
    %p307 = pneg %p301
    %p308 = scmp.eq.s32.totalorder %s20, 1
    %p309 = por %p307, %p308
    %p310 = scmp.ne.s32.totalorder %s302, %s305
    %p311 = scmp.eq.s32.totalorder %s20, 0
    %p312 = por %p310, %p311
    %p313 = scmp.ne.s32.totalorder %s302, %s305
    %p314 = scmp.eq.s32.totalorder %s25, 1
    %p315 = por %p313, %p314
    %p316 = scmp.ne.s32.totalorder %s305, %s306
    %p317 = scmp.eq.s32.totalorder %s25, 0
    %p318 = por %p316, %p317
    %p319 = scmp.ne.s32.totalorder %s305, %s306
    %p320 = scmp.eq.s32.totalorder %s26, 1
    %p321 = por %p319, %p320
    %p323 = scmp.ne.s32.totalorder %s306, %s322
    %p324 = scmp.eq.s32.totalorder %s26, 0
    %p325 = por %p323, %p324
    %s326 = ssub.s32 %s20, %s27
    %p327 = scmp.eq.s32.totalorder %s326, 0
    %s329 = sadd.s32 %s328, 1
    %s330 = scalar_select %p327, %s328, %s329
    %p333 = pneg %p327
    %p334 = scmp.eq.s32.totalorder %s20, 1
    %p335 = por %p333, %p334
    %p336 = scmp.ne.s32.totalorder %s328, %s331
    %p337 = scmp.eq.s32.totalorder %s20, 0
    %p338 = por %p336, %p337
    %p339 = scmp.ne.s32.totalorder %s328, %s331
    %p340 = scmp.eq.s32.totalorder %s25, 1
    %p341 = por %p339, %p340
    %p342 = scmp.ne.s32.totalorder %s331, %s332
    %p343 = scmp.eq.s32.totalorder %s25, 0
    %p344 = por %p342, %p343
    %p345 = scmp.ne.s32.totalorder %s331, %s332
    %p346 = scmp.eq.s32.totalorder %s26, 1
    %p347 = por %p345, %p346
    %p349 = scmp.ne.s32.totalorder %s332, %s348
    %p350 = scmp.eq.s32.totalorder %s26, 0
    %p351 = por %p349, %p350
    %p352 = scmp.le.s32.totalorder 1, %s20
    %p353 = scmp.lt.s32.totalorder %s20, 3
    %p354 = pnand %p352, %p353
    %p355 = pneg %p354
    // Predicated region
    $region9: #{regression_fpn_forward.1} parent=5 // pred_check
      _
    $region10: #{regression_fpn_forward.1} parent=5 // pred_check_branch
      %357 = sbr.rel (%p354) target = $region12
    $region11: #{regression_fpn_forward.1} parent=5 // pred_region
      %s358 = ssub.s32 %s20, 1
      // Predicated region
      $region13: #{regression_fpn_forward.1} parent=11 // pred_check
        %p359 = pneg %p67
      $region14: #{regression_fpn_forward.1} parent=11 // pred_check_branch
        %361 = sbr.rel (%p359) target = $region16
      $region15: #{regression_fpn_forward.1} parent=11 // pred_region
        _
      $region16: #{regression_fpn_forward.1} parent=11 // pred_fallthru
        _
      // Predicated region
      $region17: #{regression_fpn_forward.1} parent=11 // pred_check
        %p362 = pneg %p88
      $region18: #{regression_fpn_forward.1} parent=11 // pred_check_branch
        %364 = sbr.rel (%p362) target = $region20
      $region19: #{regression_fpn_forward.1} parent=11 // pred_region
        _
      $region20: #{regression_fpn_forward.1} parent=11 // pred_fallthru
        _
      // Predicated region
      $region21: #{regression_fpn_forward.1} parent=11 // pred_check
        %p365 = pneg %p109
      $region22: #{regression_fpn_forward.1} parent=11 // pred_check_branch
        %367 = sbr.rel (%p365) target = $region24
      $region23: #{regression_fpn_forward.1} parent=11 // pred_region
        _
      $region24: #{regression_fpn_forward.1} parent=11 // pred_fallthru
        _
      // Predicated region
      $region25: #{regression_fpn_forward.1} parent=11 // pred_check
        %p368 = pneg %p130
      $region26: #{regression_fpn_forward.1} parent=11 // pred_check_branch
        %370 = sbr.rel (%p368) target = $region28
      $region27: #{regression_fpn_forward.1} parent=11 // pred_region
        _
      $region28: #{regression_fpn_forward.1} parent=11 // pred_fallthru
        _
      // Predicated region
      $region29: #{regression_fpn_forward.1} parent=11 // pred_check
        %p371 = pneg %p151
      $region30: #{regression_fpn_forward.1} parent=11 // pred_check_branch
        %373 = sbr.rel (%p371) target = $region32
      $region31: #{regression_fpn_forward.1} parent=11 // pred_region
        _
      $region32: #{regression_fpn_forward.1} parent=11 // pred_fallthru
        _
      // Predicated region
      $region33: #{regression_fpn_forward.1} parent=11 // pred_check
        %p374 = pneg %p172
      $region34: #{regression_fpn_forward.1} parent=11 // pred_check_branch
        %376 = sbr.rel (%p374) target = $region36
      $region35: #{regression_fpn_forward.1} parent=11 // pred_region
        _
      $region36: #{regression_fpn_forward.1} parent=11 // pred_fallthru
        _
      // Predicated region
      $region37: #{regression_fpn_forward.1} parent=11 // pred_check
        %p377 = pneg %p193
      $region38: #{regression_fpn_forward.1} parent=11 // pred_check_branch
        %379 = sbr.rel (%p377) target = $region40
      $region39: #{regression_fpn_forward.1} parent=11 // pred_region
        _
      $region40: #{regression_fpn_forward.1} parent=11 // pred_fallthru
        _
      // Predicated region
      $region41: #{regression_fpn_forward.1} parent=11 // pred_check
        %p380 = pneg %p214
      $region42: #{regression_fpn_forward.1} parent=11 // pred_check_branch
        %382 = sbr.rel (%p380) target = $region44
      $region43: #{regression_fpn_forward.1} parent=11 // pred_region
        _
      $region44: #{regression_fpn_forward.1} parent=11 // pred_fallthru
        _
    $region12: #{regression_fpn_forward.1} parent=5 // pred_fallthru
      _
    %p383 = scmp.lt.s32.totalorder %s20, 2
    // Predicated region
    $region45: #{regression_fpn_forward.1} parent=5 // pred_check
      %p384 = pneg %p383
    $region46: #{regression_fpn_forward.1} parent=5 // pred_check_branch
      %386 = sbr.rel (%p384) target = $region48
    $region47: #{regression_fpn_forward.1} parent=5 // pred_region
      // Predicated region
      $region49: #{regression_fpn_forward.1} parent=47 // pred_check
        %p387 = pneg %p40
      $region50: #{regression_fpn_forward.1} parent=47 // pred_check_branch
        %389 = sbr.rel (%p387) target = $region52
      $region51: #{regression_fpn_forward.1} parent=47 // pred_region
        %p390 = scmp.lt.s32.totalorder %s20, 1
        %s391 = scalar_select %p390, %s20, 1
        %s392 = smul.addr %s391, 32
        %s393 = smul.addr %s392, 4
        %s394 = scalar_lea.vmem %s0, %s393
      $region52: #{regression_fpn_forward.1} parent=47 // pred_fallthru
        _
    $region48: #{regression_fpn_forward.1} parent=5 // pred_fallthru
      _
    %p395 = scmp.le.s32.totalorder 1, %s20
    %p396 = scmp.lt.s32.totalorder %s20, 3
    %p397 = pnand %p395, %p396
    %p398 = pneg %p397
    // Predicated region
    $region53: #{regression_fpn_forward.1} parent=5 // pred_check
      _
    $region54: #{regression_fpn_forward.1} parent=5 // pred_check_branch
      %400 = sbr.rel (%p397) target = $region56
    $region55: #{regression_fpn_forward.1} parent=5 // pred_region
      %s401 = ssub.s32 %s20, 1
      %p402 = scmp.lt.s32.totalorder %s25, 1
      %s403 = scalar_select %p402, %s25, 1
      %s404 = smul.addr %s403, 32
      %s405 = smul.addr %s404, 4
      %s406 = scalar_lea.vmem %s0, %s405
      %p407 = pneg %p46
      %p408 = pneg %p43
      %p409 = pneg %p67
      %p410 = pneg %p64
      %p411 = pneg %p88
      %p412 = pneg %p85
      %p413 = pneg %p109
      %p414 = pneg %p106
      %p415 = pneg %p130
      %p416 = pneg %p127
      %p417 = pneg %p151
      %p418 = pneg %p148
      %p419 = pneg %p172
      %p420 = pneg %p169
      %p421 = pneg %p193
      %p422 = pneg %p190
      %p423 = pneg %p214
      %p424 = pneg %p211
      %p425 = pneg %p240
      %p426 = pneg %p237
      %p427 = scmp.lt.s32.totalorder %s25, 1
      %s428 = scalar_select %p427, %s25, 1
      %s429 = smul.addr %s428, 64
      %s430 = smul.addr %s429, 4
      %s431 = scalar_lea.vmem %s9, %s430
      %p432 = pneg %p266
      %p433 = pneg %p263
      %p434 = scmp.lt.s32.totalorder %s25, 1
      %s435 = scalar_select %p434, %s25, 1
      %s436 = smul.addr %s435, 32
      %s437 = smul.addr %s436, 4
      %s438 = scalar_lea.vmem %s10, %s437
      %p439 = pneg %p292
      %p440 = pneg %p289
      %p441 = scmp.lt.s32.totalorder %s25, 1
      %s442 = scalar_select %p441, %s25, 1
      %s443 = smul.addr %s442, 32
      %s444 = smul.addr %s443, 4
      %s445 = scalar_lea.vmem %s11, %s444
      %p446 = pneg %p318
      %p447 = pneg %p315
      %p448 = scmp.lt.s32.totalorder %s25, 1
      %s449 = scalar_select %p448, %s25, 1
      %s450 = smul.addr %s449, 32
      %s451 = smul.addr %s450, 4
      %s452 = scalar_lea.vmem %s12, %s451
      %p453 = pneg %p344
      %p454 = pneg %p341
      %p455 = scmp.lt.s32.totalorder %s25, 1
      %s456 = scalar_select %p455, %s25, 1
      %s457 = smul.addr %s456, 32
      %s458 = smul.addr %s457, 8
      %s459 = scalar_lea.vmem %s13, %s458
      %p460 = scmp.lt.s32.totalorder %s25, 1
      %s461 = scalar_select %p460, %s25, 1
      %s462 = smul.addr %s461, 32
      %s463 = smul.addr %s462, 4
      %s464 = scalar_lea.vmem %s0, %s463
      %p465 = scmp.lt.s32.totalorder %s25, 1
      %s466 = scalar_select %p465, %s25, 1
      %s467 = smul.addr %s466, 64
      %s468 = smul.addr %s467, 4
      %s469 = scalar_lea.vmem %s9, %s468
      %p470 = scmp.lt.s32.totalorder %s25, 1
      %s471 = scalar_select %p470, %s25, 1
      %s472 = smul.addr %s471, 32
      %s473 = smul.addr %s472, 4
      %s474 = scalar_lea.vmem %s10, %s473
      %p475 = scmp.lt.s32.totalorder %s25, 1
      %s476 = scalar_select %p475, %s25, 1
      %s477 = smul.addr %s476, 32
      %s478 = smul.addr %s477, 4
      %s479 = scalar_lea.vmem %s11, %s478
      %p480 = scmp.lt.s32.totalorder %s25, 1
      %s481 = scalar_select %p480, %s25, 1
      %s482 = smul.addr %s481, 32
      %s483 = smul.addr %s482, 4
      %s484 = scalar_lea.vmem %s12, %s483
      %p485 = scmp.lt.s32.totalorder %s25, 1
      %s486 = scalar_select %p485, %s25, 1
      %s487 = smul.addr %s486, 32
      %s488 = smul.addr %s487, 8
      %s489 = scalar_lea.vmem %s13, %s488
      %v491 = vld [vmem:[%s5] sm:$0xff]
      %v492 = vld [vmem:[%s5 + $0x8] sm:$0xff]
      %v493 = vld [vmem:[%s5 + $0x10] sm:$0xff]
      %v494 = vld [vmem:[%s5 + $0x18] sm:$0xff]
      %v495 = vld [vmem:[%s5 + $0x20] sm:$0xff]
      %v496 = vld [vmem:[%s5 + $0x28] sm:$0xff]
      %v497 = vld [vmem:[%s5 + $0x30] sm:$0xff]
      %v498 = vld [vmem:[%s5 + $0x38] sm:$0xff]
      %v499 = vld [vmem:[%s5 + $0x40] sm:$0xff]
      %v500 = vld [vmem:[%s5 + $0x48] sm:$0xff]
      %v501 = vld [vmem:[%s5 + $0x50] sm:$0xff]
      %v502 = vld [vmem:[%s5 + $0x58] sm:$0xff]
      %v503 = vld [vmem:[%s5 + $0x60] sm:$0xff]
      %v504 = vld [vmem:[%s5 + $0x68] sm:$0xff]
      %v505 = vld [vmem:[%s5 + $0x70] sm:$0xff]
      %v506 = vld [vmem:[%s5 + $0x78] sm:$0xff]
      %v507 = vld [vmem:[%s5 + $0x80] sm:$0xff]
      %v508 = vld [vmem:[%s5 + $0x88] sm:$0xff]
      %v509 = vld [vmem:[%s5 + $0x90] sm:$0xff]
      %v510 = vld [vmem:[%s5 + $0x98] sm:$0xff]
      %v511 = vld [vmem:[%s5 + $0xa0] sm:$0xff]
      %v512 = vld [vmem:[%s5 + $0xa8] sm:$0xff]
      %v513 = vld [vmem:[%s5 + $0xb0] sm:$0xff]
      %v514 = vld [vmem:[%s5 + $0xb8] sm:$0xff]
      %v515 = vld [vmem:[%s5 + $0xc0] sm:$0xff]
      %v516 = vld [vmem:[%s5 + $0xc8] sm:$0xff]
      %v517 = vld [vmem:[%s5 + $0xd0] sm:$0xff]
      %v518 = vld [vmem:[%s5 + $0xd8] sm:$0xff]
      %v519 = vld [vmem:[%s5 + $0xe0] sm:$0xff]
      %v520 = vld [vmem:[%s5 + $0xe8] sm:$0xff]
      %v521 = vld [vmem:[%s5 + $0xf0] sm:$0xff]
      %v522 = vld [vmem:[%s5 + $0xf8] sm:$0xff]
      %v523 = vld [vmem:[%s1] sm:$0xf]
      %v524 = vld [vmem:[%s1 + $0x4] sm:$0xf]
      %v525 = vld [vmem:[%s1 + $0x8] sm:$0xf]
      %v526 = vld [vmem:[%s1 + $0xc] sm:$0xf]
      %v527 = vld [vmem:[%s1 + $0x10] sm:$0xf]
      %v528 = vld [vmem:[%s1 + $0x14] sm:$0xf]
      %v529 = vld [vmem:[%s1 + $0x18] sm:$0xf]
      %v530 = vld [vmem:[%s1 + $0x1c] sm:$0xf]
      %v531 = vld [vmem:[%s1 + $0x20] sm:$0xf]
      %v532 = vld [vmem:[%s1 + $0x24] sm:$0xf]
      %v533 = vld [vmem:[%s1 + $0x28] sm:$0xf]
      %v534 = vld [vmem:[%s1 + $0x2c] sm:$0xf]
      %v535 = vld [vmem:[%s1 + $0x30] sm:$0xf]
      %v536 = vld [vmem:[%s1 + $0x34] sm:$0xf]
      %v537 = vld [vmem:[%s1 + $0x38] sm:$0xf]
      %v538 = vld [vmem:[%s1 + $0x3c] sm:$0xf]
      %v539 = vld [vmem:[%s1 + $0x40] sm:$0xf]
      %v540 = vld [vmem:[%s1 + $0x44] sm:$0xf]
      %v541 = vld [vmem:[%s1 + $0x48] sm:$0xf]
      %v542 = vld [vmem:[%s1 + $0x4c] sm:$0xf]
      %v543 = vld [vmem:[%s1 + $0x50] sm:$0xf]
      %v544 = vld [vmem:[%s1 + $0x54] sm:$0xf]
      %v545 = vld [vmem:[%s1 + $0x58] sm:$0xf]
      %v546 = vld [vmem:[%s1 + $0x5c] sm:$0xf]
      %v547 = vld [vmem:[%s1 + $0x60] sm:$0xf]
      %v548 = vld [vmem:[%s1 + $0x64] sm:$0xf]
      %v549 = vld [vmem:[%s1 + $0x68] sm:$0xf]
      %v550 = vld [vmem:[%s1 + $0x6c] sm:$0xf]
      %v551 = vld [vmem:[%s1 + $0x70] sm:$0xf]
      %v552 = vld [vmem:[%s1 + $0x74] sm:$0xf]
      %v553 = vld [vmem:[%s1 + $0x78] sm:$0xf]
      %v554 = vld [vmem:[%s1 + $0x7c] sm:$0xf]
      %v555 = vld [vmem:[%s464] sm:$0xff]
      %v556 = vld [vmem:[%s464 + $0x8] sm:$0xff]
      %v557 = vld [vmem:[%s464 + $0x10] sm:$0xff]
      %v558 = vld [vmem:[%s464 + $0x18] sm:$0xff]
      %v559 = vld [vmem:[%s464 + $0x20] sm:$0xff]
      %v560 = vld [vmem:[%s464 + $0x28] sm:$0xff]
      %v561 = vld [vmem:[%s464 + $0x30] sm:$0xff]
      %v562 = vld [vmem:[%s464 + $0x38] sm:$0xff]
      %v563 = vld [vmem:[%s464 + $0x40] sm:$0xff]
      %v564 = vld [vmem:[%s464 + $0x48] sm:$0xff]
      %v565 = vld [vmem:[%s464 + $0x50] sm:$0xff]
      %v566 = vld [vmem:[%s464 + $0x58] sm:$0xff]
      %v567 = vld [vmem:[%s464 + $0x60] sm:$0xff]
      %v568 = vld [vmem:[%s464 + $0x68] sm:$0xff]
      %v569 = vld [vmem:[%s464 + $0x70] sm:$0xff]
      %v570 = vld [vmem:[%s464 + $0x78] sm:$0xff]
      %572 = vset.pattern.permute.xlu0 0
      %573 = vperm.xlu0 %572, %v491
      %v574 = vpop.permute.xlu0 %573
      %577 = vset.pattern.permute.xlu0 0
      %578 = vperm.xlu0 %577, %v492
      %v579 = vpop.permute.xlu0 %578
      %582 = vset.pattern.permute.xlu0 0
      %583 = vperm.xlu0 %582, %v493
      %v584 = vpop.permute.xlu0 %583
      %587 = vset.pattern.permute.xlu0 0
      %588 = vperm.xlu0 %587, %v494
      %v589 = vpop.permute.xlu0 %588
      %592 = vset.pattern.permute.xlu0 0
      %593 = vperm.xlu0 %592, %v495
      %v594 = vpop.permute.xlu0 %593
      %597 = vset.pattern.permute.xlu0 0
      %598 = vperm.xlu0 %597, %v496
      %v599 = vpop.permute.xlu0 %598
      %602 = vset.pattern.permute.xlu0 0
      %603 = vperm.xlu0 %602, %v497
      %v604 = vpop.permute.xlu0 %603
      %607 = vset.pattern.permute.xlu0 0
      %608 = vperm.xlu0 %607, %v498
      %v609 = vpop.permute.xlu0 %608
      %612 = vset.pattern.permute.xlu0 0
      %613 = vperm.xlu0 %612, %v499
      %v614 = vpop.permute.xlu0 %613
      %617 = vset.pattern.permute.xlu0 0
      %618 = vperm.xlu0 %617, %v500
      %v619 = vpop.permute.xlu0 %618
      %622 = vset.pattern.permute.xlu0 0
      %623 = vperm.xlu0 %622, %v501
      %v624 = vpop.permute.xlu0 %623
      %627 = vset.pattern.permute.xlu0 0
      %628 = vperm.xlu0 %627, %v502
      %v629 = vpop.permute.xlu0 %628
      %632 = vset.pattern.permute.xlu0 0
      %633 = vperm.xlu0 %632, %v503
      %v634 = vpop.permute.xlu0 %633
      %637 = vset.pattern.permute.xlu0 0
      %638 = vperm.xlu0 %637, %v504
      %v639 = vpop.permute.xlu0 %638
      %642 = vset.pattern.permute.xlu0 0
      %643 = vperm.xlu0 %642, %v505
      %v644 = vpop.permute.xlu0 %643
      %647 = vset.pattern.permute.xlu0 0
      %648 = vperm.xlu0 %647, %v506
      %v649 = vpop.permute.xlu0 %648
      %652 = vset.pattern.permute.xlu0 0
      %653 = vperm.xlu0 %652, %v507
      %v654 = vpop.permute.xlu0 %653
      %657 = vset.pattern.permute.xlu0 0
      %658 = vperm.xlu0 %657, %v508
      %v659 = vpop.permute.xlu0 %658
      %662 = vset.pattern.permute.xlu0 0
      %663 = vperm.xlu0 %662, %v509
      %v664 = vpop.permute.xlu0 %663
      %667 = vset.pattern.permute.xlu0 0
      %668 = vperm.xlu0 %667, %v510
      %v669 = vpop.permute.xlu0 %668
      %672 = vset.pattern.permute.xlu0 0
      %673 = vperm.xlu0 %672, %v511
      %v674 = vpop.permute.xlu0 %673
      %677 = vset.pattern.permute.xlu0 0
      %678 = vperm.xlu0 %677, %v512
      %v679 = vpop.permute.xlu0 %678
      %682 = vset.pattern.permute.xlu0 0
      %683 = vperm.xlu0 %682, %v513
      %v684 = vpop.permute.xlu0 %683
      %687 = vset.pattern.permute.xlu0 0
      %688 = vperm.xlu0 %687, %v514
      %v689 = vpop.permute.xlu0 %688
      %692 = vset.pattern.permute.xlu0 0
      %693 = vperm.xlu0 %692, %v515
      %v694 = vpop.permute.xlu0 %693
      %697 = vset.pattern.permute.xlu0 0
      %698 = vperm.xlu0 %697, %v516
      %v699 = vpop.permute.xlu0 %698
      %702 = vset.pattern.permute.xlu0 0
      %703 = vperm.xlu0 %702, %v517
      %v704 = vpop.permute.xlu0 %703
      %707 = vset.pattern.permute.xlu0 0
      %708 = vperm.xlu0 %707, %v518
      %v709 = vpop.permute.xlu0 %708
      %712 = vset.pattern.permute.xlu0 0
      %713 = vperm.xlu0 %712, %v519
      %v714 = vpop.permute.xlu0 %713
      %717 = vset.pattern.permute.xlu0 0
      %718 = vperm.xlu0 %717, %v520
      %v719 = vpop.permute.xlu0 %718
      %722 = vset.pattern.permute.xlu0 0
      %723 = vperm.xlu0 %722, %v521
      %v724 = vpop.permute.xlu0 %723
      %727 = vset.pattern.permute.xlu0 0
      %728 = vperm.xlu0 %727, %v522
      %v729 = vpop.permute.xlu0 %728
      %v763 = vunpack.c.l.b16 %v523
      %v764 = vunpack.c.l.b16 %v524
      %v765 = vunpack.c.l.b16 %v525
      %v766 = vunpack.c.l.b16 %v526
      %v767 = vunpack.c.l.b16 %v527
      %v768 = vunpack.c.l.b16 %v528
      %v769 = vunpack.c.l.b16 %v529
      %v770 = vunpack.c.l.b16 %v530
      %v771 = vunpack.c.l.b16 %v531
      %v772 = vunpack.c.l.b16 %v532
      %v773 = vunpack.c.l.b16 %v533
      %v774 = vunpack.c.l.b16 %v534
      %v775 = vunpack.c.l.b16 %v535
      %v776 = vunpack.c.l.b16 %v536
      %v777 = vunpack.c.l.b16 %v537
      %v778 = vunpack.c.l.b16 %v538
      %v779 = vunpack.c.l.b16 %v539
      %v780 = vunpack.c.l.b16 %v540
      %v781 = vunpack.c.l.b16 %v541
      %v782 = vunpack.c.l.b16 %v542
      %v783 = vunpack.c.l.b16 %v543
      %v784 = vunpack.c.l.b16 %v544
      %v785 = vunpack.c.l.b16 %v545
      %v786 = vunpack.c.l.b16 %v546
      %v787 = vunpack.c.l.b16 %v547
      %v788 = vunpack.c.l.b16 %v548
      %v789 = vunpack.c.l.b16 %v549
      %v790 = vunpack.c.l.b16 %v550
      %v791 = vunpack.c.l.b16 %v551
      %v792 = vunpack.c.l.b16 %v552
      %v793 = vunpack.c.l.b16 %v553
      %v794 = vunpack.c.l.b16 %v554
      %v795 = vpack.c.b16 %v764, %v763
      %v796 = vpack.c.b16 %v766, %v765
      %v797 = vpack.c.b16 %v768, %v767
      %v798 = vpack.c.b16 %v770, %v769
      %v799 = vpack.c.b16 %v772, %v771
      %v800 = vpack.c.b16 %v774, %v773
      %v801 = vpack.c.b16 %v776, %v775
      %v802 = vpack.c.b16 %v778, %v777
      %v803 = vpack.c.b16 %v780, %v779
      %v804 = vpack.c.b16 %v782, %v781
      %v805 = vpack.c.b16 %v784, %v783
      %v806 = vpack.c.b16 %v786, %v785
      %v807 = vpack.c.b16 %v788, %v787
      %v808 = vpack.c.b16 %v790, %v789
      %v809 = vpack.c.b16 %v792, %v791
      %v810 = vpack.c.b16 %v794, %v793
      %v843 = vunpack.c.l.b16 %v555
      %v844 = vunpack.c.h.b16 %v555
      %v845 = vunpack.c.l.b16 %v556
      %v846 = vunpack.c.h.b16 %v556
      %v847 = vunpack.c.l.b16 %v557
      %v848 = vunpack.c.h.b16 %v557
      %v849 = vunpack.c.l.b16 %v558
      %v850 = vunpack.c.h.b16 %v558
      %v851 = vunpack.c.l.b16 %v559
      %v852 = vunpack.c.h.b16 %v559
      %v853 = vunpack.c.l.b16 %v560
      %v854 = vunpack.c.h.b16 %v560
      %v855 = vunpack.c.l.b16 %v561
      %v856 = vunpack.c.h.b16 %v561
      %v857 = vunpack.c.l.b16 %v562
      %v858 = vunpack.c.h.b16 %v562
      %v859 = vunpack.c.l.b16 %v563
      %v860 = vunpack.c.h.b16 %v563
      %v861 = vunpack.c.l.b16 %v564
      %v862 = vunpack.c.h.b16 %v564
      %v863 = vunpack.c.l.b16 %v565
      %v864 = vunpack.c.h.b16 %v565
      %v865 = vunpack.c.l.b16 %v566
      %v866 = vunpack.c.h.b16 %v566
      %v867 = vunpack.c.l.b16 %v567
      %v868 = vunpack.c.h.b16 %v567
      %v869 = vunpack.c.l.b16 %v568
      %v870 = vunpack.c.h.b16 %v568
      %v871 = vunpack.c.l.b16 %v569
      %v872 = vunpack.c.h.b16 %v569
      %v873 = vunpack.c.l.b16 %v570
      %v874 = vunpack.c.h.b16 %v570
      %v875 = vpack.c.b16 %v845, %v843
      %v876 = vpack.c.b16 %v846, %v844
      %v877 = vpack.c.b16 %v849, %v847
      %v878 = vpack.c.b16 %v850, %v848
      %v879 = vpack.c.b16 %v853, %v851
      %v880 = vpack.c.b16 %v854, %v852
      %v881 = vpack.c.b16 %v857, %v855
      %v882 = vpack.c.b16 %v858, %v856
      %v883 = vpack.c.b16 %v861, %v859
      %v884 = vpack.c.b16 %v862, %v860
      %v885 = vpack.c.b16 %v865, %v863
      %v886 = vpack.c.b16 %v866, %v864
      %v887 = vpack.c.b16 %v869, %v867
      %v888 = vpack.c.b16 %v870, %v868
      %v889 = vpack.c.b16 %v873, %v871
      %v890 = vpack.c.b16 %v874, %v872
      %907 = vmatprep.subr.bf16.mxu0 %v876
      %908 = vmatpush1.bf16.msra.mxu0 %v875
      %909 = vmatprep.subr.bf16.mxu0 %v878
      %910 = vmatpush1.bf16.msra.mxu0 %v877
      %911 = vmatprep.subr.bf16.mxu0 %v880
      %912 = vmatpush1.bf16.msra.mxu0 %v879
      %913 = vmatprep.subr.bf16.mxu0 %v882
      %914 = vmatpush1.bf16.msra.mxu0 %v881
      %915 = vmatprep.subr.bf16.mxu0 %v884
      %916 = vmatpush1.bf16.msra.mxu0 %v883
      %917 = vmatprep.subr.bf16.mxu0 %v886
      %918 = vmatpush1.bf16.msra.mxu0 %v885
      %919 = vmatprep.subr.bf16.mxu0 %v888
      %920 = vmatpush1.bf16.msra.mxu0 %v887
      %921 = vmatprep.subr.bf16.mxu0 %v890
      %922 = vmatpush1.bf16.msra.mxu0 %v889
      %923 = vmatprep.subr.bf16.mxu0 0
      %924 = vmatpush1.bf16.msra.mxu0 0
      %925 = vmatprep.subr.bf16.mxu0 0
      %926 = vmatpush1.bf16.msra.mxu0 0
      %927 = vmatprep.subr.bf16.mxu0 0
      %928 = vmatpush1.bf16.msra.mxu0 0
      %929 = vmatprep.subr.bf16.mxu0 0
      %930 = vmatpush1.bf16.msra.mxu0 0
      %931 = vmatprep.subr.bf16.mxu0 0
      %932 = vmatpush1.bf16.msra.mxu0 0
      %933 = vmatprep.subr.bf16.mxu0 0
      %934 = vmatpush1.bf16.msra.mxu0 0
      %935 = vmatprep.subr.bf16.mxu0 0
      %936 = vmatpush1.bf16.msra.mxu0 0
      %937 = vmatprep.subr.bf16.mxu0 0
      %938 = vmatpush1.bf16.msra.mxu0 0
      %939 = vmatprep.mubr.bf16.mxu0 0
      %940 = vmatmul.mubr.bf16.gmra.mrb[0].mxu0 %v795
      %v941 = vpop.f32.mrb[0].mxu0
      %v942 = vadd.f32 %v574, %v941
      %v943 = vpop.f32.mrb[0].mxu0
      %v944 = vadd.f32 %v574, %v943
      %v945 = vpop.f32.mrb[0].mxu0
      %v946 = vadd.f32 %v579, %v945
      %v947 = vpop.f32.mrb[0].mxu0
      %v948 = vadd.f32 %v579, %v947
      %949 = vmatprep.mubr.bf16.mxu0 0
      %950 = vmatmul.mubr.bf16.gmra.mrb[0].mxu0 %v796
      %v951 = vpop.f32.mrb[0].mxu0
      %v952 = vadd.f32 %v584, %v951
      %v953 = vpop.f32.mrb[0].mxu0
      %v954 = vadd.f32 %v584, %v953
      %v955 = vpop.f32.mrb[0].mxu0
      %v956 = vadd.f32 %v589, %v955
      %v957 = vpop.f32.mrb[0].mxu0
      %v958 = vadd.f32 %v589, %v957
      %959 = vmatprep.mubr.bf16.mxu0 0
      %960 = vmatmul.mubr.bf16.gmra.mrb[0].mxu0 %v797
      %v961 = vpop.f32.mrb[0].mxu0
      %v962 = vadd.f32 %v594, %v961
      %v963 = vpop.f32.mrb[0].mxu0
      %v964 = vadd.f32 %v594, %v963
      %v965 = vpop.f32.mrb[0].mxu0
      %v966 = vadd.f32 %v599, %v965
      %v967 = vpop.f32.mrb[0].mxu0
      %v968 = vadd.f32 %v599, %v967
      %969 = vmatprep.mubr.bf16.mxu0 0
      %970 = vmatmul.mubr.bf16.gmra.mrb[0].mxu0 %v798
      %v971 = vpop.f32.mrb[0].mxu0
      %v972 = vadd.f32 %v604, %v971
      %v973 = vpop.f32.mrb[0].mxu0
      %v974 = vadd.f32 %v604, %v973
      %v975 = vpop.f32.mrb[0].mxu0
      %v976 = vadd.f32 %v609, %v975
      %v977 = vpop.f32.mrb[0].mxu0
      %v978 = vadd.f32 %v609, %v977
      %979 = vmatprep.mubr.bf16.mxu0 0
      %980 = vmatmul.mubr.bf16.gmra.mrb[0].mxu0 %v799
      %v981 = vpop.f32.mrb[0].mxu0
      %v982 = vadd.f32 %v614, %v981
      %v983 = vpop.f32.mrb[0].mxu0
      %v984 = vadd.f32 %v614, %v983
      %v985 = vpop.f32.mrb[0].mxu0
      %v986 = vadd.f32 %v619, %v985
      %v987 = vpop.f32.mrb[0].mxu0
      %v988 = vadd.f32 %v619, %v987
      %989 = vmatprep.mubr.bf16.mxu0 0
      %990 = vmatmul.mubr.bf16.gmra.mrb[0].mxu0 %v800
      %v991 = vpop.f32.mrb[0].mxu0
      %v992 = vadd.f32 %v624, %v991
      %v993 = vpop.f32.mrb[0].mxu0
      %v994 = vadd.f32 %v624, %v993
      %v995 = vpop.f32.mrb[0].mxu0
      %v996 = vadd.f32 %v629, %v995
      %v997 = vpop.f32.mrb[0].mxu0
      %v998 = vadd.f32 %v629, %v997
      %999 = vmatprep.mubr.bf16.mxu0 0
      %1000 = vmatmul.mubr.bf16.gmra.mrb[0].mxu0 %v801
      %v1001 = vpop.f32.mrb[0].mxu0
      %v1002 = vadd.f32 %v634, %v1001
      %v1003 = vpop.f32.mrb[0].mxu0
      %v1004 = vadd.f32 %v634, %v1003
      %v1005 = vpop.f32.mrb[0].mxu0
      %v1006 = vadd.f32 %v639, %v1005
      %v1007 = vpop.f32.mrb[0].mxu0
      %v1008 = vadd.f32 %v639, %v1007
      %1009 = vmatprep.mubr.bf16.mxu0 0
      %1010 = vmatmul.mubr.bf16.gmra.mrb[0].mxu0 %v802
      %v1011 = vpop.f32.mrb[0].mxu0
      %v1012 = vadd.f32 %v644, %v1011
      %v1013 = vpop.f32.mrb[0].mxu0
      %v1014 = vadd.f32 %v644, %v1013
      %v1015 = vpop.f32.mrb[0].mxu0
      %v1016 = vadd.f32 %v649, %v1015
      %v1017 = vpop.f32.mrb[0].mxu0
      %v1018 = vadd.f32 %v649, %v1017
      %1019 = vmatprep.mubr.bf16.mxu0 0
      %1020 = vmatmul.mubr.bf16.gmra.mrb[0].mxu0 %v803
      %v1021 = vpop.f32.mrb[0].mxu0
      %v1022 = vadd.f32 %v654, %v1021
      %v1023 = vpop.f32.mrb[0].mxu0
      %v1024 = vadd.f32 %v654, %v1023
      %v1025 = vpop.f32.mrb[0].mxu0
      %v1026 = vadd.f32 %v659, %v1025
      %v1027 = vpop.f32.mrb[0].mxu0
      %v1028 = vadd.f32 %v659, %v1027
      %1029 = vmatprep.mubr.bf16.mxu0 0
      %1030 = vmatmul.mubr.bf16.gmra.mrb[0].mxu0 %v804
      %v1031 = vpop.f32.mrb[0].mxu0
      %v1032 = vadd.f32 %v664, %v1031
      %v1033 = vpop.f32.mrb[0].mxu0
      %v1034 = vadd.f32 %v664, %v1033
      %v1035 = vpop.f32.mrb[0].mxu0
      %v1036 = vadd.f32 %v669, %v1035
      %v1037 = vpop.f32.mrb[0].mxu0
      %v1038 = vadd.f32 %v669, %v1037
      %1039 = vmatprep.mubr.bf16.mxu0 0
      %1040 = vmatmul.mubr.bf16.gmra.mrb[0].mxu0 %v805
      %v1041 = vpop.f32.mrb[0].mxu0
      %v1042 = vadd.f32 %v674, %v1041
      %v1043 = vpop.f32.mrb[0].mxu0
      %v1044 = vadd.f32 %v674, %v1043
      %v1045 = vpop.f32.mrb[0].mxu0
      %v1046 = vadd.f32 %v679, %v1045
      %v1047 = vpop.f32.mrb[0].mxu0
      %v1048 = vadd.f32 %v679, %v1047
      %1049 = vmatprep.mubr.bf16.mxu0 0
      %1050 = vmatmul.mubr.bf16.gmra.mrb[0].mxu0 %v806
      %v1051 = vpop.f32.mrb[0].mxu0
      %v1052 = vadd.f32 %v684, %v1051
      %v1053 = vpop.f32.mrb[0].mxu0
      %v1054 = vadd.f32 %v684, %v1053
      %v1055 = vpop.f32.mrb[0].mxu0
      %v1056 = vadd.f32 %v689, %v1055
      %v1057 = vpop.f32.mrb[0].mxu0
      %v1058 = vadd.f32 %v689, %v1057
      %1059 = vmatprep.mubr.bf16.mxu0 0
      %1060 = vmatmul.mubr.bf16.gmra.mrb[0].mxu0 %v807
      %v1061 = vpop.f32.mrb[0].mxu0
      %v1062 = vadd.f32 %v694, %v1061
      %v1063 = vpop.f32.mrb[0].mxu0
      %v1064 = vadd.f32 %v694, %v1063
      %v1065 = vpop.f32.mrb[0].mxu0
      %v1066 = vadd.f32 %v699, %v1065
      %v1067 = vpop.f32.mrb[0].mxu0
      %v1068 = vadd.f32 %v699, %v1067
      %1069 = vmatprep.mubr.bf16.mxu0 0
      %1070 = vmatmul.mubr.bf16.gmra.mrb[0].mxu0 %v808
      %v1071 = vpop.f32.mrb[0].mxu0
      %v1072 = vadd.f32 %v704, %v1071
      %v1073 = vpop.f32.mrb[0].mxu0
      %v1074 = vadd.f32 %v704, %v1073
      %v1075 = vpop.f32.mrb[0].mxu0
      %v1076 = vadd.f32 %v709, %v1075
      %v1077 = vpop.f32.mrb[0].mxu0
      %v1078 = vadd.f32 %v709, %v1077
      %1079 = vmatprep.mubr.bf16.mxu0 0
      %1080 = vmatmul.mubr.bf16.gmra.mrb[0].mxu0 %v809
      %v1081 = vpop.f32.mrb[0].mxu0
      %v1082 = vadd.f32 %v714, %v1081
      %v1083 = vpop.f32.mrb[0].mxu0
      %v1084 = vadd.f32 %v714, %v1083
      %v1085 = vpop.f32.mrb[0].mxu0
      %v1086 = vadd.f32 %v719, %v1085
      %v1087 = vpop.f32.mrb[0].mxu0
      %v1088 = vadd.f32 %v719, %v1087
      %1089 = vmatprep.mubr.bf16.mxu0 0
      %1090 = vmatmul.mubr.bf16.gmra.mrb[0].mxu0 %v810
      %v1091 = vpop.f32.mrb[0].mxu0
      %v1092 = vadd.f32 %v724, %v1091
      %v1093 = vpop.f32.mrb[0].mxu0
      %v1094 = vadd.f32 %v724, %v1093
      %v1095 = vpop.f32.mrb[0].mxu0
      %v1096 = vadd.f32 %v729, %v1095
      %v1097 = vpop.f32.mrb[0].mxu0
      %v1098 = vadd.f32 %v729, %v1097
      %1099 = vdwg.mxu0
      %v1100 = vmax.f32 %v942, 0.0
      %v1101 = vmax.f32 %v944, 0.0
      %v1102 = vmax.f32 %v946, 0.0
      %v1103 = vmax.f32 %v948, 0.0
      %v1104 = vmax.f32 %v952, 0.0
      %v1105 = vmax.f32 %v954, 0.0
      %v1106 = vmax.f32 %v956, 0.0
      %v1107 = vmax.f32 %v958, 0.0
      %v1108 = vmax.f32 %v962, 0.0
      %v1109 = vmax.f32 %v964, 0.0
      %v1110 = vmax.f32 %v966, 0.0
      %v1111 = vmax.f32 %v968, 0.0
      %v1112 = vmax.f32 %v972, 0.0
      %v1113 = vmax.f32 %v974, 0.0
      %v1114 = vmax.f32 %v976, 0.0
      %v1115 = vmax.f32 %v978, 0.0
      %v1116 = vmax.f32 %v982, 0.0
      %v1117 = vmax.f32 %v984, 0.0
      %v1118 = vmax.f32 %v986, 0.0
      %v1119 = vmax.f32 %v988, 0.0
      %v1120 = vmax.f32 %v992, 0.0
      %v1121 = vmax.f32 %v994, 0.0
      %v1122 = vmax.f32 %v996, 0.0
      %v1123 = vmax.f32 %v998, 0.0
      %v1124 = vmax.f32 %v1002, 0.0
      %v1125 = vmax.f32 %v1004, 0.0
      %v1126 = vmax.f32 %v1006, 0.0
      %v1127 = vmax.f32 %v1008, 0.0
      %v1128 = vmax.f32 %v1012, 0.0
      %v1129 = vmax.f32 %v1014, 0.0
      %v1130 = vmax.f32 %v1016, 0.0
      %v1131 = vmax.f32 %v1018, 0.0
      %v1132 = vmax.f32 %v1022, 0.0
      %v1133 = vmax.f32 %v1024, 0.0
      %v1134 = vmax.f32 %v1026, 0.0
      %v1135 = vmax.f32 %v1028, 0.0
      %v1136 = vmax.f32 %v1032, 0.0
      %v1137 = vmax.f32 %v1034, 0.0
      %v1138 = vmax.f32 %v1036, 0.0
      %v1139 = vmax.f32 %v1038, 0.0
      %v1140 = vmax.f32 %v1042, 0.0
      %v1141 = vmax.f32 %v1044, 0.0
      %v1142 = vmax.f32 %v1046, 0.0
      %v1143 = vmax.f32 %v1048, 0.0
      %v1144 = vmax.f32 %v1052, 0.0
      %v1145 = vmax.f32 %v1054, 0.0
      %v1146 = vmax.f32 %v1056, 0.0
      %v1147 = vmax.f32 %v1058, 0.0
      %v1148 = vmax.f32 %v1062, 0.0
      %v1149 = vmax.f32 %v1064, 0.0
      %v1150 = vmax.f32 %v1066, 0.0
      %v1151 = vmax.f32 %v1068, 0.0
      %v1152 = vmax.f32 %v1072, 0.0
      %v1153 = vmax.f32 %v1074, 0.0
      %v1154 = vmax.f32 %v1076, 0.0
      %v1155 = vmax.f32 %v1078, 0.0
      %v1156 = vmax.f32 %v1082, 0.0
      %v1157 = vmax.f32 %v1084, 0.0
      %v1158 = vmax.f32 %v1086, 0.0
      %v1159 = vmax.f32 %v1088, 0.0
      %v1160 = vmax.f32 %v1092, 0.0
      %v1161 = vmax.f32 %v1094, 0.0
      %v1162 = vmax.f32 %v1096, 0.0
      %v1163 = vmax.f32 %v1098, 0.0
      %v1164 = vpack.c.bf16 %v1102, %v1100
      %v1165 = vpack.c.bf16 %v1103, %v1101
      %v1166 = vpack.c.bf16 %v1106, %v1104
      %v1167 = vpack.c.bf16 %v1107, %v1105
      %v1168 = vpack.c.bf16 %v1110, %v1108
      %v1169 = vpack.c.bf16 %v1111, %v1109
      %v1170 = vpack.c.bf16 %v1114, %v1112
      %v1171 = vpack.c.bf16 %v1115, %v1113
      %v1172 = vpack.c.bf16 %v1118, %v1116
      %v1173 = vpack.c.bf16 %v1119, %v1117
      %v1174 = vpack.c.bf16 %v1122, %v1120
      %v1175 = vpack.c.bf16 %v1123, %v1121
      %v1176 = vpack.c.bf16 %v1126, %v1124
      %v1177 = vpack.c.bf16 %v1127, %v1125
      %v1178 = vpack.c.bf16 %v1130, %v1128
      %v1179 = vpack.c.bf16 %v1131, %v1129
      %v1180 = vpack.c.bf16 %v1134, %v1132
      %v1181 = vpack.c.bf16 %v1135, %v1133
      %v1182 = vpack.c.bf16 %v1138, %v1136
      %v1183 = vpack.c.bf16 %v1139, %v1137
      %v1184 = vpack.c.bf16 %v1142, %v1140
      %v1185 = vpack.c.bf16 %v1143, %v1141
      %v1186 = vpack.c.bf16 %v1146, %v1144
      %v1187 = vpack.c.bf16 %v1147, %v1145
      %v1188 = vpack.c.bf16 %v1150, %v1148
      %v1189 = vpack.c.bf16 %v1151, %v1149
      %v1190 = vpack.c.bf16 %v1154, %v1152
      %v1191 = vpack.c.bf16 %v1155, %v1153
      %v1192 = vpack.c.bf16 %v1158, %v1156
      %v1193 = vpack.c.bf16 %v1159, %v1157
      %v1194 = vpack.c.bf16 %v1162, %v1160
      %v1195 = vpack.c.bf16 %v1163, %v1161
      %v1228 = vunpack.c.l.b16 %v1164
      %v1229 = vunpack.c.l.b16 %v1165
      %v1230 = vunpack.c.h.b16 %v1164
      %v1231 = vunpack.c.h.b16 %v1165
      %v1232 = vunpack.c.l.b16 %v1166
      %v1233 = vunpack.c.l.b16 %v1167
      %v1234 = vunpack.c.h.b16 %v1166
      %v1235 = vunpack.c.h.b16 %v1167
      %v1236 = vunpack.c.l.b16 %v1168
      %v1237 = vunpack.c.l.b16 %v1169
      %v1238 = vunpack.c.h.b16 %v1168
      %v1239 = vunpack.c.h.b16 %v1169
      %v1240 = vunpack.c.l.b16 %v1170
      %v1241 = vunpack.c.l.b16 %v1171
      %v1242 = vunpack.c.h.b16 %v1170
      %v1243 = vunpack.c.h.b16 %v1171
      %v1244 = vunpack.c.l.b16 %v1172
      %v1245 = vunpack.c.l.b16 %v1173
      %v1246 = vunpack.c.h.b16 %v1172
      %v1247 = vunpack.c.h.b16 %v1173
      %v1248 = vunpack.c.l.b16 %v1174
      %v1249 = vunpack.c.l.b16 %v1175
      %v1250 = vunpack.c.h.b16 %v1174
      %v1251 = vunpack.c.h.b16 %v1175
      %v1252 = vunpack.c.l.b16 %v1176
      %v1253 = vunpack.c.l.b16 %v1177
      %v1254 = vunpack.c.h.b16 %v1176
      %v1255 = vunpack.c.h.b16 %v1177
      %v1256 = vunpack.c.l.b16 %v1178
      %v1257 = vunpack.c.l.b16 %v1179
      %v1258 = vunpack.c.h.b16 %v1178
      %v1259 = vunpack.c.h.b16 %v1179
      %v1260 = vunpack.c.l.b16 %v1180
      %v1261 = vunpack.c.l.b16 %v1181
      %v1262 = vunpack.c.h.b16 %v1180
      %v1263 = vunpack.c.h.b16 %v1181
      %v1264 = vunpack.c.l.b16 %v1182
      %v1265 = vunpack.c.l.b16 %v1183
      %v1266 = vunpack.c.h.b16 %v1182
      %v1267 = vunpack.c.h.b16 %v1183
      %v1268 = vunpack.c.l.b16 %v1184
      %v1269 = vunpack.c.l.b16 %v1185
      %v1270 = vunpack.c.h.b16 %v1184
      %v1271 = vunpack.c.h.b16 %v1185
      %v1272 = vunpack.c.l.b16 %v1186
      %v1273 = vunpack.c.l.b16 %v1187
      %v1274 = vunpack.c.h.b16 %v1186
      %v1275 = vunpack.c.h.b16 %v1187
      %v1276 = vunpack.c.l.b16 %v1188
      %v1277 = vunpack.c.l.b16 %v1189
      %v1278 = vunpack.c.h.b16 %v1188
      %v1279 = vunpack.c.h.b16 %v1189
      %v1280 = vunpack.c.l.b16 %v1190
      %v1281 = vunpack.c.l.b16 %v1191
      %v1282 = vunpack.c.h.b16 %v1190
      %v1283 = vunpack.c.h.b16 %v1191
      %v1284 = vunpack.c.l.b16 %v1192
      %v1285 = vunpack.c.l.b16 %v1193
      %v1286 = vunpack.c.h.b16 %v1192
      %v1287 = vunpack.c.h.b16 %v1193
      %v1288 = vunpack.c.l.b16 %v1194
      %v1289 = vunpack.c.l.b16 %v1195
      %v1290 = vunpack.c.h.b16 %v1194
      %v1291 = vunpack.c.h.b16 %v1195
      %v1292 = vpack.c.b16 %v1229, %v1228
      %v1293 = vpack.c.b16 %v1231, %v1230
      %v1294 = vpack.c.b16 %v1233, %v1232
      %v1295 = vpack.c.b16 %v1235, %v1234
      %v1296 = vpack.c.b16 %v1237, %v1236
      %v1297 = vpack.c.b16 %v1239, %v1238
      %v1298 = vpack.c.b16 %v1241, %v1240
      %v1299 = vpack.c.b16 %v1243, %v1242
      %v1300 = vpack.c.b16 %v1245, %v1244
      %v1301 = vpack.c.b16 %v1247, %v1246
      %v1302 = vpack.c.b16 %v1249, %v1248
      %v1303 = vpack.c.b16 %v1251, %v1250
      %v1304 = vpack.c.b16 %v1253, %v1252
      %v1305 = vpack.c.b16 %v1255, %v1254
      %v1306 = vpack.c.b16 %v1257, %v1256
      %v1307 = vpack.c.b16 %v1259, %v1258
      %v1308 = vpack.c.b16 %v1261, %v1260
      %v1309 = vpack.c.b16 %v1263, %v1262
      %v1310 = vpack.c.b16 %v1265, %v1264
      %v1311 = vpack.c.b16 %v1267, %v1266
      %v1312 = vpack.c.b16 %v1269, %v1268
      %v1313 = vpack.c.b16 %v1271, %v1270
      %v1314 = vpack.c.b16 %v1273, %v1272
      %v1315 = vpack.c.b16 %v1275, %v1274
      %v1316 = vpack.c.b16 %v1277, %v1276
      %v1317 = vpack.c.b16 %v1279, %v1278
      %v1318 = vpack.c.b16 %v1281, %v1280
      %v1319 = vpack.c.b16 %v1283, %v1282
      %v1320 = vpack.c.b16 %v1285, %v1284
      %v1321 = vpack.c.b16 %v1287, %v1286
      %v1322 = vpack.c.b16 %v1289, %v1288
      %v1323 = vpack.c.b16 %v1291, %v1290
      %1356 = vst [vmem:[%s469] sm:$0xff] %v1292
      %1357 = vst [vmem:[%s469 + $0x8] sm:$0xff] %v1293
      %1358 = vst [vmem:[%s469 + $0x10] sm:$0xff] %v1294
      %1359 = vst [vmem:[%s469 + $0x18] sm:$0xff] %v1295
      %1360 = vst [vmem:[%s469 + $0x20] sm:$0xff] %v1296
      %1361 = vst [vmem:[%s469 + $0x28] sm:$0xff] %v1297
      %1362 = vst [vmem:[%s469 + $0x30] sm:$0xff] %v1298
      %1363 = vst [vmem:[%s469 + $0x38] sm:$0xff] %v1299
      %1364 = vst [vmem:[%s469 + $0x40] sm:$0xff] %v1300
      %1365 = vst [vmem:[%s469 + $0x48] sm:$0xff] %v1301
      %1366 = vst [vmem:[%s469 + $0x50] sm:$0xff] %v1302
      %1367 = vst [vmem:[%s469 + $0x58] sm:$0xff] %v1303
      %1368 = vst [vmem:[%s469 + $0x60] sm:$0xff] %v1304
      %1369 = vst [vmem:[%s469 + $0x68] sm:$0xff] %v1305
      %1370 = vst [vmem:[%s469 + $0x70] sm:$0xff] %v1306
      %1371 = vst [vmem:[%s469 + $0x78] sm:$0xff] %v1307
      %1372 = vst [vmem:[%s469 + $0x80] sm:$0xff] %v1308
      %1373 = vst [vmem:[%s469 + $0x88] sm:$0xff] %v1309
      %1374 = vst [vmem:[%s469 + $0x90] sm:$0xff] %v1310
      %1375 = vst [vmem:[%s469 + $0x98] sm:$0xff] %v1311
      %1376 = vst [vmem:[%s469 + $0xa0] sm:$0xff] %v1312
      %1377 = vst [vmem:[%s469 + $0xa8] sm:$0xff] %v1313
      %1378 = vst [vmem:[%s469 + $0xb0] sm:$0xff] %v1314
      %1379 = vst [vmem:[%s469 + $0xb8] sm:$0xff] %v1315
      %1380 = vst [vmem:[%s469 + $0xc0] sm:$0xff] %v1316
      %1381 = vst [vmem:[%s469 + $0xc8] sm:$0xff] %v1317
      %1382 = vst [vmem:[%s469 + $0xd0] sm:$0xff] %v1318
      %1383 = vst [vmem:[%s469 + $0xd8] sm:$0xff] %v1319
      %1384 = vst [vmem:[%s469 + $0xe0] sm:$0xff] %v1320
      %1385 = vst [vmem:[%s469 + $0xe8] sm:$0xff] %v1321
      %1386 = vst [vmem:[%s469 + $0xf0] sm:$0xff] %v1322
      %1387 = vst [vmem:[%s469 + $0xf8] sm:$0xff] %v1323
      %v1388 = vld [vmem:[%s6] sm:$0xff]
      %v1389 = vld [vmem:[%s6 + $0x8] sm:$0xff]
      %v1390 = vld [vmem:[%s6 + $0x10] sm:$0xff]
      %v1391 = vld [vmem:[%s6 + $0x18] sm:$0xff]
      %v1392 = vld [vmem:[%s6 + $0x20] sm:$0xff]
      %v1393 = vld [vmem:[%s6 + $0x28] sm:$0xff]
      %v1394 = vld [vmem:[%s6 + $0x30] sm:$0xff]
      %v1395 = vld [vmem:[%s6 + $0x38] sm:$0xff]
      %v1396 = vld [vmem:[%s6 + $0x40] sm:$0xff]
      %v1397 = vld [vmem:[%s6 + $0x48] sm:$0xff]
      %v1398 = vld [vmem:[%s6 + $0x50] sm:$0xff]
      %v1399 = vld [vmem:[%s6 + $0x58] sm:$0xff]
      %v1400 = vld [vmem:[%s6 + $0x60] sm:$0xff]
      %v1401 = vld [vmem:[%s6 + $0x68] sm:$0xff]
      %v1402 = vld [vmem:[%s6 + $0x70] sm:$0xff]
      %v1403 = vld [vmem:[%s6 + $0x78] sm:$0xff]
      %v1404 = vld [vmem:[%s6 + $0x80] sm:$0xff]
      %v1405 = vld [vmem:[%s6 + $0x88] sm:$0xff]
      %v1406 = vld [vmem:[%s6 + $0x90] sm:$0xff]
      %v1407 = vld [vmem:[%s6 + $0x98] sm:$0xff]
      %v1408 = vld [vmem:[%s6 + $0xa0] sm:$0xff]
      %v1409 = vld [vmem:[%s6 + $0xa8] sm:$0xff]
      %v1410 = vld [vmem:[%s6 + $0xb0] sm:$0xff]
      %v1411 = vld [vmem:[%s6 + $0xb8] sm:$0xff]
      %v1412 = vld [vmem:[%s6 + $0xc0] sm:$0xff]
      %v1413 = vld [vmem:[%s6 + $0xc8] sm:$0xff]
      %v1414 = vld [vmem:[%s6 + $0xd0] sm:$0xff]
      %v1415 = vld [vmem:[%s6 + $0xd8] sm:$0xff]
      %v1416 = vld [vmem:[%s6 + $0xe0] sm:$0xff]
      %v1417 = vld [vmem:[%s6 + $0xe8] sm:$0xff]
      %v1418 = vld [vmem:[%s6 + $0xf0] sm:$0xff]
      %v1419 = vld [vmem:[%s6 + $0xf8] sm:$0xff]
      %v1420 = vld [vmem:[%s6 + $0x100] sm:$0xff]
      %v1421 = vld [vmem:[%s6 + $0x108] sm:$0xff]
      %v1422 = vld [vmem:[%s6 + $0x110] sm:$0xff]
      %v1423 = vld [vmem:[%s6 + $0x118] sm:$0xff]
      %v1424 = vld [vmem:[%s6 + $0x120] sm:$0xff]
      %v1425 = vld [vmem:[%s6 + $0x128] sm:$0xff]
      %v1426 = vld [vmem:[%s6 + $0x130] sm:$0xff]
      %v1427 = vld [vmem:[%s6 + $0x138] sm:$0xff]
      %v1428 = vld [vmem:[%s6 + $0x140] sm:$0xff]
      %v1429 = vld [vmem:[%s6 + $0x148] sm:$0xff]
      %v1430 = vld [vmem:[%s6 + $0x150] sm:$0xff]
      %v1431 = vld [vmem:[%s6 + $0x158] sm:$0xff]
      %v1432 = vld [vmem:[%s6 + $0x160] sm:$0xff]
      %v1433 = vld [vmem:[%s6 + $0x168] sm:$0xff]
      %v1434 = vld [vmem:[%s6 + $0x170] sm:$0xff]
      %v1435 = vld [vmem:[%s6 + $0x178] sm:$0xff]
      %v1436 = vld [vmem:[%s6 + $0x180] sm:$0xff]
      %v1437 = vld [vmem:[%s6 + $0x188] sm:$0xff]
      %v1438 = vld [vmem:[%s6 + $0x190] sm:$0xff]
      %v1439 = vld [vmem:[%s6 + $0x198] sm:$0xff]
      %v1440 = vld [vmem:[%s6 + $0x1a0] sm:$0xff]
      %v1441 = vld [vmem:[%s6 + $0x1a8] sm:$0xff]
      %v1442 = vld [vmem:[%s6 + $0x1b0] sm:$0xff]
      %v1443 = vld [vmem:[%s6 + $0x1b8] sm:$0xff]
      %v1444 = vld [vmem:[%s6 + $0x1c0] sm:$0xff]
      %v1445 = vld [vmem:[%s6 + $0x1c8] sm:$0xff]
      %v1446 = vld [vmem:[%s6 + $0x1d0] sm:$0xff]
      %v1447 = vld [vmem:[%s6 + $0x1d8] sm:$0xff]
      %v1448 = vld [vmem:[%s6 + $0x1e0] sm:$0xff]
      %v1449 = vld [vmem:[%s6 + $0x1e8] sm:$0xff]
      %v1450 = vld [vmem:[%s6 + $0x1f0] sm:$0xff]
      %v1451 = vld [vmem:[%s6 + $0x1f8] sm:$0xff]
      %v1516 = vunpack.c.l.b16 %v1388
      %v1517 = vunpack.c.h.b16 %v1388
      %v1518 = vunpack.c.l.b16 %v1389
      %v1519 = vunpack.c.h.b16 %v1389
      %v1520 = vunpack.c.l.b16 %v1390
      %v1521 = vunpack.c.h.b16 %v1390
      %v1522 = vunpack.c.l.b16 %v1391
      %v1523 = vunpack.c.h.b16 %v1391
      %v1524 = vunpack.c.l.b16 %v1392
      %v1525 = vunpack.c.h.b16 %v1392
      %v1526 = vunpack.c.l.b16 %v1393
      %v1527 = vunpack.c.h.b16 %v1393
      %v1528 = vunpack.c.l.b16 %v1394
      %v1529 = vunpack.c.h.b16 %v1394
      %v1530 = vunpack.c.l.b16 %v1395
      %v1531 = vunpack.c.h.b16 %v1395
      %v1532 = vunpack.c.l.b16 %v1396
      %v1533 = vunpack.c.h.b16 %v1396
      %v1534 = vunpack.c.l.b16 %v1397
      %v1535 = vunpack.c.h.b16 %v1397
      %v1536 = vunpack.c.l.b16 %v1398
      %v1537 = vunpack.c.h.b16 %v1398
      %v1538 = vunpack.c.l.b16 %v1399
      %v1539 = vunpack.c.h.b16 %v1399
      %v1540 = vunpack.c.l.b16 %v1400
      %v1541 = vunpack.c.h.b16 %v1400
      %v1542 = vunpack.c.l.b16 %v1401
      %v1543 = vunpack.c.h.b16 %v1401
      %v1544 = vunpack.c.l.b16 %v1402
      %v1545 = vunpack.c.h.b16 %v1402
      %v1546 = vunpack.c.l.b16 %v1403
      %v1547 = vunpack.c.h.b16 %v1403
      %v1548 = vunpack.c.l.b16 %v1404
      %v1549 = vunpack.c.h.b16 %v1404
      %v1550 = vunpack.c.l.b16 %v1405
      %v1551 = vunpack.c.h.b16 %v1405
      %v1552 = vunpack.c.l.b16 %v1406
      %v1553 = vunpack.c.h.b16 %v1406
      %v1554 = vunpack.c.l.b16 %v1407
      %v1555 = vunpack.c.h.b16 %v1407
      %v1556 = vunpack.c.l.b16 %v1408
      %v1557 = vunpack.c.h.b16 %v1408
      %v1558 = vunpack.c.l.b16 %v1409
      %v1559 = vunpack.c.h.b16 %v1409
      %v1560 = vunpack.c.l.b16 %v1410
      %v1561 = vunpack.c.h.b16 %v1410
      %v1562 = vunpack.c.l.b16 %v1411
      %v1563 = vunpack.c.h.b16 %v1411
      %v1564 = vunpack.c.l.b16 %v1412
      %v1565 = vunpack.c.h.b16 %v1412
      %v1566 = vunpack.c.l.b16 %v1413
      %v1567 = vunpack.c.h.b16 %v1413
      %v1568 = vunpack.c.l.b16 %v1414
      %v1569 = vunpack.c.h.b16 %v1414
      %v1570 = vunpack.c.l.b16 %v1415
      %v1571 = vunpack.c.h.b16 %v1415
      %v1572 = vunpack.c.l.b16 %v1416
      %v1573 = vunpack.c.h.b16 %v1416
      %v1574 = vunpack.c.l.b16 %v1417
      %v1575 = vunpack.c.h.b16 %v1417
      %v1576 = vunpack.c.l.b16 %v1418
      %v1577 = vunpack.c.h.b16 %v1418
      %v1578 = vunpack.c.l.b16 %v1419
      %v1579 = vunpack.c.h.b16 %v1419
      %v1580 = vunpack.c.l.b16 %v1420
      %v1581 = vunpack.c.h.b16 %v1420
      %v1582 = vunpack.c.l.b16 %v1421
      %v1583 = vunpack.c.h.b16 %v1421
      %v1584 = vunpack.c.l.b16 %v1422
      %v1585 = vunpack.c.h.b16 %v1422
      %v1586 = vunpack.c.l.b16 %v1423
      %v1587 = vunpack.c.h.b16 %v1423
      %v1588 = vunpack.c.l.b16 %v1424
      %v1589 = vunpack.c.h.b16 %v1424
      %v1590 = vunpack.c.l.b16 %v1425
      %v1591 = vunpack.c.h.b16 %v1425
      %v1592 = vunpack.c.l.b16 %v1426
      %v1593 = vunpack.c.h.b16 %v1426
      %v1594 = vunpack.c.l.b16 %v1427
      %v1595 = vunpack.c.h.b16 %v1427
      %v1596 = vunpack.c.l.b16 %v1428
      %v1597 = vunpack.c.h.b16 %v1428
      %v1598 = vunpack.c.l.b16 %v1429
      %v1599 = vunpack.c.h.b16 %v1429
      %v1600 = vunpack.c.l.b16 %v1430
      %v1601 = vunpack.c.h.b16 %v1430
      %v1602 = vunpack.c.l.b16 %v1431
      %v1603 = vunpack.c.h.b16 %v1431
      %v1604 = vunpack.c.l.b16 %v1432
      %v1605 = vunpack.c.h.b16 %v1432
      %v1606 = vunpack.c.l.b16 %v1433
      %v1607 = vunpack.c.h.b16 %v1433
      %v1608 = vunpack.c.l.b16 %v1434
      %v1609 = vunpack.c.h.b16 %v1434
      %v1610 = vunpack.c.l.b16 %v1435
      %v1611 = vunpack.c.h.b16 %v1435
      %v1612 = vunpack.c.l.b16 %v1436
      %v1613 = vunpack.c.h.b16 %v1436
      %v1614 = vunpack.c.l.b16 %v1437
      %v1615 = vunpack.c.h.b16 %v1437
      %v1616 = vunpack.c.l.b16 %v1438
      %v1617 = vunpack.c.h.b16 %v1438
      %v1618 = vunpack.c.l.b16 %v1439
      %v1619 = vunpack.c.h.b16 %v1439
      %v1620 = vunpack.c.l.b16 %v1440
      %v1621 = vunpack.c.h.b16 %v1440
      %v1622 = vunpack.c.l.b16 %v1441
      %v1623 = vunpack.c.h.b16 %v1441
      %v1624 = vunpack.c.l.b16 %v1442
      %v1625 = vunpack.c.h.b16 %v1442
      %v1626 = vunpack.c.l.b16 %v1443
      %v1627 = vunpack.c.h.b16 %v1443
      %v1628 = vunpack.c.l.b16 %v1444
      %v1629 = vunpack.c.h.b16 %v1444
      %v1630 = vunpack.c.l.b16 %v1445
      %v1631 = vunpack.c.h.b16 %v1445
      %v1632 = vunpack.c.l.b16 %v1446
      %v1633 = vunpack.c.h.b16 %v1446
      %v1634 = vunpack.c.l.b16 %v1447
      %v1635 = vunpack.c.h.b16 %v1447
      %v1636 = vunpack.c.l.b16 %v1448
      %v1637 = vunpack.c.h.b16 %v1448
      %v1638 = vunpack.c.l.b16 %v1449
      %v1639 = vunpack.c.h.b16 %v1449
      %v1640 = vunpack.c.l.b16 %v1450
      %v1641 = vunpack.c.h.b16 %v1450
      %v1642 = vunpack.c.l.b16 %v1451
      %v1643 = vunpack.c.h.b16 %v1451
      %v1644 = vpack.c.b16 %v1520, %v1516
      %v1645 = vpack.c.b16 %v1521, %v1517
      %v1646 = vpack.c.b16 %v1522, %v1518
      %v1647 = vpack.c.b16 %v1523, %v1519
      %v1648 = vpack.c.b16 %v1528, %v1524
      %v1649 = vpack.c.b16 %v1529, %v1525
      %v1650 = vpack.c.b16 %v1530, %v1526
      %v1651 = vpack.c.b16 %v1531, %v1527
      %v1652 = vpack.c.b16 %v1536, %v1532
      %v1653 = vpack.c.b16 %v1537, %v1533
      %v1654 = vpack.c.b16 %v1538, %v1534
      %v1655 = vpack.c.b16 %v1539, %v1535
      %v1656 = vpack.c.b16 %v1544, %v1540
      %v1657 = vpack.c.b16 %v1545, %v1541
      %v1658 = vpack.c.b16 %v1546, %v1542
      %v1659 = vpack.c.b16 %v1547, %v1543
      %v1660 = vpack.c.b16 %v1552, %v1548
      %v1661 = vpack.c.b16 %v1553, %v1549
      %v1662 = vpack.c.b16 %v1554, %v1550
      %v1663 = vpack.c.b16 %v1555, %v1551
      %v1664 = vpack.c.b16 %v1560, %v1556
      %v1665 = vpack.c.b16 %v1561, %v1557
      %v1666 = vpack.c.b16 %v1562, %v1558
      %v1667 = vpack.c.b16 %v1563, %v1559
      %v1668 = vpack.c.b16 %v1568, %v1564
      %v1669 = vpack.c.b16 %v1569, %v1565
      %v1670 = vpack.c.b16 %v1570, %v1566
      %v1671 = vpack.c.b16 %v1571, %v1567
      %v1672 = vpack.c.b16 %v1576, %v1572
      %v1673 = vpack.c.b16 %v1577, %v1573
      %v1674 = vpack.c.b16 %v1578, %v1574
      %v1675 = vpack.c.b16 %v1579, %v1575
      %v1676 = vpack.c.b16 %v1584, %v1580
      %v1677 = vpack.c.b16 %v1585, %v1581
      %v1678 = vpack.c.b16 %v1586, %v1582
      %v1679 = vpack.c.b16 %v1587, %v1583
      %v1680 = vpack.c.b16 %v1592, %v1588
      %v1681 = vpack.c.b16 %v1593, %v1589
      %v1682 = vpack.c.b16 %v1594, %v1590
      %v1683 = vpack.c.b16 %v1595, %v1591
      %v1684 = vpack.c.b16 %v1600, %v1596
      %v1685 = vpack.c.b16 %v1601, %v1597
      %v1686 = vpack.c.b16 %v1602, %v1598
      %v1687 = vpack.c.b16 %v1603, %v1599
      %v1688 = vpack.c.b16 %v1608, %v1604
      %v1689 = vpack.c.b16 %v1609, %v1605
      %v1690 = vpack.c.b16 %v1610, %v1606
      %v1691 = vpack.c.b16 %v1611, %v1607
      %v1692 = vpack.c.b16 %v1616, %v1612
      %v1693 = vpack.c.b16 %v1617, %v1613
      %v1694 = vpack.c.b16 %v1618, %v1614
      %v1695 = vpack.c.b16 %v1619, %v1615
      %v1696 = vpack.c.b16 %v1624, %v1620
      %v1697 = vpack.c.b16 %v1625, %v1621
      %v1698 = vpack.c.b16 %v1626, %v1622
      %v1699 = vpack.c.b16 %v1627, %v1623
      %v1700 = vpack.c.b16 %v1632, %v1628
      %v1701 = vpack.c.b16 %v1633, %v1629
      %v1702 = vpack.c.b16 %v1634, %v1630
      %v1703 = vpack.c.b16 %v1635, %v1631
      %v1704 = vpack.c.b16 %v1640, %v1636
      %v1705 = vpack.c.b16 %v1641, %v1637
      %v1706 = vpack.c.b16 %v1642, %v1638
      %v1707 = vpack.c.b16 %v1643, %v1639
      %1772 = vmatprep.subr.bf16.mxu0 %v1645
      %1773 = vmatpush1.bf16.msra.mxu0 %v1644
      %1774 = vmatprep.subr.bf16.mxu0 %v1649
      %1775 = vmatpush1.bf16.msra.mxu0 %v1648
      %1776 = vmatprep.subr.bf16.mxu0 %v1653
      %1777 = vmatpush1.bf16.msra.mxu0 %v1652
      %1778 = vmatprep.subr.bf16.mxu0 %v1657
      %1779 = vmatpush1.bf16.msra.mxu0 %v1656
      %1780 = vmatprep.subr.bf16.mxu0 %v1661
      %1781 = vmatpush1.bf16.msra.mxu0 %v1660
      %1782 = vmatprep.subr.bf16.mxu0 %v1665
      %1783 = vmatpush1.bf16.msra.mxu0 %v1664
      %1784 = vmatprep.subr.bf16.mxu0 %v1669
      %1785 = vmatpush1.bf16.msra.mxu0 %v1668
      %1786 = vmatprep.subr.bf16.mxu0 %v1673
      %1787 = vmatpush1.bf16.msra.mxu0 %v1672
      %1788 = vmatprep.subr.bf16.mxu0 %v1677
      %1789 = vmatpush1.bf16.msra.mxu0 %v1676
      %1790 = vmatprep.subr.bf16.mxu0 %v1681
      %1791 = vmatpush1.bf16.msra.mxu0 %v1680
      %1792 = vmatprep.subr.bf16.mxu0 %v1685
      %1793 = vmatpush1.bf16.msra.mxu0 %v1684
      %1794 = vmatprep.subr.bf16.mxu0 %v1689
      %1795 = vmatpush1.bf16.msra.mxu0 %v1688
      %1796 = vmatprep.subr.bf16.mxu0 %v1693
      %1797 = vmatpush1.bf16.msra.mxu0 %v1692
      %1798 = vmatprep.subr.bf16.mxu0 %v1697
      %1799 = vmatpush1.bf16.msra.mxu0 %v1696
      %1800 = vmatprep.subr.bf16.mxu0 %v1701
      %1801 = vmatpush1.bf16.msra.mxu0 %v1700
      %1802 = vmatprep.subr.bf16.mxu0 %v1705
      %1803 = vmatpush1.bf16.msra.mxu0 %v1704
      %1804 = vmatprep.mubr.bf16.mxu0 %v1165
      %1805 = vmatmul.mubr.bf16.gmra.mrb[0].mxu0 %v1164
      %v1806 = vpop.f32.mrb[0].mxu0
      %v1807 = vadd.f32 0.0, %v1806
      %v1808 = vpop.f32.mrb[0].mxu0
      %v1809 = vadd.f32 0.0, %v1808
      %v1810 = vpop.f32.mrb[0].mxu0
      %v1811 = vadd.f32 0.0, %v1810
      %v1812 = vpop.f32.mrb[0].mxu0
      %v1813 = vadd.f32 0.0, %v1812
      %1814 = vmatprep.mubr.bf16.mxu0 %v1167
      %1815 = vmatmul.mubr.bf16.gmra.mrb[0].mxu0 %v1166
      %v1816 = vpop.f32.mrb[0].mxu0
      %v1817 = vadd.f32 0.0, %v1816
      %v1818 = vpop.f32.mrb[0].mxu0
      %v1819 = vadd.f32 0.0, %v1818
      %v1820 = vpop.f32.mrb[0].mxu0
      %v1821 = vadd.f32 0.0, %v1820
      %v1822 = vpop.f32.mrb[0].mxu0
      %v1823 = vadd.f32 0.0, %v1822
      %1824 = vmatprep.mubr.bf16.mxu0 %v1169
      %1825 = vmatmul.mubr.bf16.gmra.mrb[0].mxu0 %v1168
      %v1826 = vpop.f32.mrb[0].mxu0
      %v1827 = vadd.f32 0.0, %v1826
      %v1828 = vpop.f32.mrb[0].mxu0
      %v1829 = vadd.f32 0.0, %v1828
      %v1830 = vpop.f32.mrb[0].mxu0
      %v1831 = vadd.f32 0.0, %v1830
      %v1832 = vpop.f32.mrb[0].mxu0
      %v1833 = vadd.f32 0.0, %v1832
      %1834 = vmatprep.mubr.bf16.mxu0 %v1171
      %1835 = vmatmul.mubr.bf16.gmra.mrb[0].mxu0 %v1170
      %v1836 = vpop.f32.mrb[0].mxu0
      %v1837 = vadd.f32 0.0, %v1836
      %v1838 = vpop.f32.mrb[0].mxu0
      %v1839 = vadd.f32 0.0, %v1838
      %v1840 = vpop.f32.mrb[0].mxu0
      %v1841 = vadd.f32 0.0, %v1840
      %v1842 = vpop.f32.mrb[0].mxu0
      %v1843 = vadd.f32 0.0, %v1842
      %1844 = vmatprep.mubr.bf16.mxu0 %v1173
      %1845 = vmatmul.mubr.bf16.gmra.mrb[0].mxu0 %v1172
      %v1846 = vpop.f32.mrb[0].mxu0
      %v1847 = vadd.f32 0.0, %v1846
      %v1848 = vpop.f32.mrb[0].mxu0
      %v1849 = vadd.f32 0.0, %v1848
      %v1850 = vpop.f32.mrb[0].mxu0
      %v1851 = vadd.f32 0.0, %v1850
      %v1852 = vpop.f32.mrb[0].mxu0
      %v1853 = vadd.f32 0.0, %v1852
      %1854 = vmatprep.mubr.bf16.mxu0 %v1175
      %1855 = vmatmul.mubr.bf16.gmra.mrb[0].mxu0 %v1174
      %v1856 = vpop.f32.mrb[0].mxu0
      %v1857 = vadd.f32 0.0, %v1856
      %v1858 = vpop.f32.mrb[0].mxu0
      %v1859 = vadd.f32 0.0, %v1858
      %v1860 = vpop.f32.mrb[0].mxu0
      %v1861 = vadd.f32 0.0, %v1860
      %v1862 = vpop.f32.mrb[0].mxu0
      %v1863 = vadd.f32 0.0, %v1862
      %1864 = vmatprep.mubr.bf16.mxu0 %v1177
      %1865 = vmatmul.mubr.bf16.gmra.mrb[0].mxu0 %v1176
      %v1866 = vpop.f32.mrb[0].mxu0
      %v1867 = vadd.f32 0.0, %v1866
      %v1868 = vpop.f32.mrb[0].mxu0
      %v1869 = vadd.f32 0.0, %v1868
      %v1870 = vpop.f32.mrb[0].mxu0
      %v1871 = vadd.f32 0.0, %v1870
      %v1872 = vpop.f32.mrb[0].mxu0
      %v1873 = vadd.f32 0.0, %v1872
      %1874 = vmatprep.mubr.bf16.mxu0 %v1179
      %1875 = vmatmul.mubr.bf16.gmra.mrb[0].mxu0 %v1178
      %v1876 = vpop.f32.mrb[0].mxu0
      %v1877 = vadd.f32 0.0, %v1876
      %v1878 = vpop.f32.mrb[0].mxu0
      %v1879 = vadd.f32 0.0, %v1878
      %v1880 = vpop.f32.mrb[0].mxu0
      %v1881 = vadd.f32 0.0, %v1880
      %v1882 = vpop.f32.mrb[0].mxu0
      %v1883 = vadd.f32 0.0, %v1882
      %1884 = vmatprep.mubr.bf16.mxu0 %v1181
      %1885 = vmatmul.mubr.bf16.gmra.mrb[0].mxu0 %v1180
      %v1886 = vpop.f32.mrb[0].mxu0
      %v1887 = vadd.f32 0.0, %v1886
      %v1888 = vpop.f32.mrb[0].mxu0
      %v1889 = vadd.f32 0.0, %v1888
      %v1890 = vpop.f32.mrb[0].mxu0
      %v1891 = vadd.f32 0.0, %v1890
      %v1892 = vpop.f32.mrb[0].mxu0
      %v1893 = vadd.f32 0.0, %v1892
      %1894 = vmatprep.mubr.bf16.mxu0 %v1183
      %1895 = vmatmul.mubr.bf16.gmra.mrb[0].mxu0 %v1182
      %v1896 = vpop.f32.mrb[0].mxu0
      %v1897 = vadd.f32 0.0, %v1896
      %v1898 = vpop.f32.mrb[0].mxu0
      %v1899 = vadd.f32 0.0, %v1898
      %v1900 = vpop.f32.mrb[0].mxu0
      %v1901 = vadd.f32 0.0, %v1900
      %v1902 = vpop.f32.mrb[0].mxu0
      %v1903 = vadd.f32 0.0, %v1902
      %1904 = vmatprep.mubr.bf16.mxu0 %v1185
      %1905 = vmatmul.mubr.bf16.gmra.mrb[0].mxu0 %v1184
      %v1906 = vpop.f32.mrb[0].mxu0
      %v1907 = vadd.f32 0.0, %v1906
      %v1908 = vpop.f32.mrb[0].mxu0
      %v1909 = vadd.f32 0.0, %v1908
      %v1910 = vpop.f32.mrb[0].mxu0
      %v1911 = vadd.f32 0.0, %v1910
      %v1912 = vpop.f32.mrb[0].mxu0
      %v1913 = vadd.f32 0.0, %v1912
      %1914 = vmatprep.mubr.bf16.mxu0 %v1187
      %1915 = vmatmul.mubr.bf16.gmra.mrb[0].mxu0 %v1186
      %v1916 = vpop.f32.mrb[0].mxu0
      %v1917 = vadd.f32 0.0, %v1916
      %v1918 = vpop.f32.mrb[0].mxu0
      %v1919 = vadd.f32 0.0, %v1918
      %v1920 = vpop.f32.mrb[0].mxu0
      %v1921 = vadd.f32 0.0, %v1920
      %v1922 = vpop.f32.mrb[0].mxu0
      %v1923 = vadd.f32 0.0, %v1922
      %1924 = vmatprep.mubr.bf16.mxu0 %v1189
      %1925 = vmatmul.mubr.bf16.gmra.mrb[0].mxu0 %v1188
      %v1926 = vpop.f32.mrb[0].mxu0
      %v1927 = vadd.f32 0.0, %v1926
      %v1928 = vpop.f32.mrb[0].mxu0
      %v1929 = vadd.f32 0.0, %v1928
      %v1930 = vpop.f32.mrb[0].mxu0
      %v1931 = vadd.f32 0.0, %v1930
      %v1932 = vpop.f32.mrb[0].mxu0
      %v1933 = vadd.f32 0.0, %v1932
      %1934 = vmatprep.mubr.bf16.mxu0 %v1191
      %1935 = vmatmul.mubr.bf16.gmra.mrb[0].mxu0 %v1190
      %v1936 = vpop.f32.mrb[0].mxu0
      %v1937 = vadd.f32 0.0, %v1936
      %v1938 = vpop.f32.mrb[0].mxu0
      %v1939 = vadd.f32 0.0, %v1938
      %v1940 = vpop.f32.mrb[0].mxu0
      %v1941 = vadd.f32 0.0, %v1940
      %v1942 = vpop.f32.mrb[0].mxu0
      %v1943 = vadd.f32 0.0, %v1942
      %1944 = vmatprep.mubr.bf16.mxu0 %v1193
      %1945 = vmatmul.mubr.bf16.gmra.mrb[0].mxu0 %v1192
      %v1946 = vpop.f32.mrb[0].mxu0
      %v1947 = vadd.f32 0.0, %v1946
      %v1948 = vpop.f32.mrb[0].mxu0
      %v1949 = vadd.f32 0.0, %v1948
      %v1950 = vpop.f32.mrb[0].mxu0
      %v1951 = vadd.f32 0.0, %v1950
      %v1952 = vpop.f32.mrb[0].mxu0
      %v1953 = vadd.f32 0.0, %v1952
      %1954 = vmatprep.mubr.bf16.mxu0 %v1195
      %1955 = vmatmul.mubr.bf16.gmra.mrb[0].mxu0 %v1194
      %v1956 = vpop.f32.mrb[0].mxu0
      %v1957 = vadd.f32 0.0, %v1956
      %v1958 = vpop.f32.mrb[0].mxu0
      %v1959 = vadd.f32 0.0, %v1958
      %v1960 = vpop.f32.mrb[0].mxu0
      %v1961 = vadd.f32 0.0, %v1960
      %v1962 = vpop.f32.mrb[0].mxu0
      %v1963 = vadd.f32 0.0, %v1962
      %1964 = vdwg.mxu0
      %1965 = vmatprep.subr.bf16.mxu0 %v1647
      %1966 = vmatpush1.bf16.msra.mxu0 %v1646
      %1967 = vmatprep.subr.bf16.mxu0 %v1651
      %1968 = vmatpush1.bf16.msra.mxu0 %v1650
      %1969 = vmatprep.subr.bf16.mxu0 %v1655
      %1970 = vmatpush1.bf16.msra.mxu0 %v1654
      %1971 = vmatprep.subr.bf16.mxu0 %v1659
      %1972 = vmatpush1.bf16.msra.mxu0 %v1658
      %1973 = vmatprep.subr.bf16.mxu0 %v1663
      %1974 = vmatpush1.bf16.msra.mxu0 %v1662
      %1975 = vmatprep.subr.bf16.mxu0 %v1667
      %1976 = vmatpush1.bf16.msra.mxu0 %v1666
      %1977 = vmatprep.subr.bf16.mxu0 %v1671
      %1978 = vmatpush1.bf16.msra.mxu0 %v1670
      %1979 = vmatprep.subr.bf16.mxu0 %v1675
      %1980 = vmatpush1.bf16.msra.mxu0 %v1674
      %1981 = vmatprep.subr.bf16.mxu0 %v1679
      %1982 = vmatpush1.bf16.msra.mxu0 %v1678
      %1983 = vmatprep.subr.bf16.mxu0 %v1683
      %1984 = vmatpush1.bf16.msra.mxu0 %v1682
      %1985 = vmatprep.subr.bf16.mxu0 %v1687
      %1986 = vmatpush1.bf16.msra.mxu0 %v1686
      %1987 = vmatprep.subr.bf16.mxu0 %v1691
      %1988 = vmatpush1.bf16.msra.mxu0 %v1690
      %1989 = vmatprep.subr.bf16.mxu0 %v1695
      %1990 = vmatpush1.bf16.msra.mxu0 %v1694
      %1991 = vmatprep.subr.bf16.mxu0 %v1699
      %1992 = vmatpush1.bf16.msra.mxu0 %v1698
      %1993 = vmatprep.subr.bf16.mxu0 %v1703
      %1994 = vmatpush1.bf16.msra.mxu0 %v1702
      %1995 = vmatprep.subr.bf16.mxu0 %v1707
      %1996 = vmatpush1.bf16.msra.mxu0 %v1706
      %1997 = vmatprep.mubr.bf16.mxu0 %v1165
      %1998 = vmatmul.mubr.bf16.gmra.mrb[0].mxu0 %v1164
      %v1999 = vpop.f32.mrb[0].mxu0
      %v2000 = vadd.f32 0.0, %v1999
      %v2001 = vpop.f32.mrb[0].mxu0
      %v2002 = vadd.f32 0.0, %v2001
      %v2003 = vpop.f32.mrb[0].mxu0
      %v2004 = vadd.f32 0.0, %v2003
      %v2005 = vpop.f32.mrb[0].mxu0
      %v2006 = vadd.f32 0.0, %v2005
      %2007 = vmatprep.mubr.bf16.mxu0 %v1167
      %2008 = vmatmul.mubr.bf16.gmra.mrb[0].mxu0 %v1166
      %v2009 = vpop.f32.mrb[0].mxu0
      %v2010 = vadd.f32 0.0, %v2009
      %v2011 = vpop.f32.mrb[0].mxu0
      %v2012 = vadd.f32 0.0, %v2011
      %v2013 = vpop.f32.mrb[0].mxu0
      %v2014 = vadd.f32 0.0, %v2013
      %v2015 = vpop.f32.mrb[0].mxu0
      %v2016 = vadd.f32 0.0, %v2015
      %2017 = vmatprep.mubr.bf16.mxu0 %v1169
      %2018 = vmatmul.mubr.bf16.gmra.mrb[0].mxu0 %v1168
      %v2019 = vpop.f32.mrb[0].mxu0
      %v2020 = vadd.f32 0.0, %v2019
      %v2021 = vpop.f32.mrb[0].mxu0
      %v2022 = vadd.f32 0.0, %v2021
      %v2023 = vpop.f32.mrb[0].mxu0
      %v2024 = vadd.f32 0.0, %v2023
      %v2025 = vpop.f32.mrb[0].mxu0
      %v2026 = vadd.f32 0.0, %v2025
      %2027 = vmatprep.mubr.bf16.mxu0 %v1171
      %2028 = vmatmul.mubr.bf16.gmra.mrb[0].mxu0 %v1170
      %v2029 = vpop.f32.mrb[0].mxu0
      %v2030 = vadd.f32 0.0, %v2029
      %v2031 = vpop.f32.mrb[0].mxu0
      %v2032 = vadd.f32 0.0, %v2031
      %v2033 = vpop.f32.mrb[0].mxu0
      %v2034 = vadd.f32 0.0, %v2033
      %v2035 = vpop.f32.mrb[0].mxu0
      %v2036 = vadd.f32 0.0, %v2035
      %2037 = vmatprep.mubr.bf16.mxu0 %v1173
      %2038 = vmatmul.mubr.bf16.gmra.mrb[0].mxu0 %v1172
      %v2039 = vpop.f32.mrb[0].mxu0
      %v2040 = vadd.f32 0.0, %v2039
      %v2041 = vpop.f32.mrb[0].mxu0
      %v2042 = vadd.f32 0.0, %v2041
      %v2043 = vpop.f32.mrb[0].mxu0
      %v2044 = vadd.f32 0.0, %v2043
      %v2045 = vpop.f32.mrb[0].mxu0
      %v2046 = vadd.f32 0.0, %v2045
      %2047 = vmatprep.mubr.bf16.mxu0 %v1175
      %2048 = vmatmul.mubr.bf16.gmra.mrb[0].mxu0 %v1174
      %v2049 = vpop.f32.mrb[0].mxu0
      %v2050 = vadd.f32 0.0, %v2049
      %v2051 = vpop.f32.mrb[0].mxu0
      %v2052 = vadd.f32 0.0, %v2051
      %v2053 = vpop.f32.mrb[0].mxu0
      %v2054 = vadd.f32 0.0, %v2053
      %v2055 = vpop.f32.mrb[0].mxu0
      %v2056 = vadd.f32 0.0, %v2055
      %2057 = vmatprep.mubr.bf16.mxu0 %v1177
      %2058 = vmatmul.mubr.bf16.gmra.mrb[0].mxu0 %v1176
      %v2059 = vpop.f32.mrb[0].mxu0
      %v2060 = vadd.f32 0.0, %v2059
      %v2061 = vpop.f32.mrb[0].mxu0
      %v2062 = vadd.f32 0.0, %v2061
      %v2063 = vpop.f32.mrb[0].mxu0
      %v2064 = vadd.f32 0.0, %v2063
      %v2065 = vpop.f32.mrb[0].mxu0
      %v2066 = vadd.f32 0.0, %v2065
      %2067 = vmatprep.mubr.bf16.mxu0 %v1179
      %2068 = vmatmul.mubr.bf16.gmra.mrb[0].mxu0 %v1178
      %v2069 = vpop.f32.mrb[0].mxu0
      %v2070 = vadd.f32 0.0, %v2069
      %v2071 = vpop.f32.mrb[0].mxu0
      %v2072 = vadd.f32 0.0, %v2071
      %v2073 = vpop.f32.mrb[0].mxu0
      %v2074 = vadd.f32 0.0, %v2073
      %v2075 = vpop.f32.mrb[0].mxu0
      %v2076 = vadd.f32 0.0, %v2075
      %2077 = vmatprep.mubr.bf16.mxu0 %v1181
      %2078 = vmatmul.mubr.bf16.gmra.mrb[0].mxu0 %v1180
      %v2079 = vpop.f32.mrb[0].mxu0
      %v2080 = vadd.f32 0.0, %v2079
      %v2081 = vpop.f32.mrb[0].mxu0
      %v2082 = vadd.f32 0.0, %v2081
      %v2083 = vpop.f32.mrb[0].mxu0
      %v2084 = vadd.f32 0.0, %v2083
      %v2085 = vpop.f32.mrb[0].mxu0
      %v2086 = vadd.f32 0.0, %v2085
      %2087 = vmatprep.mubr.bf16.mxu0 %v1183
      %2088 = vmatmul.mubr.bf16.gmra.mrb[0].mxu0 %v1182
      %v2089 = vpop.f32.mrb[0].mxu0
      %v2090 = vadd.f32 0.0, %v2089
      %v2091 = vpop.f32.mrb[0].mxu0
      %v2092 = vadd.f32 0.0, %v2091
      %v2093 = vpop.f32.mrb[0].mxu0
      %v2094 = vadd.f32 0.0, %v2093
      %v2095 = vpop.f32.mrb[0].mxu0
      %v2096 = vadd.f32 0.0, %v2095
      %2097 = vmatprep.mubr.bf16.mxu0 %v1185
      %2098 = vmatmul.mubr.bf16.gmra.mrb[0].mxu0 %v1184
      %v2099 = vpop.f32.mrb[0].mxu0
      %v2100 = vadd.f32 0.0, %v2099
      %v2101 = vpop.f32.mrb[0].mxu0
      %v2102 = vadd.f32 0.0, %v2101
      %v2103 = vpop.f32.mrb[0].mxu0
      %v2104 = vadd.f32 0.0, %v2103
      %v2105 = vpop.f32.mrb[0].mxu0
      %v2106 = vadd.f32 0.0, %v2105
      %2107 = vmatprep.mubr.bf16.mxu0 %v1187
      %2108 = vmatmul.mubr.bf16.gmra.mrb[0].mxu0 %v1186
      %v2109 = vpop.f32.mrb[0].mxu0
      %v2110 = vadd.f32 0.0, %v2109
      %v2111 = vpop.f32.mrb[0].mxu0
      %v2112 = vadd.f32 0.0, %v2111
      %v2113 = vpop.f32.mrb[0].mxu0
      %v2114 = vadd.f32 0.0, %v2113
      %v2115 = vpop.f32.mrb[0].mxu0
      %v2116 = vadd.f32 0.0, %v2115
      %2117 = vmatprep.mubr.bf16.mxu0 %v1189
      %2118 = vmatmul.mubr.bf16.gmra.mrb[0].mxu0 %v1188
      %v2119 = vpop.f32.mrb[0].mxu0
      %v2120 = vadd.f32 0.0, %v2119
      %v2121 = vpop.f32.mrb[0].mxu0
      %v2122 = vadd.f32 0.0, %v2121
      %v2123 = vpop.f32.mrb[0].mxu0
      %v2124 = vadd.f32 0.0, %v2123
      %v2125 = vpop.f32.mrb[0].mxu0
      %v2126 = vadd.f32 0.0, %v2125
      %2127 = vmatprep.mubr.bf16.mxu0 %v1191
      %2128 = vmatmul.mubr.bf16.gmra.mrb[0].mxu0 %v1190
      %v2129 = vpop.f32.mrb[0].mxu0
      %v2130 = vadd.f32 0.0, %v2129
      %v2131 = vpop.f32.mrb[0].mxu0
      %v2132 = vadd.f32 0.0, %v2131
      %v2133 = vpop.f32.mrb[0].mxu0
      %v2134 = vadd.f32 0.0, %v2133
      %v2135 = vpop.f32.mrb[0].mxu0
      %v2136 = vadd.f32 0.0, %v2135
      %2137 = vmatprep.mubr.bf16.mxu0 %v1193
      %2138 = vmatmul.mubr.bf16.gmra.mrb[0].mxu0 %v1192
      %v2139 = vpop.f32.mrb[0].mxu0
      %v2140 = vadd.f32 0.0, %v2139
      %v2141 = vpop.f32.mrb[0].mxu0
      %v2142 = vadd.f32 0.0, %v2141
      %v2143 = vpop.f32.mrb[0].mxu0
      %v2144 = vadd.f32 0.0, %v2143
      %v2145 = vpop.f32.mrb[0].mxu0
      %v2146 = vadd.f32 0.0, %v2145
      %2147 = vmatprep.mubr.bf16.mxu0 %v1195
      %2148 = vmatmul.mubr.bf16.gmra.mrb[0].mxu0 %v1194
      %v2149 = vpop.f32.mrb[0].mxu0
      %v2150 = vadd.f32 0.0, %v2149
      %v2151 = vpop.f32.mrb[0].mxu0
      %v2152 = vadd.f32 0.0, %v2151
      %v2153 = vpop.f32.mrb[0].mxu0
      %v2154 = vadd.f32 0.0, %v2153
      %v2155 = vpop.f32.mrb[0].mxu0
      %v2156 = vadd.f32 0.0, %v2155
      %2157 = vdwg.mxu0
      %v2158 = vpack.c.bf16 %v1811, %v1807
      %v2159 = vpack.c.bf16 %v1813, %v1809
      %v2160 = vpack.c.bf16 %v2004, %v2000
      %v2161 = vpack.c.bf16 %v2006, %v2002
      %v2162 = vpack.c.bf16 %v1821, %v1817
      %v2163 = vpack.c.bf16 %v1823, %v1819
      %v2164 = vpack.c.bf16 %v2014, %v2010
      %v2165 = vpack.c.bf16 %v2016, %v2012
      %v2166 = vpack.c.bf16 %v1831, %v1827
      %v2167 = vpack.c.bf16 %v1833, %v1829
      %v2168 = vpack.c.bf16 %v2024, %v2020
      %v2169 = vpack.c.bf16 %v2026, %v2022
      %v2170 = vpack.c.bf16 %v1841, %v1837
      %v2171 = vpack.c.bf16 %v1843, %v1839
      %v2172 = vpack.c.bf16 %v2034, %v2030
      %v2173 = vpack.c.bf16 %v2036, %v2032
      %v2174 = vpack.c.bf16 %v1851, %v1847
      %v2175 = vpack.c.bf16 %v1853, %v1849
      %v2176 = vpack.c.bf16 %v2044, %v2040
      %v2177 = vpack.c.bf16 %v2046, %v2042
      %v2178 = vpack.c.bf16 %v1861, %v1857
      %v2179 = vpack.c.bf16 %v1863, %v1859
      %v2180 = vpack.c.bf16 %v2054, %v2050
      %v2181 = vpack.c.bf16 %v2056, %v2052
      %v2182 = vpack.c.bf16 %v1871, %v1867
      %v2183 = vpack.c.bf16 %v1873, %v1869
      %v2184 = vpack.c.bf16 %v2064, %v2060
      %v2185 = vpack.c.bf16 %v2066, %v2062
      %v2186 = vpack.c.bf16 %v1881, %v1877
      %v2187 = vpack.c.bf16 %v1883, %v1879
      %v2188 = vpack.c.bf16 %v2074, %v2070
      %v2189 = vpack.c.bf16 %v2076, %v2072
      %v2190 = vpack.c.bf16 %v1891, %v1887
      %v2191 = vpack.c.bf16 %v1893, %v1889
      %v2192 = vpack.c.bf16 %v2084, %v2080
      %v2193 = vpack.c.bf16 %v2086, %v2082
      %v2194 = vpack.c.bf16 %v1901, %v1897
      %v2195 = vpack.c.bf16 %v1903, %v1899
      %v2196 = vpack.c.bf16 %v2094, %v2090
      %v2197 = vpack.c.bf16 %v2096, %v2092
      %v2198 = vpack.c.bf16 %v1911, %v1907
      %v2199 = vpack.c.bf16 %v1913, %v1909
      %v2200 = vpack.c.bf16 %v2104, %v2100
      %v2201 = vpack.c.bf16 %v2106, %v2102
      %v2202 = vpack.c.bf16 %v1921, %v1917
      %v2203 = vpack.c.bf16 %v1923, %v1919
      %v2204 = vpack.c.bf16 %v2114, %v2110
      %v2205 = vpack.c.bf16 %v2116, %v2112
      %v2206 = vpack.c.bf16 %v1931, %v1927
      %v2207 = vpack.c.bf16 %v1933, %v1929
      %v2208 = vpack.c.bf16 %v2124, %v2120
      %v2209 = vpack.c.bf16 %v2126, %v2122
      %v2210 = vpack.c.bf16 %v1941, %v1937
      %v2211 = vpack.c.bf16 %v1943, %v1939
      %v2212 = vpack.c.bf16 %v2134, %v2130
      %v2213 = vpack.c.bf16 %v2136, %v2132
      %v2214 = vpack.c.bf16 %v1951, %v1947
      %v2215 = vpack.c.bf16 %v1953, %v1949
      %v2216 = vpack.c.bf16 %v2144, %v2140
      %v2217 = vpack.c.bf16 %v2146, %v2142
      %v2218 = vpack.c.bf16 %v1961, %v1957
      %v2219 = vpack.c.bf16 %v1963, %v1959
      %v2220 = vpack.c.bf16 %v2154, %v2150
      %v2221 = vpack.c.bf16 %v2156, %v2152
      %v2222 = vld [vmem:[%s2] sm:$0xff]
      %v2223 = vld [vmem:[%s2 + $0x8] sm:$0xff]
      %v2224 = vld [vmem:[%s2 + $0x10] sm:$0xff]
      %v2225 = vld [vmem:[%s2 + $0x18] sm:$0xff]
      %v2226 = vld [vmem:[%s2 + $0x20] sm:$0xff]
      %v2227 = vld [vmem:[%s2 + $0x28] sm:$0xff]
      %v2228 = vld [vmem:[%s2 + $0x30] sm:$0xff]
      %v2229 = vld [vmem:[%s2 + $0x38] sm:$0xff]
      %v2230 = vld [vmem:[%s2 + $0x40] sm:$0xff]
      %v2231 = vld [vmem:[%s2 + $0x48] sm:$0xff]
      %v2232 = vld [vmem:[%s2 + $0x50] sm:$0xff]
      %v2233 = vld [vmem:[%s2 + $0x58] sm:$0xff]
      %v2234 = vld [vmem:[%s2 + $0x60] sm:$0xff]
      %v2235 = vld [vmem:[%s2 + $0x68] sm:$0xff]
      %v2236 = vld [vmem:[%s2 + $0x70] sm:$0xff]
      %v2237 = vld [vmem:[%s2 + $0x78] sm:$0xff]
      %v2238 = vld [vmem:[%s2 + $0x80] sm:$0xff]
      %v2239 = vld [vmem:[%s2 + $0x88] sm:$0xff]
      %v2240 = vld [vmem:[%s2 + $0x90] sm:$0xff]
      %v2241 = vld [vmem:[%s2 + $0x98] sm:$0xff]
      %v2242 = vld [vmem:[%s2 + $0xa0] sm:$0xff]
      %v2243 = vld [vmem:[%s2 + $0xa8] sm:$0xff]
      %v2244 = vld [vmem:[%s2 + $0xb0] sm:$0xff]
      %v2245 = vld [vmem:[%s2 + $0xb8] sm:$0xff]
      %v2246 = vld [vmem:[%s2 + $0xc0] sm:$0xff]
      %v2247 = vld [vmem:[%s2 + $0xc8] sm:$0xff]
      %v2248 = vld [vmem:[%s2 + $0xd0] sm:$0xff]
      %v2249 = vld [vmem:[%s2 + $0xd8] sm:$0xff]
      %v2250 = vld [vmem:[%s2 + $0xe0] sm:$0xff]
      %v2251 = vld [vmem:[%s2 + $0xe8] sm:$0xff]
      %v2252 = vld [vmem:[%s2 + $0xf0] sm:$0xff]
      %v2253 = vld [vmem:[%s2 + $0xf8] sm:$0xff]
      %s2254 = scalar_lea.vmem %s2, 256
      %v2255 = vld [vmem:[%s2254] sm:$0xff]
      %v2256 = vld [vmem:[%s2254 + $0x8] sm:$0xff]
      %v2257 = vld [vmem:[%s2254 + $0x10] sm:$0xff]
      %v2258 = vld [vmem:[%s2254 + $0x18] sm:$0xff]
      %v2259 = vld [vmem:[%s2254 + $0x20] sm:$0xff]
      %v2260 = vld [vmem:[%s2254 + $0x28] sm:$0xff]
      %v2261 = vld [vmem:[%s2254 + $0x30] sm:$0xff]
      %v2262 = vld [vmem:[%s2254 + $0x38] sm:$0xff]
      %v2263 = vld [vmem:[%s2254 + $0x40] sm:$0xff]
      %v2264 = vld [vmem:[%s2254 + $0x48] sm:$0xff]
      %v2265 = vld [vmem:[%s2254 + $0x50] sm:$0xff]
      %v2266 = vld [vmem:[%s2254 + $0x58] sm:$0xff]
      %v2267 = vld [vmem:[%s2254 + $0x60] sm:$0xff]
      %v2268 = vld [vmem:[%s2254 + $0x68] sm:$0xff]
      %v2269 = vld [vmem:[%s2254 + $0x70] sm:$0xff]
      %v2270 = vld [vmem:[%s2254 + $0x78] sm:$0xff]
      %v2271 = vld [vmem:[%s2254 + $0x80] sm:$0xff]
      %v2272 = vld [vmem:[%s2254 + $0x88] sm:$0xff]
      %v2273 = vld [vmem:[%s2254 + $0x90] sm:$0xff]
      %v2274 = vld [vmem:[%s2254 + $0x98] sm:$0xff]
      %v2275 = vld [vmem:[%s2254 + $0xa0] sm:$0xff]
      %v2276 = vld [vmem:[%s2254 + $0xa8] sm:$0xff]
      %v2277 = vld [vmem:[%s2254 + $0xb0] sm:$0xff]
      %v2278 = vld [vmem:[%s2254 + $0xb8] sm:$0xff]
      %v2279 = vld [vmem:[%s2254 + $0xc0] sm:$0xff]
      %v2280 = vld [vmem:[%s2254 + $0xc8] sm:$0xff]
      %v2281 = vld [vmem:[%s2254 + $0xd0] sm:$0xff]
      %v2282 = vld [vmem:[%s2254 + $0xd8] sm:$0xff]
      %v2283 = vld [vmem:[%s2254 + $0xe0] sm:$0xff]
      %v2284 = vld [vmem:[%s2254 + $0xe8] sm:$0xff]
      %v2285 = vld [vmem:[%s2254 + $0xf0] sm:$0xff]
      %v2286 = vld [vmem:[%s2254 + $0xf8] sm:$0xff]
      %v2319 = vunpack.c.l.b16 %v2255
      %v2320 = vunpack.c.h.b16 %v2255
      %v2321 = vunpack.c.l.b16 %v2256
      %v2322 = vunpack.c.h.b16 %v2256
      %v2323 = vunpack.c.l.b16 %v2257
      %v2324 = vunpack.c.h.b16 %v2257
      %v2325 = vunpack.c.l.b16 %v2258
      %v2326 = vunpack.c.h.b16 %v2258
      %v2327 = vunpack.c.l.b16 %v2259
      %v2328 = vunpack.c.h.b16 %v2259
      %v2329 = vunpack.c.l.b16 %v2260
      %v2330 = vunpack.c.h.b16 %v2260
      %v2331 = vunpack.c.l.b16 %v2261
      %v2332 = vunpack.c.h.b16 %v2261
      %v2333 = vunpack.c.l.b16 %v2262
      %v2334 = vunpack.c.h.b16 %v2262
      %v2335 = vunpack.c.l.b16 %v2263
      %v2336 = vunpack.c.h.b16 %v2263
      %v2337 = vunpack.c.l.b16 %v2264
      %v2338 = vunpack.c.h.b16 %v2264
      %v2339 = vunpack.c.l.b16 %v2265
      %v2340 = vunpack.c.h.b16 %v2265
      %v2341 = vunpack.c.l.b16 %v2266
      %v2342 = vunpack.c.h.b16 %v2266
      %v2343 = vunpack.c.l.b16 %v2267
      %v2344 = vunpack.c.h.b16 %v2267
      %v2345 = vunpack.c.l.b16 %v2268
      %v2346 = vunpack.c.h.b16 %v2268
      %v2347 = vunpack.c.l.b16 %v2269
      %v2348 = vunpack.c.h.b16 %v2269
      %v2349 = vunpack.c.l.b16 %v2270
      %v2350 = vunpack.c.h.b16 %v2270
      %v2351 = vunpack.c.l.b16 %v2271
      %v2352 = vunpack.c.h.b16 %v2271
      %v2353 = vunpack.c.l.b16 %v2272
      %v2354 = vunpack.c.h.b16 %v2272
      %v2355 = vunpack.c.l.b16 %v2273
      %v2356 = vunpack.c.h.b16 %v2273
      %v2357 = vunpack.c.l.b16 %v2274
      %v2358 = vunpack.c.h.b16 %v2274
      %v2359 = vunpack.c.l.b16 %v2275
      %v2360 = vunpack.c.h.b16 %v2275
      %v2361 = vunpack.c.l.b16 %v2276
      %v2362 = vunpack.c.h.b16 %v2276
      %v2363 = vunpack.c.l.b16 %v2277
      %v2364 = vunpack.c.h.b16 %v2277
      %v2365 = vunpack.c.l.b16 %v2278
      %v2366 = vunpack.c.h.b16 %v2278
      %v2367 = vunpack.c.l.b16 %v2279
      %v2368 = vunpack.c.h.b16 %v2279
      %v2369 = vunpack.c.l.b16 %v2280
      %v2370 = vunpack.c.h.b16 %v2280
      %v2371 = vunpack.c.l.b16 %v2281
      %v2372 = vunpack.c.h.b16 %v2281
      %v2373 = vunpack.c.l.b16 %v2282
      %v2374 = vunpack.c.h.b16 %v2282
      %v2375 = vunpack.c.l.b16 %v2283
      %v2376 = vunpack.c.h.b16 %v2283
      %v2377 = vunpack.c.l.b16 %v2284
      %v2378 = vunpack.c.h.b16 %v2284
      %v2379 = vunpack.c.l.b16 %v2285
      %v2380 = vunpack.c.h.b16 %v2285
      %v2381 = vunpack.c.l.b16 %v2286
      %v2382 = vunpack.c.h.b16 %v2286
      %v2383 = vpack.c.b16 %v2321, %v2319
      %v2384 = vpack.c.b16 %v2322, %v2320
      %v2385 = vpack.c.b16 %v2325, %v2323
      %v2386 = vpack.c.b16 %v2326, %v2324
      %v2387 = vpack.c.b16 %v2329, %v2327
      %v2388 = vpack.c.b16 %v2330, %v2328
      %v2389 = vpack.c.b16 %v2333, %v2331
      %v2390 = vpack.c.b16 %v2334, %v2332
      %v2391 = vpack.c.b16 %v2337, %v2335
      %v2392 = vpack.c.b16 %v2338, %v2336
      %v2393 = vpack.c.b16 %v2341, %v2339
      %v2394 = vpack.c.b16 %v2342, %v2340
      %v2395 = vpack.c.b16 %v2345, %v2343
      %v2396 = vpack.c.b16 %v2346, %v2344
      %v2397 = vpack.c.b16 %v2349, %v2347
      %v2398 = vpack.c.b16 %v2350, %v2348
      %v2399 = vpack.c.b16 %v2353, %v2351
      %v2400 = vpack.c.b16 %v2354, %v2352
      %v2401 = vpack.c.b16 %v2357, %v2355
      %v2402 = vpack.c.b16 %v2358, %v2356
      %v2403 = vpack.c.b16 %v2361, %v2359
      %v2404 = vpack.c.b16 %v2362, %v2360
      %v2405 = vpack.c.b16 %v2365, %v2363
      %v2406 = vpack.c.b16 %v2366, %v2364
      %v2407 = vpack.c.b16 %v2369, %v2367
      %v2408 = vpack.c.b16 %v2370, %v2368
      %v2409 = vpack.c.b16 %v2373, %v2371
      %v2410 = vpack.c.b16 %v2374, %v2372
      %v2411 = vpack.c.b16 %v2377, %v2375
      %v2412 = vpack.c.b16 %v2378, %v2376
      %v2413 = vpack.c.b16 %v2381, %v2379
      %v2414 = vpack.c.b16 %v2382, %v2380
      %2447 = vmatprep.subr.bf16.mxu0 0
      %2448 = vmatpush1.bf16.msra.mxu0 %v2159
      %2449 = vmatprep.subr.bf16.mxu0 0
      %2450 = vmatpush1.bf16.msra.mxu0 %v2163
      %2451 = vmatprep.subr.bf16.mxu0 0
      %2452 = vmatpush1.bf16.msra.mxu0 %v2167
      %2453 = vmatprep.subr.bf16.mxu0 0
      %2454 = vmatpush1.bf16.msra.mxu0 %v2171
      %2455 = vmatprep.subr.bf16.mxu0 0
      %2456 = vmatpush1.bf16.msra.mxu0 %v2175
      %2457 = vmatprep.subr.bf16.mxu0 0
      %2458 = vmatpush1.bf16.msra.mxu0 %v2179
      %2459 = vmatprep.subr.bf16.mxu0 0
      %2460 = vmatpush1.bf16.msra.mxu0 %v2183
      %2461 = vmatprep.subr.bf16.mxu0 0
      %2462 = vmatpush1.bf16.msra.mxu0 %v2187
      %2463 = vmatprep.subr.bf16.mxu0 0
      %2464 = vmatpush1.bf16.msra.mxu0 %v2191
      %2465 = vmatprep.subr.bf16.mxu0 0
      %2466 = vmatpush1.bf16.msra.mxu0 %v2195
      %2467 = vmatprep.subr.bf16.mxu0 0
      %2468 = vmatpush1.bf16.msra.mxu0 %v2199
      %2469 = vmatprep.subr.bf16.mxu0 0
      %2470 = vmatpush1.bf16.msra.mxu0 %v2203
      %2471 = vmatprep.subr.bf16.mxu0 0
      %2472 = vmatpush1.bf16.msra.mxu0 %v2207
      %2473 = vmatprep.subr.bf16.mxu0 0
      %2474 = vmatpush1.bf16.msra.mxu0 %v2211
      %2475 = vmatprep.subr.bf16.mxu0 0
      %2476 = vmatpush1.bf16.msra.mxu0 %v2215
      %2477 = vmatprep.subr.bf16.mxu0 0
      %2478 = vmatpush1.bf16.msra.mxu0 %v2219
      %2479 = vmatprep.mubr.bf16.mxu0 %v2384
      %2480 = vmatmul.mubr.bf16.gmra.mrb[0].mxu0 %v2383
      %v2481 = vpop.f32.mrb[0].mxu0
      %v2482 = vadd.f32 0.0, %v2481
      %v2483 = vpop.f32.mrb[0].mxu0
      %v2484 = vpop.f32.mrb[0].mxu0
      %v2485 = vadd.f32 0.0, %v2484
      %v2486 = vpop.f32.mrb[0].mxu0
      %2487 = vmatprep.mubr.bf16.mxu0 %v2386
      %2488 = vmatmul.mubr.bf16.gmra.mrb[0].mxu0 %v2385
      %v2489 = vpop.f32.mrb[0].mxu0
      %v2490 = vadd.f32 0.0, %v2489
      %v2491 = vpop.f32.mrb[0].mxu0
      %v2492 = vpop.f32.mrb[0].mxu0
      %v2493 = vadd.f32 0.0, %v2492
      %v2494 = vpop.f32.mrb[0].mxu0
      %2495 = vmatprep.mubr.bf16.mxu0 %v2388
      %2496 = vmatmul.mubr.bf16.gmra.mrb[0].mxu0 %v2387
      %v2497 = vpop.f32.mrb[0].mxu0
      %v2498 = vadd.f32 0.0, %v2497
      %v2499 = vpop.f32.mrb[0].mxu0
      %v2500 = vpop.f32.mrb[0].mxu0
      %v2501 = vadd.f32 0.0, %v2500
      %v2502 = vpop.f32.mrb[0].mxu0
      %2503 = vmatprep.mubr.bf16.mxu0 %v2390
      %2504 = vmatmul.mubr.bf16.gmra.mrb[0].mxu0 %v2389
      %v2505 = vpop.f32.mrb[0].mxu0
      %v2506 = vadd.f32 0.0, %v2505
      %v2507 = vpop.f32.mrb[0].mxu0
      %v2508 = vpop.f32.mrb[0].mxu0
      %v2509 = vadd.f32 0.0, %v2508
      %v2510 = vpop.f32.mrb[0].mxu0
      %2511 = vmatprep.mubr.bf16.mxu0 %v2392
      %2512 = vmatmul.mubr.bf16.gmra.mrb[0].mxu0 %v2391
      %v2513 = vpop.f32.mrb[0].mxu0
      %v2514 = vadd.f32 0.0, %v2513
      %v2515 = vpop.f32.mrb[0].mxu0
      %v2516 = vpop.f32.mrb[0].mxu0
      %v2517 = vadd.f32 0.0, %v2516
      %v2518 = vpop.f32.mrb[0].mxu0
      %2519 = vmatprep.mubr.bf16.mxu0 %v2394
      %2520 = vmatmul.mubr.bf16.gmra.mrb[0].mxu0 %v2393
      %v2521 = vpop.f32.mrb[0].mxu0
      %v2522 = vadd.f32 0.0, %v2521
      %v2523 = vpop.f32.mrb[0].mxu0
      %v2524 = vpop.f32.mrb[0].mxu0
      %v2525 = vadd.f32 0.0, %v2524
      %v2526 = vpop.f32.mrb[0].mxu0
      %2527 = vmatprep.mubr.bf16.mxu0 %v2396
      %2528 = vmatmul.mubr.bf16.gmra.mrb[0].mxu0 %v2395
      %v2529 = vpop.f32.mrb[0].mxu0
      %v2530 = vadd.f32 0.0, %v2529
      %v2531 = vpop.f32.mrb[0].mxu0
      %v2532 = vpop.f32.mrb[0].mxu0
      %v2533 = vadd.f32 0.0, %v2532
      %v2534 = vpop.f32.mrb[0].mxu0
      %2535 = vmatprep.mubr.bf16.mxu0 %v2398
      %2536 = vmatmul.mubr.bf16.gmra.mrb[0].mxu0 %v2397
      %v2537 = vpop.f32.mrb[0].mxu0
      %v2538 = vadd.f32 0.0, %v2537
      %v2539 = vpop.f32.mrb[0].mxu0
      %v2540 = vpop.f32.mrb[0].mxu0
      %v2541 = vadd.f32 0.0, %v2540
      %v2542 = vpop.f32.mrb[0].mxu0
      %2543 = vmatprep.mubr.bf16.mxu0 %v2400
      %2544 = vmatmul.mubr.bf16.gmra.mrb[0].mxu0 %v2399
      %v2545 = vpop.f32.mrb[0].mxu0
      %v2546 = vadd.f32 0.0, %v2545
      %v2547 = vpop.f32.mrb[0].mxu0
      %v2548 = vpop.f32.mrb[0].mxu0
      %v2549 = vadd.f32 0.0, %v2548
      %v2550 = vpop.f32.mrb[0].mxu0
      %2551 = vmatprep.mubr.bf16.mxu0 %v2402
      %2552 = vmatmul.mubr.bf16.gmra.mrb[0].mxu0 %v2401
      %v2553 = vpop.f32.mrb[0].mxu0
      %v2554 = vadd.f32 0.0, %v2553
      %v2555 = vpop.f32.mrb[0].mxu0
      %v2556 = vpop.f32.mrb[0].mxu0
      %v2557 = vadd.f32 0.0, %v2556
      %v2558 = vpop.f32.mrb[0].mxu0
      %2559 = vmatprep.mubr.bf16.mxu0 %v2404
      %2560 = vmatmul.mubr.bf16.gmra.mrb[0].mxu0 %v2403
      %v2561 = vpop.f32.mrb[0].mxu0
      %v2562 = vadd.f32 0.0, %v2561
      %v2563 = vpop.f32.mrb[0].mxu0
      %v2564 = vpop.f32.mrb[0].mxu0
      %v2565 = vadd.f32 0.0, %v2564
      %v2566 = vpop.f32.mrb[0].mxu0
      %2567 = vmatprep.mubr.bf16.mxu0 %v2406
      %2568 = vmatmul.mubr.bf16.gmra.mrb[0].mxu0 %v2405
      %v2569 = vpop.f32.mrb[0].mxu0
      %v2570 = vadd.f32 0.0, %v2569
      %v2571 = vpop.f32.mrb[0].mxu0
      %v2572 = vpop.f32.mrb[0].mxu0
      %v2573 = vadd.f32 0.0, %v2572
      %v2574 = vpop.f32.mrb[0].mxu0
      %2575 = vmatprep.mubr.bf16.mxu0 %v2408
      %2576 = vmatmul.mubr.bf16.gmra.mrb[0].mxu0 %v2407
      %v2577 = vpop.f32.mrb[0].mxu0
      %v2578 = vadd.f32 0.0, %v2577
      %v2579 = vpop.f32.mrb[0].mxu0
      %v2580 = vpop.f32.mrb[0].mxu0
      %v2581 = vadd.f32 0.0, %v2580
      %v2582 = vpop.f32.mrb[0].mxu0
      %2583 = vmatprep.mubr.bf16.mxu0 %v2410
      %2584 = vmatmul.mubr.bf16.gmra.mrb[0].mxu0 %v2409
      %v2585 = vpop.f32.mrb[0].mxu0
      %v2586 = vadd.f32 0.0, %v2585
      %v2587 = vpop.f32.mrb[0].mxu0
      %v2588 = vpop.f32.mrb[0].mxu0
      %v2589 = vadd.f32 0.0, %v2588
      %v2590 = vpop.f32.mrb[0].mxu0
      %2591 = vmatprep.mubr.bf16.mxu0 %v2412
      %2592 = vmatmul.mubr.bf16.gmra.mrb[0].mxu0 %v2411
      %v2593 = vpop.f32.mrb[0].mxu0
      %v2594 = vadd.f32 0.0, %v2593
      %v2595 = vpop.f32.mrb[0].mxu0
      %v2596 = vpop.f32.mrb[0].mxu0
      %v2597 = vadd.f32 0.0, %v2596
      %v2598 = vpop.f32.mrb[0].mxu0
      %2599 = vmatprep.mubr.bf16.mxu0 %v2414
      %2600 = vmatmul.mubr.bf16.gmra.mrb[0].mxu0 %v2413
      %v2601 = vpop.f32.mrb[0].mxu0
      %v2602 = vadd.f32 0.0, %v2601
      %v2603 = vpop.f32.mrb[0].mxu0
      %v2604 = vpop.f32.mrb[0].mxu0
      %v2605 = vadd.f32 0.0, %v2604
      %v2606 = vpop.f32.mrb[0].mxu0
      %2607 = vdwg.mxu0
      %v2640 = vunpack.c.l.b16 %v2222
      %v2641 = vunpack.c.h.b16 %v2222
      %v2642 = vunpack.c.l.b16 %v2223
      %v2643 = vunpack.c.h.b16 %v2223
      %v2644 = vunpack.c.l.b16 %v2224
      %v2645 = vunpack.c.h.b16 %v2224
      %v2646 = vunpack.c.l.b16 %v2225
      %v2647 = vunpack.c.h.b16 %v2225
      %v2648 = vunpack.c.l.b16 %v2226
      %v2649 = vunpack.c.h.b16 %v2226
      %v2650 = vunpack.c.l.b16 %v2227
      %v2651 = vunpack.c.h.b16 %v2227
      %v2652 = vunpack.c.l.b16 %v2228
      %v2653 = vunpack.c.h.b16 %v2228
      %v2654 = vunpack.c.l.b16 %v2229
      %v2655 = vunpack.c.h.b16 %v2229
      %v2656 = vunpack.c.l.b16 %v2230
      %v2657 = vunpack.c.h.b16 %v2230
      %v2658 = vunpack.c.l.b16 %v2231
      %v2659 = vunpack.c.h.b16 %v2231
      %v2660 = vunpack.c.l.b16 %v2232
      %v2661 = vunpack.c.h.b16 %v2232
      %v2662 = vunpack.c.l.b16 %v2233
      %v2663 = vunpack.c.h.b16 %v2233
      %v2664 = vunpack.c.l.b16 %v2234
      %v2665 = vunpack.c.h.b16 %v2234
      %v2666 = vunpack.c.l.b16 %v2235
      %v2667 = vunpack.c.h.b16 %v2235
      %v2668 = vunpack.c.l.b16 %v2236
      %v2669 = vunpack.c.h.b16 %v2236
      %v2670 = vunpack.c.l.b16 %v2237
      %v2671 = vunpack.c.h.b16 %v2237
      %v2672 = vunpack.c.l.b16 %v2238
      %v2673 = vunpack.c.h.b16 %v2238
      %v2674 = vunpack.c.l.b16 %v2239
      %v2675 = vunpack.c.h.b16 %v2239
      %v2676 = vunpack.c.l.b16 %v2240
      %v2677 = vunpack.c.h.b16 %v2240
      %v2678 = vunpack.c.l.b16 %v2241
      %v2679 = vunpack.c.h.b16 %v2241
      %v2680 = vunpack.c.l.b16 %v2242
      %v2681 = vunpack.c.h.b16 %v2242
      %v2682 = vunpack.c.l.b16 %v2243
      %v2683 = vunpack.c.h.b16 %v2243
      %v2684 = vunpack.c.l.b16 %v2244
      %v2685 = vunpack.c.h.b16 %v2244
      %v2686 = vunpack.c.l.b16 %v2245
      %v2687 = vunpack.c.h.b16 %v2245
      %v2688 = vunpack.c.l.b16 %v2246
      %v2689 = vunpack.c.h.b16 %v2246
      %v2690 = vunpack.c.l.b16 %v2247
      %v2691 = vunpack.c.h.b16 %v2247
      %v2692 = vunpack.c.l.b16 %v2248
      %v2693 = vunpack.c.h.b16 %v2248
      %v2694 = vunpack.c.l.b16 %v2249
      %v2695 = vunpack.c.h.b16 %v2249
      %v2696 = vunpack.c.l.b16 %v2250
      %v2697 = vunpack.c.h.b16 %v2250
      %v2698 = vunpack.c.l.b16 %v2251
      %v2699 = vunpack.c.h.b16 %v2251
      %v2700 = vunpack.c.l.b16 %v2252
      %v2701 = vunpack.c.h.b16 %v2252
      %v2702 = vunpack.c.l.b16 %v2253
      %v2703 = vunpack.c.h.b16 %v2253
      %v2704 = vpack.c.b16 %v2642, %v2640
      %v2705 = vpack.c.b16 %v2643, %v2641
      %v2706 = vpack.c.b16 %v2646, %v2644
      %v2707 = vpack.c.b16 %v2647, %v2645
      %v2708 = vpack.c.b16 %v2650, %v2648
      %v2709 = vpack.c.b16 %v2651, %v2649
      %v2710 = vpack.c.b16 %v2654, %v2652
      %v2711 = vpack.c.b16 %v2655, %v2653
      %v2712 = vpack.c.b16 %v2658, %v2656
      %v2713 = vpack.c.b16 %v2659, %v2657
      %v2714 = vpack.c.b16 %v2662, %v2660
      %v2715 = vpack.c.b16 %v2663, %v2661
      %v2716 = vpack.c.b16 %v2666, %v2664
      %v2717 = vpack.c.b16 %v2667, %v2665
      %v2718 = vpack.c.b16 %v2670, %v2668
      %v2719 = vpack.c.b16 %v2671, %v2669
      %v2720 = vpack.c.b16 %v2674, %v2672
      %v2721 = vpack.c.b16 %v2675, %v2673
      %v2722 = vpack.c.b16 %v2678, %v2676
      %v2723 = vpack.c.b16 %v2679, %v2677
      %v2724 = vpack.c.b16 %v2682, %v2680
      %v2725 = vpack.c.b16 %v2683, %v2681
      %v2726 = vpack.c.b16 %v2686, %v2684
      %v2727 = vpack.c.b16 %v2687, %v2685
      %v2728 = vpack.c.b16 %v2690, %v2688
      %v2729 = vpack.c.b16 %v2691, %v2689
      %v2730 = vpack.c.b16 %v2694, %v2692
      %v2731 = vpack.c.b16 %v2695, %v2693
      %v2732 = vpack.c.b16 %v2698, %v2696
      %v2733 = vpack.c.b16 %v2699, %v2697
      %v2734 = vpack.c.b16 %v2702, %v2700
      %v2735 = vpack.c.b16 %v2703, %v2701
      %2768 = vmatprep.subr.bf16.mxu0 0
      %2769 = vmatpush1.bf16.msra.mxu0 %v2158
      %2770 = vmatprep.subr.bf16.mxu0 0
      %2771 = vmatpush1.bf16.msra.mxu0 %v2162
      %2772 = vmatprep.subr.bf16.mxu0 0
      %2773 = vmatpush1.bf16.msra.mxu0 %v2166
      %2774 = vmatprep.subr.bf16.mxu0 0
      %2775 = vmatpush1.bf16.msra.mxu0 %v2170
      %2776 = vmatprep.subr.bf16.mxu0 0
      %2777 = vmatpush1.bf16.msra.mxu0 %v2174
      %2778 = vmatprep.subr.bf16.mxu0 0
      %2779 = vmatpush1.bf16.msra.mxu0 %v2178
      %2780 = vmatprep.subr.bf16.mxu0 0
      %2781 = vmatpush1.bf16.msra.mxu0 %v2182
      %2782 = vmatprep.subr.bf16.mxu0 0
      %2783 = vmatpush1.bf16.msra.mxu0 %v2186
      %2784 = vmatprep.subr.bf16.mxu0 0
      %2785 = vmatpush1.bf16.msra.mxu0 %v2190
      %2786 = vmatprep.subr.bf16.mxu0 0
      %2787 = vmatpush1.bf16.msra.mxu0 %v2194
      %2788 = vmatprep.subr.bf16.mxu0 0
      %2789 = vmatpush1.bf16.msra.mxu0 %v2198
      %2790 = vmatprep.subr.bf16.mxu0 0
      %2791 = vmatpush1.bf16.msra.mxu0 %v2202
      %2792 = vmatprep.subr.bf16.mxu0 0
      %2793 = vmatpush1.bf16.msra.mxu0 %v2206
      %2794 = vmatprep.subr.bf16.mxu0 0
      %2795 = vmatpush1.bf16.msra.mxu0 %v2210
      %2796 = vmatprep.subr.bf16.mxu0 0
      %2797 = vmatpush1.bf16.msra.mxu0 %v2214
      %2798 = vmatprep.subr.bf16.mxu0 0
      %2799 = vmatpush1.bf16.msra.mxu0 %v2218
      %2800 = vmatprep.mubr.bf16.mxu0 %v2705
      %2801 = vmatmul.mubr.bf16.gmra.mrb[0].mxu0 %v2704
      %v2802 = vpop.f32.mrb[0].mxu0
      %v2803 = vadd.f32 %v2482, %v2802
      %v2804 = vpop.f32.mrb[0].mxu0
      %v2805 = vpop.f32.mrb[0].mxu0
      %v2806 = vadd.f32 %v2485, %v2805
      %v2807 = vpop.f32.mrb[0].mxu0
      %2808 = vmatprep.mubr.bf16.mxu0 %v2707
      %2809 = vmatmul.mubr.bf16.gmra.mrb[0].mxu0 %v2706
      %v2810 = vpop.f32.mrb[0].mxu0
      %v2811 = vadd.f32 %v2490, %v2810
      %v2812 = vpop.f32.mrb[0].mxu0
      %v2813 = vpop.f32.mrb[0].mxu0
      %v2814 = vadd.f32 %v2493, %v2813
      %v2815 = vpop.f32.mrb[0].mxu0
      %2816 = vmatprep.mubr.bf16.mxu0 %v2709
      %2817 = vmatmul.mubr.bf16.gmra.mrb[0].mxu0 %v2708
      %v2818 = vpop.f32.mrb[0].mxu0
      %v2819 = vadd.f32 %v2498, %v2818
      %v2820 = vpop.f32.mrb[0].mxu0
      %v2821 = vpop.f32.mrb[0].mxu0
      %v2822 = vadd.f32 %v2501, %v2821
      %v2823 = vpop.f32.mrb[0].mxu0
      %2824 = vmatprep.mubr.bf16.mxu0 %v2711
      %2825 = vmatmul.mubr.bf16.gmra.mrb[0].mxu0 %v2710
      %v2826 = vpop.f32.mrb[0].mxu0
      %v2827 = vadd.f32 %v2506, %v2826
      %v2828 = vpop.f32.mrb[0].mxu0
      %v2829 = vpop.f32.mrb[0].mxu0
      %v2830 = vadd.f32 %v2509, %v2829
      %v2831 = vpop.f32.mrb[0].mxu0
      %2832 = vmatprep.mubr.bf16.mxu0 %v2713
      %2833 = vmatmul.mubr.bf16.gmra.mrb[0].mxu0 %v2712
      %v2834 = vpop.f32.mrb[0].mxu0
      %v2835 = vadd.f32 %v2514, %v2834
      %v2836 = vpop.f32.mrb[0].mxu0
      %v2837 = vpop.f32.mrb[0].mxu0
      %v2838 = vadd.f32 %v2517, %v2837
      %v2839 = vpop.f32.mrb[0].mxu0
      %2840 = vmatprep.mubr.bf16.mxu0 %v2715
      %2841 = vmatmul.mubr.bf16.gmra.mrb[0].mxu0 %v2714
      %v2842 = vpop.f32.mrb[0].mxu0
      %v2843 = vadd.f32 %v2522, %v2842
      %v2844 = vpop.f32.mrb[0].mxu0
      %v2845 = vpop.f32.mrb[0].mxu0
      %v2846 = vadd.f32 %v2525, %v2845
      %v2847 = vpop.f32.mrb[0].mxu0
      %2848 = vmatprep.mubr.bf16.mxu0 %v2717
      %2849 = vmatmul.mubr.bf16.gmra.mrb[0].mxu0 %v2716
      %v2850 = vpop.f32.mrb[0].mxu0
      %v2851 = vadd.f32 %v2530, %v2850
      %v2852 = vpop.f32.mrb[0].mxu0
      %v2853 = vpop.f32.mrb[0].mxu0
      %v2854 = vadd.f32 %v2533, %v2853
      %v2855 = vpop.f32.mrb[0].mxu0
      %2856 = vmatprep.mubr.bf16.mxu0 %v2719
      %2857 = vmatmul.mubr.bf16.gmra.mrb[0].mxu0 %v2718
      %v2858 = vpop.f32.mrb[0].mxu0
      %v2859 = vadd.f32 %v2538, %v2858
      %v2860 = vpop.f32.mrb[0].mxu0
      %v2861 = vpop.f32.mrb[0].mxu0
      %v2862 = vadd.f32 %v2541, %v2861
      %v2863 = vpop.f32.mrb[0].mxu0
      %2864 = vmatprep.mubr.bf16.mxu0 %v2721
      %2865 = vmatmul.mubr.bf16.gmra.mrb[0].mxu0 %v2720
      %v2866 = vpop.f32.mrb[0].mxu0
      %v2867 = vadd.f32 %v2546, %v2866
      %v2868 = vpop.f32.mrb[0].mxu0
      %v2869 = vpop.f32.mrb[0].mxu0
      %v2870 = vadd.f32 %v2549, %v2869
      %v2871 = vpop.f32.mrb[0].mxu0
      %2872 = vmatprep.mubr.bf16.mxu0 %v2723
      %2873 = vmatmul.mubr.bf16.gmra.mrb[0].mxu0 %v2722
      %v2874 = vpop.f32.mrb[0].mxu0
      %v2875 = vadd.f32 %v2554, %v2874
      %v2876 = vpop.f32.mrb[0].mxu0
      %v2877 = vpop.f32.mrb[0].mxu0
      %v2878 = vadd.f32 %v2557, %v2877
      %v2879 = vpop.f32.mrb[0].mxu0
      %2880 = vmatprep.mubr.bf16.mxu0 %v2725
      %2881 = vmatmul.mubr.bf16.gmra.mrb[0].mxu0 %v2724
      %v2882 = vpop.f32.mrb[0].mxu0
      %v2883 = vadd.f32 %v2562, %v2882
      %v2884 = vpop.f32.mrb[0].mxu0
      %v2885 = vpop.f32.mrb[0].mxu0
      %v2886 = vadd.f32 %v2565, %v2885
      %v2887 = vpop.f32.mrb[0].mxu0
      %2888 = vmatprep.mubr.bf16.mxu0 %v2727
      %2889 = vmatmul.mubr.bf16.gmra.mrb[0].mxu0 %v2726
      %v2890 = vpop.f32.mrb[0].mxu0
      %v2891 = vadd.f32 %v2570, %v2890
      %v2892 = vpop.f32.mrb[0].mxu0
      %v2893 = vpop.f32.mrb[0].mxu0
      %v2894 = vadd.f32 %v2573, %v2893
      %v2895 = vpop.f32.mrb[0].mxu0
      %2896 = vmatprep.mubr.bf16.mxu0 %v2729
      %2897 = vmatmul.mubr.bf16.gmra.mrb[0].mxu0 %v2728
      %v2898 = vpop.f32.mrb[0].mxu0
      %v2899 = vadd.f32 %v2578, %v2898
      %v2900 = vpop.f32.mrb[0].mxu0
      %v2901 = vpop.f32.mrb[0].mxu0
      %v2902 = vadd.f32 %v2581, %v2901
      %v2903 = vpop.f32.mrb[0].mxu0
      %2904 = vmatprep.mubr.bf16.mxu0 %v2731
      %2905 = vmatmul.mubr.bf16.gmra.mrb[0].mxu0 %v2730
      %v2906 = vpop.f32.mrb[0].mxu0
      %v2907 = vadd.f32 %v2586, %v2906
      %v2908 = vpop.f32.mrb[0].mxu0
      %v2909 = vpop.f32.mrb[0].mxu0
      %v2910 = vadd.f32 %v2589, %v2909
      %v2911 = vpop.f32.mrb[0].mxu0
      %2912 = vmatprep.mubr.bf16.mxu0 %v2733
      %2913 = vmatmul.mubr.bf16.gmra.mrb[0].mxu0 %v2732
      %v2914 = vpop.f32.mrb[0].mxu0
      %v2915 = vadd.f32 %v2594, %v2914
      %v2916 = vpop.f32.mrb[0].mxu0
      %v2917 = vpop.f32.mrb[0].mxu0
      %v2918 = vadd.f32 %v2597, %v2917
      %v2919 = vpop.f32.mrb[0].mxu0
      %2920 = vmatprep.mubr.bf16.mxu0 %v2735
      %2921 = vmatmul.mubr.bf16.gmra.mrb[0].mxu0 %v2734
      %v2922 = vpop.f32.mrb[0].mxu0
      %v2923 = vadd.f32 %v2602, %v2922
      %v2924 = vpop.f32.mrb[0].mxu0
      %v2925 = vpop.f32.mrb[0].mxu0
      %v2926 = vadd.f32 %v2605, %v2925
      %v2927 = vpop.f32.mrb[0].mxu0
      %2928 = vdwg.mxu0
      %s2929 = scalar_lea.vmem %s2, 512
      %v2930 = vld [vmem:[%s2929] sm:$0xff]
      %v2931 = vld [vmem:[%s2929 + $0x8] sm:$0xff]
      %v2932 = vld [vmem:[%s2929 + $0x10] sm:$0xff]
      %v2933 = vld [vmem:[%s2929 + $0x18] sm:$0xff]
      %v2934 = vld [vmem:[%s2929 + $0x20] sm:$0xff]
      %v2935 = vld [vmem:[%s2929 + $0x28] sm:$0xff]
      %v2936 = vld [vmem:[%s2929 + $0x30] sm:$0xff]
      %v2937 = vld [vmem:[%s2929 + $0x38] sm:$0xff]
      %v2938 = vld [vmem:[%s2929 + $0x40] sm:$0xff]
      %v2939 = vld [vmem:[%s2929 + $0x48] sm:$0xff]
      %v2940 = vld [vmem:[%s2929 + $0x50] sm:$0xff]
      %v2941 = vld [vmem:[%s2929 + $0x58] sm:$0xff]
      %v2942 = vld [vmem:[%s2929 + $0x60] sm:$0xff]
      %v2943 = vld [vmem:[%s2929 + $0x68] sm:$0xff]
      %v2944 = vld [vmem:[%s2929 + $0x70] sm:$0xff]
      %v2945 = vld [vmem:[%s2929 + $0x78] sm:$0xff]
      %v2946 = vld [vmem:[%s2929 + $0x80] sm:$0xff]
      %v2947 = vld [vmem:[%s2929 + $0x88] sm:$0xff]
      %v2948 = vld [vmem:[%s2929 + $0x90] sm:$0xff]
      %v2949 = vld [vmem:[%s2929 + $0x98] sm:$0xff]
      %v2950 = vld [vmem:[%s2929 + $0xa0] sm:$0xff]
      %v2951 = vld [vmem:[%s2929 + $0xa8] sm:$0xff]
      %v2952 = vld [vmem:[%s2929 + $0xb0] sm:$0xff]
      %v2953 = vld [vmem:[%s2929 + $0xb8] sm:$0xff]
      %v2954 = vld [vmem:[%s2929 + $0xc0] sm:$0xff]
      %v2955 = vld [vmem:[%s2929 + $0xc8] sm:$0xff]
      %v2956 = vld [vmem:[%s2929 + $0xd0] sm:$0xff]
      %v2957 = vld [vmem:[%s2929 + $0xd8] sm:$0xff]
      %v2958 = vld [vmem:[%s2929 + $0xe0] sm:$0xff]
      %v2959 = vld [vmem:[%s2929 + $0xe8] sm:$0xff]
      %v2960 = vld [vmem:[%s2929 + $0xf0] sm:$0xff]
      %v2961 = vld [vmem:[%s2929 + $0xf8] sm:$0xff]
      %v2994 = vunpack.c.l.b16 %v2930
      %v2995 = vunpack.c.h.b16 %v2930
      %v2996 = vunpack.c.l.b16 %v2931
      %v2997 = vunpack.c.h.b16 %v2931
      %v2998 = vunpack.c.l.b16 %v2932
      %v2999 = vunpack.c.h.b16 %v2932
      %v3000 = vunpack.c.l.b16 %v2933
      %v3001 = vunpack.c.h.b16 %v2933
      %v3002 = vunpack.c.l.b16 %v2934
      %v3003 = vunpack.c.h.b16 %v2934
      %v3004 = vunpack.c.l.b16 %v2935
      %v3005 = vunpack.c.h.b16 %v2935
      %v3006 = vunpack.c.l.b16 %v2936
      %v3007 = vunpack.c.h.b16 %v2936
      %v3008 = vunpack.c.l.b16 %v2937
      %v3009 = vunpack.c.h.b16 %v2937
      %v3010 = vunpack.c.l.b16 %v2938
      %v3011 = vunpack.c.h.b16 %v2938
      %v3012 = vunpack.c.l.b16 %v2939
      %v3013 = vunpack.c.h.b16 %v2939
      %v3014 = vunpack.c.l.b16 %v2940
      %v3015 = vunpack.c.h.b16 %v2940
      %v3016 = vunpack.c.l.b16 %v2941
      %v3017 = vunpack.c.h.b16 %v2941
      %v3018 = vunpack.c.l.b16 %v2942
      %v3019 = vunpack.c.h.b16 %v2942
      %v3020 = vunpack.c.l.b16 %v2943
      %v3021 = vunpack.c.h.b16 %v2943
      %v3022 = vunpack.c.l.b16 %v2944
      %v3023 = vunpack.c.h.b16 %v2944
      %v3024 = vunpack.c.l.b16 %v2945
      %v3025 = vunpack.c.h.b16 %v2945
      %v3026 = vunpack.c.l.b16 %v2946
      %v3027 = vunpack.c.h.b16 %v2946
      %v3028 = vunpack.c.l.b16 %v2947
      %v3029 = vunpack.c.h.b16 %v2947
      %v3030 = vunpack.c.l.b16 %v2948
      %v3031 = vunpack.c.h.b16 %v2948
      %v3032 = vunpack.c.l.b16 %v2949
      %v3033 = vunpack.c.h.b16 %v2949
      %v3034 = vunpack.c.l.b16 %v2950
      %v3035 = vunpack.c.h.b16 %v2950
      %v3036 = vunpack.c.l.b16 %v2951
      %v3037 = vunpack.c.h.b16 %v2951
      %v3038 = vunpack.c.l.b16 %v2952
      %v3039 = vunpack.c.h.b16 %v2952
      %v3040 = vunpack.c.l.b16 %v2953
      %v3041 = vunpack.c.h.b16 %v2953
      %v3042 = vunpack.c.l.b16 %v2954
      %v3043 = vunpack.c.h.b16 %v2954
      %v3044 = vunpack.c.l.b16 %v2955
      %v3045 = vunpack.c.h.b16 %v2955
      %v3046 = vunpack.c.l.b16 %v2956
      %v3047 = vunpack.c.h.b16 %v2956
      %v3048 = vunpack.c.l.b16 %v2957
      %v3049 = vunpack.c.h.b16 %v2957
      %v3050 = vunpack.c.l.b16 %v2958
      %v3051 = vunpack.c.h.b16 %v2958
      %v3052 = vunpack.c.l.b16 %v2959
      %v3053 = vunpack.c.h.b16 %v2959
      %v3054 = vunpack.c.l.b16 %v2960
      %v3055 = vunpack.c.h.b16 %v2960
      %v3056 = vunpack.c.l.b16 %v2961
      %v3057 = vunpack.c.h.b16 %v2961
      %v3058 = vpack.c.b16 %v2996, %v2994
      %v3059 = vpack.c.b16 %v2997, %v2995
      %v3060 = vpack.c.b16 %v3000, %v2998
      %v3061 = vpack.c.b16 %v3001, %v2999
      %v3062 = vpack.c.b16 %v3004, %v3002
      %v3063 = vpack.c.b16 %v3005, %v3003
      %v3064 = vpack.c.b16 %v3008, %v3006
      %v3065 = vpack.c.b16 %v3009, %v3007
      %v3066 = vpack.c.b16 %v3012, %v3010
      %v3067 = vpack.c.b16 %v3013, %v3011
      %v3068 = vpack.c.b16 %v3016, %v3014
      %v3069 = vpack.c.b16 %v3017, %v3015
      %v3070 = vpack.c.b16 %v3020, %v3018
      %v3071 = vpack.c.b16 %v3021, %v3019
      %v3072 = vpack.c.b16 %v3024, %v3022
      %v3073 = vpack.c.b16 %v3025, %v3023
      %v3074 = vpack.c.b16 %v3028, %v3026
      %v3075 = vpack.c.b16 %v3029, %v3027
      %v3076 = vpack.c.b16 %v3032, %v3030
      %v3077 = vpack.c.b16 %v3033, %v3031
      %v3078 = vpack.c.b16 %v3036, %v3034
      %v3079 = vpack.c.b16 %v3037, %v3035
      %v3080 = vpack.c.b16 %v3040, %v3038
      %v3081 = vpack.c.b16 %v3041, %v3039
      %v3082 = vpack.c.b16 %v3044, %v3042
      %v3083 = vpack.c.b16 %v3045, %v3043
      %v3084 = vpack.c.b16 %v3048, %v3046
      %v3085 = vpack.c.b16 %v3049, %v3047
      %v3086 = vpack.c.b16 %v3052, %v3050
      %v3087 = vpack.c.b16 %v3053, %v3051
      %v3088 = vpack.c.b16 %v3056, %v3054
      %v3089 = vpack.c.b16 %v3057, %v3055
      %3122 = vmatprep.subr.bf16.mxu0 0
      %3123 = vmatpush1.bf16.msra.mxu0 %v2160
      %3124 = vmatprep.subr.bf16.mxu0 0
      %3125 = vmatpush1.bf16.msra.mxu0 %v2164
      %3126 = vmatprep.subr.bf16.mxu0 0
      %3127 = vmatpush1.bf16.msra.mxu0 %v2168
      %3128 = vmatprep.subr.bf16.mxu0 0
      %3129 = vmatpush1.bf16.msra.mxu0 %v2172
      %3130 = vmatprep.subr.bf16.mxu0 0
      %3131 = vmatpush1.bf16.msra.mxu0 %v2176
      %3132 = vmatprep.subr.bf16.mxu0 0
      %3133 = vmatpush1.bf16.msra.mxu0 %v2180
      %3134 = vmatprep.subr.bf16.mxu0 0
      %3135 = vmatpush1.bf16.msra.mxu0 %v2184
      %3136 = vmatprep.subr.bf16.mxu0 0
      %3137 = vmatpush1.bf16.msra.mxu0 %v2188
      %3138 = vmatprep.subr.bf16.mxu0 0
      %3139 = vmatpush1.bf16.msra.mxu0 %v2192
      %3140 = vmatprep.subr.bf16.mxu0 0
      %3141 = vmatpush1.bf16.msra.mxu0 %v2196
      %3142 = vmatprep.subr.bf16.mxu0 0
      %3143 = vmatpush1.bf16.msra.mxu0 %v2200
      %3144 = vmatprep.subr.bf16.mxu0 0
      %3145 = vmatpush1.bf16.msra.mxu0 %v2204
      %3146 = vmatprep.subr.bf16.mxu0 0
      %3147 = vmatpush1.bf16.msra.mxu0 %v2208
      %3148 = vmatprep.subr.bf16.mxu0 0
      %3149 = vmatpush1.bf16.msra.mxu0 %v2212
      %3150 = vmatprep.subr.bf16.mxu0 0
      %3151 = vmatpush1.bf16.msra.mxu0 %v2216
      %3152 = vmatprep.subr.bf16.mxu0 0
      %3153 = vmatpush1.bf16.msra.mxu0 %v2220
      %3154 = vmatprep.mubr.bf16.mxu0 %v3059
      %3155 = vmatmul.mubr.bf16.gmra.mrb[0].mxu0 %v3058
      %v3156 = vpop.f32.mrb[0].mxu0
      %v3157 = vadd.f32 0.0, %v3156
      %v3158 = vpop.f32.mrb[0].mxu0
      %v3159 = vpop.f32.mrb[0].mxu0
      %v3160 = vadd.f32 0.0, %v3159
      %v3161 = vpop.f32.mrb[0].mxu0
      %3162 = vmatprep.mubr.bf16.mxu0 %v3061
      %3163 = vmatmul.mubr.bf16.gmra.mrb[0].mxu0 %v3060
      %v3164 = vpop.f32.mrb[0].mxu0
      %v3165 = vadd.f32 0.0, %v3164
      %v3166 = vpop.f32.mrb[0].mxu0
      %v3167 = vpop.f32.mrb[0].mxu0
      %v3168 = vadd.f32 0.0, %v3167
      %v3169 = vpop.f32.mrb[0].mxu0
      %3170 = vmatprep.mubr.bf16.mxu0 %v3063
      %3171 = vmatmul.mubr.bf16.gmra.mrb[0].mxu0 %v3062
      %v3172 = vpop.f32.mrb[0].mxu0
      %v3173 = vadd.f32 0.0, %v3172
      %v3174 = vpop.f32.mrb[0].mxu0
      %v3175 = vpop.f32.mrb[0].mxu0
      %v3176 = vadd.f32 0.0, %v3175
      %v3177 = vpop.f32.mrb[0].mxu0
      %3178 = vmatprep.mubr.bf16.mxu0 %v3065
      %3179 = vmatmul.mubr.bf16.gmra.mrb[0].mxu0 %v3064
      %v3180 = vpop.f32.mrb[0].mxu0
      %v3181 = vadd.f32 0.0, %v3180
      %v3182 = vpop.f32.mrb[0].mxu0
      %v3183 = vpop.f32.mrb[0].mxu0
      %v3184 = vadd.f32 0.0, %v3183
      %v3185 = vpop.f32.mrb[0].mxu0
      %3186 = vmatprep.mubr.bf16.mxu0 %v3067
      %3187 = vmatmul.mubr.bf16.gmra.mrb[0].mxu0 %v3066
      %v3188 = vpop.f32.mrb[0].mxu0
      %v3189 = vadd.f32 0.0, %v3188
      %v3190 = vpop.f32.mrb[0].mxu0
      %v3191 = vpop.f32.mrb[0].mxu0
      %v3192 = vadd.f32 0.0, %v3191
      %v3193 = vpop.f32.mrb[0].mxu0
      %3194 = vmatprep.mubr.bf16.mxu0 %v3069
      %3195 = vmatmul.mubr.bf16.gmra.mrb[0].mxu0 %v3068
      %v3196 = vpop.f32.mrb[0].mxu0
      %v3197 = vadd.f32 0.0, %v3196
      %v3198 = vpop.f32.mrb[0].mxu0
      %v3199 = vpop.f32.mrb[0].mxu0
      %v3200 = vadd.f32 0.0, %v3199
      %v3201 = vpop.f32.mrb[0].mxu0
      %3202 = vmatprep.mubr.bf16.mxu0 %v3071
      %3203 = vmatmul.mubr.bf16.gmra.mrb[0].mxu0 %v3070
      %v3204 = vpop.f32.mrb[0].mxu0
      %v3205 = vadd.f32 0.0, %v3204
      %v3206 = vpop.f32.mrb[0].mxu0
      %v3207 = vpop.f32.mrb[0].mxu0
      %v3208 = vadd.f32 0.0, %v3207
      %v3209 = vpop.f32.mrb[0].mxu0
      %3210 = vmatprep.mubr.bf16.mxu0 %v3073
      %3211 = vmatmul.mubr.bf16.gmra.mrb[0].mxu0 %v3072
      %v3212 = vpop.f32.mrb[0].mxu0
      %v3213 = vadd.f32 0.0, %v3212
      %v3214 = vpop.f32.mrb[0].mxu0
      %v3215 = vpop.f32.mrb[0].mxu0
      %v3216 = vadd.f32 0.0, %v3215
      %v3217 = vpop.f32.mrb[0].mxu0
      %3218 = vmatprep.mubr.bf16.mxu0 %v3075
      %3219 = vmatmul.mubr.bf16.gmra.mrb[0].mxu0 %v3074
      %v3220 = vpop.f32.mrb[0].mxu0
      %v3221 = vadd.f32 0.0, %v3220
      %v3222 = vpop.f32.mrb[0].mxu0
      %v3223 = vpop.f32.mrb[0].mxu0
      %v3224 = vadd.f32 0.0, %v3223
      %v3225 = vpop.f32.mrb[0].mxu0
      %3226 = vmatprep.mubr.bf16.mxu0 %v3077
      %3227 = vmatmul.mubr.bf16.gmra.mrb[0].mxu0 %v3076
      %v3228 = vpop.f32.mrb[0].mxu0
      %v3229 = vadd.f32 0.0, %v3228
      %v3230 = vpop.f32.mrb[0].mxu0
      %v3231 = vpop.f32.mrb[0].mxu0
      %v3232 = vadd.f32 0.0, %v3231
      %v3233 = vpop.f32.mrb[0].mxu0
      %3234 = vmatprep.mubr.bf16.mxu0 %v3079
      %3235 = vmatmul.mubr.bf16.gmra.mrb[0].mxu0 %v3078
      %v3236 = vpop.f32.mrb[0].mxu0
      %v3237 = vadd.f32 0.0, %v3236
      %v3238 = vpop.f32.mrb[0].mxu0
      %v3239 = vpop.f32.mrb[0].mxu0
      %v3240 = vadd.f32 0.0, %v3239
      %v3241 = vpop.f32.mrb[0].mxu0
      %3242 = vmatprep.mubr.bf16.mxu0 %v3081
      %3243 = vmatmul.mubr.bf16.gmra.mrb[0].mxu0 %v3080
      %v3244 = vpop.f32.mrb[0].mxu0
      %v3245 = vadd.f32 0.0, %v3244
      %v3246 = vpop.f32.mrb[0].mxu0
      %v3247 = vpop.f32.mrb[0].mxu0
      %v3248 = vadd.f32 0.0, %v3247
      %v3249 = vpop.f32.mrb[0].mxu0
      %3250 = vmatprep.mubr.bf16.mxu0 %v3083
      %3251 = vmatmul.mubr.bf16.gmra.mrb[0].mxu0 %v3082
      %v3252 = vpop.f32.mrb[0].mxu0
      %v3253 = vadd.f32 0.0, %v3252
      %v3254 = vpop.f32.mrb[0].mxu0
      %v3255 = vpop.f32.mrb[0].mxu0
      %v3256 = vadd.f32 0.0, %v3255
      %v3257 = vpop.f32.mrb[0].mxu0
      %3258 = vmatprep.mubr.bf16.mxu0 %v3085
      %3259 = vmatmul.mubr.bf16.gmra.mrb[0].mxu0 %v3084
      %v3260 = vpop.f32.mrb[0].mxu0
      %v3261 = vadd.f32 0.0, %v3260
      %v3262 = vpop.f32.mrb[0].mxu0
      %v3263 = vpop.f32.mrb[0].mxu0
      %v3264 = vadd.f32 0.0, %v3263
      %v3265 = vpop.f32.mrb[0].mxu0
      %3266 = vmatprep.mubr.bf16.mxu0 %v3087
      %3267 = vmatmul.mubr.bf16.gmra.mrb[0].mxu0 %v3086
      %v3268 = vpop.f32.mrb[0].mxu0
      %v3269 = vadd.f32 0.0, %v3268
      %v3270 = vpop.f32.mrb[0].mxu0
      %v3271 = vpop.f32.mrb[0].mxu0
      %v3272 = vadd.f32 0.0, %v3271
      %v3273 = vpop.f32.mrb[0].mxu0
      %3274 = vmatprep.mubr.bf16.mxu0 %v3089
      %3275 = vmatmul.mubr.bf16.gmra.mrb[0].mxu0 %v3088
      %v3276 = vpop.f32.mrb[0].mxu0
      %v3277 = vadd.f32 0.0, %v3276
      %v3278 = vpop.f32.mrb[0].mxu0
      %v3279 = vpop.f32.mrb[0].mxu0
      %v3280 = vadd.f32 0.0, %v3279
      %v3281 = vpop.f32.mrb[0].mxu0
      %3282 = vdwg.mxu0
      %v3283 = vadd.f32 %v2803, %v3157
      %v3284 = vadd.f32 %v2806, %v3160
      %v3285 = vadd.f32 %v2811, %v3165
      %v3286 = vadd.f32 %v2814, %v3168
      %v3287 = vadd.f32 %v2819, %v3173
      %v3288 = vadd.f32 %v2822, %v3176
      %v3289 = vadd.f32 %v2827, %v3181
      %v3290 = vadd.f32 %v2830, %v3184
      %v3291 = vadd.f32 %v2835, %v3189
      %v3292 = vadd.f32 %v2838, %v3192
      %v3293 = vadd.f32 %v2843, %v3197
      %v3294 = vadd.f32 %v2846, %v3200
      %v3295 = vadd.f32 %v2851, %v3205
      %v3296 = vadd.f32 %v2854, %v3208
      %v3297 = vadd.f32 %v2859, %v3213
      %v3298 = vadd.f32 %v2862, %v3216
      %v3299 = vadd.f32 %v2867, %v3221
      %v3300 = vadd.f32 %v2870, %v3224
      %v3301 = vadd.f32 %v2875, %v3229
      %v3302 = vadd.f32 %v2878, %v3232
      %v3303 = vadd.f32 %v2883, %v3237
      %v3304 = vadd.f32 %v2886, %v3240
      %v3305 = vadd.f32 %v2891, %v3245
      %v3306 = vadd.f32 %v2894, %v3248
      %v3307 = vadd.f32 %v2899, %v3253
      %v3308 = vadd.f32 %v2902, %v3256
      %v3309 = vadd.f32 %v2907, %v3261
      %v3310 = vadd.f32 %v2910, %v3264
      %v3311 = vadd.f32 %v2915, %v3269
      %v3312 = vadd.f32 %v2918, %v3272
      %v3313 = vadd.f32 %v2923, %v3277
      %v3314 = vadd.f32 %v2926, %v3280
      %s3315 = scalar_lea.vmem %s2, 768
      %v3316 = vld [vmem:[%s3315] sm:$0xff]
      %v3317 = vld [vmem:[%s3315 + $0x8] sm:$0xff]
      %v3318 = vld [vmem:[%s3315 + $0x10] sm:$0xff]
      %v3319 = vld [vmem:[%s3315 + $0x18] sm:$0xff]
      %v3320 = vld [vmem:[%s3315 + $0x20] sm:$0xff]
      %v3321 = vld [vmem:[%s3315 + $0x28] sm:$0xff]
      %v3322 = vld [vmem:[%s3315 + $0x30] sm:$0xff]
      %v3323 = vld [vmem:[%s3315 + $0x38] sm:$0xff]
      %v3324 = vld [vmem:[%s3315 + $0x40] sm:$0xff]
      %v3325 = vld [vmem:[%s3315 + $0x48] sm:$0xff]
      %v3326 = vld [vmem:[%s3315 + $0x50] sm:$0xff]
      %v3327 = vld [vmem:[%s3315 + $0x58] sm:$0xff]
      %v3328 = vld [vmem:[%s3315 + $0x60] sm:$0xff]
      %v3329 = vld [vmem:[%s3315 + $0x68] sm:$0xff]
      %v3330 = vld [vmem:[%s3315 + $0x70] sm:$0xff]
      %v3331 = vld [vmem:[%s3315 + $0x78] sm:$0xff]
      %v3332 = vld [vmem:[%s3315 + $0x80] sm:$0xff]
      %v3333 = vld [vmem:[%s3315 + $0x88] sm:$0xff]
      %v3334 = vld [vmem:[%s3315 + $0x90] sm:$0xff]
      %v3335 = vld [vmem:[%s3315 + $0x98] sm:$0xff]
      %v3336 = vld [vmem:[%s3315 + $0xa0] sm:$0xff]
      %v3337 = vld [vmem:[%s3315 + $0xa8] sm:$0xff]
      %v3338 = vld [vmem:[%s3315 + $0xb0] sm:$0xff]
      %v3339 = vld [vmem:[%s3315 + $0xb8] sm:$0xff]
      %v3340 = vld [vmem:[%s3315 + $0xc0] sm:$0xff]
      %v3341 = vld [vmem:[%s3315 + $0xc8] sm:$0xff]
      %v3342 = vld [vmem:[%s3315 + $0xd0] sm:$0xff]
      %v3343 = vld [vmem:[%s3315 + $0xd8] sm:$0xff]
      %v3344 = vld [vmem:[%s3315 + $0xe0] sm:$0xff]
      %v3345 = vld [vmem:[%s3315 + $0xe8] sm:$0xff]
      %v3346 = vld [vmem:[%s3315 + $0xf0] sm:$0xff]
      %v3347 = vld [vmem:[%s3315 + $0xf8] sm:$0xff]
      %v3380 = vunpack.c.l.b16 %v3316
      %v3381 = vunpack.c.h.b16 %v3316
      %v3382 = vunpack.c.l.b16 %v3317
      %v3383 = vunpack.c.h.b16 %v3317
      %v3384 = vunpack.c.l.b16 %v3318
      %v3385 = vunpack.c.h.b16 %v3318
      %v3386 = vunpack.c.l.b16 %v3319
      %v3387 = vunpack.c.h.b16 %v3319
      %v3388 = vunpack.c.l.b16 %v3320
      %v3389 = vunpack.c.h.b16 %v3320
      %v3390 = vunpack.c.l.b16 %v3321
      %v3391 = vunpack.c.h.b16 %v3321
      %v3392 = vunpack.c.l.b16 %v3322
      %v3393 = vunpack.c.h.b16 %v3322
      %v3394 = vunpack.c.l.b16 %v3323
      %v3395 = vunpack.c.h.b16 %v3323
      %v3396 = vunpack.c.l.b16 %v3324
      %v3397 = vunpack.c.h.b16 %v3324
      %v3398 = vunpack.c.l.b16 %v3325
      %v3399 = vunpack.c.h.b16 %v3325
      %v3400 = vunpack.c.l.b16 %v3326
      %v3401 = vunpack.c.h.b16 %v3326
      %v3402 = vunpack.c.l.b16 %v3327
      %v3403 = vunpack.c.h.b16 %v3327
      %v3404 = vunpack.c.l.b16 %v3328
      %v3405 = vunpack.c.h.b16 %v3328
      %v3406 = vunpack.c.l.b16 %v3329
      %v3407 = vunpack.c.h.b16 %v3329
      %v3408 = vunpack.c.l.b16 %v3330
      %v3409 = vunpack.c.h.b16 %v3330
      %v3410 = vunpack.c.l.b16 %v3331
      %v3411 = vunpack.c.h.b16 %v3331
      %v3412 = vunpack.c.l.b16 %v3332
      %v3413 = vunpack.c.h.b16 %v3332
      %v3414 = vunpack.c.l.b16 %v3333
      %v3415 = vunpack.c.h.b16 %v3333
      %v3416 = vunpack.c.l.b16 %v3334
      %v3417 = vunpack.c.h.b16 %v3334
      %v3418 = vunpack.c.l.b16 %v3335
      %v3419 = vunpack.c.h.b16 %v3335
      %v3420 = vunpack.c.l.b16 %v3336
      %v3421 = vunpack.c.h.b16 %v3336
      %v3422 = vunpack.c.l.b16 %v3337
      %v3423 = vunpack.c.h.b16 %v3337
      %v3424 = vunpack.c.l.b16 %v3338
      %v3425 = vunpack.c.h.b16 %v3338
      %v3426 = vunpack.c.l.b16 %v3339
      %v3427 = vunpack.c.h.b16 %v3339
      %v3428 = vunpack.c.l.b16 %v3340
      %v3429 = vunpack.c.h.b16 %v3340
      %v3430 = vunpack.c.l.b16 %v3341
      %v3431 = vunpack.c.h.b16 %v3341
      %v3432 = vunpack.c.l.b16 %v3342
      %v3433 = vunpack.c.h.b16 %v3342
      %v3434 = vunpack.c.l.b16 %v3343
      %v3435 = vunpack.c.h.b16 %v3343
      %v3436 = vunpack.c.l.b16 %v3344
      %v3437 = vunpack.c.h.b16 %v3344
      %v3438 = vunpack.c.l.b16 %v3345
      %v3439 = vunpack.c.h.b16 %v3345
      %v3440 = vunpack.c.l.b16 %v3346
      %v3441 = vunpack.c.h.b16 %v3346
      %v3442 = vunpack.c.l.b16 %v3347
      %v3443 = vunpack.c.h.b16 %v3347
      %v3444 = vpack.c.b16 %v3382, %v3380
      %v3445 = vpack.c.b16 %v3383, %v3381
      %v3446 = vpack.c.b16 %v3386, %v3384
      %v3447 = vpack.c.b16 %v3387, %v3385
      %v3448 = vpack.c.b16 %v3390, %v3388
      %v3449 = vpack.c.b16 %v3391, %v3389
      %v3450 = vpack.c.b16 %v3394, %v3392
      %v3451 = vpack.c.b16 %v3395, %v3393
      %v3452 = vpack.c.b16 %v3398, %v3396
      %v3453 = vpack.c.b16 %v3399, %v3397
      %v3454 = vpack.c.b16 %v3402, %v3400
      %v3455 = vpack.c.b16 %v3403, %v3401
      %v3456 = vpack.c.b16 %v3406, %v3404
      %v3457 = vpack.c.b16 %v3407, %v3405
      %v3458 = vpack.c.b16 %v3410, %v3408
      %v3459 = vpack.c.b16 %v3411, %v3409
      %v3460 = vpack.c.b16 %v3414, %v3412
      %v3461 = vpack.c.b16 %v3415, %v3413
      %v3462 = vpack.c.b16 %v3418, %v3416
      %v3463 = vpack.c.b16 %v3419, %v3417
      %v3464 = vpack.c.b16 %v3422, %v3420
      %v3465 = vpack.c.b16 %v3423, %v3421
      %v3466 = vpack.c.b16 %v3426, %v3424
      %v3467 = vpack.c.b16 %v3427, %v3425
      %v3468 = vpack.c.b16 %v3430, %v3428
      %v3469 = vpack.c.b16 %v3431, %v3429
      %v3470 = vpack.c.b16 %v3434, %v3432
      %v3471 = vpack.c.b16 %v3435, %v3433
      %v3472 = vpack.c.b16 %v3438, %v3436
      %v3473 = vpack.c.b16 %v3439, %v3437
      %v3474 = vpack.c.b16 %v3442, %v3440
      %v3475 = vpack.c.b16 %v3443, %v3441
      %3508 = vmatprep.subr.bf16.mxu0 0
      %3509 = vmatpush1.bf16.msra.mxu0 %v2161
      %3510 = vmatprep.subr.bf16.mxu0 0
      %3511 = vmatpush1.bf16.msra.mxu0 %v2165
      %3512 = vmatprep.subr.bf16.mxu0 0
      %3513 = vmatpush1.bf16.msra.mxu0 %v2169
      %3514 = vmatprep.subr.bf16.mxu0 0
      %3515 = vmatpush1.bf16.msra.mxu0 %v2173
      %3516 = vmatprep.subr.bf16.mxu0 0
      %3517 = vmatpush1.bf16.msra.mxu0 %v2177
      %3518 = vmatprep.subr.bf16.mxu0 0
      %3519 = vmatpush1.bf16.msra.mxu0 %v2181
      %3520 = vmatprep.subr.bf16.mxu0 0
      %3521 = vmatpush1.bf16.msra.mxu0 %v2185
      %3522 = vmatprep.subr.bf16.mxu0 0
      %3523 = vmatpush1.bf16.msra.mxu0 %v2189
      %3524 = vmatprep.subr.bf16.mxu0 0
      %3525 = vmatpush1.bf16.msra.mxu0 %v2193
      %3526 = vmatprep.subr.bf16.mxu0 0
      %3527 = vmatpush1.bf16.msra.mxu0 %v2197
      %3528 = vmatprep.subr.bf16.mxu0 0
      %3529 = vmatpush1.bf16.msra.mxu0 %v2201
      %3530 = vmatprep.subr.bf16.mxu0 0
      %3531 = vmatpush1.bf16.msra.mxu0 %v2205
      %3532 = vmatprep.subr.bf16.mxu0 0
      %3533 = vmatpush1.bf16.msra.mxu0 %v2209
      %3534 = vmatprep.subr.bf16.mxu0 0
      %3535 = vmatpush1.bf16.msra.mxu0 %v2213
      %3536 = vmatprep.subr.bf16.mxu0 0
      %3537 = vmatpush1.bf16.msra.mxu0 %v2217
      %3538 = vmatprep.subr.bf16.mxu0 0
      %3539 = vmatpush1.bf16.msra.mxu0 %v2221
      %3540 = vmatprep.mubr.bf16.mxu0 %v3445
      %3541 = vmatmul.mubr.bf16.gmra.mrb[0].mxu0 %v3444
      %v3542 = vpop.f32.mrb[0].mxu0
      %v3543 = vadd.f32 0.0, %v3542
      %v3544 = vpop.f32.mrb[0].mxu0
      %v3545 = vpop.f32.mrb[0].mxu0
      %v3546 = vadd.f32 0.0, %v3545
      %v3547 = vpop.f32.mrb[0].mxu0
      %3548 = vmatprep.mubr.bf16.mxu0 %v3447
      %3549 = vmatmul.mubr.bf16.gmra.mrb[0].mxu0 %v3446
      %v3550 = vpop.f32.mrb[0].mxu0
      %v3551 = vadd.f32 0.0, %v3550
      %v3552 = vpop.f32.mrb[0].mxu0
      %v3553 = vpop.f32.mrb[0].mxu0
      %v3554 = vadd.f32 0.0, %v3553
      %v3555 = vpop.f32.mrb[0].mxu0
      %3556 = vmatprep.mubr.bf16.mxu0 %v3449
      %3557 = vmatmul.mubr.bf16.gmra.mrb[0].mxu0 %v3448
      %v3558 = vpop.f32.mrb[0].mxu0
      %v3559 = vadd.f32 0.0, %v3558
      %v3560 = vpop.f32.mrb[0].mxu0
      %v3561 = vpop.f32.mrb[0].mxu0
      %v3562 = vadd.f32 0.0, %v3561
      %v3563 = vpop.f32.mrb[0].mxu0
      %3564 = vmatprep.mubr.bf16.mxu0 %v3451
      %3565 = vmatmul.mubr.bf16.gmra.mrb[0].mxu0 %v3450
      %v3566 = vpop.f32.mrb[0].mxu0
      %v3567 = vadd.f32 0.0, %v3566
      %v3568 = vpop.f32.mrb[0].mxu0
      %v3569 = vpop.f32.mrb[0].mxu0
      %v3570 = vadd.f32 0.0, %v3569
      %v3571 = vpop.f32.mrb[0].mxu0
      %3572 = vmatprep.mubr.bf16.mxu0 %v3453
      %3573 = vmatmul.mubr.bf16.gmra.mrb[0].mxu0 %v3452
      %v3574 = vpop.f32.mrb[0].mxu0
      %v3575 = vadd.f32 0.0, %v3574
      %v3576 = vpop.f32.mrb[0].mxu0
      %v3577 = vpop.f32.mrb[0].mxu0
      %v3578 = vadd.f32 0.0, %v3577
      %v3579 = vpop.f32.mrb[0].mxu0
      %3580 = vmatprep.mubr.bf16.mxu0 %v3455
      %3581 = vmatmul.mubr.bf16.gmra.mrb[0].mxu0 %v3454
      %v3582 = vpop.f32.mrb[0].mxu0
      %v3583 = vadd.f32 0.0, %v3582
      %v3584 = vpop.f32.mrb[0].mxu0
      %v3585 = vpop.f32.mrb[0].mxu0
      %v3586 = vadd.f32 0.0, %v3585
      %v3587 = vpop.f32.mrb[0].mxu0
      %3588 = vmatprep.mubr.bf16.mxu0 %v3457
      %3589 = vmatmul.mubr.bf16.gmra.mrb[0].mxu0 %v3456
      %v3590 = vpop.f32.mrb[0].mxu0
      %v3591 = vadd.f32 0.0, %v3590
      %v3592 = vpop.f32.mrb[0].mxu0
      %v3593 = vpop.f32.mrb[0].mxu0
      %v3594 = vadd.f32 0.0, %v3593
      %v3595 = vpop.f32.mrb[0].mxu0
      %3596 = vmatprep.mubr.bf16.mxu0 %v3459
      %3597 = vmatmul.mubr.bf16.gmra.mrb[0].mxu0 %v3458
      %v3598 = vpop.f32.mrb[0].mxu0
      %v3599 = vadd.f32 0.0, %v3598
      %v3600 = vpop.f32.mrb[0].mxu0
      %v3601 = vpop.f32.mrb[0].mxu0
      %v3602 = vadd.f32 0.0, %v3601
      %v3603 = vpop.f32.mrb[0].mxu0
      %3604 = vmatprep.mubr.bf16.mxu0 %v3461
      %3605 = vmatmul.mubr.bf16.gmra.mrb[0].mxu0 %v3460
      %v3606 = vpop.f32.mrb[0].mxu0
      %v3607 = vadd.f32 0.0, %v3606
      %v3608 = vpop.f32.mrb[0].mxu0
      %v3609 = vpop.f32.mrb[0].mxu0
      %v3610 = vadd.f32 0.0, %v3609
      %v3611 = vpop.f32.mrb[0].mxu0
      %3612 = vmatprep.mubr.bf16.mxu0 %v3463
      %3613 = vmatmul.mubr.bf16.gmra.mrb[0].mxu0 %v3462
      %v3614 = vpop.f32.mrb[0].mxu0
      %v3615 = vadd.f32 0.0, %v3614
      %v3616 = vpop.f32.mrb[0].mxu0
      %v3617 = vpop.f32.mrb[0].mxu0
      %v3618 = vadd.f32 0.0, %v3617
      %v3619 = vpop.f32.mrb[0].mxu0
      %3620 = vmatprep.mubr.bf16.mxu0 %v3465
      %3621 = vmatmul.mubr.bf16.gmra.mrb[0].mxu0 %v3464
      %v3622 = vpop.f32.mrb[0].mxu0
      %v3623 = vadd.f32 0.0, %v3622
      %v3624 = vpop.f32.mrb[0].mxu0
      %v3625 = vpop.f32.mrb[0].mxu0
      %v3626 = vadd.f32 0.0, %v3625
      %v3627 = vpop.f32.mrb[0].mxu0
      %3628 = vmatprep.mubr.bf16.mxu0 %v3467
      %3629 = vmatmul.mubr.bf16.gmra.mrb[0].mxu0 %v3466
      %v3630 = vpop.f32.mrb[0].mxu0
      %v3631 = vadd.f32 0.0, %v3630
      %v3632 = vpop.f32.mrb[0].mxu0
      %v3633 = vpop.f32.mrb[0].mxu0
      %v3634 = vadd.f32 0.0, %v3633
      %v3635 = vpop.f32.mrb[0].mxu0
      %3636 = vmatprep.mubr.bf16.mxu0 %v3469
      %3637 = vmatmul.mubr.bf16.gmra.mrb[0].mxu0 %v3468
      %v3638 = vpop.f32.mrb[0].mxu0
      %v3639 = vadd.f32 0.0, %v3638
      %v3640 = vpop.f32.mrb[0].mxu0
      %v3641 = vpop.f32.mrb[0].mxu0
      %v3642 = vadd.f32 0.0, %v3641
      %v3643 = vpop.f32.mrb[0].mxu0
      %3644 = vmatprep.mubr.bf16.mxu0 %v3471
      %3645 = vmatmul.mubr.bf16.gmra.mrb[0].mxu0 %v3470
      %v3646 = vpop.f32.mrb[0].mxu0
      %v3647 = vadd.f32 0.0, %v3646
      %v3648 = vpop.f32.mrb[0].mxu0
      %v3649 = vpop.f32.mrb[0].mxu0
      %v3650 = vadd.f32 0.0, %v3649
      %v3651 = vpop.f32.mrb[0].mxu0
      %3652 = vmatprep.mubr.bf16.mxu0 %v3473
      %3653 = vmatmul.mubr.bf16.gmra.mrb[0].mxu0 %v3472
      %v3654 = vpop.f32.mrb[0].mxu0
      %v3655 = vadd.f32 0.0, %v3654
      %v3656 = vpop.f32.mrb[0].mxu0
      %v3657 = vpop.f32.mrb[0].mxu0
      %v3658 = vadd.f32 0.0, %v3657
      %v3659 = vpop.f32.mrb[0].mxu0
      %3660 = vmatprep.mubr.bf16.mxu0 %v3475
      %3661 = vmatmul.mubr.bf16.gmra.mrb[0].mxu0 %v3474
      %v3662 = vpop.f32.mrb[0].mxu0
      %v3663 = vadd.f32 0.0, %v3662
      %v3664 = vpop.f32.mrb[0].mxu0
      %v3665 = vpop.f32.mrb[0].mxu0
      %v3666 = vadd.f32 0.0, %v3665
      %v3667 = vpop.f32.mrb[0].mxu0
      %3668 = vdwg.mxu0
      %v3669 = vadd.f32 %v3283, %v3543
      %v3670 = vadd.f32 %v3284, %v3546
      %v3671 = vadd.f32 %v3285, %v3551
      %v3672 = vadd.f32 %v3286, %v3554
      %v3673 = vadd.f32 %v3287, %v3559
      %v3674 = vadd.f32 %v3288, %v3562
      %v3675 = vadd.f32 %v3289, %v3567
      %v3676 = vadd.f32 %v3290, %v3570
      %v3677 = vadd.f32 %v3291, %v3575
      %v3678 = vadd.f32 %v3292, %v3578
      %v3679 = vadd.f32 %v3293, %v3583
      %v3680 = vadd.f32 %v3294, %v3586
      %v3681 = vadd.f32 %v3295, %v3591
      %v3682 = vadd.f32 %v3296, %v3594
      %v3683 = vadd.f32 %v3297, %v3599
      %v3684 = vadd.f32 %v3298, %v3602
      %v3685 = vadd.f32 %v3299, %v3607
      %v3686 = vadd.f32 %v3300, %v3610
      %v3687 = vadd.f32 %v3301, %v3615
      %v3688 = vadd.f32 %v3302, %v3618
      %v3689 = vadd.f32 %v3303, %v3623
      %v3690 = vadd.f32 %v3304, %v3626
      %v3691 = vadd.f32 %v3305, %v3631
      %v3692 = vadd.f32 %v3306, %v3634
      %v3693 = vadd.f32 %v3307, %v3639
      %v3694 = vadd.f32 %v3308, %v3642
      %v3695 = vadd.f32 %v3309, %v3647
      %v3696 = vadd.f32 %v3310, %v3650
      %v3697 = vadd.f32 %v3311, %v3655
      %v3698 = vadd.f32 %v3312, %v3658
      %v3699 = vadd.f32 %v3313, %v3663
      %v3700 = vadd.f32 %v3314, %v3666
      %3701 = vset.pattern.permute.xlu0 1
      %3702 = vperm.xlu0 %3701, %v491
      %v3703 = vpop.permute.xlu0 %3702
      %3705 = vset.pattern.permute.xlu0 1
      %3706 = vperm.xlu0 %3705, %v492
      %v3707 = vpop.permute.xlu0 %3706
      %3709 = vset.pattern.permute.xlu0 1
      %3710 = vperm.xlu0 %3709, %v493
      %v3711 = vpop.permute.xlu0 %3710
      %3713 = vset.pattern.permute.xlu0 1
      %3714 = vperm.xlu0 %3713, %v494
      %v3715 = vpop.permute.xlu0 %3714
      %3717 = vset.pattern.permute.xlu0 1
      %3718 = vperm.xlu0 %3717, %v495
      %v3719 = vpop.permute.xlu0 %3718
      %3721 = vset.pattern.permute.xlu0 1
      %3722 = vperm.xlu0 %3721, %v496
      %v3723 = vpop.permute.xlu0 %3722
      %3725 = vset.pattern.permute.xlu0 1
      %3726 = vperm.xlu0 %3725, %v497
      %v3727 = vpop.permute.xlu0 %3726
      %3729 = vset.pattern.permute.xlu0 1
      %3730 = vperm.xlu0 %3729, %v498
      %v3731 = vpop.permute.xlu0 %3730
      %3733 = vset.pattern.permute.xlu0 1
      %3734 = vperm.xlu0 %3733, %v499
      %v3735 = vpop.permute.xlu0 %3734
      %3737 = vset.pattern.permute.xlu0 1
      %3738 = vperm.xlu0 %3737, %v500
      %v3739 = vpop.permute.xlu0 %3738
      %3741 = vset.pattern.permute.xlu0 1
      %3742 = vperm.xlu0 %3741, %v501
      %v3743 = vpop.permute.xlu0 %3742
      %3745 = vset.pattern.permute.xlu0 1
      %3746 = vperm.xlu0 %3745, %v502
      %v3747 = vpop.permute.xlu0 %3746
      %3749 = vset.pattern.permute.xlu0 1
      %3750 = vperm.xlu0 %3749, %v503
      %v3751 = vpop.permute.xlu0 %3750
      %3753 = vset.pattern.permute.xlu0 1
      %3754 = vperm.xlu0 %3753, %v504
      %v3755 = vpop.permute.xlu0 %3754
      %3757 = vset.pattern.permute.xlu0 1
      %3758 = vperm.xlu0 %3757, %v505
      %v3759 = vpop.permute.xlu0 %3758
      %3761 = vset.pattern.permute.xlu0 1
      %3762 = vperm.xlu0 %3761, %v506
      %v3763 = vpop.permute.xlu0 %3762
      %3765 = vset.pattern.permute.xlu0 1
      %3766 = vperm.xlu0 %3765, %v507
      %v3767 = vpop.permute.xlu0 %3766
      %3769 = vset.pattern.permute.xlu0 1
      %3770 = vperm.xlu0 %3769, %v508
      %v3771 = vpop.permute.xlu0 %3770
      %3773 = vset.pattern.permute.xlu0 1
      %3774 = vperm.xlu0 %3773, %v509
      %v3775 = vpop.permute.xlu0 %3774
      %3777 = vset.pattern.permute.xlu0 1
      %3778 = vperm.xlu0 %3777, %v510
      %v3779 = vpop.permute.xlu0 %3778
      %3781 = vset.pattern.permute.xlu0 1
      %3782 = vperm.xlu0 %3781, %v511
      %v3783 = vpop.permute.xlu0 %3782
      %3785 = vset.pattern.permute.xlu0 1
      %3786 = vperm.xlu0 %3785, %v512
      %v3787 = vpop.permute.xlu0 %3786
      %3789 = vset.pattern.permute.xlu0 1
      %3790 = vperm.xlu0 %3789, %v513
      %v3791 = vpop.permute.xlu0 %3790
      %3793 = vset.pattern.permute.xlu0 1
      %3794 = vperm.xlu0 %3793, %v514
      %v3795 = vpop.permute.xlu0 %3794
      %3797 = vset.pattern.permute.xlu0 1
      %3798 = vperm.xlu0 %3797, %v515
      %v3799 = vpop.permute.xlu0 %3798
      %3801 = vset.pattern.permute.xlu0 1
      %3802 = vperm.xlu0 %3801, %v516
      %v3803 = vpop.permute.xlu0 %3802
      %3805 = vset.pattern.permute.xlu0 1
      %3806 = vperm.xlu0 %3805, %v517
      %v3807 = vpop.permute.xlu0 %3806
      %3809 = vset.pattern.permute.xlu0 1
      %3810 = vperm.xlu0 %3809, %v518
      %v3811 = vpop.permute.xlu0 %3810
      %3813 = vset.pattern.permute.xlu0 1
      %3814 = vperm.xlu0 %3813, %v519
      %v3815 = vpop.permute.xlu0 %3814
      %3817 = vset.pattern.permute.xlu0 1
      %3818 = vperm.xlu0 %3817, %v520
      %v3819 = vpop.permute.xlu0 %3818
      %3821 = vset.pattern.permute.xlu0 1
      %3822 = vperm.xlu0 %3821, %v521
      %v3823 = vpop.permute.xlu0 %3822
      %3825 = vset.pattern.permute.xlu0 1
      %3826 = vperm.xlu0 %3825, %v522
      %v3827 = vpop.permute.xlu0 %3826
      %v3829 = vadd.f32 %v3669, %v3703
      %v3830 = vadd.f32 %v3670, %v3707
      %v3831 = vadd.f32 %v3671, %v3711
      %v3832 = vadd.f32 %v3672, %v3715
      %v3833 = vadd.f32 %v3673, %v3719
      %v3834 = vadd.f32 %v3674, %v3723
      %v3835 = vadd.f32 %v3675, %v3727
      %v3836 = vadd.f32 %v3676, %v3731
      %v3837 = vadd.f32 %v3677, %v3735
      %v3838 = vadd.f32 %v3678, %v3739
      %v3839 = vadd.f32 %v3679, %v3743
      %v3840 = vadd.f32 %v3680, %v3747
      %v3841 = vadd.f32 %v3681, %v3751
      %v3842 = vadd.f32 %v3682, %v3755
      %v3843 = vadd.f32 %v3683, %v3759
      %v3844 = vadd.f32 %v3684, %v3763
      %v3845 = vadd.f32 %v3685, %v3767
      %v3846 = vadd.f32 %v3686, %v3771
      %v3847 = vadd.f32 %v3687, %v3775
      %v3848 = vadd.f32 %v3688, %v3779
      %v3849 = vadd.f32 %v3689, %v3783
      %v3850 = vadd.f32 %v3690, %v3787
      %v3851 = vadd.f32 %v3691, %v3791
      %v3852 = vadd.f32 %v3692, %v3795
      %v3853 = vadd.f32 %v3693, %v3799
      %v3854 = vadd.f32 %v3694, %v3803
      %v3855 = vadd.f32 %v3695, %v3807
      %v3856 = vadd.f32 %v3696, %v3811
      %v3857 = vadd.f32 %v3697, %v3815
      %v3858 = vadd.f32 %v3698, %v3819
      %v3859 = vadd.f32 %v3699, %v3823
      %v3860 = vadd.f32 %v3700, %v3827
      %v3861 = vmax.f32 %v3829, 0.0
      %v3862 = vmax.f32 %v3830, 0.0
      %v3863 = vmax.f32 %v3831, 0.0
      %v3864 = vmax.f32 %v3832, 0.0
      %v3865 = vmax.f32 %v3833, 0.0
      %v3866 = vmax.f32 %v3834, 0.0
      %v3867 = vmax.f32 %v3835, 0.0
      %v3868 = vmax.f32 %v3836, 0.0
      %v3869 = vmax.f32 %v3837, 0.0
      %v3870 = vmax.f32 %v3838, 0.0
      %v3871 = vmax.f32 %v3839, 0.0
      %v3872 = vmax.f32 %v3840, 0.0
      %v3873 = vmax.f32 %v3841, 0.0
      %v3874 = vmax.f32 %v3842, 0.0
      %v3875 = vmax.f32 %v3843, 0.0
      %v3876 = vmax.f32 %v3844, 0.0
      %v3877 = vmax.f32 %v3845, 0.0
      %v3878 = vmax.f32 %v3846, 0.0
      %v3879 = vmax.f32 %v3847, 0.0
      %v3880 = vmax.f32 %v3848, 0.0
      %v3881 = vmax.f32 %v3849, 0.0
      %v3882 = vmax.f32 %v3850, 0.0
      %v3883 = vmax.f32 %v3851, 0.0
      %v3884 = vmax.f32 %v3852, 0.0
      %v3885 = vmax.f32 %v3853, 0.0
      %v3886 = vmax.f32 %v3854, 0.0
      %v3887 = vmax.f32 %v3855, 0.0
      %v3888 = vmax.f32 %v3856, 0.0
      %v3889 = vmax.f32 %v3857, 0.0
      %v3890 = vmax.f32 %v3858, 0.0
      %v3891 = vmax.f32 %v3859, 0.0
      %v3892 = vmax.f32 %v3860, 0.0
      %v3893 = vpack.c.bf16 %v3862, %v3861
      %v3894 = vpack.c.bf16 %v3864, %v3863
      %v3895 = vpack.c.bf16 %v3866, %v3865
      %v3896 = vpack.c.bf16 %v3868, %v3867
      %v3897 = vpack.c.bf16 %v3870, %v3869
      %v3898 = vpack.c.bf16 %v3872, %v3871
      %v3899 = vpack.c.bf16 %v3874, %v3873
      %v3900 = vpack.c.bf16 %v3876, %v3875
      %v3901 = vpack.c.bf16 %v3878, %v3877
      %v3902 = vpack.c.bf16 %v3880, %v3879
      %v3903 = vpack.c.bf16 %v3882, %v3881
      %v3904 = vpack.c.bf16 %v3884, %v3883
      %v3905 = vpack.c.bf16 %v3886, %v3885
      %v3906 = vpack.c.bf16 %v3888, %v3887
      %v3907 = vpack.c.bf16 %v3890, %v3889
      %v3908 = vpack.c.bf16 %v3892, %v3891
      %v3925 = vunpack.c.l.b16 %v3893
      %v3926 = vunpack.c.h.b16 %v3893
      %v3927 = vunpack.c.l.b16 %v3894
      %v3928 = vunpack.c.h.b16 %v3894
      %v3929 = vunpack.c.l.b16 %v3895
      %v3930 = vunpack.c.h.b16 %v3895
      %v3931 = vunpack.c.l.b16 %v3896
      %v3932 = vunpack.c.h.b16 %v3896
      %v3933 = vunpack.c.l.b16 %v3897
      %v3934 = vunpack.c.h.b16 %v3897
      %v3935 = vunpack.c.l.b16 %v3898
      %v3936 = vunpack.c.h.b16 %v3898
      %v3937 = vunpack.c.l.b16 %v3899
      %v3938 = vunpack.c.h.b16 %v3899
      %v3939 = vunpack.c.l.b16 %v3900
      %v3940 = vunpack.c.h.b16 %v3900
      %v3941 = vunpack.c.l.b16 %v3901
      %v3942 = vunpack.c.h.b16 %v3901
      %v3943 = vunpack.c.l.b16 %v3902
      %v3944 = vunpack.c.h.b16 %v3902
      %v3945 = vunpack.c.l.b16 %v3903
      %v3946 = vunpack.c.h.b16 %v3903
      %v3947 = vunpack.c.l.b16 %v3904
      %v3948 = vunpack.c.h.b16 %v3904
      %v3949 = vunpack.c.l.b16 %v3905
      %v3950 = vunpack.c.h.b16 %v3905
      %v3951 = vunpack.c.l.b16 %v3906
      %v3952 = vunpack.c.h.b16 %v3906
      %v3953 = vunpack.c.l.b16 %v3907
      %v3954 = vunpack.c.h.b16 %v3907
      %v3955 = vunpack.c.l.b16 %v3908
      %v3956 = vunpack.c.h.b16 %v3908
      %v3957 = vpack.c.b16 %v3925, %v3925
      %v3958 = vpack.c.b16 %v3926, %v3926
      %v3959 = vpack.c.b16 %v3927, %v3927
      %v3960 = vpack.c.b16 %v3928, %v3928
      %v3961 = vpack.c.b16 %v3929, %v3929
      %v3962 = vpack.c.b16 %v3930, %v3930
      %v3963 = vpack.c.b16 %v3931, %v3931
      %v3964 = vpack.c.b16 %v3932, %v3932
      %v3965 = vpack.c.b16 %v3933, %v3933
      %v3966 = vpack.c.b16 %v3934, %v3934
      %v3967 = vpack.c.b16 %v3935, %v3935
      %v3968 = vpack.c.b16 %v3936, %v3936
      %v3969 = vpack.c.b16 %v3937, %v3937
      %v3970 = vpack.c.b16 %v3938, %v3938
      %v3971 = vpack.c.b16 %v3939, %v3939
      %v3972 = vpack.c.b16 %v3940, %v3940
      %v3973 = vpack.c.b16 %v3941, %v3941
      %v3974 = vpack.c.b16 %v3942, %v3942
      %v3975 = vpack.c.b16 %v3943, %v3943
      %v3976 = vpack.c.b16 %v3944, %v3944
      %v3977 = vpack.c.b16 %v3945, %v3945
      %v3978 = vpack.c.b16 %v3946, %v3946
      %v3979 = vpack.c.b16 %v3947, %v3947
      %v3980 = vpack.c.b16 %v3948, %v3948
      %v3981 = vpack.c.b16 %v3949, %v3949
      %v3982 = vpack.c.b16 %v3950, %v3950
      %v3983 = vpack.c.b16 %v3951, %v3951
      %v3984 = vpack.c.b16 %v3952, %v3952
      %v3985 = vpack.c.b16 %v3953, %v3953
      %v3986 = vpack.c.b16 %v3954, %v3954
      %v3987 = vpack.c.b16 %v3955, %v3955
      %v3988 = vpack.c.b16 %v3956, %v3956
      %vm4021 = vcmask 519168
      %4022 = vst.msk [vmem:[%s474] sm:$0xf] %vm4021, %v3957
      %4023 = vst.msk [vmem:[%s474 + $0x4] sm:$0xf] %vm4021, %v3958
      %4024 = vst.msk [vmem:[%s474 + $0x8] sm:$0xf] %vm4021, %v3959
      %4025 = vst.msk [vmem:[%s474 + $0xc] sm:$0xf] %vm4021, %v3960
      %4026 = vst.msk [vmem:[%s474 + $0x10] sm:$0xf] %vm4021, %v3961
      %4027 = vst.msk [vmem:[%s474 + $0x14] sm:$0xf] %vm4021, %v3962
      %4028 = vst.msk [vmem:[%s474 + $0x18] sm:$0xf] %vm4021, %v3963
      %4029 = vst.msk [vmem:[%s474 + $0x1c] sm:$0xf] %vm4021, %v3964
      %4030 = vst.msk [vmem:[%s474 + $0x20] sm:$0xf] %vm4021, %v3965
      %4031 = vst.msk [vmem:[%s474 + $0x24] sm:$0xf] %vm4021, %v3966
      %4032 = vst.msk [vmem:[%s474 + $0x28] sm:$0xf] %vm4021, %v3967
      %4033 = vst.msk [vmem:[%s474 + $0x2c] sm:$0xf] %vm4021, %v3968
      %4034 = vst.msk [vmem:[%s474 + $0x30] sm:$0xf] %vm4021, %v3969
      %4035 = vst.msk [vmem:[%s474 + $0x34] sm:$0xf] %vm4021, %v3970
      %4036 = vst.msk [vmem:[%s474 + $0x38] sm:$0xf] %vm4021, %v3971
      %4037 = vst.msk [vmem:[%s474 + $0x3c] sm:$0xf] %vm4021, %v3972
      %4038 = vst.msk [vmem:[%s474 + $0x40] sm:$0xf] %vm4021, %v3973
      %4039 = vst.msk [vmem:[%s474 + $0x44] sm:$0xf] %vm4021, %v3974
      %4040 = vst.msk [vmem:[%s474 + $0x48] sm:$0xf] %vm4021, %v3975
      %4041 = vst.msk [vmem:[%s474 + $0x4c] sm:$0xf] %vm4021, %v3976
      %4042 = vst.msk [vmem:[%s474 + $0x50] sm:$0xf] %vm4021, %v3977
      %4043 = vst.msk [vmem:[%s474 + $0x54] sm:$0xf] %vm4021, %v3978
      %4044 = vst.msk [vmem:[%s474 + $0x58] sm:$0xf] %vm4021, %v3979
      %4045 = vst.msk [vmem:[%s474 + $0x5c] sm:$0xf] %vm4021, %v3980
      %4046 = vst.msk [vmem:[%s474 + $0x60] sm:$0xf] %vm4021, %v3981
      %4047 = vst.msk [vmem:[%s474 + $0x64] sm:$0xf] %vm4021, %v3982
      %4048 = vst.msk [vmem:[%s474 + $0x68] sm:$0xf] %vm4021, %v3983
      %4049 = vst.msk [vmem:[%s474 + $0x6c] sm:$0xf] %vm4021, %v3984
      %4050 = vst.msk [vmem:[%s474 + $0x70] sm:$0xf] %vm4021, %v3985
      %4051 = vst.msk [vmem:[%s474 + $0x74] sm:$0xf] %vm4021, %v3986
      %4052 = vst.msk [vmem:[%s474 + $0x78] sm:$0xf] %vm4021, %v3987
      %4053 = vst.msk [vmem:[%s474 + $0x7c] sm:$0xf] %vm4021, %v3988
      %v4054 = vld [vmem:[%s7] sm:$0xff]
      %v4055 = vld [vmem:[%s7 + $0x8] sm:$0xff]
      %v4056 = vld [vmem:[%s7 + $0x10] sm:$0xff]
      %v4057 = vld [vmem:[%s7 + $0x18] sm:$0xff]
      %v4058 = vld [vmem:[%s7 + $0x20] sm:$0xff]
      %v4059 = vld [vmem:[%s7 + $0x28] sm:$0xff]
      %v4060 = vld [vmem:[%s7 + $0x30] sm:$0xff]
      %v4061 = vld [vmem:[%s7 + $0x38] sm:$0xff]
      %v4062 = vld [vmem:[%s7 + $0x40] sm:$0xff]
      %v4063 = vld [vmem:[%s7 + $0x48] sm:$0xff]
      %v4064 = vld [vmem:[%s7 + $0x50] sm:$0xff]
      %v4065 = vld [vmem:[%s7 + $0x58] sm:$0xff]
      %v4066 = vld [vmem:[%s7 + $0x60] sm:$0xff]
      %v4067 = vld [vmem:[%s7 + $0x68] sm:$0xff]
      %v4068 = vld [vmem:[%s7 + $0x70] sm:$0xff]
      %v4069 = vld [vmem:[%s7 + $0x78] sm:$0xff]
      %v4070 = vld [vmem:[%s7 + $0x80] sm:$0xff]
      %v4071 = vld [vmem:[%s7 + $0x88] sm:$0xff]
      %v4072 = vld [vmem:[%s7 + $0x90] sm:$0xff]
      %v4073 = vld [vmem:[%s7 + $0x98] sm:$0xff]
      %v4074 = vld [vmem:[%s7 + $0xa0] sm:$0xff]
      %v4075 = vld [vmem:[%s7 + $0xa8] sm:$0xff]
      %v4076 = vld [vmem:[%s7 + $0xb0] sm:$0xff]
      %v4077 = vld [vmem:[%s7 + $0xb8] sm:$0xff]
      %v4078 = vld [vmem:[%s7 + $0xc0] sm:$0xff]
      %v4079 = vld [vmem:[%s7 + $0xc8] sm:$0xff]
      %v4080 = vld [vmem:[%s7 + $0xd0] sm:$0xff]
      %v4081 = vld [vmem:[%s7 + $0xd8] sm:$0xff]
      %v4082 = vld [vmem:[%s7 + $0xe0] sm:$0xff]
      %v4083 = vld [vmem:[%s7 + $0xe8] sm:$0xff]
      %v4084 = vld [vmem:[%s7 + $0xf0] sm:$0xff]
      %v4085 = vld [vmem:[%s7 + $0xf8] sm:$0xff]
      %v4118 = vunpack.c.l.b16 %v4054
      %v4119 = vunpack.c.h.b16 %v4054
      %v4120 = vunpack.c.l.b16 %v4055
      %v4121 = vunpack.c.h.b16 %v4055
      %v4122 = vunpack.c.l.b16 %v4056
      %v4123 = vunpack.c.h.b16 %v4056
      %v4124 = vunpack.c.l.b16 %v4057
      %v4125 = vunpack.c.h.b16 %v4057
      %v4126 = vunpack.c.l.b16 %v4058
      %v4127 = vunpack.c.h.b16 %v4058
      %v4128 = vunpack.c.l.b16 %v4059
      %v4129 = vunpack.c.h.b16 %v4059
      %v4130 = vunpack.c.l.b16 %v4060
      %v4131 = vunpack.c.h.b16 %v4060
      %v4132 = vunpack.c.l.b16 %v4061
      %v4133 = vunpack.c.h.b16 %v4061
      %v4134 = vunpack.c.l.b16 %v4062
      %v4135 = vunpack.c.h.b16 %v4062
      %v4136 = vunpack.c.l.b16 %v4063
      %v4137 = vunpack.c.h.b16 %v4063
      %v4138 = vunpack.c.l.b16 %v4064
      %v4139 = vunpack.c.h.b16 %v4064
      %v4140 = vunpack.c.l.b16 %v4065
      %v4141 = vunpack.c.h.b16 %v4065
      %v4142 = vunpack.c.l.b16 %v4066
      %v4143 = vunpack.c.h.b16 %v4066
      %v4144 = vunpack.c.l.b16 %v4067
      %v4145 = vunpack.c.h.b16 %v4067
      %v4146 = vunpack.c.l.b16 %v4068
      %v4147 = vunpack.c.h.b16 %v4068
      %v4148 = vunpack.c.l.b16 %v4069
      %v4149 = vunpack.c.h.b16 %v4069
      %v4150 = vunpack.c.l.b16 %v4070
      %v4151 = vunpack.c.h.b16 %v4070
      %v4152 = vunpack.c.l.b16 %v4071
      %v4153 = vunpack.c.h.b16 %v4071
      %v4154 = vunpack.c.l.b16 %v4072
      %v4155 = vunpack.c.h.b16 %v4072
      %v4156 = vunpack.c.l.b16 %v4073
      %v4157 = vunpack.c.h.b16 %v4073
      %v4158 = vunpack.c.l.b16 %v4074
      %v4159 = vunpack.c.h.b16 %v4074
      %v4160 = vunpack.c.l.b16 %v4075
      %v4161 = vunpack.c.h.b16 %v4075
      %v4162 = vunpack.c.l.b16 %v4076
      %v4163 = vunpack.c.h.b16 %v4076
      %v4164 = vunpack.c.l.b16 %v4077
      %v4165 = vunpack.c.h.b16 %v4077
      %v4166 = vunpack.c.l.b16 %v4078
      %v4167 = vunpack.c.h.b16 %v4078
      %v4168 = vunpack.c.l.b16 %v4079
      %v4169 = vunpack.c.h.b16 %v4079
      %v4170 = vunpack.c.l.b16 %v4080
      %v4171 = vunpack.c.h.b16 %v4080
      %v4172 = vunpack.c.l.b16 %v4081
      %v4173 = vunpack.c.h.b16 %v4081
      %v4174 = vunpack.c.l.b16 %v4082
      %v4175 = vunpack.c.h.b16 %v4082
      %v4176 = vunpack.c.l.b16 %v4083
      %v4177 = vunpack.c.h.b16 %v4083
      %v4178 = vunpack.c.l.b16 %v4084
      %v4179 = vunpack.c.h.b16 %v4084
      %v4180 = vunpack.c.l.b16 %v4085
      %v4181 = vunpack.c.h.b16 %v4085
      %v4182 = vpack.c.b16 %v4122, %v4118
      %v4183 = vpack.c.b16 %v4123, %v4119
      %v4184 = vpack.c.b16 %v4124, %v4120
      %v4185 = vpack.c.b16 %v4125, %v4121
      %v4186 = vpack.c.b16 %v4130, %v4126
      %v4187 = vpack.c.b16 %v4131, %v4127
      %v4188 = vpack.c.b16 %v4132, %v4128
      %v4189 = vpack.c.b16 %v4133, %v4129
      %v4190 = vpack.c.b16 %v4138, %v4134
      %v4191 = vpack.c.b16 %v4139, %v4135
      %v4192 = vpack.c.b16 %v4140, %v4136
      %v4193 = vpack.c.b16 %v4141, %v4137
      %v4194 = vpack.c.b16 %v4146, %v4142
      %v4195 = vpack.c.b16 %v4147, %v4143
      %v4196 = vpack.c.b16 %v4148, %v4144
      %v4197 = vpack.c.b16 %v4149, %v4145
      %v4198 = vpack.c.b16 %v4154, %v4150
      %v4199 = vpack.c.b16 %v4155, %v4151
      %v4200 = vpack.c.b16 %v4156, %v4152
      %v4201 = vpack.c.b16 %v4157, %v4153
      %v4202 = vpack.c.b16 %v4162, %v4158
      %v4203 = vpack.c.b16 %v4163, %v4159
      %v4204 = vpack.c.b16 %v4164, %v4160
      %v4205 = vpack.c.b16 %v4165, %v4161
      %v4206 = vpack.c.b16 %v4170, %v4166
      %v4207 = vpack.c.b16 %v4171, %v4167
      %v4208 = vpack.c.b16 %v4172, %v4168
      %v4209 = vpack.c.b16 %v4173, %v4169
      %v4210 = vpack.c.b16 %v4178, %v4174
      %v4211 = vpack.c.b16 %v4179, %v4175
      %v4212 = vpack.c.b16 %v4180, %v4176
      %v4213 = vpack.c.b16 %v4181, %v4177
      %4246 = vmatprep.subr.bf16.mxu0 %v4183
      %4247 = vmatpush1.bf16.msra.mxu0 %v4182
      %4248 = vmatprep.subr.bf16.mxu0 %v4187
      %4249 = vmatpush1.bf16.msra.mxu0 %v4186
      %4250 = vmatprep.subr.bf16.mxu0 %v4191
      %4251 = vmatpush1.bf16.msra.mxu0 %v4190
      %4252 = vmatprep.subr.bf16.mxu0 %v4195
      %4253 = vmatpush1.bf16.msra.mxu0 %v4194
      %4254 = vmatprep.subr.bf16.mxu0 %v4199
      %4255 = vmatpush1.bf16.msra.mxu0 %v4198
      %4256 = vmatprep.subr.bf16.mxu0 %v4203
      %4257 = vmatpush1.bf16.msra.mxu0 %v4202
      %4258 = vmatprep.subr.bf16.mxu0 %v4207
      %4259 = vmatpush1.bf16.msra.mxu0 %v4206
      %4260 = vmatprep.subr.bf16.mxu0 %v4211
      %4261 = vmatpush1.bf16.msra.mxu0 %v4210
      %4262 = vmatprep.subr.bf16.mxu0 0
      %4263 = vmatpush1.bf16.msra.mxu0 0
      %4264 = vmatprep.subr.bf16.mxu0 0
      %4265 = vmatpush1.bf16.msra.mxu0 0
      %4266 = vmatprep.subr.bf16.mxu0 0
      %4267 = vmatpush1.bf16.msra.mxu0 0
      %4268 = vmatprep.subr.bf16.mxu0 0
      %4269 = vmatpush1.bf16.msra.mxu0 0
      %4270 = vmatprep.subr.bf16.mxu0 0
      %4271 = vmatpush1.bf16.msra.mxu0 0
      %4272 = vmatprep.subr.bf16.mxu0 0
      %4273 = vmatpush1.bf16.msra.mxu0 0
      %4274 = vmatprep.subr.bf16.mxu0 0
      %4275 = vmatpush1.bf16.msra.mxu0 0
      %4276 = vmatprep.subr.bf16.mxu0 0
      %4277 = vmatpush1.bf16.msra.mxu0 0
      %4278 = vmatprep.mubr.bf16.mxu0 0
      %4279 = vmatmul.mubr.bf16.gmra.mrb[0].mxu0 %v3893
      %v4280 = vpop.f32.mrb[0].mxu0
      %v4281 = vadd.f32 0.0, %v4280
      %v4282 = vpop.f32.mrb[0].mxu0
      %v4283 = vadd.f32 0.0, %v4282
      %v4284 = vpop.f32.mrb[0].mxu0
      %v4285 = vadd.f32 0.0, %v4284
      %v4286 = vpop.f32.mrb[0].mxu0
      %v4287 = vadd.f32 0.0, %v4286
      %4288 = vmatprep.mubr.bf16.mxu0 0
      %4289 = vmatmul.mubr.bf16.gmra.mrb[0].mxu0 %v3894
      %v4290 = vpop.f32.mrb[0].mxu0
      %v4291 = vadd.f32 0.0, %v4290
      %v4292 = vpop.f32.mrb[0].mxu0
      %v4293 = vadd.f32 0.0, %v4292
      %v4294 = vpop.f32.mrb[0].mxu0
      %v4295 = vadd.f32 0.0, %v4294
      %v4296 = vpop.f32.mrb[0].mxu0
      %v4297 = vadd.f32 0.0, %v4296
      %4298 = vmatprep.mubr.bf16.mxu0 0
      %4299 = vmatmul.mubr.bf16.gmra.mrb[0].mxu0 %v3895
      %v4300 = vpop.f32.mrb[0].mxu0
      %v4301 = vadd.f32 0.0, %v4300
      %v4302 = vpop.f32.mrb[0].mxu0
      %v4303 = vadd.f32 0.0, %v4302
      %v4304 = vpop.f32.mrb[0].mxu0
      %v4305 = vadd.f32 0.0, %v4304
      %v4306 = vpop.f32.mrb[0].mxu0
      %v4307 = vadd.f32 0.0, %v4306
      %4308 = vmatprep.mubr.bf16.mxu0 0
      %4309 = vmatmul.mubr.bf16.gmra.mrb[0].mxu0 %v3896
      %v4310 = vpop.f32.mrb[0].mxu0
      %v4311 = vadd.f32 0.0, %v4310
      %v4312 = vpop.f32.mrb[0].mxu0
      %v4313 = vadd.f32 0.0, %v4312
      %v4314 = vpop.f32.mrb[0].mxu0
      %v4315 = vadd.f32 0.0, %v4314
      %v4316 = vpop.f32.mrb[0].mxu0
      %v4317 = vadd.f32 0.0, %v4316
      %4318 = vmatprep.mubr.bf16.mxu0 0
      %4319 = vmatmul.mubr.bf16.gmra.mrb[0].mxu0 %v3897
      %v4320 = vpop.f32.mrb[0].mxu0
      %v4321 = vadd.f32 0.0, %v4320
      %v4322 = vpop.f32.mrb[0].mxu0
      %v4323 = vadd.f32 0.0, %v4322
      %v4324 = vpop.f32.mrb[0].mxu0
      %v4325 = vadd.f32 0.0, %v4324
      %v4326 = vpop.f32.mrb[0].mxu0
      %v4327 = vadd.f32 0.0, %v4326
      %4328 = vmatprep.mubr.bf16.mxu0 0
      %4329 = vmatmul.mubr.bf16.gmra.mrb[0].mxu0 %v3898
      %v4330 = vpop.f32.mrb[0].mxu0
      %v4331 = vadd.f32 0.0, %v4330
      %v4332 = vpop.f32.mrb[0].mxu0
      %v4333 = vadd.f32 0.0, %v4332
      %v4334 = vpop.f32.mrb[0].mxu0
      %v4335 = vadd.f32 0.0, %v4334
      %v4336 = vpop.f32.mrb[0].mxu0
      %v4337 = vadd.f32 0.0, %v4336
      %4338 = vmatprep.mubr.bf16.mxu0 0
      %4339 = vmatmul.mubr.bf16.gmra.mrb[0].mxu0 %v3899
      %v4340 = vpop.f32.mrb[0].mxu0
      %v4341 = vadd.f32 0.0, %v4340
      %v4342 = vpop.f32.mrb[0].mxu0
      %v4343 = vadd.f32 0.0, %v4342
      %v4344 = vpop.f32.mrb[0].mxu0
      %v4345 = vadd.f32 0.0, %v4344
      %v4346 = vpop.f32.mrb[0].mxu0
      %v4347 = vadd.f32 0.0, %v4346
      %4348 = vmatprep.mubr.bf16.mxu0 0
      %4349 = vmatmul.mubr.bf16.gmra.mrb[0].mxu0 %v3900
      %v4350 = vpop.f32.mrb[0].mxu0
      %v4351 = vadd.f32 0.0, %v4350
      %v4352 = vpop.f32.mrb[0].mxu0
      %v4353 = vadd.f32 0.0, %v4352
      %v4354 = vpop.f32.mrb[0].mxu0
      %v4355 = vadd.f32 0.0, %v4354
      %v4356 = vpop.f32.mrb[0].mxu0
      %v4357 = vadd.f32 0.0, %v4356
      %4358 = vmatprep.mubr.bf16.mxu0 0
      %4359 = vmatmul.mubr.bf16.gmra.mrb[0].mxu0 %v3901
      %v4360 = vpop.f32.mrb[0].mxu0
      %v4361 = vadd.f32 0.0, %v4360
      %v4362 = vpop.f32.mrb[0].mxu0
      %v4363 = vadd.f32 0.0, %v4362
      %v4364 = vpop.f32.mrb[0].mxu0
      %v4365 = vadd.f32 0.0, %v4364
      %v4366 = vpop.f32.mrb[0].mxu0
      %v4367 = vadd.f32 0.0, %v4366
      %4368 = vmatprep.mubr.bf16.mxu0 0
      %4369 = vmatmul.mubr.bf16.gmra.mrb[0].mxu0 %v3902
      %v4370 = vpop.f32.mrb[0].mxu0
      %v4371 = vadd.f32 0.0, %v4370
      %v4372 = vpop.f32.mrb[0].mxu0
      %v4373 = vadd.f32 0.0, %v4372
      %v4374 = vpop.f32.mrb[0].mxu0
      %v4375 = vadd.f32 0.0, %v4374
      %v4376 = vpop.f32.mrb[0].mxu0
      %v4377 = vadd.f32 0.0, %v4376
      %4378 = vmatprep.mubr.bf16.mxu0 0
      %4379 = vmatmul.mubr.bf16.gmra.mrb[0].mxu0 %v3903
      %v4380 = vpop.f32.mrb[0].mxu0
      %v4381 = vadd.f32 0.0, %v4380
      %v4382 = vpop.f32.mrb[0].mxu0
      %v4383 = vadd.f32 0.0, %v4382
      %v4384 = vpop.f32.mrb[0].mxu0
      %v4385 = vadd.f32 0.0, %v4384
      %v4386 = vpop.f32.mrb[0].mxu0
      %v4387 = vadd.f32 0.0, %v4386
      %4388 = vmatprep.mubr.bf16.mxu0 0
      %4389 = vmatmul.mubr.bf16.gmra.mrb[0].mxu0 %v3904
      %v4390 = vpop.f32.mrb[0].mxu0
      %v4391 = vadd.f32 0.0, %v4390
      %v4392 = vpop.f32.mrb[0].mxu0
      %v4393 = vadd.f32 0.0, %v4392
      %v4394 = vpop.f32.mrb[0].mxu0
      %v4395 = vadd.f32 0.0, %v4394
      %v4396 = vpop.f32.mrb[0].mxu0
      %v4397 = vadd.f32 0.0, %v4396
      %4398 = vmatprep.mubr.bf16.mxu0 0
      %4399 = vmatmul.mubr.bf16.gmra.mrb[0].mxu0 %v3905
      %v4400 = vpop.f32.mrb[0].mxu0
      %v4401 = vadd.f32 0.0, %v4400
      %v4402 = vpop.f32.mrb[0].mxu0
      %v4403 = vadd.f32 0.0, %v4402
      %v4404 = vpop.f32.mrb[0].mxu0
      %v4405 = vadd.f32 0.0, %v4404
      %v4406 = vpop.f32.mrb[0].mxu0
      %v4407 = vadd.f32 0.0, %v4406
      %4408 = vmatprep.mubr.bf16.mxu0 0
      %4409 = vmatmul.mubr.bf16.gmra.mrb[0].mxu0 %v3906
      %v4410 = vpop.f32.mrb[0].mxu0
      %v4411 = vadd.f32 0.0, %v4410
      %v4412 = vpop.f32.mrb[0].mxu0
      %v4413 = vadd.f32 0.0, %v4412
      %v4414 = vpop.f32.mrb[0].mxu0
      %v4415 = vadd.f32 0.0, %v4414
      %v4416 = vpop.f32.mrb[0].mxu0
      %v4417 = vadd.f32 0.0, %v4416
      %4418 = vmatprep.mubr.bf16.mxu0 0
      %4419 = vmatmul.mubr.bf16.gmra.mrb[0].mxu0 %v3907
      %v4420 = vpop.f32.mrb[0].mxu0
      %v4421 = vadd.f32 0.0, %v4420
      %v4422 = vpop.f32.mrb[0].mxu0
      %v4423 = vadd.f32 0.0, %v4422
      %v4424 = vpop.f32.mrb[0].mxu0
      %v4425 = vadd.f32 0.0, %v4424
      %v4426 = vpop.f32.mrb[0].mxu0
      %v4427 = vadd.f32 0.0, %v4426
      %4428 = vmatprep.mubr.bf16.mxu0 0
      %4429 = vmatmul.mubr.bf16.gmra.mrb[0].mxu0 %v3908
      %v4430 = vpop.f32.mrb[0].mxu0
      %v4431 = vadd.f32 0.0, %v4430
      %v4432 = vpop.f32.mrb[0].mxu0
      %v4433 = vadd.f32 0.0, %v4432
      %v4434 = vpop.f32.mrb[0].mxu0
      %v4435 = vadd.f32 0.0, %v4434
      %v4436 = vpop.f32.mrb[0].mxu0
      %v4437 = vadd.f32 0.0, %v4436
      %4438 = vdwg.mxu0
      %4439 = vmatprep.subr.bf16.mxu0 %v4185
      %4440 = vmatpush1.bf16.msra.mxu0 %v4184
      %4441 = vmatprep.subr.bf16.mxu0 %v4189
      %4442 = vmatpush1.bf16.msra.mxu0 %v4188
      %4443 = vmatprep.subr.bf16.mxu0 %v4193
      %4444 = vmatpush1.bf16.msra.mxu0 %v4192
      %4445 = vmatprep.subr.bf16.mxu0 %v4197
      %4446 = vmatpush1.bf16.msra.mxu0 %v4196
      %4447 = vmatprep.subr.bf16.mxu0 %v4201
      %4448 = vmatpush1.bf16.msra.mxu0 %v4200
      %4449 = vmatprep.subr.bf16.mxu0 %v4205
      %4450 = vmatpush1.bf16.msra.mxu0 %v4204
      %4451 = vmatprep.subr.bf16.mxu0 %v4209
      %4452 = vmatpush1.bf16.msra.mxu0 %v4208
      %4453 = vmatprep.subr.bf16.mxu0 %v4213
      %4454 = vmatpush1.bf16.msra.mxu0 %v4212
      %4455 = vmatprep.subr.bf16.mxu0 0
      %4456 = vmatpush1.bf16.msra.mxu0 0
      %4457 = vmatprep.subr.bf16.mxu0 0
      %4458 = vmatpush1.bf16.msra.mxu0 0
      %4459 = vmatprep.subr.bf16.mxu0 0
      %4460 = vmatpush1.bf16.msra.mxu0 0
      %4461 = vmatprep.subr.bf16.mxu0 0
      %4462 = vmatpush1.bf16.msra.mxu0 0
      %4463 = vmatprep.subr.bf16.mxu0 0
      %4464 = vmatpush1.bf16.msra.mxu0 0
      %4465 = vmatprep.subr.bf16.mxu0 0
      %4466 = vmatpush1.bf16.msra.mxu0 0
      %4467 = vmatprep.subr.bf16.mxu0 0
      %4468 = vmatpush1.bf16.msra.mxu0 0
      %4469 = vmatprep.subr.bf16.mxu0 0
      %4470 = vmatpush1.bf16.msra.mxu0 0
      %4471 = vmatprep.mubr.bf16.mxu0 0
      %4472 = vmatmul.mubr.bf16.gmra.mrb[0].mxu0 %v3893
      %v4473 = vpop.f32.mrb[0].mxu0
      %v4474 = vadd.f32 0.0, %v4473
      %v4475 = vpop.f32.mrb[0].mxu0
      %v4476 = vadd.f32 0.0, %v4475
      %v4477 = vpop.f32.mrb[0].mxu0
      %v4478 = vadd.f32 0.0, %v4477
      %v4479 = vpop.f32.mrb[0].mxu0
      %v4480 = vadd.f32 0.0, %v4479
      %4481 = vmatprep.mubr.bf16.mxu0 0
      %4482 = vmatmul.mubr.bf16.gmra.mrb[0].mxu0 %v3894
      %v4483 = vpop.f32.mrb[0].mxu0
      %v4484 = vadd.f32 0.0, %v4483
      %v4485 = vpop.f32.mrb[0].mxu0
      %v4486 = vadd.f32 0.0, %v4485
      %v4487 = vpop.f32.mrb[0].mxu0
      %v4488 = vadd.f32 0.0, %v4487
      %v4489 = vpop.f32.mrb[0].mxu0
      %v4490 = vadd.f32 0.0, %v4489
      %4491 = vmatprep.mubr.bf16.mxu0 0
      %4492 = vmatmul.mubr.bf16.gmra.mrb[0].mxu0 %v3895
      %v4493 = vpop.f32.mrb[0].mxu0
      %v4494 = vadd.f32 0.0, %v4493
      %v4495 = vpop.f32.mrb[0].mxu0
      %v4496 = vadd.f32 0.0, %v4495
      %v4497 = vpop.f32.mrb[0].mxu0
      %v4498 = vadd.f32 0.0, %v4497
      %v4499 = vpop.f32.mrb[0].mxu0
      %v4500 = vadd.f32 0.0, %v4499
      %4501 = vmatprep.mubr.bf16.mxu0 0
      %4502 = vmatmul.mubr.bf16.gmra.mrb[0].mxu0 %v3896
      %v4503 = vpop.f32.mrb[0].mxu0
      %v4504 = vadd.f32 0.0, %v4503
      %v4505 = vpop.f32.mrb[0].mxu0
      %v4506 = vadd.f32 0.0, %v4505
      %v4507 = vpop.f32.mrb[0].mxu0
      %v4508 = vadd.f32 0.0, %v4507
      %v4509 = vpop.f32.mrb[0].mxu0
      %v4510 = vadd.f32 0.0, %v4509
      %4511 = vmatprep.mubr.bf16.mxu0 0
      %4512 = vmatmul.mubr.bf16.gmra.mrb[0].mxu0 %v3897
      %v4513 = vpop.f32.mrb[0].mxu0
      %v4514 = vadd.f32 0.0, %v4513
      %v4515 = vpop.f32.mrb[0].mxu0
      %v4516 = vadd.f32 0.0, %v4515
      %v4517 = vpop.f32.mrb[0].mxu0
      %v4518 = vadd.f32 0.0, %v4517
      %v4519 = vpop.f32.mrb[0].mxu0
      %v4520 = vadd.f32 0.0, %v4519
      %4521 = vmatprep.mubr.bf16.mxu0 0
      %4522 = vmatmul.mubr.bf16.gmra.mrb[0].mxu0 %v3898
      %v4523 = vpop.f32.mrb[0].mxu0
      %v4524 = vadd.f32 0.0, %v4523
      %v4525 = vpop.f32.mrb[0].mxu0
      %v4526 = vadd.f32 0.0, %v4525
      %v4527 = vpop.f32.mrb[0].mxu0
      %v4528 = vadd.f32 0.0, %v4527
      %v4529 = vpop.f32.mrb[0].mxu0
      %v4530 = vadd.f32 0.0, %v4529
      %4531 = vmatprep.mubr.bf16.mxu0 0
      %4532 = vmatmul.mubr.bf16.gmra.mrb[0].mxu0 %v3899
      %v4533 = vpop.f32.mrb[0].mxu0
      %v4534 = vadd.f32 0.0, %v4533
      %v4535 = vpop.f32.mrb[0].mxu0
      %v4536 = vadd.f32 0.0, %v4535
      %v4537 = vpop.f32.mrb[0].mxu0
      %v4538 = vadd.f32 0.0, %v4537
      %v4539 = vpop.f32.mrb[0].mxu0
      %v4540 = vadd.f32 0.0, %v4539
      %4541 = vmatprep.mubr.bf16.mxu0 0
      %4542 = vmatmul.mubr.bf16.gmra.mrb[0].mxu0 %v3900
      %v4543 = vpop.f32.mrb[0].mxu0
      %v4544 = vadd.f32 0.0, %v4543
      %v4545 = vpop.f32.mrb[0].mxu0
      %v4546 = vadd.f32 0.0, %v4545
      %v4547 = vpop.f32.mrb[0].mxu0
      %v4548 = vadd.f32 0.0, %v4547
      %v4549 = vpop.f32.mrb[0].mxu0
      %v4550 = vadd.f32 0.0, %v4549
      %4551 = vmatprep.mubr.bf16.mxu0 0
      %4552 = vmatmul.mubr.bf16.gmra.mrb[0].mxu0 %v3901
      %v4553 = vpop.f32.mrb[0].mxu0
      %v4554 = vadd.f32 0.0, %v4553
      %v4555 = vpop.f32.mrb[0].mxu0
      %v4556 = vadd.f32 0.0, %v4555
      %v4557 = vpop.f32.mrb[0].mxu0
      %v4558 = vadd.f32 0.0, %v4557
      %v4559 = vpop.f32.mrb[0].mxu0
      %v4560 = vadd.f32 0.0, %v4559
      %4561 = vmatprep.mubr.bf16.mxu0 0
      %4562 = vmatmul.mubr.bf16.gmra.mrb[0].mxu0 %v3902
      %v4563 = vpop.f32.mrb[0].mxu0
      %v4564 = vadd.f32 0.0, %v4563
      %v4565 = vpop.f32.mrb[0].mxu0
      %v4566 = vadd.f32 0.0, %v4565
      %v4567 = vpop.f32.mrb[0].mxu0
      %v4568 = vadd.f32 0.0, %v4567
      %v4569 = vpop.f32.mrb[0].mxu0
      %v4570 = vadd.f32 0.0, %v4569
      %4571 = vmatprep.mubr.bf16.mxu0 0
      %4572 = vmatmul.mubr.bf16.gmra.mrb[0].mxu0 %v3903
      %v4573 = vpop.f32.mrb[0].mxu0
      %v4574 = vadd.f32 0.0, %v4573
      %v4575 = vpop.f32.mrb[0].mxu0
      %v4576 = vadd.f32 0.0, %v4575
      %v4577 = vpop.f32.mrb[0].mxu0
      %v4578 = vadd.f32 0.0, %v4577
      %v4579 = vpop.f32.mrb[0].mxu0
      %v4580 = vadd.f32 0.0, %v4579
      %4581 = vmatprep.mubr.bf16.mxu0 0
      %4582 = vmatmul.mubr.bf16.gmra.mrb[0].mxu0 %v3904
      %v4583 = vpop.f32.mrb[0].mxu0
      %v4584 = vadd.f32 0.0, %v4583
      %v4585 = vpop.f32.mrb[0].mxu0
      %v4586 = vadd.f32 0.0, %v4585
      %v4587 = vpop.f32.mrb[0].mxu0
      %v4588 = vadd.f32 0.0, %v4587
      %v4589 = vpop.f32.mrb[0].mxu0
      %v4590 = vadd.f32 0.0, %v4589
      %4591 = vmatprep.mubr.bf16.mxu0 0
      %4592 = vmatmul.mubr.bf16.gmra.mrb[0].mxu0 %v3905
      %v4593 = vpop.f32.mrb[0].mxu0
      %v4594 = vadd.f32 0.0, %v4593
      %v4595 = vpop.f32.mrb[0].mxu0
      %v4596 = vadd.f32 0.0, %v4595
      %v4597 = vpop.f32.mrb[0].mxu0
      %v4598 = vadd.f32 0.0, %v4597
      %v4599 = vpop.f32.mrb[0].mxu0
      %v4600 = vadd.f32 0.0, %v4599
      %4601 = vmatprep.mubr.bf16.mxu0 0
      %4602 = vmatmul.mubr.bf16.gmra.mrb[0].mxu0 %v3906
      %v4603 = vpop.f32.mrb[0].mxu0
      %v4604 = vadd.f32 0.0, %v4603
      %v4605 = vpop.f32.mrb[0].mxu0
      %v4606 = vadd.f32 0.0, %v4605
      %v4607 = vpop.f32.mrb[0].mxu0
      %v4608 = vadd.f32 0.0, %v4607
      %v4609 = vpop.f32.mrb[0].mxu0
      %v4610 = vadd.f32 0.0, %v4609
      %4611 = vmatprep.mubr.bf16.mxu0 0
      %4612 = vmatmul.mubr.bf16.gmra.mrb[0].mxu0 %v3907
      %v4613 = vpop.f32.mrb[0].mxu0
      %v4614 = vadd.f32 0.0, %v4613
      %v4615 = vpop.f32.mrb[0].mxu0
      %v4616 = vadd.f32 0.0, %v4615
      %v4617 = vpop.f32.mrb[0].mxu0
      %v4618 = vadd.f32 0.0, %v4617
      %v4619 = vpop.f32.mrb[0].mxu0
      %v4620 = vadd.f32 0.0, %v4619
      %4621 = vmatprep.mubr.bf16.mxu0 0
      %4622 = vmatmul.mubr.bf16.gmra.mrb[0].mxu0 %v3908
      %v4623 = vpop.f32.mrb[0].mxu0
      %v4624 = vadd.f32 0.0, %v4623
      %v4625 = vpop.f32.mrb[0].mxu0
      %v4626 = vadd.f32 0.0, %v4625
      %v4627 = vpop.f32.mrb[0].mxu0
      %v4628 = vadd.f32 0.0, %v4627
      %v4629 = vpop.f32.mrb[0].mxu0
      %v4630 = vadd.f32 0.0, %v4629
      %4631 = vdwg.mxu0
      %v4632 = vpack.c.bf16 %v4285, %v4281
      %v4633 = vpack.c.bf16 %v4287, %v4283
      %v4634 = vpack.c.bf16 %v4478, %v4474
      %v4635 = vpack.c.bf16 %v4480, %v4476
      %v4636 = vpack.c.bf16 %v4295, %v4291
      %v4637 = vpack.c.bf16 %v4297, %v4293
      %v4638 = vpack.c.bf16 %v4488, %v4484
      %v4639 = vpack.c.bf16 %v4490, %v4486
      %v4640 = vpack.c.bf16 %v4305, %v4301
      %v4641 = vpack.c.bf16 %v4307, %v4303
      %v4642 = vpack.c.bf16 %v4498, %v4494
      %v4643 = vpack.c.bf16 %v4500, %v4496
      %v4644 = vpack.c.bf16 %v4315, %v4311
      %v4645 = vpack.c.bf16 %v4317, %v4313
      %v4646 = vpack.c.bf16 %v4508, %v4504
      %v4647 = vpack.c.bf16 %v4510, %v4506
      %v4648 = vpack.c.bf16 %v4325, %v4321
      %v4649 = vpack.c.bf16 %v4327, %v4323
      %v4650 = vpack.c.bf16 %v4518, %v4514
      %v4651 = vpack.c.bf16 %v4520, %v4516
      %v4652 = vpack.c.bf16 %v4335, %v4331
      %v4653 = vpack.c.bf16 %v4337, %v4333
      %v4654 = vpack.c.bf16 %v4528, %v4524
      %v4655 = vpack.c.bf16 %v4530, %v4526
      %v4656 = vpack.c.bf16 %v4345, %v4341
      %v4657 = vpack.c.bf16 %v4347, %v4343
      %v4658 = vpack.c.bf16 %v4538, %v4534
      %v4659 = vpack.c.bf16 %v4540, %v4536
      %v4660 = vpack.c.bf16 %v4355, %v4351
      %v4661 = vpack.c.bf16 %v4357, %v4353
      %v4662 = vpack.c.bf16 %v4548, %v4544
      %v4663 = vpack.c.bf16 %v4550, %v4546
      %v4664 = vpack.c.bf16 %v4365, %v4361
      %v4665 = vpack.c.bf16 %v4367, %v4363
      %v4666 = vpack.c.bf16 %v4558, %v4554
      %v4667 = vpack.c.bf16 %v4560, %v4556
      %v4668 = vpack.c.bf16 %v4375, %v4371
      %v4669 = vpack.c.bf16 %v4377, %v4373
      %v4670 = vpack.c.bf16 %v4568, %v4564
      %v4671 = vpack.c.bf16 %v4570, %v4566
      %v4672 = vpack.c.bf16 %v4385, %v4381
      %v4673 = vpack.c.bf16 %v4387, %v4383
      %v4674 = vpack.c.bf16 %v4578, %v4574
      %v4675 = vpack.c.bf16 %v4580, %v4576
      %v4676 = vpack.c.bf16 %v4395, %v4391
      %v4677 = vpack.c.bf16 %v4397, %v4393
      %v4678 = vpack.c.bf16 %v4588, %v4584
      %v4679 = vpack.c.bf16 %v4590, %v4586
      %v4680 = vpack.c.bf16 %v4405, %v4401
      %v4681 = vpack.c.bf16 %v4407, %v4403
      %v4682 = vpack.c.bf16 %v4598, %v4594
      %v4683 = vpack.c.bf16 %v4600, %v4596
      %v4684 = vpack.c.bf16 %v4415, %v4411
      %v4685 = vpack.c.bf16 %v4417, %v4413
      %v4686 = vpack.c.bf16 %v4608, %v4604
      %v4687 = vpack.c.bf16 %v4610, %v4606
      %v4688 = vpack.c.bf16 %v4425, %v4421
      %v4689 = vpack.c.bf16 %v4427, %v4423
      %v4690 = vpack.c.bf16 %v4618, %v4614
      %v4691 = vpack.c.bf16 %v4620, %v4616
      %v4692 = vpack.c.bf16 %v4435, %v4431
      %v4693 = vpack.c.bf16 %v4437, %v4433
      %v4694 = vpack.c.bf16 %v4628, %v4624
      %v4695 = vpack.c.bf16 %v4630, %v4626
      %v4696 = vld [vmem:[%s3] sm:$0xff]
      %v4697 = vld [vmem:[%s3 + $0x8] sm:$0xff]
      %v4698 = vld [vmem:[%s3 + $0x10] sm:$0xff]
      %v4699 = vld [vmem:[%s3 + $0x18] sm:$0xff]
      %v4700 = vld [vmem:[%s3 + $0x20] sm:$0xff]
      %v4701 = vld [vmem:[%s3 + $0x28] sm:$0xff]
      %v4702 = vld [vmem:[%s3 + $0x30] sm:$0xff]
      %v4703 = vld [vmem:[%s3 + $0x38] sm:$0xff]
      %v4704 = vld [vmem:[%s3 + $0x40] sm:$0xff]
      %v4705 = vld [vmem:[%s3 + $0x48] sm:$0xff]
      %v4706 = vld [vmem:[%s3 + $0x50] sm:$0xff]
      %v4707 = vld [vmem:[%s3 + $0x58] sm:$0xff]
      %v4708 = vld [vmem:[%s3 + $0x60] sm:$0xff]
      %v4709 = vld [vmem:[%s3 + $0x68] sm:$0xff]
      %v4710 = vld [vmem:[%s3 + $0x70] sm:$0xff]
      %v4711 = vld [vmem:[%s3 + $0x78] sm:$0xff]
      %v4712 = vld [vmem:[%s3 + $0x80] sm:$0xff]
      %v4713 = vld [vmem:[%s3 + $0x88] sm:$0xff]
      %v4714 = vld [vmem:[%s3 + $0x90] sm:$0xff]
      %v4715 = vld [vmem:[%s3 + $0x98] sm:$0xff]
      %v4716 = vld [vmem:[%s3 + $0xa0] sm:$0xff]
      %v4717 = vld [vmem:[%s3 + $0xa8] sm:$0xff]
      %v4718 = vld [vmem:[%s3 + $0xb0] sm:$0xff]
      %v4719 = vld [vmem:[%s3 + $0xb8] sm:$0xff]
      %v4720 = vld [vmem:[%s3 + $0xc0] sm:$0xff]
      %v4721 = vld [vmem:[%s3 + $0xc8] sm:$0xff]
      %v4722 = vld [vmem:[%s3 + $0xd0] sm:$0xff]
      %v4723 = vld [vmem:[%s3 + $0xd8] sm:$0xff]
      %v4724 = vld [vmem:[%s3 + $0xe0] sm:$0xff]
      %v4725 = vld [vmem:[%s3 + $0xe8] sm:$0xff]
      %v4726 = vld [vmem:[%s3 + $0xf0] sm:$0xff]
      %v4727 = vld [vmem:[%s3 + $0xf8] sm:$0xff]
      %s4728 = scalar_lea.vmem %s3, 256
      %v4729 = vld [vmem:[%s4728] sm:$0xff]
      %v4730 = vld [vmem:[%s4728 + $0x8] sm:$0xff]
      %v4731 = vld [vmem:[%s4728 + $0x10] sm:$0xff]
      %v4732 = vld [vmem:[%s4728 + $0x18] sm:$0xff]
      %v4733 = vld [vmem:[%s4728 + $0x20] sm:$0xff]
      %v4734 = vld [vmem:[%s4728 + $0x28] sm:$0xff]
      %v4735 = vld [vmem:[%s4728 + $0x30] sm:$0xff]
      %v4736 = vld [vmem:[%s4728 + $0x38] sm:$0xff]
      %v4737 = vld [vmem:[%s4728 + $0x40] sm:$0xff]
      %v4738 = vld [vmem:[%s4728 + $0x48] sm:$0xff]
      %v4739 = vld [vmem:[%s4728 + $0x50] sm:$0xff]
      %v4740 = vld [vmem:[%s4728 + $0x58] sm:$0xff]
      %v4741 = vld [vmem:[%s4728 + $0x60] sm:$0xff]
      %v4742 = vld [vmem:[%s4728 + $0x68] sm:$0xff]
      %v4743 = vld [vmem:[%s4728 + $0x70] sm:$0xff]
      %v4744 = vld [vmem:[%s4728 + $0x78] sm:$0xff]
      %v4745 = vld [vmem:[%s4728 + $0x80] sm:$0xff]
      %v4746 = vld [vmem:[%s4728 + $0x88] sm:$0xff]
      %v4747 = vld [vmem:[%s4728 + $0x90] sm:$0xff]
      %v4748 = vld [vmem:[%s4728 + $0x98] sm:$0xff]
      %v4749 = vld [vmem:[%s4728 + $0xa0] sm:$0xff]
      %v4750 = vld [vmem:[%s4728 + $0xa8] sm:$0xff]
      %v4751 = vld [vmem:[%s4728 + $0xb0] sm:$0xff]
      %v4752 = vld [vmem:[%s4728 + $0xb8] sm:$0xff]
      %v4753 = vld [vmem:[%s4728 + $0xc0] sm:$0xff]
      %v4754 = vld [vmem:[%s4728 + $0xc8] sm:$0xff]
      %v4755 = vld [vmem:[%s4728 + $0xd0] sm:$0xff]
      %v4756 = vld [vmem:[%s4728 + $0xd8] sm:$0xff]
      %v4757 = vld [vmem:[%s4728 + $0xe0] sm:$0xff]
      %v4758 = vld [vmem:[%s4728 + $0xe8] sm:$0xff]
      %v4759 = vld [vmem:[%s4728 + $0xf0] sm:$0xff]
      %v4760 = vld [vmem:[%s4728 + $0xf8] sm:$0xff]
      %v4793 = vunpack.c.l.b16 %v4729
      %v4794 = vunpack.c.h.b16 %v4729
      %v4795 = vunpack.c.l.b16 %v4730
      %v4796 = vunpack.c.h.b16 %v4730
      %v4797 = vunpack.c.l.b16 %v4731
      %v4798 = vunpack.c.h.b16 %v4731
      %v4799 = vunpack.c.l.b16 %v4732
      %v4800 = vunpack.c.h.b16 %v4732
      %v4801 = vunpack.c.l.b16 %v4733
      %v4802 = vunpack.c.h.b16 %v4733
      %v4803 = vunpack.c.l.b16 %v4734
      %v4804 = vunpack.c.h.b16 %v4734
      %v4805 = vunpack.c.l.b16 %v4735
      %v4806 = vunpack.c.h.b16 %v4735
      %v4807 = vunpack.c.l.b16 %v4736
      %v4808 = vunpack.c.h.b16 %v4736
      %v4809 = vunpack.c.l.b16 %v4737
      %v4810 = vunpack.c.h.b16 %v4737
      %v4811 = vunpack.c.l.b16 %v4738
      %v4812 = vunpack.c.h.b16 %v4738
      %v4813 = vunpack.c.l.b16 %v4739
      %v4814 = vunpack.c.h.b16 %v4739
      %v4815 = vunpack.c.l.b16 %v4740
      %v4816 = vunpack.c.h.b16 %v4740
      %v4817 = vunpack.c.l.b16 %v4741
      %v4818 = vunpack.c.h.b16 %v4741
      %v4819 = vunpack.c.l.b16 %v4742
      %v4820 = vunpack.c.h.b16 %v4742
      %v4821 = vunpack.c.l.b16 %v4743
      %v4822 = vunpack.c.h.b16 %v4743
      %v4823 = vunpack.c.l.b16 %v4744
      %v4824 = vunpack.c.h.b16 %v4744
      %v4825 = vunpack.c.l.b16 %v4745
      %v4826 = vunpack.c.h.b16 %v4745
      %v4827 = vunpack.c.l.b16 %v4746
      %v4828 = vunpack.c.h.b16 %v4746
      %v4829 = vunpack.c.l.b16 %v4747
      %v4830 = vunpack.c.h.b16 %v4747
      %v4831 = vunpack.c.l.b16 %v4748
      %v4832 = vunpack.c.h.b16 %v4748
      %v4833 = vunpack.c.l.b16 %v4749
      %v4834 = vunpack.c.h.b16 %v4749
      %v4835 = vunpack.c.l.b16 %v4750
      %v4836 = vunpack.c.h.b16 %v4750
      %v4837 = vunpack.c.l.b16 %v4751
      %v4838 = vunpack.c.h.b16 %v4751
      %v4839 = vunpack.c.l.b16 %v4752
      %v4840 = vunpack.c.h.b16 %v4752
      %v4841 = vunpack.c.l.b16 %v4753
      %v4842 = vunpack.c.h.b16 %v4753
      %v4843 = vunpack.c.l.b16 %v4754
      %v4844 = vunpack.c.h.b16 %v4754
      %v4845 = vunpack.c.l.b16 %v4755
      %v4846 = vunpack.c.h.b16 %v4755
      %v4847 = vunpack.c.l.b16 %v4756
      %v4848 = vunpack.c.h.b16 %v4756
      %v4849 = vunpack.c.l.b16 %v4757
      %v4850 = vunpack.c.h.b16 %v4757
      %v4851 = vunpack.c.l.b16 %v4758
      %v4852 = vunpack.c.h.b16 %v4758
      %v4853 = vunpack.c.l.b16 %v4759
      %v4854 = vunpack.c.h.b16 %v4759
      %v4855 = vunpack.c.l.b16 %v4760
      %v4856 = vunpack.c.h.b16 %v4760
      %v4857 = vpack.c.b16 %v4795, %v4793
      %v4858 = vpack.c.b16 %v4796, %v4794
      %v4859 = vpack.c.b16 %v4799, %v4797
      %v4860 = vpack.c.b16 %v4800, %v4798
      %v4861 = vpack.c.b16 %v4803, %v4801
      %v4862 = vpack.c.b16 %v4804, %v4802
      %v4863 = vpack.c.b16 %v4807, %v4805
      %v4864 = vpack.c.b16 %v4808, %v4806
      %v4865 = vpack.c.b16 %v4811, %v4809
      %v4866 = vpack.c.b16 %v4812, %v4810
      %v4867 = vpack.c.b16 %v4815, %v4813
      %v4868 = vpack.c.b16 %v4816, %v4814
      %v4869 = vpack.c.b16 %v4819, %v4817
      %v4870 = vpack.c.b16 %v4820, %v4818
      %v4871 = vpack.c.b16 %v4823, %v4821
      %v4872 = vpack.c.b16 %v4824, %v4822
      %v4873 = vpack.c.b16 %v4827, %v4825
      %v4874 = vpack.c.b16 %v4828, %v4826
      %v4875 = vpack.c.b16 %v4831, %v4829
      %v4876 = vpack.c.b16 %v4832, %v4830
      %v4877 = vpack.c.b16 %v4835, %v4833
      %v4878 = vpack.c.b16 %v4836, %v4834
      %v4879 = vpack.c.b16 %v4839, %v4837
      %v4880 = vpack.c.b16 %v4840, %v4838
      %v4881 = vpack.c.b16 %v4843, %v4841
      %v4882 = vpack.c.b16 %v4844, %v4842
      %v4883 = vpack.c.b16 %v4847, %v4845
      %v4884 = vpack.c.b16 %v4848, %v4846
      %v4885 = vpack.c.b16 %v4851, %v4849
      %v4886 = vpack.c.b16 %v4852, %v4850
      %v4887 = vpack.c.b16 %v4855, %v4853
      %v4888 = vpack.c.b16 %v4856, %v4854
      %4921 = vmatprep.subr.bf16.mxu0 0
      %4922 = vmatpush1.bf16.msra.mxu0 %v4633
      %4923 = vmatprep.subr.bf16.mxu0 0
      %4924 = vmatpush1.bf16.msra.mxu0 %v4637
      %4925 = vmatprep.subr.bf16.mxu0 0
      %4926 = vmatpush1.bf16.msra.mxu0 %v4641
      %4927 = vmatprep.subr.bf16.mxu0 0
      %4928 = vmatpush1.bf16.msra.mxu0 %v4645
      %4929 = vmatprep.subr.bf16.mxu0 0
      %4930 = vmatpush1.bf16.msra.mxu0 %v4649
      %4931 = vmatprep.subr.bf16.mxu0 0
      %4932 = vmatpush1.bf16.msra.mxu0 %v4653
      %4933 = vmatprep.subr.bf16.mxu0 0
      %4934 = vmatpush1.bf16.msra.mxu0 %v4657
      %4935 = vmatprep.subr.bf16.mxu0 0
      %4936 = vmatpush1.bf16.msra.mxu0 %v4661
      %4937 = vmatprep.subr.bf16.mxu0 0
      %4938 = vmatpush1.bf16.msra.mxu0 %v4665
      %4939 = vmatprep.subr.bf16.mxu0 0
      %4940 = vmatpush1.bf16.msra.mxu0 %v4669
      %4941 = vmatprep.subr.bf16.mxu0 0
      %4942 = vmatpush1.bf16.msra.mxu0 %v4673
      %4943 = vmatprep.subr.bf16.mxu0 0
      %4944 = vmatpush1.bf16.msra.mxu0 %v4677
      %4945 = vmatprep.subr.bf16.mxu0 0
      %4946 = vmatpush1.bf16.msra.mxu0 %v4681
      %4947 = vmatprep.subr.bf16.mxu0 0
      %4948 = vmatpush1.bf16.msra.mxu0 %v4685
      %4949 = vmatprep.subr.bf16.mxu0 0
      %4950 = vmatpush1.bf16.msra.mxu0 %v4689
      %4951 = vmatprep.subr.bf16.mxu0 0
      %4952 = vmatpush1.bf16.msra.mxu0 %v4693
      %4953 = vmatprep.mubr.bf16.mxu0 %v4858
      %4954 = vmatmul.mubr.bf16.gmra.mrb[0].mxu0 %v4857
      %v4955 = vpop.f32.mrb[0].mxu0
      %v4956 = vadd.f32 0.0, %v4955
      %v4957 = vpop.f32.mrb[0].mxu0
      %v4958 = vpop.f32.mrb[0].mxu0
      %v4959 = vadd.f32 0.0, %v4958
      %v4960 = vpop.f32.mrb[0].mxu0
      %4961 = vmatprep.mubr.bf16.mxu0 %v4860
      %4962 = vmatmul.mubr.bf16.gmra.mrb[0].mxu0 %v4859
      %v4963 = vpop.f32.mrb[0].mxu0
      %v4964 = vadd.f32 0.0, %v4963
      %v4965 = vpop.f32.mrb[0].mxu0
      %v4966 = vpop.f32.mrb[0].mxu0
      %v4967 = vadd.f32 0.0, %v4966
      %v4968 = vpop.f32.mrb[0].mxu0
      %4969 = vmatprep.mubr.bf16.mxu0 %v4862
      %4970 = vmatmul.mubr.bf16.gmra.mrb[0].mxu0 %v4861
      %v4971 = vpop.f32.mrb[0].mxu0
      %v4972 = vadd.f32 0.0, %v4971
      %v4973 = vpop.f32.mrb[0].mxu0
      %v4974 = vpop.f32.mrb[0].mxu0
      %v4975 = vadd.f32 0.0, %v4974
      %v4976 = vpop.f32.mrb[0].mxu0
      %4977 = vmatprep.mubr.bf16.mxu0 %v4864
      %4978 = vmatmul.mubr.bf16.gmra.mrb[0].mxu0 %v4863
      %v4979 = vpop.f32.mrb[0].mxu0
      %v4980 = vadd.f32 0.0, %v4979
      %v4981 = vpop.f32.mrb[0].mxu0
      %v4982 = vpop.f32.mrb[0].mxu0
      %v4983 = vadd.f32 0.0, %v4982
      %v4984 = vpop.f32.mrb[0].mxu0
      %4985 = vmatprep.mubr.bf16.mxu0 %v4866
      %4986 = vmatmul.mubr.bf16.gmra.mrb[0].mxu0 %v4865
      %v4987 = vpop.f32.mrb[0].mxu0
      %v4988 = vadd.f32 0.0, %v4987
      %v4989 = vpop.f32.mrb[0].mxu0
      %v4990 = vpop.f32.mrb[0].mxu0
      %v4991 = vadd.f32 0.0, %v4990
      %v4992 = vpop.f32.mrb[0].mxu0
      %4993 = vmatprep.mubr.bf16.mxu0 %v4868
      %4994 = vmatmul.mubr.bf16.gmra.mrb[0].mxu0 %v4867
      %v4995 = vpop.f32.mrb[0].mxu0
      %v4996 = vadd.f32 0.0, %v4995
      %v4997 = vpop.f32.mrb[0].mxu0
      %v4998 = vpop.f32.mrb[0].mxu0
      %v4999 = vadd.f32 0.0, %v4998
      %v5000 = vpop.f32.mrb[0].mxu0
      %5001 = vmatprep.mubr.bf16.mxu0 %v4870
      %5002 = vmatmul.mubr.bf16.gmra.mrb[0].mxu0 %v4869
      %v5003 = vpop.f32.mrb[0].mxu0
      %v5004 = vadd.f32 0.0, %v5003
      %v5005 = vpop.f32.mrb[0].mxu0
      %v5006 = vpop.f32.mrb[0].mxu0
      %v5007 = vadd.f32 0.0, %v5006
      %v5008 = vpop.f32.mrb[0].mxu0
      %5009 = vmatprep.mubr.bf16.mxu0 %v4872
      %5010 = vmatmul.mubr.bf16.gmra.mrb[0].mxu0 %v4871
      %v5011 = vpop.f32.mrb[0].mxu0
      %v5012 = vadd.f32 0.0, %v5011
      %v5013 = vpop.f32.mrb[0].mxu0
      %v5014 = vpop.f32.mrb[0].mxu0
      %v5015 = vadd.f32 0.0, %v5014
      %v5016 = vpop.f32.mrb[0].mxu0
      %5017 = vmatprep.mubr.bf16.mxu0 %v4874
      %5018 = vmatmul.mubr.bf16.gmra.mrb[0].mxu0 %v4873
      %v5019 = vpop.f32.mrb[0].mxu0
      %v5020 = vadd.f32 0.0, %v5019
      %v5021 = vpop.f32.mrb[0].mxu0
      %v5022 = vpop.f32.mrb[0].mxu0
      %v5023 = vadd.f32 0.0, %v5022
      %v5024 = vpop.f32.mrb[0].mxu0
      %5025 = vmatprep.mubr.bf16.mxu0 %v4876
      %5026 = vmatmul.mubr.bf16.gmra.mrb[0].mxu0 %v4875
      %v5027 = vpop.f32.mrb[0].mxu0
      %v5028 = vadd.f32 0.0, %v5027
      %v5029 = vpop.f32.mrb[0].mxu0
      %v5030 = vpop.f32.mrb[0].mxu0
      %v5031 = vadd.f32 0.0, %v5030
      %v5032 = vpop.f32.mrb[0].mxu0
      %5033 = vmatprep.mubr.bf16.mxu0 %v4878
      %5034 = vmatmul.mubr.bf16.gmra.mrb[0].mxu0 %v4877
      %v5035 = vpop.f32.mrb[0].mxu0
      %v5036 = vadd.f32 0.0, %v5035
      %v5037 = vpop.f32.mrb[0].mxu0
      %v5038 = vpop.f32.mrb[0].mxu0
      %v5039 = vadd.f32 0.0, %v5038
      %v5040 = vpop.f32.mrb[0].mxu0
      %5041 = vmatprep.mubr.bf16.mxu0 %v4880
      %5042 = vmatmul.mubr.bf16.gmra.mrb[0].mxu0 %v4879
      %v5043 = vpop.f32.mrb[0].mxu0
      %v5044 = vadd.f32 0.0, %v5043
      %v5045 = vpop.f32.mrb[0].mxu0
      %v5046 = vpop.f32.mrb[0].mxu0
      %v5047 = vadd.f32 0.0, %v5046
      %v5048 = vpop.f32.mrb[0].mxu0
      %5049 = vmatprep.mubr.bf16.mxu0 %v4882
      %5050 = vmatmul.mubr.bf16.gmra.mrb[0].mxu0 %v4881
      %v5051 = vpop.f32.mrb[0].mxu0
      %v5052 = vadd.f32 0.0, %v5051
      %v5053 = vpop.f32.mrb[0].mxu0
      %v5054 = vpop.f32.mrb[0].mxu0
      %v5055 = vadd.f32 0.0, %v5054
      %v5056 = vpop.f32.mrb[0].mxu0
      %5057 = vmatprep.mubr.bf16.mxu0 %v4884
      %5058 = vmatmul.mubr.bf16.gmra.mrb[0].mxu0 %v4883
      %v5059 = vpop.f32.mrb[0].mxu0
      %v5060 = vadd.f32 0.0, %v5059
      %v5061 = vpop.f32.mrb[0].mxu0
      %v5062 = vpop.f32.mrb[0].mxu0
      %v5063 = vadd.f32 0.0, %v5062
      %v5064 = vpop.f32.mrb[0].mxu0
      %5065 = vmatprep.mubr.bf16.mxu0 %v4886
      %5066 = vmatmul.mubr.bf16.gmra.mrb[0].mxu0 %v4885
      %v5067 = vpop.f32.mrb[0].mxu0
      %v5068 = vadd.f32 0.0, %v5067
      %v5069 = vpop.f32.mrb[0].mxu0
      %v5070 = vpop.f32.mrb[0].mxu0
      %v5071 = vadd.f32 0.0, %v5070
      %v5072 = vpop.f32.mrb[0].mxu0
      %5073 = vmatprep.mubr.bf16.mxu0 %v4888
      %5074 = vmatmul.mubr.bf16.gmra.mrb[0].mxu0 %v4887
      %v5075 = vpop.f32.mrb[0].mxu0
      %v5076 = vadd.f32 0.0, %v5075
      %v5077 = vpop.f32.mrb[0].mxu0
      %v5078 = vpop.f32.mrb[0].mxu0
      %v5079 = vadd.f32 0.0, %v5078
      %v5080 = vpop.f32.mrb[0].mxu0
      %5081 = vdwg.mxu0
      %v5114 = vunpack.c.l.b16 %v4696
      %v5115 = vunpack.c.h.b16 %v4696
      %v5116 = vunpack.c.l.b16 %v4697
      %v5117 = vunpack.c.h.b16 %v4697
      %v5118 = vunpack.c.l.b16 %v4698
      %v5119 = vunpack.c.h.b16 %v4698
      %v5120 = vunpack.c.l.b16 %v4699
      %v5121 = vunpack.c.h.b16 %v4699
      %v5122 = vunpack.c.l.b16 %v4700
      %v5123 = vunpack.c.h.b16 %v4700
      %v5124 = vunpack.c.l.b16 %v4701
      %v5125 = vunpack.c.h.b16 %v4701
      %v5126 = vunpack.c.l.b16 %v4702
      %v5127 = vunpack.c.h.b16 %v4702
      %v5128 = vunpack.c.l.b16 %v4703
      %v5129 = vunpack.c.h.b16 %v4703
      %v5130 = vunpack.c.l.b16 %v4704
      %v5131 = vunpack.c.h.b16 %v4704
      %v5132 = vunpack.c.l.b16 %v4705
      %v5133 = vunpack.c.h.b16 %v4705
      %v5134 = vunpack.c.l.b16 %v4706
      %v5135 = vunpack.c.h.b16 %v4706
      %v5136 = vunpack.c.l.b16 %v4707
      %v5137 = vunpack.c.h.b16 %v4707
      %v5138 = vunpack.c.l.b16 %v4708
      %v5139 = vunpack.c.h.b16 %v4708
      %v5140 = vunpack.c.l.b16 %v4709
      %v5141 = vunpack.c.h.b16 %v4709
      %v5142 = vunpack.c.l.b16 %v4710
      %v5143 = vunpack.c.h.b16 %v4710
      %v5144 = vunpack.c.l.b16 %v4711
      %v5145 = vunpack.c.h.b16 %v4711
      %v5146 = vunpack.c.l.b16 %v4712
      %v5147 = vunpack.c.h.b16 %v4712
      %v5148 = vunpack.c.l.b16 %v4713
      %v5149 = vunpack.c.h.b16 %v4713
      %v5150 = vunpack.c.l.b16 %v4714
      %v5151 = vunpack.c.h.b16 %v4714
      %v5152 = vunpack.c.l.b16 %v4715
      %v5153 = vunpack.c.h.b16 %v4715
      %v5154 = vunpack.c.l.b16 %v4716
      %v5155 = vunpack.c.h.b16 %v4716
      %v5156 = vunpack.c.l.b16 %v4717
      %v5157 = vunpack.c.h.b16 %v4717
      %v5158 = vunpack.c.l.b16 %v4718
      %v5159 = vunpack.c.h.b16 %v4718
      %v5160 = vunpack.c.l.b16 %v4719
      %v5161 = vunpack.c.h.b16 %v4719
      %v5162 = vunpack.c.l.b16 %v4720
      %v5163 = vunpack.c.h.b16 %v4720
      %v5164 = vunpack.c.l.b16 %v4721
      %v5165 = vunpack.c.h.b16 %v4721
      %v5166 = vunpack.c.l.b16 %v4722
      %v5167 = vunpack.c.h.b16 %v4722
      %v5168 = vunpack.c.l.b16 %v4723
      %v5169 = vunpack.c.h.b16 %v4723
      %v5170 = vunpack.c.l.b16 %v4724
      %v5171 = vunpack.c.h.b16 %v4724
      %v5172 = vunpack.c.l.b16 %v4725
      %v5173 = vunpack.c.h.b16 %v4725
      %v5174 = vunpack.c.l.b16 %v4726
      %v5175 = vunpack.c.h.b16 %v4726
      %v5176 = vunpack.c.l.b16 %v4727
      %v5177 = vunpack.c.h.b16 %v4727
      %v5178 = vpack.c.b16 %v5116, %v5114
      %v5179 = vpack.c.b16 %v5117, %v5115
      %v5180 = vpack.c.b16 %v5120, %v5118
      %v5181 = vpack.c.b16 %v5121, %v5119
      %v5182 = vpack.c.b16 %v5124, %v5122
      %v5183 = vpack.c.b16 %v5125, %v5123
      %v5184 = vpack.c.b16 %v5128, %v5126
      %v5185 = vpack.c.b16 %v5129, %v5127
      %v5186 = vpack.c.b16 %v5132, %v5130
      %v5187 = vpack.c.b16 %v5133, %v5131
      %v5188 = vpack.c.b16 %v5136, %v5134
      %v5189 = vpack.c.b16 %v5137, %v5135
      %v5190 = vpack.c.b16 %v5140, %v5138
      %v5191 = vpack.c.b16 %v5141, %v5139
      %v5192 = vpack.c.b16 %v5144, %v5142
      %v5193 = vpack.c.b16 %v5145, %v5143
      %v5194 = vpack.c.b16 %v5148, %v5146
      %v5195 = vpack.c.b16 %v5149, %v5147
      %v5196 = vpack.c.b16 %v5152, %v5150
      %v5197 = vpack.c.b16 %v5153, %v5151
      %v5198 = vpack.c.b16 %v5156, %v5154
      %v5199 = vpack.c.b16 %v5157, %v5155
      %v5200 = vpack.c.b16 %v5160, %v5158
      %v5201 = vpack.c.b16 %v5161, %v5159
      %v5202 = vpack.c.b16 %v5164, %v5162
      %v5203 = vpack.c.b16 %v5165, %v5163
      %v5204 = vpack.c.b16 %v5168, %v5166
      %v5205 = vpack.c.b16 %v5169, %v5167
      %v5206 = vpack.c.b16 %v5172, %v5170
      %v5207 = vpack.c.b16 %v5173, %v5171
      %v5208 = vpack.c.b16 %v5176, %v5174
      %v5209 = vpack.c.b16 %v5177, %v5175
      %5242 = vmatprep.subr.bf16.mxu0 0
      %5243 = vmatpush1.bf16.msra.mxu0 %v4632
      %5244 = vmatprep.subr.bf16.mxu0 0
      %5245 = vmatpush1.bf16.msra.mxu0 %v4636
      %5246 = vmatprep.subr.bf16.mxu0 0
      %5247 = vmatpush1.bf16.msra.mxu0 %v4640
      %5248 = vmatprep.subr.bf16.mxu0 0
      %5249 = vmatpush1.bf16.msra.mxu0 %v4644
      %5250 = vmatprep.subr.bf16.mxu0 0
      %5251 = vmatpush1.bf16.msra.mxu0 %v4648
      %5252 = vmatprep.subr.bf16.mxu0 0
      %5253 = vmatpush1.bf16.msra.mxu0 %v4652
      %5254 = vmatprep.subr.bf16.mxu0 0
      %5255 = vmatpush1.bf16.msra.mxu0 %v4656
      %5256 = vmatprep.subr.bf16.mxu0 0
      %5257 = vmatpush1.bf16.msra.mxu0 %v4660
      %5258 = vmatprep.subr.bf16.mxu0 0
      %5259 = vmatpush1.bf16.msra.mxu0 %v4664
      %5260 = vmatprep.subr.bf16.mxu0 0
      %5261 = vmatpush1.bf16.msra.mxu0 %v4668
      %5262 = vmatprep.subr.bf16.mxu0 0
      %5263 = vmatpush1.bf16.msra.mxu0 %v4672
      %5264 = vmatprep.subr.bf16.mxu0 0
      %5265 = vmatpush1.bf16.msra.mxu0 %v4676
      %5266 = vmatprep.subr.bf16.mxu0 0
      %5267 = vmatpush1.bf16.msra.mxu0 %v4680
      %5268 = vmatprep.subr.bf16.mxu0 0
      %5269 = vmatpush1.bf16.msra.mxu0 %v4684
      %5270 = vmatprep.subr.bf16.mxu0 0
      %5271 = vmatpush1.bf16.msra.mxu0 %v4688
      %5272 = vmatprep.subr.bf16.mxu0 0
      %5273 = vmatpush1.bf16.msra.mxu0 %v4692
      %5274 = vmatprep.mubr.bf16.mxu0 %v5179
      %5275 = vmatmul.mubr.bf16.gmra.mrb[0].mxu0 %v5178
      %v5276 = vpop.f32.mrb[0].mxu0
      %v5277 = vadd.f32 %v4956, %v5276
      %v5278 = vpop.f32.mrb[0].mxu0
      %v5279 = vpop.f32.mrb[0].mxu0
      %v5280 = vadd.f32 %v4959, %v5279
      %v5281 = vpop.f32.mrb[0].mxu0
      %5282 = vmatprep.mubr.bf16.mxu0 %v5181
      %5283 = vmatmul.mubr.bf16.gmra.mrb[0].mxu0 %v5180
      %v5284 = vpop.f32.mrb[0].mxu0
      %v5285 = vadd.f32 %v4964, %v5284
      %v5286 = vpop.f32.mrb[0].mxu0
      %v5287 = vpop.f32.mrb[0].mxu0
      %v5288 = vadd.f32 %v4967, %v5287
      %v5289 = vpop.f32.mrb[0].mxu0
      %5290 = vmatprep.mubr.bf16.mxu0 %v5183
      %5291 = vmatmul.mubr.bf16.gmra.mrb[0].mxu0 %v5182
      %v5292 = vpop.f32.mrb[0].mxu0
      %v5293 = vadd.f32 %v4972, %v5292
      %v5294 = vpop.f32.mrb[0].mxu0
      %v5295 = vpop.f32.mrb[0].mxu0
      %v5296 = vadd.f32 %v4975, %v5295
      %v5297 = vpop.f32.mrb[0].mxu0
      %5298 = vmatprep.mubr.bf16.mxu0 %v5185
      %5299 = vmatmul.mubr.bf16.gmra.mrb[0].mxu0 %v5184
      %v5300 = vpop.f32.mrb[0].mxu0
      %v5301 = vadd.f32 %v4980, %v5300
      %v5302 = vpop.f32.mrb[0].mxu0
      %v5303 = vpop.f32.mrb[0].mxu0
      %v5304 = vadd.f32 %v4983, %v5303
      %v5305 = vpop.f32.mrb[0].mxu0
      %5306 = vmatprep.mubr.bf16.mxu0 %v5187
      %5307 = vmatmul.mubr.bf16.gmra.mrb[0].mxu0 %v5186
      %v5308 = vpop.f32.mrb[0].mxu0
      %v5309 = vadd.f32 %v4988, %v5308
      %v5310 = vpop.f32.mrb[0].mxu0
      %v5311 = vpop.f32.mrb[0].mxu0
      %v5312 = vadd.f32 %v4991, %v5311
      %v5313 = vpop.f32.mrb[0].mxu0
      %5314 = vmatprep.mubr.bf16.mxu0 %v5189
      %5315 = vmatmul.mubr.bf16.gmra.mrb[0].mxu0 %v5188
      %v5316 = vpop.f32.mrb[0].mxu0
      %v5317 = vadd.f32 %v4996, %v5316
      %v5318 = vpop.f32.mrb[0].mxu0
      %v5319 = vpop.f32.mrb[0].mxu0
      %v5320 = vadd.f32 %v4999, %v5319
      %v5321 = vpop.f32.mrb[0].mxu0
      %5322 = vmatprep.mubr.bf16.mxu0 %v5191
      %5323 = vmatmul.mubr.bf16.gmra.mrb[0].mxu0 %v5190
      %v5324 = vpop.f32.mrb[0].mxu0
      %v5325 = vadd.f32 %v5004, %v5324
      %v5326 = vpop.f32.mrb[0].mxu0
      %v5327 = vpop.f32.mrb[0].mxu0
      %v5328 = vadd.f32 %v5007, %v5327
      %v5329 = vpop.f32.mrb[0].mxu0
      %5330 = vmatprep.mubr.bf16.mxu0 %v5193
      %5331 = vmatmul.mubr.bf16.gmra.mrb[0].mxu0 %v5192
      %v5332 = vpop.f32.mrb[0].mxu0
      %v5333 = vadd.f32 %v5012, %v5332
      %v5334 = vpop.f32.mrb[0].mxu0
      %v5335 = vpop.f32.mrb[0].mxu0
      %v5336 = vadd.f32 %v5015, %v5335
      %v5337 = vpop.f32.mrb[0].mxu0
      %5338 = vmatprep.mubr.bf16.mxu0 %v5195
      %5339 = vmatmul.mubr.bf16.gmra.mrb[0].mxu0 %v5194
      %v5340 = vpop.f32.mrb[0].mxu0
      %v5341 = vadd.f32 %v5020, %v5340
      %v5342 = vpop.f32.mrb[0].mxu0
      %v5343 = vpop.f32.mrb[0].mxu0
      %v5344 = vadd.f32 %v5023, %v5343
      %v5345 = vpop.f32.mrb[0].mxu0
      %5346 = vmatprep.mubr.bf16.mxu0 %v5197
      %5347 = vmatmul.mubr.bf16.gmra.mrb[0].mxu0 %v5196
      %v5348 = vpop.f32.mrb[0].mxu0
      %v5349 = vadd.f32 %v5028, %v5348
      %v5350 = vpop.f32.mrb[0].mxu0
      %v5351 = vpop.f32.mrb[0].mxu0
      %v5352 = vadd.f32 %v5031, %v5351
      %v5353 = vpop.f32.mrb[0].mxu0
      %5354 = vmatprep.mubr.bf16.mxu0 %v5199
      %5355 = vmatmul.mubr.bf16.gmra.mrb[0].mxu0 %v5198
      %v5356 = vpop.f32.mrb[0].mxu0
      %v5357 = vadd.f32 %v5036, %v5356
      %v5358 = vpop.f32.mrb[0].mxu0
      %v5359 = vpop.f32.mrb[0].mxu0
      %v5360 = vadd.f32 %v5039, %v5359
      %v5361 = vpop.f32.mrb[0].mxu0
      %5362 = vmatprep.mubr.bf16.mxu0 %v5201
      %5363 = vmatmul.mubr.bf16.gmra.mrb[0].mxu0 %v5200
      %v5364 = vpop.f32.mrb[0].mxu0
      %v5365 = vadd.f32 %v5044, %v5364
      %v5366 = vpop.f32.mrb[0].mxu0
      %v5367 = vpop.f32.mrb[0].mxu0
      %v5368 = vadd.f32 %v5047, %v5367
      %v5369 = vpop.f32.mrb[0].mxu0
      %5370 = vmatprep.mubr.bf16.mxu0 %v5203
      %5371 = vmatmul.mubr.bf16.gmra.mrb[0].mxu0 %v5202
      %v5372 = vpop.f32.mrb[0].mxu0
      %v5373 = vadd.f32 %v5052, %v5372
      %v5374 = vpop.f32.mrb[0].mxu0
      %v5375 = vpop.f32.mrb[0].mxu0
      %v5376 = vadd.f32 %v5055, %v5375
      %v5377 = vpop.f32.mrb[0].mxu0
      %5378 = vmatprep.mubr.bf16.mxu0 %v5205
      %5379 = vmatmul.mubr.bf16.gmra.mrb[0].mxu0 %v5204
      %v5380 = vpop.f32.mrb[0].mxu0
      %v5381 = vadd.f32 %v5060, %v5380
      %v5382 = vpop.f32.mrb[0].mxu0
      %v5383 = vpop.f32.mrb[0].mxu0
      %v5384 = vadd.f32 %v5063, %v5383
      %v5385 = vpop.f32.mrb[0].mxu0
      %5386 = vmatprep.mubr.bf16.mxu0 %v5207
      %5387 = vmatmul.mubr.bf16.gmra.mrb[0].mxu0 %v5206
      %v5388 = vpop.f32.mrb[0].mxu0
      %v5389 = vadd.f32 %v5068, %v5388
      %v5390 = vpop.f32.mrb[0].mxu0
      %v5391 = vpop.f32.mrb[0].mxu0
      %v5392 = vadd.f32 %v5071, %v5391
      %v5393 = vpop.f32.mrb[0].mxu0
      %5394 = vmatprep.mubr.bf16.mxu0 %v5209
      %5395 = vmatmul.mubr.bf16.gmra.mrb[0].mxu0 %v5208
      %v5396 = vpop.f32.mrb[0].mxu0
      %v5397 = vadd.f32 %v5076, %v5396
      %v5398 = vpop.f32.mrb[0].mxu0
      %v5399 = vpop.f32.mrb[0].mxu0
      %v5400 = vadd.f32 %v5079, %v5399
      %v5401 = vpop.f32.mrb[0].mxu0
      %5402 = vdwg.mxu0
      %s5403 = scalar_lea.vmem %s3, 512
      %v5404 = vld [vmem:[%s5403] sm:$0xff]
      %v5405 = vld [vmem:[%s5403 + $0x8] sm:$0xff]
      %v5406 = vld [vmem:[%s5403 + $0x10] sm:$0xff]
      %v5407 = vld [vmem:[%s5403 + $0x18] sm:$0xff]
      %v5408 = vld [vmem:[%s5403 + $0x20] sm:$0xff]
      %v5409 = vld [vmem:[%s5403 + $0x28] sm:$0xff]
      %v5410 = vld [vmem:[%s5403 + $0x30] sm:$0xff]
      %v5411 = vld [vmem:[%s5403 + $0x38] sm:$0xff]
      %v5412 = vld [vmem:[%s5403 + $0x40] sm:$0xff]
      %v5413 = vld [vmem:[%s5403 + $0x48] sm:$0xff]
      %v5414 = vld [vmem:[%s5403 + $0x50] sm:$0xff]
      %v5415 = vld [vmem:[%s5403 + $0x58] sm:$0xff]
      %v5416 = vld [vmem:[%s5403 + $0x60] sm:$0xff]
      %v5417 = vld [vmem:[%s5403 + $0x68] sm:$0xff]
      %v5418 = vld [vmem:[%s5403 + $0x70] sm:$0xff]
      %v5419 = vld [vmem:[%s5403 + $0x78] sm:$0xff]
      %v5420 = vld [vmem:[%s5403 + $0x80] sm:$0xff]
      %v5421 = vld [vmem:[%s5403 + $0x88] sm:$0xff]
      %v5422 = vld [vmem:[%s5403 + $0x90] sm:$0xff]
      %v5423 = vld [vmem:[%s5403 + $0x98] sm:$0xff]
      %v5424 = vld [vmem:[%s5403 + $0xa0] sm:$0xff]
      %v5425 = vld [vmem:[%s5403 + $0xa8] sm:$0xff]
      %v5426 = vld [vmem:[%s5403 + $0xb0] sm:$0xff]
      %v5427 = vld [vmem:[%s5403 + $0xb8] sm:$0xff]
      %v5428 = vld [vmem:[%s5403 + $0xc0] sm:$0xff]
      %v5429 = vld [vmem:[%s5403 + $0xc8] sm:$0xff]
      %v5430 = vld [vmem:[%s5403 + $0xd0] sm:$0xff]
      %v5431 = vld [vmem:[%s5403 + $0xd8] sm:$0xff]
      %v5432 = vld [vmem:[%s5403 + $0xe0] sm:$0xff]
      %v5433 = vld [vmem:[%s5403 + $0xe8] sm:$0xff]
      %v5434 = vld [vmem:[%s5403 + $0xf0] sm:$0xff]
      %v5435 = vld [vmem:[%s5403 + $0xf8] sm:$0xff]
      %v5468 = vunpack.c.l.b16 %v5404
      %v5469 = vunpack.c.h.b16 %v5404
      %v5470 = vunpack.c.l.b16 %v5405
      %v5471 = vunpack.c.h.b16 %v5405
      %v5472 = vunpack.c.l.b16 %v5406
      %v5473 = vunpack.c.h.b16 %v5406
      %v5474 = vunpack.c.l.b16 %v5407
      %v5475 = vunpack.c.h.b16 %v5407
      %v5476 = vunpack.c.l.b16 %v5408
      %v5477 = vunpack.c.h.b16 %v5408
      %v5478 = vunpack.c.l.b16 %v5409
      %v5479 = vunpack.c.h.b16 %v5409
      %v5480 = vunpack.c.l.b16 %v5410
      %v5481 = vunpack.c.h.b16 %v5410
      %v5482 = vunpack.c.l.b16 %v5411
      %v5483 = vunpack.c.h.b16 %v5411
      %v5484 = vunpack.c.l.b16 %v5412
      %v5485 = vunpack.c.h.b16 %v5412
      %v5486 = vunpack.c.l.b16 %v5413
      %v5487 = vunpack.c.h.b16 %v5413
      %v5488 = vunpack.c.l.b16 %v5414
      %v5489 = vunpack.c.h.b16 %v5414
      %v5490 = vunpack.c.l.b16 %v5415
      %v5491 = vunpack.c.h.b16 %v5415
      %v5492 = vunpack.c.l.b16 %v5416
      %v5493 = vunpack.c.h.b16 %v5416
      %v5494 = vunpack.c.l.b16 %v5417
      %v5495 = vunpack.c.h.b16 %v5417
      %v5496 = vunpack.c.l.b16 %v5418
      %v5497 = vunpack.c.h.b16 %v5418
      %v5498 = vunpack.c.l.b16 %v5419
      %v5499 = vunpack.c.h.b16 %v5419
      %v5500 = vunpack.c.l.b16 %v5420
      %v5501 = vunpack.c.h.b16 %v5420
      %v5502 = vunpack.c.l.b16 %v5421
      %v5503 = vunpack.c.h.b16 %v5421
      %v5504 = vunpack.c.l.b16 %v5422
      %v5505 = vunpack.c.h.b16 %v5422
      %v5506 = vunpack.c.l.b16 %v5423
      %v5507 = vunpack.c.h.b16 %v5423
      %v5508 = vunpack.c.l.b16 %v5424
      %v5509 = vunpack.c.h.b16 %v5424
      %v5510 = vunpack.c.l.b16 %v5425
      %v5511 = vunpack.c.h.b16 %v5425
      %v5512 = vunpack.c.l.b16 %v5426
      %v5513 = vunpack.c.h.b16 %v5426
      %v5514 = vunpack.c.l.b16 %v5427
      %v5515 = vunpack.c.h.b16 %v5427
      %v5516 = vunpack.c.l.b16 %v5428
      %v5517 = vunpack.c.h.b16 %v5428
      %v5518 = vunpack.c.l.b16 %v5429
      %v5519 = vunpack.c.h.b16 %v5429
      %v5520 = vunpack.c.l.b16 %v5430
      %v5521 = vunpack.c.h.b16 %v5430
      %v5522 = vunpack.c.l.b16 %v5431
      %v5523 = vunpack.c.h.b16 %v5431
      %v5524 = vunpack.c.l.b16 %v5432
      %v5525 = vunpack.c.h.b16 %v5432
      %v5526 = vunpack.c.l.b16 %v5433
      %v5527 = vunpack.c.h.b16 %v5433
      %v5528 = vunpack.c.l.b16 %v5434
      %v5529 = vunpack.c.h.b16 %v5434
      %v5530 = vunpack.c.l.b16 %v5435
      %v5531 = vunpack.c.h.b16 %v5435
      %v5532 = vpack.c.b16 %v5470, %v5468
      %v5533 = vpack.c.b16 %v5471, %v5469
      %v5534 = vpack.c.b16 %v5474, %v5472
      %v5535 = vpack.c.b16 %v5475, %v5473
      %v5536 = vpack.c.b16 %v5478, %v5476
      %v5537 = vpack.c.b16 %v5479, %v5477
      %v5538 = vpack.c.b16 %v5482, %v5480
      %v5539 = vpack.c.b16 %v5483, %v5481
      %v5540 = vpack.c.b16 %v5486, %v5484
      %v5541 = vpack.c.b16 %v5487, %v5485
      %v5542 = vpack.c.b16 %v5490, %v5488
      %v5543 = vpack.c.b16 %v5491, %v5489
      %v5544 = vpack.c.b16 %v5494, %v5492
      %v5545 = vpack.c.b16 %v5495, %v5493
      %v5546 = vpack.c.b16 %v5498, %v5496
      %v5547 = vpack.c.b16 %v5499, %v5497
      %v5548 = vpack.c.b16 %v5502, %v5500
      %v5549 = vpack.c.b16 %v5503, %v5501
      %v5550 = vpack.c.b16 %v5506, %v5504
      %v5551 = vpack.c.b16 %v5507, %v5505
      %v5552 = vpack.c.b16 %v5510, %v5508
      %v5553 = vpack.c.b16 %v5511, %v5509
      %v5554 = vpack.c.b16 %v5514, %v5512
      %v5555 = vpack.c.b16 %v5515, %v5513
      %v5556 = vpack.c.b16 %v5518, %v5516
      %v5557 = vpack.c.b16 %v5519, %v5517
      %v5558 = vpack.c.b16 %v5522, %v5520
      %v5559 = vpack.c.b16 %v5523, %v5521
      %v5560 = vpack.c.b16 %v5526, %v5524
      %v5561 = vpack.c.b16 %v5527, %v5525
      %v5562 = vpack.c.b16 %v5530, %v5528
      %v5563 = vpack.c.b16 %v5531, %v5529
      %5596 = vmatprep.subr.bf16.mxu0 0
      %5597 = vmatpush1.bf16.msra.mxu0 %v4634
      %5598 = vmatprep.subr.bf16.mxu0 0
      %5599 = vmatpush1.bf16.msra.mxu0 %v4638
      %5600 = vmatprep.subr.bf16.mxu0 0
      %5601 = vmatpush1.bf16.msra.mxu0 %v4642
      %5602 = vmatprep.subr.bf16.mxu0 0
      %5603 = vmatpush1.bf16.msra.mxu0 %v4646
      %5604 = vmatprep.subr.bf16.mxu0 0
      %5605 = vmatpush1.bf16.msra.mxu0 %v4650
      %5606 = vmatprep.subr.bf16.mxu0 0
      %5607 = vmatpush1.bf16.msra.mxu0 %v4654
      %5608 = vmatprep.subr.bf16.mxu0 0
      %5609 = vmatpush1.bf16.msra.mxu0 %v4658
      %5610 = vmatprep.subr.bf16.mxu0 0
      %5611 = vmatpush1.bf16.msra.mxu0 %v4662
      %5612 = vmatprep.subr.bf16.mxu0 0
      %5613 = vmatpush1.bf16.msra.mxu0 %v4666
      %5614 = vmatprep.subr.bf16.mxu0 0
      %5615 = vmatpush1.bf16.msra.mxu0 %v4670
      %5616 = vmatprep.subr.bf16.mxu0 0
      %5617 = vmatpush1.bf16.msra.mxu0 %v4674
      %5618 = vmatprep.subr.bf16.mxu0 0
      %5619 = vmatpush1.bf16.msra.mxu0 %v4678
      %5620 = vmatprep.subr.bf16.mxu0 0
      %5621 = vmatpush1.bf16.msra.mxu0 %v4682
      %5622 = vmatprep.subr.bf16.mxu0 0
      %5623 = vmatpush1.bf16.msra.mxu0 %v4686
      %5624 = vmatprep.subr.bf16.mxu0 0
      %5625 = vmatpush1.bf16.msra.mxu0 %v4690
      %5626 = vmatprep.subr.bf16.mxu0 0
      %5627 = vmatpush1.bf16.msra.mxu0 %v4694
      %5628 = vmatprep.mubr.bf16.mxu0 %v5533
      %5629 = vmatmul.mubr.bf16.gmra.mrb[0].mxu0 %v5532
      %v5630 = vpop.f32.mrb[0].mxu0
      %v5631 = vadd.f32 0.0, %v5630
      %v5632 = vpop.f32.mrb[0].mxu0
      %v5633 = vpop.f32.mrb[0].mxu0
      %v5634 = vadd.f32 0.0, %v5633
      %v5635 = vpop.f32.mrb[0].mxu0
      %5636 = vmatprep.mubr.bf16.mxu0 %v5535
      %5637 = vmatmul.mubr.bf16.gmra.mrb[0].mxu0 %v5534
      %v5638 = vpop.f32.mrb[0].mxu0
      %v5639 = vadd.f32 0.0, %v5638
      %v5640 = vpop.f32.mrb[0].mxu0
      %v5641 = vpop.f32.mrb[0].mxu0
      %v5642 = vadd.f32 0.0, %v5641
      %v5643 = vpop.f32.mrb[0].mxu0
      %5644 = vmatprep.mubr.bf16.mxu0 %v5537
      %5645 = vmatmul.mubr.bf16.gmra.mrb[0].mxu0 %v5536
      %v5646 = vpop.f32.mrb[0].mxu0
      %v5647 = vadd.f32 0.0, %v5646
      %v5648 = vpop.f32.mrb[0].mxu0
      %v5649 = vpop.f32.mrb[0].mxu0
      %v5650 = vadd.f32 0.0, %v5649
      %v5651 = vpop.f32.mrb[0].mxu0
      %5652 = vmatprep.mubr.bf16.mxu0 %v5539
      %5653 = vmatmul.mubr.bf16.gmra.mrb[0].mxu0 %v5538
      %v5654 = vpop.f32.mrb[0].mxu0
      %v5655 = vadd.f32 0.0, %v5654
      %v5656 = vpop.f32.mrb[0].mxu0
      %v5657 = vpop.f32.mrb[0].mxu0
      %v5658 = vadd.f32 0.0, %v5657
      %v5659 = vpop.f32.mrb[0].mxu0
      %5660 = vmatprep.mubr.bf16.mxu0 %v5541
      %5661 = vmatmul.mubr.bf16.gmra.mrb[0].mxu0 %v5540
      %v5662 = vpop.f32.mrb[0].mxu0
      %v5663 = vadd.f32 0.0, %v5662
      %v5664 = vpop.f32.mrb[0].mxu0
      %v5665 = vpop.f32.mrb[0].mxu0
      %v5666 = vadd.f32 0.0, %v5665
      %v5667 = vpop.f32.mrb[0].mxu0
      %5668 = vmatprep.mubr.bf16.mxu0 %v5543
      %5669 = vmatmul.mubr.bf16.gmra.mrb[0].mxu0 %v5542
      %v5670 = vpop.f32.mrb[0].mxu0
      %v5671 = vadd.f32 0.0, %v5670
      %v5672 = vpop.f32.mrb[0].mxu0
      %v5673 = vpop.f32.mrb[0].mxu0
      %v5674 = vadd.f32 0.0, %v5673
      %v5675 = vpop.f32.mrb[0].mxu0
      %5676 = vmatprep.mubr.bf16.mxu0 %v5545
      %5677 = vmatmul.mubr.bf16.gmra.mrb[0].mxu0 %v5544
      %v5678 = vpop.f32.mrb[0].mxu0
      %v5679 = vadd.f32 0.0, %v5678
      %v5680 = vpop.f32.mrb[0].mxu0
      %v5681 = vpop.f32.mrb[0].mxu0
      %v5682 = vadd.f32 0.0, %v5681
      %v5683 = vpop.f32.mrb[0].mxu0
      %5684 = vmatprep.mubr.bf16.mxu0 %v5547
      %5685 = vmatmul.mubr.bf16.gmra.mrb[0].mxu0 %v5546
      %v5686 = vpop.f32.mrb[0].mxu0
      %v5687 = vadd.f32 0.0, %v5686
      %v5688 = vpop.f32.mrb[0].mxu0
      %v5689 = vpop.f32.mrb[0].mxu0
      %v5690 = vadd.f32 0.0, %v5689
      %v5691 = vpop.f32.mrb[0].mxu0
      %5692 = vmatprep.mubr.bf16.mxu0 %v5549
      %5693 = vmatmul.mubr.bf16.gmra.mrb[0].mxu0 %v5548
      %v5694 = vpop.f32.mrb[0].mxu0
      %v5695 = vadd.f32 0.0, %v5694
      %v5696 = vpop.f32.mrb[0].mxu0
      %v5697 = vpop.f32.mrb[0].mxu0
      %v5698 = vadd.f32 0.0, %v5697
      %v5699 = vpop.f32.mrb[0].mxu0
      %5700 = vmatprep.mubr.bf16.mxu0 %v5551
      %5701 = vmatmul.mubr.bf16.gmra.mrb[0].mxu0 %v5550
      %v5702 = vpop.f32.mrb[0].mxu0
      %v5703 = vadd.f32 0.0, %v5702
      %v5704 = vpop.f32.mrb[0].mxu0
      %v5705 = vpop.f32.mrb[0].mxu0
      %v5706 = vadd.f32 0.0, %v5705
      %v5707 = vpop.f32.mrb[0].mxu0
      %5708 = vmatprep.mubr.bf16.mxu0 %v5553
      %5709 = vmatmul.mubr.bf16.gmra.mrb[0].mxu0 %v5552
      %v5710 = vpop.f32.mrb[0].mxu0
      %v5711 = vadd.f32 0.0, %v5710
      %v5712 = vpop.f32.mrb[0].mxu0
      %v5713 = vpop.f32.mrb[0].mxu0
      %v5714 = vadd.f32 0.0, %v5713
      %v5715 = vpop.f32.mrb[0].mxu0
      %5716 = vmatprep.mubr.bf16.mxu0 %v5555
      %5717 = vmatmul.mubr.bf16.gmra.mrb[0].mxu0 %v5554
      %v5718 = vpop.f32.mrb[0].mxu0
      %v5719 = vadd.f32 0.0, %v5718
      %v5720 = vpop.f32.mrb[0].mxu0
      %v5721 = vpop.f32.mrb[0].mxu0
      %v5722 = vadd.f32 0.0, %v5721
      %v5723 = vpop.f32.mrb[0].mxu0
      %5724 = vmatprep.mubr.bf16.mxu0 %v5557
      %5725 = vmatmul.mubr.bf16.gmra.mrb[0].mxu0 %v5556
      %v5726 = vpop.f32.mrb[0].mxu0
      %v5727 = vadd.f32 0.0, %v5726
      %v5728 = vpop.f32.mrb[0].mxu0
      %v5729 = vpop.f32.mrb[0].mxu0
      %v5730 = vadd.f32 0.0, %v5729
      %v5731 = vpop.f32.mrb[0].mxu0
      %5732 = vmatprep.mubr.bf16.mxu0 %v5559
      %5733 = vmatmul.mubr.bf16.gmra.mrb[0].mxu0 %v5558
      %v5734 = vpop.f32.mrb[0].mxu0
      %v5735 = vadd.f32 0.0, %v5734
      %v5736 = vpop.f32.mrb[0].mxu0
      %v5737 = vpop.f32.mrb[0].mxu0
      %v5738 = vadd.f32 0.0, %v5737
      %v5739 = vpop.f32.mrb[0].mxu0
      %5740 = vmatprep.mubr.bf16.mxu0 %v5561
      %5741 = vmatmul.mubr.bf16.gmra.mrb[0].mxu0 %v5560
      %v5742 = vpop.f32.mrb[0].mxu0
      %v5743 = vadd.f32 0.0, %v5742
      %v5744 = vpop.f32.mrb[0].mxu0
      %v5745 = vpop.f32.mrb[0].mxu0
      %v5746 = vadd.f32 0.0, %v5745
      %v5747 = vpop.f32.mrb[0].mxu0
      %5748 = vmatprep.mubr.bf16.mxu0 %v5563
      %5749 = vmatmul.mubr.bf16.gmra.mrb[0].mxu0 %v5562
      %v5750 = vpop.f32.mrb[0].mxu0
      %v5751 = vadd.f32 0.0, %v5750
      %v5752 = vpop.f32.mrb[0].mxu0
      %v5753 = vpop.f32.mrb[0].mxu0
      %v5754 = vadd.f32 0.0, %v5753
      %v5755 = vpop.f32.mrb[0].mxu0
      %5756 = vdwg.mxu0
      %v5757 = vadd.f32 %v5277, %v5631
      %v5758 = vadd.f32 %v5280, %v5634
      %v5759 = vadd.f32 %v5285, %v5639
      %v5760 = vadd.f32 %v5288, %v5642
      %v5761 = vadd.f32 %v5293, %v5647
      %v5762 = vadd.f32 %v5296, %v5650
      %v5763 = vadd.f32 %v5301, %v5655
      %v5764 = vadd.f32 %v5304, %v5658
      %v5765 = vadd.f32 %v5309, %v5663
      %v5766 = vadd.f32 %v5312, %v5666
      %v5767 = vadd.f32 %v5317, %v5671
      %v5768 = vadd.f32 %v5320, %v5674
      %v5769 = vadd.f32 %v5325, %v5679
      %v5770 = vadd.f32 %v5328, %v5682
      %v5771 = vadd.f32 %v5333, %v5687
      %v5772 = vadd.f32 %v5336, %v5690
      %v5773 = vadd.f32 %v5341, %v5695
      %v5774 = vadd.f32 %v5344, %v5698
      %v5775 = vadd.f32 %v5349, %v5703
      %v5776 = vadd.f32 %v5352, %v5706
      %v5777 = vadd.f32 %v5357, %v5711
      %v5778 = vadd.f32 %v5360, %v5714
      %v5779 = vadd.f32 %v5365, %v5719
      %v5780 = vadd.f32 %v5368, %v5722
      %v5781 = vadd.f32 %v5373, %v5727
      %v5782 = vadd.f32 %v5376, %v5730
      %v5783 = vadd.f32 %v5381, %v5735
      %v5784 = vadd.f32 %v5384, %v5738
      %v5785 = vadd.f32 %v5389, %v5743
      %v5786 = vadd.f32 %v5392, %v5746
      %v5787 = vadd.f32 %v5397, %v5751
      %v5788 = vadd.f32 %v5400, %v5754
      %s5789 = scalar_lea.vmem %s3, 768
      %v5790 = vld [vmem:[%s5789] sm:$0xff]
      %v5791 = vld [vmem:[%s5789 + $0x8] sm:$0xff]
      %v5792 = vld [vmem:[%s5789 + $0x10] sm:$0xff]
      %v5793 = vld [vmem:[%s5789 + $0x18] sm:$0xff]
      %v5794 = vld [vmem:[%s5789 + $0x20] sm:$0xff]
      %v5795 = vld [vmem:[%s5789 + $0x28] sm:$0xff]
      %v5796 = vld [vmem:[%s5789 + $0x30] sm:$0xff]
      %v5797 = vld [vmem:[%s5789 + $0x38] sm:$0xff]
      %v5798 = vld [vmem:[%s5789 + $0x40] sm:$0xff]
      %v5799 = vld [vmem:[%s5789 + $0x48] sm:$0xff]
      %v5800 = vld [vmem:[%s5789 + $0x50] sm:$0xff]
      %v5801 = vld [vmem:[%s5789 + $0x58] sm:$0xff]
      %v5802 = vld [vmem:[%s5789 + $0x60] sm:$0xff]
      %v5803 = vld [vmem:[%s5789 + $0x68] sm:$0xff]
      %v5804 = vld [vmem:[%s5789 + $0x70] sm:$0xff]
      %v5805 = vld [vmem:[%s5789 + $0x78] sm:$0xff]
      %v5806 = vld [vmem:[%s5789 + $0x80] sm:$0xff]
      %v5807 = vld [vmem:[%s5789 + $0x88] sm:$0xff]
      %v5808 = vld [vmem:[%s5789 + $0x90] sm:$0xff]
      %v5809 = vld [vmem:[%s5789 + $0x98] sm:$0xff]
      %v5810 = vld [vmem:[%s5789 + $0xa0] sm:$0xff]
      %v5811 = vld [vmem:[%s5789 + $0xa8] sm:$0xff]
      %v5812 = vld [vmem:[%s5789 + $0xb0] sm:$0xff]
      %v5813 = vld [vmem:[%s5789 + $0xb8] sm:$0xff]
      %v5814 = vld [vmem:[%s5789 + $0xc0] sm:$0xff]
      %v5815 = vld [vmem:[%s5789 + $0xc8] sm:$0xff]
      %v5816 = vld [vmem:[%s5789 + $0xd0] sm:$0xff]
      %v5817 = vld [vmem:[%s5789 + $0xd8] sm:$0xff]
      %v5818 = vld [vmem:[%s5789 + $0xe0] sm:$0xff]
      %v5819 = vld [vmem:[%s5789 + $0xe8] sm:$0xff]
      %v5820 = vld [vmem:[%s5789 + $0xf0] sm:$0xff]
      %v5821 = vld [vmem:[%s5789 + $0xf8] sm:$0xff]
      %v5854 = vunpack.c.l.b16 %v5790
      %v5855 = vunpack.c.h.b16 %v5790
      %v5856 = vunpack.c.l.b16 %v5791
      %v5857 = vunpack.c.h.b16 %v5791
      %v5858 = vunpack.c.l.b16 %v5792
      %v5859 = vunpack.c.h.b16 %v5792
      %v5860 = vunpack.c.l.b16 %v5793
      %v5861 = vunpack.c.h.b16 %v5793
      %v5862 = vunpack.c.l.b16 %v5794
      %v5863 = vunpack.c.h.b16 %v5794
      %v5864 = vunpack.c.l.b16 %v5795
      %v5865 = vunpack.c.h.b16 %v5795
      %v5866 = vunpack.c.l.b16 %v5796
      %v5867 = vunpack.c.h.b16 %v5796
      %v5868 = vunpack.c.l.b16 %v5797
      %v5869 = vunpack.c.h.b16 %v5797
      %v5870 = vunpack.c.l.b16 %v5798
      %v5871 = vunpack.c.h.b16 %v5798
      %v5872 = vunpack.c.l.b16 %v5799
      %v5873 = vunpack.c.h.b16 %v5799
      %v5874 = vunpack.c.l.b16 %v5800
      %v5875 = vunpack.c.h.b16 %v5800
      %v5876 = vunpack.c.l.b16 %v5801
      %v5877 = vunpack.c.h.b16 %v5801
      %v5878 = vunpack.c.l.b16 %v5802
      %v5879 = vunpack.c.h.b16 %v5802
      %v5880 = vunpack.c.l.b16 %v5803
      %v5881 = vunpack.c.h.b16 %v5803
      %v5882 = vunpack.c.l.b16 %v5804
      %v5883 = vunpack.c.h.b16 %v5804
      %v5884 = vunpack.c.l.b16 %v5805
      %v5885 = vunpack.c.h.b16 %v5805
      %v5886 = vunpack.c.l.b16 %v5806
      %v5887 = vunpack.c.h.b16 %v5806
      %v5888 = vunpack.c.l.b16 %v5807
      %v5889 = vunpack.c.h.b16 %v5807
      %v5890 = vunpack.c.l.b16 %v5808
      %v5891 = vunpack.c.h.b16 %v5808
      %v5892 = vunpack.c.l.b16 %v5809
      %v5893 = vunpack.c.h.b16 %v5809
      %v5894 = vunpack.c.l.b16 %v5810
      %v5895 = vunpack.c.h.b16 %v5810
      %v5896 = vunpack.c.l.b16 %v5811
      %v5897 = vunpack.c.h.b16 %v5811
      %v5898 = vunpack.c.l.b16 %v5812
      %v5899 = vunpack.c.h.b16 %v5812
      %v5900 = vunpack.c.l.b16 %v5813
      %v5901 = vunpack.c.h.b16 %v5813
      %v5902 = vunpack.c.l.b16 %v5814
      %v5903 = vunpack.c.h.b16 %v5814
      %v5904 = vunpack.c.l.b16 %v5815
      %v5905 = vunpack.c.h.b16 %v5815
      %v5906 = vunpack.c.l.b16 %v5816
      %v5907 = vunpack.c.h.b16 %v5816
      %v5908 = vunpack.c.l.b16 %v5817
      %v5909 = vunpack.c.h.b16 %v5817
      %v5910 = vunpack.c.l.b16 %v5818
      %v5911 = vunpack.c.h.b16 %v5818
      %v5912 = vunpack.c.l.b16 %v5819
      %v5913 = vunpack.c.h.b16 %v5819
      %v5914 = vunpack.c.l.b16 %v5820
      %v5915 = vunpack.c.h.b16 %v5820
      %v5916 = vunpack.c.l.b16 %v5821
      %v5917 = vunpack.c.h.b16 %v5821
      %v5918 = vpack.c.b16 %v5856, %v5854
      %v5919 = vpack.c.b16 %v5857, %v5855
      %v5920 = vpack.c.b16 %v5860, %v5858
      %v5921 = vpack.c.b16 %v5861, %v5859
      %v5922 = vpack.c.b16 %v5864, %v5862
      %v5923 = vpack.c.b16 %v5865, %v5863
      %v5924 = vpack.c.b16 %v5868, %v5866
      %v5925 = vpack.c.b16 %v5869, %v5867
      %v5926 = vpack.c.b16 %v5872, %v5870
      %v5927 = vpack.c.b16 %v5873, %v5871
      %v5928 = vpack.c.b16 %v5876, %v5874
      %v5929 = vpack.c.b16 %v5877, %v5875
      %v5930 = vpack.c.b16 %v5880, %v5878
      %v5931 = vpack.c.b16 %v5881, %v5879
      %v5932 = vpack.c.b16 %v5884, %v5882
      %v5933 = vpack.c.b16 %v5885, %v5883
      %v5934 = vpack.c.b16 %v5888, %v5886
      %v5935 = vpack.c.b16 %v5889, %v5887
      %v5936 = vpack.c.b16 %v5892, %v5890
      %v5937 = vpack.c.b16 %v5893, %v5891
      %v5938 = vpack.c.b16 %v5896, %v5894
      %v5939 = vpack.c.b16 %v5897, %v5895
      %v5940 = vpack.c.b16 %v5900, %v5898
      %v5941 = vpack.c.b16 %v5901, %v5899
      %v5942 = vpack.c.b16 %v5904, %v5902
      %v5943 = vpack.c.b16 %v5905, %v5903
      %v5944 = vpack.c.b16 %v5908, %v5906
      %v5945 = vpack.c.b16 %v5909, %v5907
      %v5946 = vpack.c.b16 %v5912, %v5910
      %v5947 = vpack.c.b16 %v5913, %v5911
      %v5948 = vpack.c.b16 %v5916, %v5914
      %v5949 = vpack.c.b16 %v5917, %v5915
      %5982 = vmatprep.subr.bf16.mxu0 0
      %5983 = vmatpush1.bf16.msra.mxu0 %v4635
      %5984 = vmatprep.subr.bf16.mxu0 0
      %5985 = vmatpush1.bf16.msra.mxu0 %v4639
      %5986 = vmatprep.subr.bf16.mxu0 0
      %5987 = vmatpush1.bf16.msra.mxu0 %v4643
      %5988 = vmatprep.subr.bf16.mxu0 0
      %5989 = vmatpush1.bf16.msra.mxu0 %v4647
      %5990 = vmatprep.subr.bf16.mxu0 0
      %5991 = vmatpush1.bf16.msra.mxu0 %v4651
      %5992 = vmatprep.subr.bf16.mxu0 0
      %5993 = vmatpush1.bf16.msra.mxu0 %v4655
      %5994 = vmatprep.subr.bf16.mxu0 0
      %5995 = vmatpush1.bf16.msra.mxu0 %v4659
      %5996 = vmatprep.subr.bf16.mxu0 0
      %5997 = vmatpush1.bf16.msra.mxu0 %v4663
      %5998 = vmatprep.subr.bf16.mxu0 0
      %5999 = vmatpush1.bf16.msra.mxu0 %v4667
      %6000 = vmatprep.subr.bf16.mxu0 0
      %6001 = vmatpush1.bf16.msra.mxu0 %v4671
      %6002 = vmatprep.subr.bf16.mxu0 0
      %6003 = vmatpush1.bf16.msra.mxu0 %v4675
      %6004 = vmatprep.subr.bf16.mxu0 0
      %6005 = vmatpush1.bf16.msra.mxu0 %v4679
      %6006 = vmatprep.subr.bf16.mxu0 0
      %6007 = vmatpush1.bf16.msra.mxu0 %v4683
      %6008 = vmatprep.subr.bf16.mxu0 0
      %6009 = vmatpush1.bf16.msra.mxu0 %v4687
      %6010 = vmatprep.subr.bf16.mxu0 0
      %6011 = vmatpush1.bf16.msra.mxu0 %v4691
      %6012 = vmatprep.subr.bf16.mxu0 0
      %6013 = vmatpush1.bf16.msra.mxu0 %v4695
      %6014 = vmatprep.mubr.bf16.mxu0 %v5919
      %6015 = vmatmul.mubr.bf16.gmra.mrb[0].mxu0 %v5918
      %v6016 = vpop.f32.mrb[0].mxu0
      %v6017 = vadd.f32 0.0, %v6016
      %v6018 = vpop.f32.mrb[0].mxu0
      %v6019 = vpop.f32.mrb[0].mxu0
      %v6020 = vadd.f32 0.0, %v6019
      %v6021 = vpop.f32.mrb[0].mxu0
      %6022 = vmatprep.mubr.bf16.mxu0 %v5921
      %6023 = vmatmul.mubr.bf16.gmra.mrb[0].mxu0 %v5920
      %v6024 = vpop.f32.mrb[0].mxu0
      %v6025 = vadd.f32 0.0, %v6024
      %v6026 = vpop.f32.mrb[0].mxu0
      %v6027 = vpop.f32.mrb[0].mxu0
      %v6028 = vadd.f32 0.0, %v6027
      %v6029 = vpop.f32.mrb[0].mxu0
      %6030 = vmatprep.mubr.bf16.mxu0 %v5923
      %6031 = vmatmul.mubr.bf16.gmra.mrb[0].mxu0 %v5922
      %v6032 = vpop.f32.mrb[0].mxu0
      %v6033 = vadd.f32 0.0, %v6032
      %v6034 = vpop.f32.mrb[0].mxu0
      %v6035 = vpop.f32.mrb[0].mxu0
      %v6036 = vadd.f32 0.0, %v6035
      %v6037 = vpop.f32.mrb[0].mxu0
      %6038 = vmatprep.mubr.bf16.mxu0 %v5925
      %6039 = vmatmul.mubr.bf16.gmra.mrb[0].mxu0 %v5924
      %v6040 = vpop.f32.mrb[0].mxu0
      %v6041 = vadd.f32 0.0, %v6040
      %v6042 = vpop.f32.mrb[0].mxu0
      %v6043 = vpop.f32.mrb[0].mxu0
      %v6044 = vadd.f32 0.0, %v6043
      %v6045 = vpop.f32.mrb[0].mxu0
      %6046 = vmatprep.mubr.bf16.mxu0 %v5927
      %6047 = vmatmul.mubr.bf16.gmra.mrb[0].mxu0 %v5926
      %v6048 = vpop.f32.mrb[0].mxu0
      %v6049 = vadd.f32 0.0, %v6048
      %v6050 = vpop.f32.mrb[0].mxu0
      %v6051 = vpop.f32.mrb[0].mxu0
      %v6052 = vadd.f32 0.0, %v6051
      %v6053 = vpop.f32.mrb[0].mxu0
      %6054 = vmatprep.mubr.bf16.mxu0 %v5929
      %6055 = vmatmul.mubr.bf16.gmra.mrb[0].mxu0 %v5928
      %v6056 = vpop.f32.mrb[0].mxu0
      %v6057 = vadd.f32 0.0, %v6056
      %v6058 = vpop.f32.mrb[0].mxu0
      %v6059 = vpop.f32.mrb[0].mxu0
      %v6060 = vadd.f32 0.0, %v6059
      %v6061 = vpop.f32.mrb[0].mxu0
      %6062 = vmatprep.mubr.bf16.mxu0 %v5931
      %6063 = vmatmul.mubr.bf16.gmra.mrb[0].mxu0 %v5930
      %v6064 = vpop.f32.mrb[0].mxu0
      %v6065 = vadd.f32 0.0, %v6064
      %v6066 = vpop.f32.mrb[0].mxu0
      %v6067 = vpop.f32.mrb[0].mxu0
      %v6068 = vadd.f32 0.0, %v6067
      %v6069 = vpop.f32.mrb[0].mxu0
      %6070 = vmatprep.mubr.bf16.mxu0 %v5933
      %6071 = vmatmul.mubr.bf16.gmra.mrb[0].mxu0 %v5932
      %v6072 = vpop.f32.mrb[0].mxu0
      %v6073 = vadd.f32 0.0, %v6072
      %v6074 = vpop.f32.mrb[0].mxu0
      %v6075 = vpop.f32.mrb[0].mxu0
      %v6076 = vadd.f32 0.0, %v6075
      %v6077 = vpop.f32.mrb[0].mxu0
      %6078 = vmatprep.mubr.bf16.mxu0 %v5935
      %6079 = vmatmul.mubr.bf16.gmra.mrb[0].mxu0 %v5934
      %v6080 = vpop.f32.mrb[0].mxu0
      %v6081 = vadd.f32 0.0, %v6080
      %v6082 = vpop.f32.mrb[0].mxu0
      %v6083 = vpop.f32.mrb[0].mxu0
      %v6084 = vadd.f32 0.0, %v6083
      %v6085 = vpop.f32.mrb[0].mxu0
      %6086 = vmatprep.mubr.bf16.mxu0 %v5937
      %6087 = vmatmul.mubr.bf16.gmra.mrb[0].mxu0 %v5936
      %v6088 = vpop.f32.mrb[0].mxu0
      %v6089 = vadd.f32 0.0, %v6088
      %v6090 = vpop.f32.mrb[0].mxu0
      %v6091 = vpop.f32.mrb[0].mxu0
      %v6092 = vadd.f32 0.0, %v6091
      %v6093 = vpop.f32.mrb[0].mxu0
      %6094 = vmatprep.mubr.bf16.mxu0 %v5939
      %6095 = vmatmul.mubr.bf16.gmra.mrb[0].mxu0 %v5938
      %v6096 = vpop.f32.mrb[0].mxu0
      %v6097 = vadd.f32 0.0, %v6096
      %v6098 = vpop.f32.mrb[0].mxu0
      %v6099 = vpop.f32.mrb[0].mxu0
      %v6100 = vadd.f32 0.0, %v6099
      %v6101 = vpop.f32.mrb[0].mxu0
      %6102 = vmatprep.mubr.bf16.mxu0 %v5941
      %6103 = vmatmul.mubr.bf16.gmra.mrb[0].mxu0 %v5940
      %v6104 = vpop.f32.mrb[0].mxu0
      %v6105 = vadd.f32 0.0, %v6104
      %v6106 = vpop.f32.mrb[0].mxu0
      %v6107 = vpop.f32.mrb[0].mxu0
      %v6108 = vadd.f32 0.0, %v6107
      %v6109 = vpop.f32.mrb[0].mxu0
      %6110 = vmatprep.mubr.bf16.mxu0 %v5943
      %6111 = vmatmul.mubr.bf16.gmra.mrb[0].mxu0 %v5942
      %v6112 = vpop.f32.mrb[0].mxu0
      %v6113 = vadd.f32 0.0, %v6112
      %v6114 = vpop.f32.mrb[0].mxu0
      %v6115 = vpop.f32.mrb[0].mxu0
      %v6116 = vadd.f32 0.0, %v6115
      %v6117 = vpop.f32.mrb[0].mxu0
      %6118 = vmatprep.mubr.bf16.mxu0 %v5945
      %6119 = vmatmul.mubr.bf16.gmra.mrb[0].mxu0 %v5944
      %v6120 = vpop.f32.mrb[0].mxu0
      %v6121 = vadd.f32 0.0, %v6120
      %v6122 = vpop.f32.mrb[0].mxu0
      %v6123 = vpop.f32.mrb[0].mxu0
      %v6124 = vadd.f32 0.0, %v6123
      %v6125 = vpop.f32.mrb[0].mxu0
      %6126 = vmatprep.mubr.bf16.mxu0 %v5947
      %6127 = vmatmul.mubr.bf16.gmra.mrb[0].mxu0 %v5946
      %v6128 = vpop.f32.mrb[0].mxu0
      %v6129 = vadd.f32 0.0, %v6128
      %v6130 = vpop.f32.mrb[0].mxu0
      %v6131 = vpop.f32.mrb[0].mxu0
      %v6132 = vadd.f32 0.0, %v6131
      %v6133 = vpop.f32.mrb[0].mxu0
      %6134 = vmatprep.mubr.bf16.mxu0 %v5949
      %6135 = vmatmul.mubr.bf16.gmra.mrb[0].mxu0 %v5948
      %v6136 = vpop.f32.mrb[0].mxu0
      %v6137 = vadd.f32 0.0, %v6136
      %v6138 = vpop.f32.mrb[0].mxu0
      %v6139 = vpop.f32.mrb[0].mxu0
      %v6140 = vadd.f32 0.0, %v6139
      %v6141 = vpop.f32.mrb[0].mxu0
      %6142 = vdwg.mxu0
      %v6143 = vadd.f32 %v5757, %v6017
      %v6144 = vadd.f32 %v5758, %v6020
      %v6145 = vadd.f32 %v5759, %v6025
      %v6146 = vadd.f32 %v5760, %v6028
      %v6147 = vadd.f32 %v5761, %v6033
      %v6148 = vadd.f32 %v5762, %v6036
      %v6149 = vadd.f32 %v5763, %v6041
      %v6150 = vadd.f32 %v5764, %v6044
      %v6151 = vadd.f32 %v5765, %v6049
      %v6152 = vadd.f32 %v5766, %v6052
      %v6153 = vadd.f32 %v5767, %v6057
      %v6154 = vadd.f32 %v5768, %v6060
      %v6155 = vadd.f32 %v5769, %v6065
      %v6156 = vadd.f32 %v5770, %v6068
      %v6157 = vadd.f32 %v5771, %v6073
      %v6158 = vadd.f32 %v5772, %v6076
      %v6159 = vadd.f32 %v5773, %v6081
      %v6160 = vadd.f32 %v5774, %v6084
      %v6161 = vadd.f32 %v5775, %v6089
      %v6162 = vadd.f32 %v5776, %v6092
      %v6163 = vadd.f32 %v5777, %v6097
      %v6164 = vadd.f32 %v5778, %v6100
      %v6165 = vadd.f32 %v5779, %v6105
      %v6166 = vadd.f32 %v5780, %v6108
      %v6167 = vadd.f32 %v5781, %v6113
      %v6168 = vadd.f32 %v5782, %v6116
      %v6169 = vadd.f32 %v5783, %v6121
      %v6170 = vadd.f32 %v5784, %v6124
      %v6171 = vadd.f32 %v5785, %v6129
      %v6172 = vadd.f32 %v5786, %v6132
      %v6173 = vadd.f32 %v5787, %v6137
      %v6174 = vadd.f32 %v5788, %v6140
      %6175 = vset.pattern.permute.xlu0 2
      %6176 = vperm.xlu0 %6175, %v491
      %v6177 = vpop.permute.xlu0 %6176
      %6179 = vset.pattern.permute.xlu0 2
      %6180 = vperm.xlu0 %6179, %v492
      %v6181 = vpop.permute.xlu0 %6180
      %6183 = vset.pattern.permute.xlu0 2
      %6184 = vperm.xlu0 %6183, %v493
      %v6185 = vpop.permute.xlu0 %6184
      %6187 = vset.pattern.permute.xlu0 2
      %6188 = vperm.xlu0 %6187, %v494
      %v6189 = vpop.permute.xlu0 %6188
      %6191 = vset.pattern.permute.xlu0 2
      %6192 = vperm.xlu0 %6191, %v495
      %v6193 = vpop.permute.xlu0 %6192
      %6195 = vset.pattern.permute.xlu0 2
      %6196 = vperm.xlu0 %6195, %v496
      %v6197 = vpop.permute.xlu0 %6196
      %6199 = vset.pattern.permute.xlu0 2
      %6200 = vperm.xlu0 %6199, %v497
      %v6201 = vpop.permute.xlu0 %6200
      %6203 = vset.pattern.permute.xlu0 2
      %6204 = vperm.xlu0 %6203, %v498
      %v6205 = vpop.permute.xlu0 %6204
      %6207 = vset.pattern.permute.xlu0 2
      %6208 = vperm.xlu0 %6207, %v499
      %v6209 = vpop.permute.xlu0 %6208
      %6211 = vset.pattern.permute.xlu0 2
      %6212 = vperm.xlu0 %6211, %v500
      %v6213 = vpop.permute.xlu0 %6212
      %6215 = vset.pattern.permute.xlu0 2
      %6216 = vperm.xlu0 %6215, %v501
      %v6217 = vpop.permute.xlu0 %6216
      %6219 = vset.pattern.permute.xlu0 2
      %6220 = vperm.xlu0 %6219, %v502
      %v6221 = vpop.permute.xlu0 %6220
      %6223 = vset.pattern.permute.xlu0 2
      %6224 = vperm.xlu0 %6223, %v503
      %v6225 = vpop.permute.xlu0 %6224
      %6227 = vset.pattern.permute.xlu0 2
      %6228 = vperm.xlu0 %6227, %v504
      %v6229 = vpop.permute.xlu0 %6228
      %6231 = vset.pattern.permute.xlu0 2
      %6232 = vperm.xlu0 %6231, %v505
      %v6233 = vpop.permute.xlu0 %6232
      %6235 = vset.pattern.permute.xlu0 2
      %6236 = vperm.xlu0 %6235, %v506
      %v6237 = vpop.permute.xlu0 %6236
      %6239 = vset.pattern.permute.xlu0 2
      %6240 = vperm.xlu0 %6239, %v507
      %v6241 = vpop.permute.xlu0 %6240
      %6243 = vset.pattern.permute.xlu0 2
      %6244 = vperm.xlu0 %6243, %v508
      %v6245 = vpop.permute.xlu0 %6244
      %6247 = vset.pattern.permute.xlu0 2
      %6248 = vperm.xlu0 %6247, %v509
      %v6249 = vpop.permute.xlu0 %6248
      %6251 = vset.pattern.permute.xlu0 2
      %6252 = vperm.xlu0 %6251, %v510
      %v6253 = vpop.permute.xlu0 %6252
      %6255 = vset.pattern.permute.xlu0 2
      %6256 = vperm.xlu0 %6255, %v511
      %v6257 = vpop.permute.xlu0 %6256
      %6259 = vset.pattern.permute.xlu0 2
      %6260 = vperm.xlu0 %6259, %v512
      %v6261 = vpop.permute.xlu0 %6260
      %6263 = vset.pattern.permute.xlu0 2
      %6264 = vperm.xlu0 %6263, %v513
      %v6265 = vpop.permute.xlu0 %6264
      %6267 = vset.pattern.permute.xlu0 2
      %6268 = vperm.xlu0 %6267, %v514
      %v6269 = vpop.permute.xlu0 %6268
      %6271 = vset.pattern.permute.xlu0 2
      %6272 = vperm.xlu0 %6271, %v515
      %v6273 = vpop.permute.xlu0 %6272
      %6275 = vset.pattern.permute.xlu0 2
      %6276 = vperm.xlu0 %6275, %v516
      %v6277 = vpop.permute.xlu0 %6276
      %6279 = vset.pattern.permute.xlu0 2
      %6280 = vperm.xlu0 %6279, %v517
      %v6281 = vpop.permute.xlu0 %6280
      %6283 = vset.pattern.permute.xlu0 2
      %6284 = vperm.xlu0 %6283, %v518
      %v6285 = vpop.permute.xlu0 %6284
      %6287 = vset.pattern.permute.xlu0 2
      %6288 = vperm.xlu0 %6287, %v519
      %v6289 = vpop.permute.xlu0 %6288
      %6291 = vset.pattern.permute.xlu0 2
      %6292 = vperm.xlu0 %6291, %v520
      %v6293 = vpop.permute.xlu0 %6292
      %6295 = vset.pattern.permute.xlu0 2
      %6296 = vperm.xlu0 %6295, %v521
      %v6297 = vpop.permute.xlu0 %6296
      %6299 = vset.pattern.permute.xlu0 2
      %6300 = vperm.xlu0 %6299, %v522
      %v6301 = vpop.permute.xlu0 %6300
      %v6303 = vadd.f32 %v6143, %v6177
      %v6304 = vadd.f32 %v6144, %v6181
      %v6305 = vadd.f32 %v6145, %v6185
      %v6306 = vadd.f32 %v6146, %v6189
      %v6307 = vadd.f32 %v6147, %v6193
      %v6308 = vadd.f32 %v6148, %v6197
      %v6309 = vadd.f32 %v6149, %v6201
      %v6310 = vadd.f32 %v6150, %v6205
      %v6311 = vadd.f32 %v6151, %v6209
      %v6312 = vadd.f32 %v6152, %v6213
      %v6313 = vadd.f32 %v6153, %v6217
      %v6314 = vadd.f32 %v6154, %v6221
      %v6315 = vadd.f32 %v6155, %v6225
      %v6316 = vadd.f32 %v6156, %v6229
      %v6317 = vadd.f32 %v6157, %v6233
      %v6318 = vadd.f32 %v6158, %v6237
      %v6319 = vadd.f32 %v6159, %v6241
      %v6320 = vadd.f32 %v6160, %v6245
      %v6321 = vadd.f32 %v6161, %v6249
      %v6322 = vadd.f32 %v6162, %v6253
      %v6323 = vadd.f32 %v6163, %v6257
      %v6324 = vadd.f32 %v6164, %v6261
      %v6325 = vadd.f32 %v6165, %v6265
      %v6326 = vadd.f32 %v6166, %v6269
      %v6327 = vadd.f32 %v6167, %v6273
      %v6328 = vadd.f32 %v6168, %v6277
      %v6329 = vadd.f32 %v6169, %v6281
      %v6330 = vadd.f32 %v6170, %v6285
      %v6331 = vadd.f32 %v6171, %v6289
      %v6332 = vadd.f32 %v6172, %v6293
      %v6333 = vadd.f32 %v6173, %v6297
      %v6334 = vadd.f32 %v6174, %v6301
      %v6335 = vmax.f32 %v6303, 0.0
      %v6336 = vmax.f32 %v6304, 0.0
      %v6337 = vmax.f32 %v6305, 0.0
      %v6338 = vmax.f32 %v6306, 0.0
      %v6339 = vmax.f32 %v6307, 0.0
      %v6340 = vmax.f32 %v6308, 0.0
      %v6341 = vmax.f32 %v6309, 0.0
      %v6342 = vmax.f32 %v6310, 0.0
      %v6343 = vmax.f32 %v6311, 0.0
      %v6344 = vmax.f32 %v6312, 0.0
      %v6345 = vmax.f32 %v6313, 0.0
      %v6346 = vmax.f32 %v6314, 0.0
      %v6347 = vmax.f32 %v6315, 0.0
      %v6348 = vmax.f32 %v6316, 0.0
      %v6349 = vmax.f32 %v6317, 0.0
      %v6350 = vmax.f32 %v6318, 0.0
      %v6351 = vmax.f32 %v6319, 0.0
      %v6352 = vmax.f32 %v6320, 0.0
      %v6353 = vmax.f32 %v6321, 0.0
      %v6354 = vmax.f32 %v6322, 0.0
      %v6355 = vmax.f32 %v6323, 0.0
      %v6356 = vmax.f32 %v6324, 0.0
      %v6357 = vmax.f32 %v6325, 0.0
      %v6358 = vmax.f32 %v6326, 0.0
      %v6359 = vmax.f32 %v6327, 0.0
      %v6360 = vmax.f32 %v6328, 0.0
      %v6361 = vmax.f32 %v6329, 0.0
      %v6362 = vmax.f32 %v6330, 0.0
      %v6363 = vmax.f32 %v6331, 0.0
      %v6364 = vmax.f32 %v6332, 0.0
      %v6365 = vmax.f32 %v6333, 0.0
      %v6366 = vmax.f32 %v6334, 0.0
      %v6367 = vpack.c.bf16 %v6336, %v6335
      %v6368 = vpack.c.bf16 %v6338, %v6337
      %v6369 = vpack.c.bf16 %v6340, %v6339
      %v6370 = vpack.c.bf16 %v6342, %v6341
      %v6371 = vpack.c.bf16 %v6344, %v6343
      %v6372 = vpack.c.bf16 %v6346, %v6345
      %v6373 = vpack.c.bf16 %v6348, %v6347
      %v6374 = vpack.c.bf16 %v6350, %v6349
      %v6375 = vpack.c.bf16 %v6352, %v6351
      %v6376 = vpack.c.bf16 %v6354, %v6353
      %v6377 = vpack.c.bf16 %v6356, %v6355
      %v6378 = vpack.c.bf16 %v6358, %v6357
      %v6379 = vpack.c.bf16 %v6360, %v6359
      %v6380 = vpack.c.bf16 %v6362, %v6361
      %v6381 = vpack.c.bf16 %v6364, %v6363
      %v6382 = vpack.c.bf16 %v6366, %v6365
      %v6399 = vunpack.c.l.b16 %v6367
      %v6400 = vunpack.c.h.b16 %v6367
      %v6401 = vunpack.c.l.b16 %v6368
      %v6402 = vunpack.c.h.b16 %v6368
      %v6403 = vunpack.c.l.b16 %v6369
      %v6404 = vunpack.c.h.b16 %v6369
      %v6405 = vunpack.c.l.b16 %v6370
      %v6406 = vunpack.c.h.b16 %v6370
      %v6407 = vunpack.c.l.b16 %v6371
      %v6408 = vunpack.c.h.b16 %v6371
      %v6409 = vunpack.c.l.b16 %v6372
      %v6410 = vunpack.c.h.b16 %v6372
      %v6411 = vunpack.c.l.b16 %v6373
      %v6412 = vunpack.c.h.b16 %v6373
      %v6413 = vunpack.c.l.b16 %v6374
      %v6414 = vunpack.c.h.b16 %v6374
      %v6415 = vunpack.c.l.b16 %v6375
      %v6416 = vunpack.c.h.b16 %v6375
      %v6417 = vunpack.c.l.b16 %v6376
      %v6418 = vunpack.c.h.b16 %v6376
      %v6419 = vunpack.c.l.b16 %v6377
      %v6420 = vunpack.c.h.b16 %v6377
      %v6421 = vunpack.c.l.b16 %v6378
      %v6422 = vunpack.c.h.b16 %v6378
      %v6423 = vunpack.c.l.b16 %v6379
      %v6424 = vunpack.c.h.b16 %v6379
      %v6425 = vunpack.c.l.b16 %v6380
      %v6426 = vunpack.c.h.b16 %v6380
      %v6427 = vunpack.c.l.b16 %v6381
      %v6428 = vunpack.c.h.b16 %v6381
      %v6429 = vunpack.c.l.b16 %v6382
      %v6430 = vunpack.c.h.b16 %v6382
      %v6431 = vpack.c.b16 %v6399, %v6399
      %v6432 = vpack.c.b16 %v6400, %v6400
      %v6433 = vpack.c.b16 %v6401, %v6401
      %v6434 = vpack.c.b16 %v6402, %v6402
      %v6435 = vpack.c.b16 %v6403, %v6403
      %v6436 = vpack.c.b16 %v6404, %v6404
      %v6437 = vpack.c.b16 %v6405, %v6405
      %v6438 = vpack.c.b16 %v6406, %v6406
      %v6439 = vpack.c.b16 %v6407, %v6407
      %v6440 = vpack.c.b16 %v6408, %v6408
      %v6441 = vpack.c.b16 %v6409, %v6409
      %v6442 = vpack.c.b16 %v6410, %v6410
      %v6443 = vpack.c.b16 %v6411, %v6411
      %v6444 = vpack.c.b16 %v6412, %v6412
      %v6445 = vpack.c.b16 %v6413, %v6413
      %v6446 = vpack.c.b16 %v6414, %v6414
      %v6447 = vpack.c.b16 %v6415, %v6415
      %v6448 = vpack.c.b16 %v6416, %v6416
      %v6449 = vpack.c.b16 %v6417, %v6417
      %v6450 = vpack.c.b16 %v6418, %v6418
      %v6451 = vpack.c.b16 %v6419, %v6419
      %v6452 = vpack.c.b16 %v6420, %v6420
      %v6453 = vpack.c.b16 %v6421, %v6421
      %v6454 = vpack.c.b16 %v6422, %v6422
      %v6455 = vpack.c.b16 %v6423, %v6423
      %v6456 = vpack.c.b16 %v6424, %v6424
      %v6457 = vpack.c.b16 %v6425, %v6425
      %v6458 = vpack.c.b16 %v6426, %v6426
      %v6459 = vpack.c.b16 %v6427, %v6427
      %v6460 = vpack.c.b16 %v6428, %v6428
      %v6461 = vpack.c.b16 %v6429, %v6429
      %v6462 = vpack.c.b16 %v6430, %v6430
      %vm6495 = vcmask 125952
      %6496 = vst.msk [vmem:[%s479] sm:$0xf] %vm6495, %v6431
      %6497 = vst.msk [vmem:[%s479 + $0x4] sm:$0xf] %vm6495, %v6432
      %6498 = vst.msk [vmem:[%s479 + $0x8] sm:$0xf] %vm6495, %v6433
      %6499 = vst.msk [vmem:[%s479 + $0xc] sm:$0xf] %vm6495, %v6434
      %6500 = vst.msk [vmem:[%s479 + $0x10] sm:$0xf] %vm6495, %v6435
      %6501 = vst.msk [vmem:[%s479 + $0x14] sm:$0xf] %vm6495, %v6436
      %6502 = vst.msk [vmem:[%s479 + $0x18] sm:$0xf] %vm6495, %v6437
      %6503 = vst.msk [vmem:[%s479 + $0x1c] sm:$0xf] %vm6495, %v6438
      %6504 = vst.msk [vmem:[%s479 + $0x20] sm:$0xf] %vm6495, %v6439
      %6505 = vst.msk [vmem:[%s479 + $0x24] sm:$0xf] %vm6495, %v6440
      %6506 = vst.msk [vmem:[%s479 + $0x28] sm:$0xf] %vm6495, %v6441
      %6507 = vst.msk [vmem:[%s479 + $0x2c] sm:$0xf] %vm6495, %v6442
      %6508 = vst.msk [vmem:[%s479 + $0x30] sm:$0xf] %vm6495, %v6443
      %6509 = vst.msk [vmem:[%s479 + $0x34] sm:$0xf] %vm6495, %v6444
      %6510 = vst.msk [vmem:[%s479 + $0x38] sm:$0xf] %vm6495, %v6445
      %6511 = vst.msk [vmem:[%s479 + $0x3c] sm:$0xf] %vm6495, %v6446
      %6512 = vst.msk [vmem:[%s479 + $0x40] sm:$0xf] %vm6495, %v6447
      %6513 = vst.msk [vmem:[%s479 + $0x44] sm:$0xf] %vm6495, %v6448
      %6514 = vst.msk [vmem:[%s479 + $0x48] sm:$0xf] %vm6495, %v6449
      %6515 = vst.msk [vmem:[%s479 + $0x4c] sm:$0xf] %vm6495, %v6450
      %6516 = vst.msk [vmem:[%s479 + $0x50] sm:$0xf] %vm6495, %v6451
      %6517 = vst.msk [vmem:[%s479 + $0x54] sm:$0xf] %vm6495, %v6452
      %6518 = vst.msk [vmem:[%s479 + $0x58] sm:$0xf] %vm6495, %v6453
      %6519 = vst.msk [vmem:[%s479 + $0x5c] sm:$0xf] %vm6495, %v6454
      %6520 = vst.msk [vmem:[%s479 + $0x60] sm:$0xf] %vm6495, %v6455
      %6521 = vst.msk [vmem:[%s479 + $0x64] sm:$0xf] %vm6495, %v6456
      %6522 = vst.msk [vmem:[%s479 + $0x68] sm:$0xf] %vm6495, %v6457
      %6523 = vst.msk [vmem:[%s479 + $0x6c] sm:$0xf] %vm6495, %v6458
      %6524 = vst.msk [vmem:[%s479 + $0x70] sm:$0xf] %vm6495, %v6459
      %6525 = vst.msk [vmem:[%s479 + $0x74] sm:$0xf] %vm6495, %v6460
      %6526 = vst.msk [vmem:[%s479 + $0x78] sm:$0xf] %vm6495, %v6461
      %6527 = vst.msk [vmem:[%s479 + $0x7c] sm:$0xf] %vm6495, %v6462
      %v6528 = vld [vmem:[%s8] sm:$0xff]
      %v6529 = vld [vmem:[%s8 + $0x8] sm:$0xff]
      %v6530 = vld [vmem:[%s8 + $0x10] sm:$0xff]
      %v6531 = vld [vmem:[%s8 + $0x18] sm:$0xff]
      %v6532 = vld [vmem:[%s8 + $0x20] sm:$0xff]
      %v6533 = vld [vmem:[%s8 + $0x28] sm:$0xff]
      %v6534 = vld [vmem:[%s8 + $0x30] sm:$0xff]
      %v6535 = vld [vmem:[%s8 + $0x38] sm:$0xff]
      %v6536 = vld [vmem:[%s8 + $0x40] sm:$0xff]
      %v6537 = vld [vmem:[%s8 + $0x48] sm:$0xff]
      %v6538 = vld [vmem:[%s8 + $0x50] sm:$0xff]
      %v6539 = vld [vmem:[%s8 + $0x58] sm:$0xff]
      %v6540 = vld [vmem:[%s8 + $0x60] sm:$0xff]
      %v6541 = vld [vmem:[%s8 + $0x68] sm:$0xff]
      %v6542 = vld [vmem:[%s8 + $0x70] sm:$0xff]
      %v6543 = vld [vmem:[%s8 + $0x78] sm:$0xff]
      %v6544 = vld [vmem:[%s8 + $0x80] sm:$0xff]
      %v6545 = vld [vmem:[%s8 + $0x88] sm:$0xff]
      %v6546 = vld [vmem:[%s8 + $0x90] sm:$0xff]
      %v6547 = vld [vmem:[%s8 + $0x98] sm:$0xff]
      %v6548 = vld [vmem:[%s8 + $0xa0] sm:$0xff]
      %v6549 = vld [vmem:[%s8 + $0xa8] sm:$0xff]
      %v6550 = vld [vmem:[%s8 + $0xb0] sm:$0xff]
      %v6551 = vld [vmem:[%s8 + $0xb8] sm:$0xff]
      %v6552 = vld [vmem:[%s8 + $0xc0] sm:$0xff]
      %v6553 = vld [vmem:[%s8 + $0xc8] sm:$0xff]
      %v6554 = vld [vmem:[%s8 + $0xd0] sm:$0xff]
      %v6555 = vld [vmem:[%s8 + $0xd8] sm:$0xff]
      %v6556 = vld [vmem:[%s8 + $0xe0] sm:$0xff]
      %v6557 = vld [vmem:[%s8 + $0xe8] sm:$0xff]
      %v6558 = vld [vmem:[%s8 + $0xf0] sm:$0xff]
      %v6559 = vld [vmem:[%s8 + $0xf8] sm:$0xff]
      %v6592 = vunpack.c.l.b16 %v6528
      %v6593 = vunpack.c.h.b16 %v6528
      %v6594 = vunpack.c.l.b16 %v6529
      %v6595 = vunpack.c.h.b16 %v6529
      %v6596 = vunpack.c.l.b16 %v6530
      %v6597 = vunpack.c.h.b16 %v6530
      %v6598 = vunpack.c.l.b16 %v6531
      %v6599 = vunpack.c.h.b16 %v6531
      %v6600 = vunpack.c.l.b16 %v6532
      %v6601 = vunpack.c.h.b16 %v6532
      %v6602 = vunpack.c.l.b16 %v6533
      %v6603 = vunpack.c.h.b16 %v6533
      %v6604 = vunpack.c.l.b16 %v6534
      %v6605 = vunpack.c.h.b16 %v6534
      %v6606 = vunpack.c.l.b16 %v6535
      %v6607 = vunpack.c.h.b16 %v6535
      %v6608 = vunpack.c.l.b16 %v6536
      %v6609 = vunpack.c.h.b16 %v6536
      %v6610 = vunpack.c.l.b16 %v6537
      %v6611 = vunpack.c.h.b16 %v6537
      %v6612 = vunpack.c.l.b16 %v6538
      %v6613 = vunpack.c.h.b16 %v6538
      %v6614 = vunpack.c.l.b16 %v6539
      %v6615 = vunpack.c.h.b16 %v6539
      %v6616 = vunpack.c.l.b16 %v6540
      %v6617 = vunpack.c.h.b16 %v6540
      %v6618 = vunpack.c.l.b16 %v6541
      %v6619 = vunpack.c.h.b16 %v6541
      %v6620 = vunpack.c.l.b16 %v6542
      %v6621 = vunpack.c.h.b16 %v6542
      %v6622 = vunpack.c.l.b16 %v6543
      %v6623 = vunpack.c.h.b16 %v6543
      %v6624 = vunpack.c.l.b16 %v6544
      %v6625 = vunpack.c.h.b16 %v6544
      %v6626 = vunpack.c.l.b16 %v6545
      %v6627 = vunpack.c.h.b16 %v6545
      %v6628 = vunpack.c.l.b16 %v6546
      %v6629 = vunpack.c.h.b16 %v6546
      %v6630 = vunpack.c.l.b16 %v6547
      %v6631 = vunpack.c.h.b16 %v6547
      %v6632 = vunpack.c.l.b16 %v6548
      %v6633 = vunpack.c.h.b16 %v6548
      %v6634 = vunpack.c.l.b16 %v6549
      %v6635 = vunpack.c.h.b16 %v6549
      %v6636 = vunpack.c.l.b16 %v6550
      %v6637 = vunpack.c.h.b16 %v6550
      %v6638 = vunpack.c.l.b16 %v6551
      %v6639 = vunpack.c.h.b16 %v6551
      %v6640 = vunpack.c.l.b16 %v6552
      %v6641 = vunpack.c.h.b16 %v6552
      %v6642 = vunpack.c.l.b16 %v6553
      %v6643 = vunpack.c.h.b16 %v6553
      %v6644 = vunpack.c.l.b16 %v6554
      %v6645 = vunpack.c.h.b16 %v6554
      %v6646 = vunpack.c.l.b16 %v6555
      %v6647 = vunpack.c.h.b16 %v6555
      %v6648 = vunpack.c.l.b16 %v6556
      %v6649 = vunpack.c.h.b16 %v6556
      %v6650 = vunpack.c.l.b16 %v6557
      %v6651 = vunpack.c.h.b16 %v6557
      %v6652 = vunpack.c.l.b16 %v6558
      %v6653 = vunpack.c.h.b16 %v6558
      %v6654 = vunpack.c.l.b16 %v6559
      %v6655 = vunpack.c.h.b16 %v6559
      %v6656 = vpack.c.b16 %v6596, %v6592
      %v6657 = vpack.c.b16 %v6597, %v6593
      %v6658 = vpack.c.b16 %v6598, %v6594
      %v6659 = vpack.c.b16 %v6599, %v6595
      %v6660 = vpack.c.b16 %v6604, %v6600
      %v6661 = vpack.c.b16 %v6605, %v6601
      %v6662 = vpack.c.b16 %v6606, %v6602
      %v6663 = vpack.c.b16 %v6607, %v6603
      %v6664 = vpack.c.b16 %v6612, %v6608
      %v6665 = vpack.c.b16 %v6613, %v6609
      %v6666 = vpack.c.b16 %v6614, %v6610
      %v6667 = vpack.c.b16 %v6615, %v6611
      %v6668 = vpack.c.b16 %v6620, %v6616
      %v6669 = vpack.c.b16 %v6621, %v6617
      %v6670 = vpack.c.b16 %v6622, %v6618
      %v6671 = vpack.c.b16 %v6623, %v6619
      %v6672 = vpack.c.b16 %v6628, %v6624
      %v6673 = vpack.c.b16 %v6629, %v6625
      %v6674 = vpack.c.b16 %v6630, %v6626
      %v6675 = vpack.c.b16 %v6631, %v6627
      %v6676 = vpack.c.b16 %v6636, %v6632
      %v6677 = vpack.c.b16 %v6637, %v6633
      %v6678 = vpack.c.b16 %v6638, %v6634
      %v6679 = vpack.c.b16 %v6639, %v6635
      %v6680 = vpack.c.b16 %v6644, %v6640
      %v6681 = vpack.c.b16 %v6645, %v6641
      %v6682 = vpack.c.b16 %v6646, %v6642
      %v6683 = vpack.c.b16 %v6647, %v6643
      %v6684 = vpack.c.b16 %v6652, %v6648
      %v6685 = vpack.c.b16 %v6653, %v6649
      %v6686 = vpack.c.b16 %v6654, %v6650
      %v6687 = vpack.c.b16 %v6655, %v6651
      %6720 = vmatprep.subr.bf16.mxu0 %v6657
      %6721 = vmatpush1.bf16.msra.mxu0 %v6656
      %6722 = vmatprep.subr.bf16.mxu0 %v6661
      %6723 = vmatpush1.bf16.msra.mxu0 %v6660
      %6724 = vmatprep.subr.bf16.mxu0 %v6665
      %6725 = vmatpush1.bf16.msra.mxu0 %v6664
      %6726 = vmatprep.subr.bf16.mxu0 %v6669
      %6727 = vmatpush1.bf16.msra.mxu0 %v6668
      %6728 = vmatprep.subr.bf16.mxu0 %v6673
      %6729 = vmatpush1.bf16.msra.mxu0 %v6672
      %6730 = vmatprep.subr.bf16.mxu0 %v6677
      %6731 = vmatpush1.bf16.msra.mxu0 %v6676
      %6732 = vmatprep.subr.bf16.mxu0 %v6681
      %6733 = vmatpush1.bf16.msra.mxu0 %v6680
      %6734 = vmatprep.subr.bf16.mxu0 %v6685
      %6735 = vmatpush1.bf16.msra.mxu0 %v6684
      %6736 = vmatprep.subr.bf16.mxu0 0
      %6737 = vmatpush1.bf16.msra.mxu0 0
      %6738 = vmatprep.subr.bf16.mxu0 0
      %6739 = vmatpush1.bf16.msra.mxu0 0
      %6740 = vmatprep.subr.bf16.mxu0 0
      %6741 = vmatpush1.bf16.msra.mxu0 0
      %6742 = vmatprep.subr.bf16.mxu0 0
      %6743 = vmatpush1.bf16.msra.mxu0 0
      %6744 = vmatprep.subr.bf16.mxu0 0
      %6745 = vmatpush1.bf16.msra.mxu0 0
      %6746 = vmatprep.subr.bf16.mxu0 0
      %6747 = vmatpush1.bf16.msra.mxu0 0
      %6748 = vmatprep.subr.bf16.mxu0 0
      %6749 = vmatpush1.bf16.msra.mxu0 0
      %6750 = vmatprep.subr.bf16.mxu0 0
      %6751 = vmatpush1.bf16.msra.mxu0 0
      %6752 = vmatprep.mubr.bf16.mxu0 0
      %6753 = vmatmul.mubr.bf16.gmra.mrb[0].mxu0 %v6367
      %v6754 = vpop.f32.mrb[0].mxu0
      %v6755 = vadd.f32 0.0, %v6754
      %v6756 = vpop.f32.mrb[0].mxu0
      %v6757 = vadd.f32 0.0, %v6756
      %v6758 = vpop.f32.mrb[0].mxu0
      %v6759 = vadd.f32 0.0, %v6758
      %v6760 = vpop.f32.mrb[0].mxu0
      %v6761 = vadd.f32 0.0, %v6760
      %6762 = vmatprep.mubr.bf16.mxu0 0
      %6763 = vmatmul.mubr.bf16.gmra.mrb[0].mxu0 %v6368
      %v6764 = vpop.f32.mrb[0].mxu0
      %v6765 = vadd.f32 0.0, %v6764
      %v6766 = vpop.f32.mrb[0].mxu0
      %v6767 = vadd.f32 0.0, %v6766
      %v6768 = vpop.f32.mrb[0].mxu0
      %v6769 = vadd.f32 0.0, %v6768
      %v6770 = vpop.f32.mrb[0].mxu0
      %v6771 = vadd.f32 0.0, %v6770
      %6772 = vmatprep.mubr.bf16.mxu0 0
      %6773 = vmatmul.mubr.bf16.gmra.mrb[0].mxu0 %v6369
      %v6774 = vpop.f32.mrb[0].mxu0
      %v6775 = vadd.f32 0.0, %v6774
      %v6776 = vpop.f32.mrb[0].mxu0
      %v6777 = vadd.f32 0.0, %v6776
      %v6778 = vpop.f32.mrb[0].mxu0
      %v6779 = vadd.f32 0.0, %v6778
      %v6780 = vpop.f32.mrb[0].mxu0
      %v6781 = vadd.f32 0.0, %v6780
      %6782 = vmatprep.mubr.bf16.mxu0 0
      %6783 = vmatmul.mubr.bf16.gmra.mrb[0].mxu0 %v6370
      %v6784 = vpop.f32.mrb[0].mxu0
      %v6785 = vadd.f32 0.0, %v6784
      %v6786 = vpop.f32.mrb[0].mxu0
      %v6787 = vadd.f32 0.0, %v6786
      %v6788 = vpop.f32.mrb[0].mxu0
      %v6789 = vadd.f32 0.0, %v6788
      %v6790 = vpop.f32.mrb[0].mxu0
      %v6791 = vadd.f32 0.0, %v6790
      %6792 = vmatprep.mubr.bf16.mxu0 0
      %6793 = vmatmul.mubr.bf16.gmra.mrb[0].mxu0 %v6371
      %v6794 = vpop.f32.mrb[0].mxu0
      %v6795 = vadd.f32 0.0, %v6794
      %v6796 = vpop.f32.mrb[0].mxu0
      %v6797 = vadd.f32 0.0, %v6796
      %v6798 = vpop.f32.mrb[0].mxu0
      %v6799 = vadd.f32 0.0, %v6798
      %v6800 = vpop.f32.mrb[0].mxu0
      %v6801 = vadd.f32 0.0, %v6800
      %6802 = vmatprep.mubr.bf16.mxu0 0
      %6803 = vmatmul.mubr.bf16.gmra.mrb[0].mxu0 %v6372
      %v6804 = vpop.f32.mrb[0].mxu0
      %v6805 = vadd.f32 0.0, %v6804
      %v6806 = vpop.f32.mrb[0].mxu0
      %v6807 = vadd.f32 0.0, %v6806
      %v6808 = vpop.f32.mrb[0].mxu0
      %v6809 = vadd.f32 0.0, %v6808
      %v6810 = vpop.f32.mrb[0].mxu0
      %v6811 = vadd.f32 0.0, %v6810
      %6812 = vmatprep.mubr.bf16.mxu0 0
      %6813 = vmatmul.mubr.bf16.gmra.mrb[0].mxu0 %v6373
      %v6814 = vpop.f32.mrb[0].mxu0
      %v6815 = vadd.f32 0.0, %v6814
      %v6816 = vpop.f32.mrb[0].mxu0
      %v6817 = vadd.f32 0.0, %v6816
      %v6818 = vpop.f32.mrb[0].mxu0
      %v6819 = vadd.f32 0.0, %v6818
      %v6820 = vpop.f32.mrb[0].mxu0
      %v6821 = vadd.f32 0.0, %v6820
      %6822 = vmatprep.mubr.bf16.mxu0 0
      %6823 = vmatmul.mubr.bf16.gmra.mrb[0].mxu0 %v6374
      %v6824 = vpop.f32.mrb[0].mxu0
      %v6825 = vadd.f32 0.0, %v6824
      %v6826 = vpop.f32.mrb[0].mxu0
      %v6827 = vadd.f32 0.0, %v6826
      %v6828 = vpop.f32.mrb[0].mxu0
      %v6829 = vadd.f32 0.0, %v6828
      %v6830 = vpop.f32.mrb[0].mxu0
      %v6831 = vadd.f32 0.0, %v6830
      %6832 = vmatprep.mubr.bf16.mxu0 0
      %6833 = vmatmul.mubr.bf16.gmra.mrb[0].mxu0 %v6375
      %v6834 = vpop.f32.mrb[0].mxu0
      %v6835 = vadd.f32 0.0, %v6834
      %v6836 = vpop.f32.mrb[0].mxu0
      %v6837 = vadd.f32 0.0, %v6836
      %v6838 = vpop.f32.mrb[0].mxu0
      %v6839 = vadd.f32 0.0, %v6838
      %v6840 = vpop.f32.mrb[0].mxu0
      %v6841 = vadd.f32 0.0, %v6840
      %6842 = vmatprep.mubr.bf16.mxu0 0
      %6843 = vmatmul.mubr.bf16.gmra.mrb[0].mxu0 %v6376
      %v6844 = vpop.f32.mrb[0].mxu0
      %v6845 = vadd.f32 0.0, %v6844
      %v6846 = vpop.f32.mrb[0].mxu0
      %v6847 = vadd.f32 0.0, %v6846
      %v6848 = vpop.f32.mrb[0].mxu0
      %v6849 = vadd.f32 0.0, %v6848
      %v6850 = vpop.f32.mrb[0].mxu0
      %v6851 = vadd.f32 0.0, %v6850
      %6852 = vmatprep.mubr.bf16.mxu0 0
      %6853 = vmatmul.mubr.bf16.gmra.mrb[0].mxu0 %v6377
      %v6854 = vpop.f32.mrb[0].mxu0
      %v6855 = vadd.f32 0.0, %v6854
      %v6856 = vpop.f32.mrb[0].mxu0
      %v6857 = vadd.f32 0.0, %v6856
      %v6858 = vpop.f32.mrb[0].mxu0
      %v6859 = vadd.f32 0.0, %v6858
      %v6860 = vpop.f32.mrb[0].mxu0
      %v6861 = vadd.f32 0.0, %v6860
      %6862 = vmatprep.mubr.bf16.mxu0 0
      %6863 = vmatmul.mubr.bf16.gmra.mrb[0].mxu0 %v6378
      %v6864 = vpop.f32.mrb[0].mxu0
      %v6865 = vadd.f32 0.0, %v6864
      %v6866 = vpop.f32.mrb[0].mxu0
      %v6867 = vadd.f32 0.0, %v6866
      %v6868 = vpop.f32.mrb[0].mxu0
      %v6869 = vadd.f32 0.0, %v6868
      %v6870 = vpop.f32.mrb[0].mxu0
      %v6871 = vadd.f32 0.0, %v6870
      %6872 = vmatprep.mubr.bf16.mxu0 0
      %6873 = vmatmul.mubr.bf16.gmra.mrb[0].mxu0 %v6379
      %v6874 = vpop.f32.mrb[0].mxu0
      %v6875 = vadd.f32 0.0, %v6874
      %v6876 = vpop.f32.mrb[0].mxu0
      %v6877 = vadd.f32 0.0, %v6876
      %v6878 = vpop.f32.mrb[0].mxu0
      %v6879 = vadd.f32 0.0, %v6878
      %v6880 = vpop.f32.mrb[0].mxu0
      %v6881 = vadd.f32 0.0, %v6880
      %6882 = vmatprep.mubr.bf16.mxu0 0
      %6883 = vmatmul.mubr.bf16.gmra.mrb[0].mxu0 %v6380
      %v6884 = vpop.f32.mrb[0].mxu0
      %v6885 = vadd.f32 0.0, %v6884
      %v6886 = vpop.f32.mrb[0].mxu0
      %v6887 = vadd.f32 0.0, %v6886
      %v6888 = vpop.f32.mrb[0].mxu0
      %v6889 = vadd.f32 0.0, %v6888
      %v6890 = vpop.f32.mrb[0].mxu0
      %v6891 = vadd.f32 0.0, %v6890
      %6892 = vmatprep.mubr.bf16.mxu0 0
      %6893 = vmatmul.mubr.bf16.gmra.mrb[0].mxu0 %v6381
      %v6894 = vpop.f32.mrb[0].mxu0
      %v6895 = vadd.f32 0.0, %v6894
      %v6896 = vpop.f32.mrb[0].mxu0
      %v6897 = vadd.f32 0.0, %v6896
      %v6898 = vpop.f32.mrb[0].mxu0
      %v6899 = vadd.f32 0.0, %v6898
      %v6900 = vpop.f32.mrb[0].mxu0
      %v6901 = vadd.f32 0.0, %v6900
      %6902 = vmatprep.mubr.bf16.mxu0 0
      %6903 = vmatmul.mubr.bf16.gmra.mrb[0].mxu0 %v6382
      %v6904 = vpop.f32.mrb[0].mxu0
      %v6905 = vadd.f32 0.0, %v6904
      %v6906 = vpop.f32.mrb[0].mxu0
      %v6907 = vadd.f32 0.0, %v6906
      %v6908 = vpop.f32.mrb[0].mxu0
      %v6909 = vadd.f32 0.0, %v6908
      %v6910 = vpop.f32.mrb[0].mxu0
      %v6911 = vadd.f32 0.0, %v6910
      %6912 = vdwg.mxu0
      %6913 = vmatprep.subr.bf16.mxu0 %v6659
      %6914 = vmatpush1.bf16.msra.mxu0 %v6658
      %6915 = vmatprep.subr.bf16.mxu0 %v6663
      %6916 = vmatpush1.bf16.msra.mxu0 %v6662
      %6917 = vmatprep.subr.bf16.mxu0 %v6667
      %6918 = vmatpush1.bf16.msra.mxu0 %v6666
      %6919 = vmatprep.subr.bf16.mxu0 %v6671
      %6920 = vmatpush1.bf16.msra.mxu0 %v6670
      %6921 = vmatprep.subr.bf16.mxu0 %v6675
      %6922 = vmatpush1.bf16.msra.mxu0 %v6674
      %6923 = vmatprep.subr.bf16.mxu0 %v6679
      %6924 = vmatpush1.bf16.msra.mxu0 %v6678
      %6925 = vmatprep.subr.bf16.mxu0 %v6683
      %6926 = vmatpush1.bf16.msra.mxu0 %v6682
      %6927 = vmatprep.subr.bf16.mxu0 %v6687
      %6928 = vmatpush1.bf16.msra.mxu0 %v6686
      %6929 = vmatprep.subr.bf16.mxu0 0
      %6930 = vmatpush1.bf16.msra.mxu0 0
      %6931 = vmatprep.subr.bf16.mxu0 0
      %6932 = vmatpush1.bf16.msra.mxu0 0
      %6933 = vmatprep.subr.bf16.mxu0 0
      %6934 = vmatpush1.bf16.msra.mxu0 0
      %6935 = vmatprep.subr.bf16.mxu0 0
      %6936 = vmatpush1.bf16.msra.mxu0 0
      %6937 = vmatprep.subr.bf16.mxu0 0
      %6938 = vmatpush1.bf16.msra.mxu0 0
      %6939 = vmatprep.subr.bf16.mxu0 0
      %6940 = vmatpush1.bf16.msra.mxu0 0
      %6941 = vmatprep.subr.bf16.mxu0 0
      %6942 = vmatpush1.bf16.msra.mxu0 0
      %6943 = vmatprep.subr.bf16.mxu0 0
      %6944 = vmatpush1.bf16.msra.mxu0 0
      %6945 = vmatprep.mubr.bf16.mxu0 0
      %6946 = vmatmul.mubr.bf16.gmra.mrb[0].mxu0 %v6367
      %v6947 = vpop.f32.mrb[0].mxu0
      %v6948 = vadd.f32 0.0, %v6947
      %v6949 = vpop.f32.mrb[0].mxu0
      %v6950 = vadd.f32 0.0, %v6949
      %v6951 = vpop.f32.mrb[0].mxu0
      %v6952 = vadd.f32 0.0, %v6951
      %v6953 = vpop.f32.mrb[0].mxu0
      %v6954 = vadd.f32 0.0, %v6953
      %6955 = vmatprep.mubr.bf16.mxu0 0
      %6956 = vmatmul.mubr.bf16.gmra.mrb[0].mxu0 %v6368
      %v6957 = vpop.f32.mrb[0].mxu0
      %v6958 = vadd.f32 0.0, %v6957
      %v6959 = vpop.f32.mrb[0].mxu0
      %v6960 = vadd.f32 0.0, %v6959
      %v6961 = vpop.f32.mrb[0].mxu0
      %v6962 = vadd.f32 0.0, %v6961
      %v6963 = vpop.f32.mrb[0].mxu0
      %v6964 = vadd.f32 0.0, %v6963
      %6965 = vmatprep.mubr.bf16.mxu0 0
      %6966 = vmatmul.mubr.bf16.gmra.mrb[0].mxu0 %v6369
      %v6967 = vpop.f32.mrb[0].mxu0
      %v6968 = vadd.f32 0.0, %v6967
      %v6969 = vpop.f32.mrb[0].mxu0
      %v6970 = vadd.f32 0.0, %v6969
      %v6971 = vpop.f32.mrb[0].mxu0
      %v6972 = vadd.f32 0.0, %v6971
      %v6973 = vpop.f32.mrb[0].mxu0
      %v6974 = vadd.f32 0.0, %v6973
      %6975 = vmatprep.mubr.bf16.mxu0 0
      %6976 = vmatmul.mubr.bf16.gmra.mrb[0].mxu0 %v6370
      %v6977 = vpop.f32.mrb[0].mxu0
      %v6978 = vadd.f32 0.0, %v6977
      %v6979 = vpop.f32.mrb[0].mxu0
      %v6980 = vadd.f32 0.0, %v6979
      %v6981 = vpop.f32.mrb[0].mxu0
      %v6982 = vadd.f32 0.0, %v6981
      %v6983 = vpop.f32.mrb[0].mxu0
      %v6984 = vadd.f32 0.0, %v6983
      %6985 = vmatprep.mubr.bf16.mxu0 0
      %6986 = vmatmul.mubr.bf16.gmra.mrb[0].mxu0 %v6371
      %v6987 = vpop.f32.mrb[0].mxu0
      %v6988 = vadd.f32 0.0, %v6987
      %v6989 = vpop.f32.mrb[0].mxu0
      %v6990 = vadd.f32 0.0, %v6989
      %v6991 = vpop.f32.mrb[0].mxu0
      %v6992 = vadd.f32 0.0, %v6991
      %v6993 = vpop.f32.mrb[0].mxu0
      %v6994 = vadd.f32 0.0, %v6993
      %6995 = vmatprep.mubr.bf16.mxu0 0
      %6996 = vmatmul.mubr.bf16.gmra.mrb[0].mxu0 %v6372
      %v6997 = vpop.f32.mrb[0].mxu0
      %v6998 = vadd.f32 0.0, %v6997
      %v6999 = vpop.f32.mrb[0].mxu0
      %v7000 = vadd.f32 0.0, %v6999
      %v7001 = vpop.f32.mrb[0].mxu0
      %v7002 = vadd.f32 0.0, %v7001
      %v7003 = vpop.f32.mrb[0].mxu0
      %v7004 = vadd.f32 0.0, %v7003
      %7005 = vmatprep.mubr.bf16.mxu0 0
      %7006 = vmatmul.mubr.bf16.gmra.mrb[0].mxu0 %v6373
      %v7007 = vpop.f32.mrb[0].mxu0
      %v7008 = vadd.f32 0.0, %v7007
      %v7009 = vpop.f32.mrb[0].mxu0
      %v7010 = vadd.f32 0.0, %v7009
      %v7011 = vpop.f32.mrb[0].mxu0
      %v7012 = vadd.f32 0.0, %v7011
      %v7013 = vpop.f32.mrb[0].mxu0
      %v7014 = vadd.f32 0.0, %v7013
      %7015 = vmatprep.mubr.bf16.mxu0 0
      %7016 = vmatmul.mubr.bf16.gmra.mrb[0].mxu0 %v6374
      %v7017 = vpop.f32.mrb[0].mxu0
      %v7018 = vadd.f32 0.0, %v7017
      %v7019 = vpop.f32.mrb[0].mxu0
      %v7020 = vadd.f32 0.0, %v7019
      %v7021 = vpop.f32.mrb[0].mxu0
      %v7022 = vadd.f32 0.0, %v7021
      %v7023 = vpop.f32.mrb[0].mxu0
      %v7024 = vadd.f32 0.0, %v7023
      %7025 = vmatprep.mubr.bf16.mxu0 0
      %7026 = vmatmul.mubr.bf16.gmra.mrb[0].mxu0 %v6375
      %v7027 = vpop.f32.mrb[0].mxu0
      %v7028 = vadd.f32 0.0, %v7027
      %v7029 = vpop.f32.mrb[0].mxu0
      %v7030 = vadd.f32 0.0, %v7029
      %v7031 = vpop.f32.mrb[0].mxu0
      %v7032 = vadd.f32 0.0, %v7031
      %v7033 = vpop.f32.mrb[0].mxu0
      %v7034 = vadd.f32 0.0, %v7033
      %7035 = vmatprep.mubr.bf16.mxu0 0
      %7036 = vmatmul.mubr.bf16.gmra.mrb[0].mxu0 %v6376
      %v7037 = vpop.f32.mrb[0].mxu0
      %v7038 = vadd.f32 0.0, %v7037
      %v7039 = vpop.f32.mrb[0].mxu0
      %v7040 = vadd.f32 0.0, %v7039
      %v7041 = vpop.f32.mrb[0].mxu0
      %v7042 = vadd.f32 0.0, %v7041
      %v7043 = vpop.f32.mrb[0].mxu0
      %v7044 = vadd.f32 0.0, %v7043
      %7045 = vmatprep.mubr.bf16.mxu0 0
      %7046 = vmatmul.mubr.bf16.gmra.mrb[0].mxu0 %v6377
      %v7047 = vpop.f32.mrb[0].mxu0
      %v7048 = vadd.f32 0.0, %v7047
      %v7049 = vpop.f32.mrb[0].mxu0
      %v7050 = vadd.f32 0.0, %v7049
      %v7051 = vpop.f32.mrb[0].mxu0
      %v7052 = vadd.f32 0.0, %v7051
      %v7053 = vpop.f32.mrb[0].mxu0
      %v7054 = vadd.f32 0.0, %v7053
      %7055 = vmatprep.mubr.bf16.mxu0 0
      %7056 = vmatmul.mubr.bf16.gmra.mrb[0].mxu0 %v6378
      %v7057 = vpop.f32.mrb[0].mxu0
      %v7058 = vadd.f32 0.0, %v7057
      %v7059 = vpop.f32.mrb[0].mxu0
      %v7060 = vadd.f32 0.0, %v7059
      %v7061 = vpop.f32.mrb[0].mxu0
      %v7062 = vadd.f32 0.0, %v7061
      %v7063 = vpop.f32.mrb[0].mxu0
      %v7064 = vadd.f32 0.0, %v7063
      %7065 = vmatprep.mubr.bf16.mxu0 0
      %7066 = vmatmul.mubr.bf16.gmra.mrb[0].mxu0 %v6379
      %v7067 = vpop.f32.mrb[0].mxu0
      %v7068 = vadd.f32 0.0, %v7067
      %v7069 = vpop.f32.mrb[0].mxu0
      %v7070 = vadd.f32 0.0, %v7069
      %v7071 = vpop.f32.mrb[0].mxu0
      %v7072 = vadd.f32 0.0, %v7071
      %v7073 = vpop.f32.mrb[0].mxu0
      %v7074 = vadd.f32 0.0, %v7073
      %7075 = vmatprep.mubr.bf16.mxu0 0
      %7076 = vmatmul.mubr.bf16.gmra.mrb[0].mxu0 %v6380
      %v7077 = vpop.f32.mrb[0].mxu0
      %v7078 = vadd.f32 0.0, %v7077
      %v7079 = vpop.f32.mrb[0].mxu0
      %v7080 = vadd.f32 0.0, %v7079
      %v7081 = vpop.f32.mrb[0].mxu0
      %v7082 = vadd.f32 0.0, %v7081
      %v7083 = vpop.f32.mrb[0].mxu0
      %v7084 = vadd.f32 0.0, %v7083
      %7085 = vmatprep.mubr.bf16.mxu0 0
      %7086 = vmatmul.mubr.bf16.gmra.mrb[0].mxu0 %v6381
      %v7087 = vpop.f32.mrb[0].mxu0
      %v7088 = vadd.f32 0.0, %v7087
      %v7089 = vpop.f32.mrb[0].mxu0
      %v7090 = vadd.f32 0.0, %v7089
      %v7091 = vpop.f32.mrb[0].mxu0
      %v7092 = vadd.f32 0.0, %v7091
      %v7093 = vpop.f32.mrb[0].mxu0
      %v7094 = vadd.f32 0.0, %v7093
      %7095 = vmatprep.mubr.bf16.mxu0 0
      %7096 = vmatmul.mubr.bf16.gmra.mrb[0].mxu0 %v6382
      %v7097 = vpop.f32.mrb[0].mxu0
      %v7098 = vadd.f32 0.0, %v7097
      %v7099 = vpop.f32.mrb[0].mxu0
      %v7100 = vadd.f32 0.0, %v7099
      %v7101 = vpop.f32.mrb[0].mxu0
      %v7102 = vadd.f32 0.0, %v7101
      %v7103 = vpop.f32.mrb[0].mxu0
      %v7104 = vadd.f32 0.0, %v7103
      %7105 = vdwg.mxu0
      %v7106 = vpack.c.bf16 %v6759, %v6755
      %v7107 = vpack.c.bf16 %v6761, %v6757
      %v7108 = vpack.c.bf16 %v6952, %v6948
      %v7109 = vpack.c.bf16 %v6954, %v6950
      %v7110 = vpack.c.bf16 %v6769, %v6765
      %v7111 = vpack.c.bf16 %v6771, %v6767
      %v7112 = vpack.c.bf16 %v6962, %v6958
      %v7113 = vpack.c.bf16 %v6964, %v6960
      %v7114 = vpack.c.bf16 %v6779, %v6775
      %v7115 = vpack.c.bf16 %v6781, %v6777
      %v7116 = vpack.c.bf16 %v6972, %v6968
      %v7117 = vpack.c.bf16 %v6974, %v6970
      %v7118 = vpack.c.bf16 %v6789, %v6785
      %v7119 = vpack.c.bf16 %v6791, %v6787
      %v7120 = vpack.c.bf16 %v6982, %v6978
      %v7121 = vpack.c.bf16 %v6984, %v6980
      %v7122 = vpack.c.bf16 %v6799, %v6795
      %v7123 = vpack.c.bf16 %v6801, %v6797
      %v7124 = vpack.c.bf16 %v6992, %v6988
      %v7125 = vpack.c.bf16 %v6994, %v6990
      %v7126 = vpack.c.bf16 %v6809, %v6805
      %v7127 = vpack.c.bf16 %v6811, %v6807
      %v7128 = vpack.c.bf16 %v7002, %v6998
      %v7129 = vpack.c.bf16 %v7004, %v7000
      %v7130 = vpack.c.bf16 %v6819, %v6815
      %v7131 = vpack.c.bf16 %v6821, %v6817
      %v7132 = vpack.c.bf16 %v7012, %v7008
      %v7133 = vpack.c.bf16 %v7014, %v7010
      %v7134 = vpack.c.bf16 %v6829, %v6825
      %v7135 = vpack.c.bf16 %v6831, %v6827
      %v7136 = vpack.c.bf16 %v7022, %v7018
      %v7137 = vpack.c.bf16 %v7024, %v7020
      %v7138 = vpack.c.bf16 %v6839, %v6835
      %v7139 = vpack.c.bf16 %v6841, %v6837
      %v7140 = vpack.c.bf16 %v7032, %v7028
      %v7141 = vpack.c.bf16 %v7034, %v7030
      %v7142 = vpack.c.bf16 %v6849, %v6845
      %v7143 = vpack.c.bf16 %v6851, %v6847
      %v7144 = vpack.c.bf16 %v7042, %v7038
      %v7145 = vpack.c.bf16 %v7044, %v7040
      %v7146 = vpack.c.bf16 %v6859, %v6855
      %v7147 = vpack.c.bf16 %v6861, %v6857
      %v7148 = vpack.c.bf16 %v7052, %v7048
      %v7149 = vpack.c.bf16 %v7054, %v7050
      %v7150 = vpack.c.bf16 %v6869, %v6865
      %v7151 = vpack.c.bf16 %v6871, %v6867
      %v7152 = vpack.c.bf16 %v7062, %v7058
      %v7153 = vpack.c.bf16 %v7064, %v7060
      %v7154 = vpack.c.bf16 %v6879, %v6875
      %v7155 = vpack.c.bf16 %v6881, %v6877
      %v7156 = vpack.c.bf16 %v7072, %v7068
      %v7157 = vpack.c.bf16 %v7074, %v7070
      %v7158 = vpack.c.bf16 %v6889, %v6885
      %v7159 = vpack.c.bf16 %v6891, %v6887
      %v7160 = vpack.c.bf16 %v7082, %v7078
      %v7161 = vpack.c.bf16 %v7084, %v7080
      %v7162 = vpack.c.bf16 %v6899, %v6895
      %v7163 = vpack.c.bf16 %v6901, %v6897
      %v7164 = vpack.c.bf16 %v7092, %v7088
      %v7165 = vpack.c.bf16 %v7094, %v7090
      %v7166 = vpack.c.bf16 %v6909, %v6905
      %v7167 = vpack.c.bf16 %v6911, %v6907
      %v7168 = vpack.c.bf16 %v7102, %v7098
      %v7169 = vpack.c.bf16 %v7104, %v7100
      %v7170 = vld [vmem:[%s4] sm:$0xff]
      %v7171 = vld [vmem:[%s4 + $0x8] sm:$0xff]
      %v7172 = vld [vmem:[%s4 + $0x10] sm:$0xff]
      %v7173 = vld [vmem:[%s4 + $0x18] sm:$0xff]
      %v7174 = vld [vmem:[%s4 + $0x20] sm:$0xff]
      %v7175 = vld [vmem:[%s4 + $0x28] sm:$0xff]
      %v7176 = vld [vmem:[%s4 + $0x30] sm:$0xff]
      %v7177 = vld [vmem:[%s4 + $0x38] sm:$0xff]
      %v7178 = vld [vmem:[%s4 + $0x40] sm:$0xff]
      %v7179 = vld [vmem:[%s4 + $0x48] sm:$0xff]
      %v7180 = vld [vmem:[%s4 + $0x50] sm:$0xff]
      %v7181 = vld [vmem:[%s4 + $0x58] sm:$0xff]
      %v7182 = vld [vmem:[%s4 + $0x60] sm:$0xff]
      %v7183 = vld [vmem:[%s4 + $0x68] sm:$0xff]
      %v7184 = vld [vmem:[%s4 + $0x70] sm:$0xff]
      %v7185 = vld [vmem:[%s4 + $0x78] sm:$0xff]
      %v7186 = vld [vmem:[%s4 + $0x80] sm:$0xff]
      %v7187 = vld [vmem:[%s4 + $0x88] sm:$0xff]
      %v7188 = vld [vmem:[%s4 + $0x90] sm:$0xff]
      %v7189 = vld [vmem:[%s4 + $0x98] sm:$0xff]
      %v7190 = vld [vmem:[%s4 + $0xa0] sm:$0xff]
      %v7191 = vld [vmem:[%s4 + $0xa8] sm:$0xff]
      %v7192 = vld [vmem:[%s4 + $0xb0] sm:$0xff]
      %v7193 = vld [vmem:[%s4 + $0xb8] sm:$0xff]
      %v7194 = vld [vmem:[%s4 + $0xc0] sm:$0xff]
      %v7195 = vld [vmem:[%s4 + $0xc8] sm:$0xff]
      %v7196 = vld [vmem:[%s4 + $0xd0] sm:$0xff]
      %v7197 = vld [vmem:[%s4 + $0xd8] sm:$0xff]
      %v7198 = vld [vmem:[%s4 + $0xe0] sm:$0xff]
      %v7199 = vld [vmem:[%s4 + $0xe8] sm:$0xff]
      %v7200 = vld [vmem:[%s4 + $0xf0] sm:$0xff]
      %v7201 = vld [vmem:[%s4 + $0xf8] sm:$0xff]
      %s7202 = scalar_lea.vmem %s4, 256
      %v7203 = vld [vmem:[%s7202] sm:$0xff]
      %v7204 = vld [vmem:[%s7202 + $0x8] sm:$0xff]
      %v7205 = vld [vmem:[%s7202 + $0x10] sm:$0xff]
      %v7206 = vld [vmem:[%s7202 + $0x18] sm:$0xff]
      %v7207 = vld [vmem:[%s7202 + $0x20] sm:$0xff]
      %v7208 = vld [vmem:[%s7202 + $0x28] sm:$0xff]
      %v7209 = vld [vmem:[%s7202 + $0x30] sm:$0xff]
      %v7210 = vld [vmem:[%s7202 + $0x38] sm:$0xff]
      %v7211 = vld [vmem:[%s7202 + $0x40] sm:$0xff]
      %v7212 = vld [vmem:[%s7202 + $0x48] sm:$0xff]
      %v7213 = vld [vmem:[%s7202 + $0x50] sm:$0xff]
      %v7214 = vld [vmem:[%s7202 + $0x58] sm:$0xff]
      %v7215 = vld [vmem:[%s7202 + $0x60] sm:$0xff]
      %v7216 = vld [vmem:[%s7202 + $0x68] sm:$0xff]
      %v7217 = vld [vmem:[%s7202 + $0x70] sm:$0xff]
      %v7218 = vld [vmem:[%s7202 + $0x78] sm:$0xff]
      %v7219 = vld [vmem:[%s7202 + $0x80] sm:$0xff]
      %v7220 = vld [vmem:[%s7202 + $0x88] sm:$0xff]
      %v7221 = vld [vmem:[%s7202 + $0x90] sm:$0xff]
      %v7222 = vld [vmem:[%s7202 + $0x98] sm:$0xff]
      %v7223 = vld [vmem:[%s7202 + $0xa0] sm:$0xff]
      %v7224 = vld [vmem:[%s7202 + $0xa8] sm:$0xff]
      %v7225 = vld [vmem:[%s7202 + $0xb0] sm:$0xff]
      %v7226 = vld [vmem:[%s7202 + $0xb8] sm:$0xff]
      %v7227 = vld [vmem:[%s7202 + $0xc0] sm:$0xff]
      %v7228 = vld [vmem:[%s7202 + $0xc8] sm:$0xff]
      %v7229 = vld [vmem:[%s7202 + $0xd0] sm:$0xff]
      %v7230 = vld [vmem:[%s7202 + $0xd8] sm:$0xff]
      %v7231 = vld [vmem:[%s7202 + $0xe0] sm:$0xff]
      %v7232 = vld [vmem:[%s7202 + $0xe8] sm:$0xff]
      %v7233 = vld [vmem:[%s7202 + $0xf0] sm:$0xff]
      %v7234 = vld [vmem:[%s7202 + $0xf8] sm:$0xff]
      %v7267 = vunpack.c.l.b16 %v7203
      %v7268 = vunpack.c.h.b16 %v7203
      %v7269 = vunpack.c.l.b16 %v7204
      %v7270 = vunpack.c.h.b16 %v7204
      %v7271 = vunpack.c.l.b16 %v7205
      %v7272 = vunpack.c.h.b16 %v7205
      %v7273 = vunpack.c.l.b16 %v7206
      %v7274 = vunpack.c.h.b16 %v7206
      %v7275 = vunpack.c.l.b16 %v7207
      %v7276 = vunpack.c.h.b16 %v7207
      %v7277 = vunpack.c.l.b16 %v7208
      %v7278 = vunpack.c.h.b16 %v7208
      %v7279 = vunpack.c.l.b16 %v7209
      %v7280 = vunpack.c.h.b16 %v7209
      %v7281 = vunpack.c.l.b16 %v7210
      %v7282 = vunpack.c.h.b16 %v7210
      %v7283 = vunpack.c.l.b16 %v7211
      %v7284 = vunpack.c.h.b16 %v7211
      %v7285 = vunpack.c.l.b16 %v7212
      %v7286 = vunpack.c.h.b16 %v7212
      %v7287 = vunpack.c.l.b16 %v7213
      %v7288 = vunpack.c.h.b16 %v7213
      %v7289 = vunpack.c.l.b16 %v7214
      %v7290 = vunpack.c.h.b16 %v7214
      %v7291 = vunpack.c.l.b16 %v7215
      %v7292 = vunpack.c.h.b16 %v7215
      %v7293 = vunpack.c.l.b16 %v7216
      %v7294 = vunpack.c.h.b16 %v7216
      %v7295 = vunpack.c.l.b16 %v7217
      %v7296 = vunpack.c.h.b16 %v7217
      %v7297 = vunpack.c.l.b16 %v7218
      %v7298 = vunpack.c.h.b16 %v7218
      %v7299 = vunpack.c.l.b16 %v7219
      %v7300 = vunpack.c.h.b16 %v7219
      %v7301 = vunpack.c.l.b16 %v7220
      %v7302 = vunpack.c.h.b16 %v7220
      %v7303 = vunpack.c.l.b16 %v7221
      %v7304 = vunpack.c.h.b16 %v7221
      %v7305 = vunpack.c.l.b16 %v7222
      %v7306 = vunpack.c.h.b16 %v7222
      %v7307 = vunpack.c.l.b16 %v7223
      %v7308 = vunpack.c.h.b16 %v7223
      %v7309 = vunpack.c.l.b16 %v7224
      %v7310 = vunpack.c.h.b16 %v7224
      %v7311 = vunpack.c.l.b16 %v7225
      %v7312 = vunpack.c.h.b16 %v7225
      %v7313 = vunpack.c.l.b16 %v7226
      %v7314 = vunpack.c.h.b16 %v7226
      %v7315 = vunpack.c.l.b16 %v7227
      %v7316 = vunpack.c.h.b16 %v7227
      %v7317 = vunpack.c.l.b16 %v7228
      %v7318 = vunpack.c.h.b16 %v7228
      %v7319 = vunpack.c.l.b16 %v7229
      %v7320 = vunpack.c.h.b16 %v7229
      %v7321 = vunpack.c.l.b16 %v7230
      %v7322 = vunpack.c.h.b16 %v7230
      %v7323 = vunpack.c.l.b16 %v7231
      %v7324 = vunpack.c.h.b16 %v7231
      %v7325 = vunpack.c.l.b16 %v7232
      %v7326 = vunpack.c.h.b16 %v7232
      %v7327 = vunpack.c.l.b16 %v7233
      %v7328 = vunpack.c.h.b16 %v7233
      %v7329 = vunpack.c.l.b16 %v7234
      %v7330 = vunpack.c.h.b16 %v7234
      %v7331 = vpack.c.b16 %v7269, %v7267
      %v7332 = vpack.c.b16 %v7270, %v7268
      %v7333 = vpack.c.b16 %v7273, %v7271
      %v7334 = vpack.c.b16 %v7274, %v7272
      %v7335 = vpack.c.b16 %v7277, %v7275
      %v7336 = vpack.c.b16 %v7278, %v7276
      %v7337 = vpack.c.b16 %v7281, %v7279
      %v7338 = vpack.c.b16 %v7282, %v7280
      %v7339 = vpack.c.b16 %v7285, %v7283
      %v7340 = vpack.c.b16 %v7286, %v7284
      %v7341 = vpack.c.b16 %v7289, %v7287
      %v7342 = vpack.c.b16 %v7290, %v7288
      %v7343 = vpack.c.b16 %v7293, %v7291
      %v7344 = vpack.c.b16 %v7294, %v7292
      %v7345 = vpack.c.b16 %v7297, %v7295
      %v7346 = vpack.c.b16 %v7298, %v7296
      %v7347 = vpack.c.b16 %v7301, %v7299
      %v7348 = vpack.c.b16 %v7302, %v7300
      %v7349 = vpack.c.b16 %v7305, %v7303
      %v7350 = vpack.c.b16 %v7306, %v7304
      %v7351 = vpack.c.b16 %v7309, %v7307
      %v7352 = vpack.c.b16 %v7310, %v7308
      %v7353 = vpack.c.b16 %v7313, %v7311
      %v7354 = vpack.c.b16 %v7314, %v7312
      %v7355 = vpack.c.b16 %v7317, %v7315
      %v7356 = vpack.c.b16 %v7318, %v7316
      %v7357 = vpack.c.b16 %v7321, %v7319
      %v7358 = vpack.c.b16 %v7322, %v7320
      %v7359 = vpack.c.b16 %v7325, %v7323
      %v7360 = vpack.c.b16 %v7326, %v7324
      %v7361 = vpack.c.b16 %v7329, %v7327
      %v7362 = vpack.c.b16 %v7330, %v7328
      %7395 = vmatprep.subr.bf16.mxu0 0
      %7396 = vmatpush1.bf16.msra.mxu0 %v7107
      %7397 = vmatprep.subr.bf16.mxu0 0
      %7398 = vmatpush1.bf16.msra.mxu0 %v7111
      %7399 = vmatprep.subr.bf16.mxu0 0
      %7400 = vmatpush1.bf16.msra.mxu0 %v7115
      %7401 = vmatprep.subr.bf16.mxu0 0
      %7402 = vmatpush1.bf16.msra.mxu0 %v7119
      %7403 = vmatprep.subr.bf16.mxu0 0
      %7404 = vmatpush1.bf16.msra.mxu0 %v7123
      %7405 = vmatprep.subr.bf16.mxu0 0
      %7406 = vmatpush1.bf16.msra.mxu0 %v7127
      %7407 = vmatprep.subr.bf16.mxu0 0
      %7408 = vmatpush1.bf16.msra.mxu0 %v7131
      %7409 = vmatprep.subr.bf16.mxu0 0
      %7410 = vmatpush1.bf16.msra.mxu0 %v7135
      %7411 = vmatprep.subr.bf16.mxu0 0
      %7412 = vmatpush1.bf16.msra.mxu0 %v7139
      %7413 = vmatprep.subr.bf16.mxu0 0
      %7414 = vmatpush1.bf16.msra.mxu0 %v7143
      %7415 = vmatprep.subr.bf16.mxu0 0
      %7416 = vmatpush1.bf16.msra.mxu0 %v7147
      %7417 = vmatprep.subr.bf16.mxu0 0
      %7418 = vmatpush1.bf16.msra.mxu0 %v7151
      %7419 = vmatprep.subr.bf16.mxu0 0
      %7420 = vmatpush1.bf16.msra.mxu0 %v7155
      %7421 = vmatprep.subr.bf16.mxu0 0
      %7422 = vmatpush1.bf16.msra.mxu0 %v7159
      %7423 = vmatprep.subr.bf16.mxu0 0
      %7424 = vmatpush1.bf16.msra.mxu0 %v7163
      %7425 = vmatprep.subr.bf16.mxu0 0
      %7426 = vmatpush1.bf16.msra.mxu0 %v7167
      %7427 = vmatprep.mubr.bf16.mxu0 %v7332
      %7428 = vmatmul.mubr.bf16.gmra.mrb[0].mxu0 %v7331
      %v7429 = vpop.f32.mrb[0].mxu0
      %v7430 = vadd.f32 0.0, %v7429
      %v7431 = vpop.f32.mrb[0].mxu0
      %v7432 = vpop.f32.mrb[0].mxu0
      %v7433 = vadd.f32 0.0, %v7432
      %v7434 = vpop.f32.mrb[0].mxu0
      %7435 = vmatprep.mubr.bf16.mxu0 %v7334
      %7436 = vmatmul.mubr.bf16.gmra.mrb[0].mxu0 %v7333
      %v7437 = vpop.f32.mrb[0].mxu0
      %v7438 = vadd.f32 0.0, %v7437
      %v7439 = vpop.f32.mrb[0].mxu0
      %v7440 = vpop.f32.mrb[0].mxu0
      %v7441 = vadd.f32 0.0, %v7440
      %v7442 = vpop.f32.mrb[0].mxu0
      %7443 = vmatprep.mubr.bf16.mxu0 %v7336
      %7444 = vmatmul.mubr.bf16.gmra.mrb[0].mxu0 %v7335
      %v7445 = vpop.f32.mrb[0].mxu0
      %v7446 = vadd.f32 0.0, %v7445
      %v7447 = vpop.f32.mrb[0].mxu0
      %v7448 = vpop.f32.mrb[0].mxu0
      %v7449 = vadd.f32 0.0, %v7448
      %v7450 = vpop.f32.mrb[0].mxu0
      %7451 = vmatprep.mubr.bf16.mxu0 %v7338
      %7452 = vmatmul.mubr.bf16.gmra.mrb[0].mxu0 %v7337
      %v7453 = vpop.f32.mrb[0].mxu0
      %v7454 = vadd.f32 0.0, %v7453
      %v7455 = vpop.f32.mrb[0].mxu0
      %v7456 = vpop.f32.mrb[0].mxu0
      %v7457 = vadd.f32 0.0, %v7456
      %v7458 = vpop.f32.mrb[0].mxu0
      %7459 = vmatprep.mubr.bf16.mxu0 %v7340
      %7460 = vmatmul.mubr.bf16.gmra.mrb[0].mxu0 %v7339
      %v7461 = vpop.f32.mrb[0].mxu0
      %v7462 = vadd.f32 0.0, %v7461
      %v7463 = vpop.f32.mrb[0].mxu0
      %v7464 = vpop.f32.mrb[0].mxu0
      %v7465 = vadd.f32 0.0, %v7464
      %v7466 = vpop.f32.mrb[0].mxu0
      %7467 = vmatprep.mubr.bf16.mxu0 %v7342
      %7468 = vmatmul.mubr.bf16.gmra.mrb[0].mxu0 %v7341
      %v7469 = vpop.f32.mrb[0].mxu0
      %v7470 = vadd.f32 0.0, %v7469
      %v7471 = vpop.f32.mrb[0].mxu0
      %v7472 = vpop.f32.mrb[0].mxu0
      %v7473 = vadd.f32 0.0, %v7472
      %v7474 = vpop.f32.mrb[0].mxu0
      %7475 = vmatprep.mubr.bf16.mxu0 %v7344
      %7476 = vmatmul.mubr.bf16.gmra.mrb[0].mxu0 %v7343
      %v7477 = vpop.f32.mrb[0].mxu0
      %v7478 = vadd.f32 0.0, %v7477
      %v7479 = vpop.f32.mrb[0].mxu0
      %v7480 = vpop.f32.mrb[0].mxu0
      %v7481 = vadd.f32 0.0, %v7480
      %v7482 = vpop.f32.mrb[0].mxu0
      %7483 = vmatprep.mubr.bf16.mxu0 %v7346
      %7484 = vmatmul.mubr.bf16.gmra.mrb[0].mxu0 %v7345
      %v7485 = vpop.f32.mrb[0].mxu0
      %v7486 = vadd.f32 0.0, %v7485
      %v7487 = vpop.f32.mrb[0].mxu0
      %v7488 = vpop.f32.mrb[0].mxu0
      %v7489 = vadd.f32 0.0, %v7488
      %v7490 = vpop.f32.mrb[0].mxu0
      %7491 = vmatprep.mubr.bf16.mxu0 %v7348
      %7492 = vmatmul.mubr.bf16.gmra.mrb[0].mxu0 %v7347
      %v7493 = vpop.f32.mrb[0].mxu0
      %v7494 = vadd.f32 0.0, %v7493
      %v7495 = vpop.f32.mrb[0].mxu0
      %v7496 = vpop.f32.mrb[0].mxu0
      %v7497 = vadd.f32 0.0, %v7496
      %v7498 = vpop.f32.mrb[0].mxu0
      %7499 = vmatprep.mubr.bf16.mxu0 %v7350
      %7500 = vmatmul.mubr.bf16.gmra.mrb[0].mxu0 %v7349
      %v7501 = vpop.f32.mrb[0].mxu0
      %v7502 = vadd.f32 0.0, %v7501
      %v7503 = vpop.f32.mrb[0].mxu0
      %v7504 = vpop.f32.mrb[0].mxu0
      %v7505 = vadd.f32 0.0, %v7504
      %v7506 = vpop.f32.mrb[0].mxu0
      %7507 = vmatprep.mubr.bf16.mxu0 %v7352
      %7508 = vmatmul.mubr.bf16.gmra.mrb[0].mxu0 %v7351
      %v7509 = vpop.f32.mrb[0].mxu0
      %v7510 = vadd.f32 0.0, %v7509
      %v7511 = vpop.f32.mrb[0].mxu0
      %v7512 = vpop.f32.mrb[0].mxu0
      %v7513 = vadd.f32 0.0, %v7512
      %v7514 = vpop.f32.mrb[0].mxu0
      %7515 = vmatprep.mubr.bf16.mxu0 %v7354
      %7516 = vmatmul.mubr.bf16.gmra.mrb[0].mxu0 %v7353
      %v7517 = vpop.f32.mrb[0].mxu0
      %v7518 = vadd.f32 0.0, %v7517
      %v7519 = vpop.f32.mrb[0].mxu0
      %v7520 = vpop.f32.mrb[0].mxu0
      %v7521 = vadd.f32 0.0, %v7520
      %v7522 = vpop.f32.mrb[0].mxu0
      %7523 = vmatprep.mubr.bf16.mxu0 %v7356
      %7524 = vmatmul.mubr.bf16.gmra.mrb[0].mxu0 %v7355
      %v7525 = vpop.f32.mrb[0].mxu0
      %v7526 = vadd.f32 0.0, %v7525
      %v7527 = vpop.f32.mrb[0].mxu0
      %v7528 = vpop.f32.mrb[0].mxu0
      %v7529 = vadd.f32 0.0, %v7528
      %v7530 = vpop.f32.mrb[0].mxu0
      %7531 = vmatprep.mubr.bf16.mxu0 %v7358
      %7532 = vmatmul.mubr.bf16.gmra.mrb[0].mxu0 %v7357
      %v7533 = vpop.f32.mrb[0].mxu0
      %v7534 = vadd.f32 0.0, %v7533
      %v7535 = vpop.f32.mrb[0].mxu0
      %v7536 = vpop.f32.mrb[0].mxu0
      %v7537 = vadd.f32 0.0, %v7536
      %v7538 = vpop.f32.mrb[0].mxu0
      %7539 = vmatprep.mubr.bf16.mxu0 %v7360
      %7540 = vmatmul.mubr.bf16.gmra.mrb[0].mxu0 %v7359
      %v7541 = vpop.f32.mrb[0].mxu0
      %v7542 = vadd.f32 0.0, %v7541
      %v7543 = vpop.f32.mrb[0].mxu0
      %v7544 = vpop.f32.mrb[0].mxu0
      %v7545 = vadd.f32 0.0, %v7544
      %v7546 = vpop.f32.mrb[0].mxu0
      %7547 = vmatprep.mubr.bf16.mxu0 %v7362
      %7548 = vmatmul.mubr.bf16.gmra.mrb[0].mxu0 %v7361
      %v7549 = vpop.f32.mrb[0].mxu0
      %v7550 = vadd.f32 0.0, %v7549
      %v7551 = vpop.f32.mrb[0].mxu0
      %v7552 = vpop.f32.mrb[0].mxu0
      %v7553 = vadd.f32 0.0, %v7552
      %v7554 = vpop.f32.mrb[0].mxu0
      %7555 = vdwg.mxu0
      %v7588 = vunpack.c.l.b16 %v7170
      %v7589 = vunpack.c.h.b16 %v7170
      %v7590 = vunpack.c.l.b16 %v7171
      %v7591 = vunpack.c.h.b16 %v7171
      %v7592 = vunpack.c.l.b16 %v7172
      %v7593 = vunpack.c.h.b16 %v7172
      %v7594 = vunpack.c.l.b16 %v7173
      %v7595 = vunpack.c.h.b16 %v7173
      %v7596 = vunpack.c.l.b16 %v7174
      %v7597 = vunpack.c.h.b16 %v7174
      %v7598 = vunpack.c.l.b16 %v7175
      %v7599 = vunpack.c.h.b16 %v7175
      %v7600 = vunpack.c.l.b16 %v7176
      %v7601 = vunpack.c.h.b16 %v7176
      %v7602 = vunpack.c.l.b16 %v7177
      %v7603 = vunpack.c.h.b16 %v7177
      %v7604 = vunpack.c.l.b16 %v7178
      %v7605 = vunpack.c.h.b16 %v7178
      %v7606 = vunpack.c.l.b16 %v7179
      %v7607 = vunpack.c.h.b16 %v7179
      %v7608 = vunpack.c.l.b16 %v7180
      %v7609 = vunpack.c.h.b16 %v7180
      %v7610 = vunpack.c.l.b16 %v7181
      %v7611 = vunpack.c.h.b16 %v7181
      %v7612 = vunpack.c.l.b16 %v7182
      %v7613 = vunpack.c.h.b16 %v7182
      %v7614 = vunpack.c.l.b16 %v7183
      %v7615 = vunpack.c.h.b16 %v7183
      %v7616 = vunpack.c.l.b16 %v7184
      %v7617 = vunpack.c.h.b16 %v7184
      %v7618 = vunpack.c.l.b16 %v7185
      %v7619 = vunpack.c.h.b16 %v7185
      %v7620 = vunpack.c.l.b16 %v7186
      %v7621 = vunpack.c.h.b16 %v7186
      %v7622 = vunpack.c.l.b16 %v7187
      %v7623 = vunpack.c.h.b16 %v7187
      %v7624 = vunpack.c.l.b16 %v7188
      %v7625 = vunpack.c.h.b16 %v7188
      %v7626 = vunpack.c.l.b16 %v7189
      %v7627 = vunpack.c.h.b16 %v7189
      %v7628 = vunpack.c.l.b16 %v7190
      %v7629 = vunpack.c.h.b16 %v7190
      %v7630 = vunpack.c.l.b16 %v7191
      %v7631 = vunpack.c.h.b16 %v7191
      %v7632 = vunpack.c.l.b16 %v7192
      %v7633 = vunpack.c.h.b16 %v7192
      %v7634 = vunpack.c.l.b16 %v7193
      %v7635 = vunpack.c.h.b16 %v7193
      %v7636 = vunpack.c.l.b16 %v7194
      %v7637 = vunpack.c.h.b16 %v7194
      %v7638 = vunpack.c.l.b16 %v7195
      %v7639 = vunpack.c.h.b16 %v7195
      %v7640 = vunpack.c.l.b16 %v7196
      %v7641 = vunpack.c.h.b16 %v7196
      %v7642 = vunpack.c.l.b16 %v7197
      %v7643 = vunpack.c.h.b16 %v7197
      %v7644 = vunpack.c.l.b16 %v7198
      %v7645 = vunpack.c.h.b16 %v7198
      %v7646 = vunpack.c.l.b16 %v7199
      %v7647 = vunpack.c.h.b16 %v7199
      %v7648 = vunpack.c.l.b16 %v7200
      %v7649 = vunpack.c.h.b16 %v7200
      %v7650 = vunpack.c.l.b16 %v7201
      %v7651 = vunpack.c.h.b16 %v7201
      %v7652 = vpack.c.b16 %v7590, %v7588
      %v7653 = vpack.c.b16 %v7591, %v7589
      %v7654 = vpack.c.b16 %v7594, %v7592
      %v7655 = vpack.c.b16 %v7595, %v7593
      %v7656 = vpack.c.b16 %v7598, %v7596
      %v7657 = vpack.c.b16 %v7599, %v7597
      %v7658 = vpack.c.b16 %v7602, %v7600
      %v7659 = vpack.c.b16 %v7603, %v7601
      %v7660 = vpack.c.b16 %v7606, %v7604
      %v7661 = vpack.c.b16 %v7607, %v7605
      %v7662 = vpack.c.b16 %v7610, %v7608
      %v7663 = vpack.c.b16 %v7611, %v7609
      %v7664 = vpack.c.b16 %v7614, %v7612
      %v7665 = vpack.c.b16 %v7615, %v7613
      %v7666 = vpack.c.b16 %v7618, %v7616
      %v7667 = vpack.c.b16 %v7619, %v7617
      %v7668 = vpack.c.b16 %v7622, %v7620
      %v7669 = vpack.c.b16 %v7623, %v7621
      %v7670 = vpack.c.b16 %v7626, %v7624
      %v7671 = vpack.c.b16 %v7627, %v7625
      %v7672 = vpack.c.b16 %v7630, %v7628
      %v7673 = vpack.c.b16 %v7631, %v7629
      %v7674 = vpack.c.b16 %v7634, %v7632
      %v7675 = vpack.c.b16 %v7635, %v7633
      %v7676 = vpack.c.b16 %v7638, %v7636
      %v7677 = vpack.c.b16 %v7639, %v7637
      %v7678 = vpack.c.b16 %v7642, %v7640
      %v7679 = vpack.c.b16 %v7643, %v7641
      %v7680 = vpack.c.b16 %v7646, %v7644
      %v7681 = vpack.c.b16 %v7647, %v7645
      %v7682 = vpack.c.b16 %v7650, %v7648
      %v7683 = vpack.c.b16 %v7651, %v7649
      %7716 = vmatprep.subr.bf16.mxu0 0
      %7717 = vmatpush1.bf16.msra.mxu0 %v7106
      %7718 = vmatprep.subr.bf16.mxu0 0
      %7719 = vmatpush1.bf16.msra.mxu0 %v7110
      %7720 = vmatprep.subr.bf16.mxu0 0
      %7721 = vmatpush1.bf16.msra.mxu0 %v7114
      %7722 = vmatprep.subr.bf16.mxu0 0
      %7723 = vmatpush1.bf16.msra.mxu0 %v7118
      %7724 = vmatprep.subr.bf16.mxu0 0
      %7725 = vmatpush1.bf16.msra.mxu0 %v7122
      %7726 = vmatprep.subr.bf16.mxu0 0
      %7727 = vmatpush1.bf16.msra.mxu0 %v7126
      %7728 = vmatprep.subr.bf16.mxu0 0
      %7729 = vmatpush1.bf16.msra.mxu0 %v7130
      %7730 = vmatprep.subr.bf16.mxu0 0
      %7731 = vmatpush1.bf16.msra.mxu0 %v7134
      %7732 = vmatprep.subr.bf16.mxu0 0
      %7733 = vmatpush1.bf16.msra.mxu0 %v7138
      %7734 = vmatprep.subr.bf16.mxu0 0
      %7735 = vmatpush1.bf16.msra.mxu0 %v7142
      %7736 = vmatprep.subr.bf16.mxu0 0
      %7737 = vmatpush1.bf16.msra.mxu0 %v7146
      %7738 = vmatprep.subr.bf16.mxu0 0
      %7739 = vmatpush1.bf16.msra.mxu0 %v7150
      %7740 = vmatprep.subr.bf16.mxu0 0
      %7741 = vmatpush1.bf16.msra.mxu0 %v7154
      %7742 = vmatprep.subr.bf16.mxu0 0
      %7743 = vmatpush1.bf16.msra.mxu0 %v7158
      %7744 = vmatprep.subr.bf16.mxu0 0
      %7745 = vmatpush1.bf16.msra.mxu0 %v7162
      %7746 = vmatprep.subr.bf16.mxu0 0
      %7747 = vmatpush1.bf16.msra.mxu0 %v7166
      %7748 = vmatprep.mubr.bf16.mxu0 %v7653
      %7749 = vmatmul.mubr.bf16.gmra.mrb[0].mxu0 %v7652
      %v7750 = vpop.f32.mrb[0].mxu0
      %v7751 = vadd.f32 %v7430, %v7750
      %v7752 = vpop.f32.mrb[0].mxu0
      %v7753 = vpop.f32.mrb[0].mxu0
      %v7754 = vadd.f32 %v7433, %v7753
      %v7755 = vpop.f32.mrb[0].mxu0
      %7756 = vmatprep.mubr.bf16.mxu0 %v7655
      %7757 = vmatmul.mubr.bf16.gmra.mrb[0].mxu0 %v7654
      %v7758 = vpop.f32.mrb[0].mxu0
      %v7759 = vadd.f32 %v7438, %v7758
      %v7760 = vpop.f32.mrb[0].mxu0
      %v7761 = vpop.f32.mrb[0].mxu0
      %v7762 = vadd.f32 %v7441, %v7761
      %v7763 = vpop.f32.mrb[0].mxu0
      %7764 = vmatprep.mubr.bf16.mxu0 %v7657
      %7765 = vmatmul.mubr.bf16.gmra.mrb[0].mxu0 %v7656
      %v7766 = vpop.f32.mrb[0].mxu0
      %v7767 = vadd.f32 %v7446, %v7766
      %v7768 = vpop.f32.mrb[0].mxu0
      %v7769 = vpop.f32.mrb[0].mxu0
      %v7770 = vadd.f32 %v7449, %v7769
      %v7771 = vpop.f32.mrb[0].mxu0
      %7772 = vmatprep.mubr.bf16.mxu0 %v7659
      %7773 = vmatmul.mubr.bf16.gmra.mrb[0].mxu0 %v7658
      %v7774 = vpop.f32.mrb[0].mxu0
      %v7775 = vadd.f32 %v7454, %v7774
      %v7776 = vpop.f32.mrb[0].mxu0
      %v7777 = vpop.f32.mrb[0].mxu0
      %v7778 = vadd.f32 %v7457, %v7777
      %v7779 = vpop.f32.mrb[0].mxu0
      %7780 = vmatprep.mubr.bf16.mxu0 %v7661
      %7781 = vmatmul.mubr.bf16.gmra.mrb[0].mxu0 %v7660
      %v7782 = vpop.f32.mrb[0].mxu0
      %v7783 = vadd.f32 %v7462, %v7782
      %v7784 = vpop.f32.mrb[0].mxu0
      %v7785 = vpop.f32.mrb[0].mxu0
      %v7786 = vadd.f32 %v7465, %v7785
      %v7787 = vpop.f32.mrb[0].mxu0
      %7788 = vmatprep.mubr.bf16.mxu0 %v7663
      %7789 = vmatmul.mubr.bf16.gmra.mrb[0].mxu0 %v7662
      %v7790 = vpop.f32.mrb[0].mxu0
      %v7791 = vadd.f32 %v7470, %v7790
      %v7792 = vpop.f32.mrb[0].mxu0
      %v7793 = vpop.f32.mrb[0].mxu0
      %v7794 = vadd.f32 %v7473, %v7793
      %v7795 = vpop.f32.mrb[0].mxu0
      %7796 = vmatprep.mubr.bf16.mxu0 %v7665
      %7797 = vmatmul.mubr.bf16.gmra.mrb[0].mxu0 %v7664
      %v7798 = vpop.f32.mrb[0].mxu0
      %v7799 = vadd.f32 %v7478, %v7798
      %v7800 = vpop.f32.mrb[0].mxu0
      %v7801 = vpop.f32.mrb[0].mxu0
      %v7802 = vadd.f32 %v7481, %v7801
      %v7803 = vpop.f32.mrb[0].mxu0
      %7804 = vmatprep.mubr.bf16.mxu0 %v7667
      %7805 = vmatmul.mubr.bf16.gmra.mrb[0].mxu0 %v7666
      %v7806 = vpop.f32.mrb[0].mxu0
      %v7807 = vadd.f32 %v7486, %v7806
      %v7808 = vpop.f32.mrb[0].mxu0
      %v7809 = vpop.f32.mrb[0].mxu0
      %v7810 = vadd.f32 %v7489, %v7809
      %v7811 = vpop.f32.mrb[0].mxu0
      %7812 = vmatprep.mubr.bf16.mxu0 %v7669
      %7813 = vmatmul.mubr.bf16.gmra.mrb[0].mxu0 %v7668
      %v7814 = vpop.f32.mrb[0].mxu0
      %v7815 = vadd.f32 %v7494, %v7814
      %v7816 = vpop.f32.mrb[0].mxu0
      %v7817 = vpop.f32.mrb[0].mxu0
      %v7818 = vadd.f32 %v7497, %v7817
      %v7819 = vpop.f32.mrb[0].mxu0
      %7820 = vmatprep.mubr.bf16.mxu0 %v7671
      %7821 = vmatmul.mubr.bf16.gmra.mrb[0].mxu0 %v7670
      %v7822 = vpop.f32.mrb[0].mxu0
      %v7823 = vadd.f32 %v7502, %v7822
      %v7824 = vpop.f32.mrb[0].mxu0
      %v7825 = vpop.f32.mrb[0].mxu0
      %v7826 = vadd.f32 %v7505, %v7825
      %v7827 = vpop.f32.mrb[0].mxu0
      %7828 = vmatprep.mubr.bf16.mxu0 %v7673
      %7829 = vmatmul.mubr.bf16.gmra.mrb[0].mxu0 %v7672
      %v7830 = vpop.f32.mrb[0].mxu0
      %v7831 = vadd.f32 %v7510, %v7830
      %v7832 = vpop.f32.mrb[0].mxu0
      %v7833 = vpop.f32.mrb[0].mxu0
      %v7834 = vadd.f32 %v7513, %v7833
      %v7835 = vpop.f32.mrb[0].mxu0
      %7836 = vmatprep.mubr.bf16.mxu0 %v7675
      %7837 = vmatmul.mubr.bf16.gmra.mrb[0].mxu0 %v7674
      %v7838 = vpop.f32.mrb[0].mxu0
      %v7839 = vadd.f32 %v7518, %v7838
      %v7840 = vpop.f32.mrb[0].mxu0
      %v7841 = vpop.f32.mrb[0].mxu0
      %v7842 = vadd.f32 %v7521, %v7841
      %v7843 = vpop.f32.mrb[0].mxu0
      %7844 = vmatprep.mubr.bf16.mxu0 %v7677
      %7845 = vmatmul.mubr.bf16.gmra.mrb[0].mxu0 %v7676
      %v7846 = vpop.f32.mrb[0].mxu0
      %v7847 = vadd.f32 %v7526, %v7846
      %v7848 = vpop.f32.mrb[0].mxu0
      %v7849 = vpop.f32.mrb[0].mxu0
      %v7850 = vadd.f32 %v7529, %v7849
      %v7851 = vpop.f32.mrb[0].mxu0
      %7852 = vmatprep.mubr.bf16.mxu0 %v7679
      %7853 = vmatmul.mubr.bf16.gmra.mrb[0].mxu0 %v7678
      %v7854 = vpop.f32.mrb[0].mxu0
      %v7855 = vadd.f32 %v7534, %v7854
      %v7856 = vpop.f32.mrb[0].mxu0
      %v7857 = vpop.f32.mrb[0].mxu0
      %v7858 = vadd.f32 %v7537, %v7857
      %v7859 = vpop.f32.mrb[0].mxu0
      %7860 = vmatprep.mubr.bf16.mxu0 %v7681
      %7861 = vmatmul.mubr.bf16.gmra.mrb[0].mxu0 %v7680
      %v7862 = vpop.f32.mrb[0].mxu0
      %v7863 = vadd.f32 %v7542, %v7862
      %v7864 = vpop.f32.mrb[0].mxu0
      %v7865 = vpop.f32.mrb[0].mxu0
      %v7866 = vadd.f32 %v7545, %v7865
      %v7867 = vpop.f32.mrb[0].mxu0
      %7868 = vmatprep.mubr.bf16.mxu0 %v7683
      %7869 = vmatmul.mubr.bf16.gmra.mrb[0].mxu0 %v7682
      %v7870 = vpop.f32.mrb[0].mxu0
      %v7871 = vadd.f32 %v7550, %v7870
      %v7872 = vpop.f32.mrb[0].mxu0
      %v7873 = vpop.f32.mrb[0].mxu0
      %v7874 = vadd.f32 %v7553, %v7873
      %v7875 = vpop.f32.mrb[0].mxu0
      %7876 = vdwg.mxu0
      %s7877 = scalar_lea.vmem %s4, 512
      %v7878 = vld [vmem:[%s7877] sm:$0xff]
      %v7879 = vld [vmem:[%s7877 + $0x8] sm:$0xff]
      %v7880 = vld [vmem:[%s7877 + $0x10] sm:$0xff]
      %v7881 = vld [vmem:[%s7877 + $0x18] sm:$0xff]
      %v7882 = vld [vmem:[%s7877 + $0x20] sm:$0xff]
      %v7883 = vld [vmem:[%s7877 + $0x28] sm:$0xff]
      %v7884 = vld [vmem:[%s7877 + $0x30] sm:$0xff]
      %v7885 = vld [vmem:[%s7877 + $0x38] sm:$0xff]
      %v7886 = vld [vmem:[%s7877 + $0x40] sm:$0xff]
      %v7887 = vld [vmem:[%s7877 + $0x48] sm:$0xff]
      %v7888 = vld [vmem:[%s7877 + $0x50] sm:$0xff]
      %v7889 = vld [vmem:[%s7877 + $0x58] sm:$0xff]
      %v7890 = vld [vmem:[%s7877 + $0x60] sm:$0xff]
      %v7891 = vld [vmem:[%s7877 + $0x68] sm:$0xff]
      %v7892 = vld [vmem:[%s7877 + $0x70] sm:$0xff]
      %v7893 = vld [vmem:[%s7877 + $0x78] sm:$0xff]
      %v7894 = vld [vmem:[%s7877 + $0x80] sm:$0xff]
      %v7895 = vld [vmem:[%s7877 + $0x88] sm:$0xff]
      %v7896 = vld [vmem:[%s7877 + $0x90] sm:$0xff]
      %v7897 = vld [vmem:[%s7877 + $0x98] sm:$0xff]
      %v7898 = vld [vmem:[%s7877 + $0xa0] sm:$0xff]
      %v7899 = vld [vmem:[%s7877 + $0xa8] sm:$0xff]
      %v7900 = vld [vmem:[%s7877 + $0xb0] sm:$0xff]
      %v7901 = vld [vmem:[%s7877 + $0xb8] sm:$0xff]
      %v7902 = vld [vmem:[%s7877 + $0xc0] sm:$0xff]
      %v7903 = vld [vmem:[%s7877 + $0xc8] sm:$0xff]
      %v7904 = vld [vmem:[%s7877 + $0xd0] sm:$0xff]
      %v7905 = vld [vmem:[%s7877 + $0xd8] sm:$0xff]
      %v7906 = vld [vmem:[%s7877 + $0xe0] sm:$0xff]
      %v7907 = vld [vmem:[%s7877 + $0xe8] sm:$0xff]
      %v7908 = vld [vmem:[%s7877 + $0xf0] sm:$0xff]
      %v7909 = vld [vmem:[%s7877 + $0xf8] sm:$0xff]
      %v7942 = vunpack.c.l.b16 %v7878
      %v7943 = vunpack.c.h.b16 %v7878
      %v7944 = vunpack.c.l.b16 %v7879
      %v7945 = vunpack.c.h.b16 %v7879
      %v7946 = vunpack.c.l.b16 %v7880
      %v7947 = vunpack.c.h.b16 %v7880
      %v7948 = vunpack.c.l.b16 %v7881
      %v7949 = vunpack.c.h.b16 %v7881
      %v7950 = vunpack.c.l.b16 %v7882
      %v7951 = vunpack.c.h.b16 %v7882
      %v7952 = vunpack.c.l.b16 %v7883
      %v7953 = vunpack.c.h.b16 %v7883
      %v7954 = vunpack.c.l.b16 %v7884
      %v7955 = vunpack.c.h.b16 %v7884
      %v7956 = vunpack.c.l.b16 %v7885
      %v7957 = vunpack.c.h.b16 %v7885
      %v7958 = vunpack.c.l.b16 %v7886
      %v7959 = vunpack.c.h.b16 %v7886
      %v7960 = vunpack.c.l.b16 %v7887
      %v7961 = vunpack.c.h.b16 %v7887
      %v7962 = vunpack.c.l.b16 %v7888
      %v7963 = vunpack.c.h.b16 %v7888
      %v7964 = vunpack.c.l.b16 %v7889
      %v7965 = vunpack.c.h.b16 %v7889
      %v7966 = vunpack.c.l.b16 %v7890
      %v7967 = vunpack.c.h.b16 %v7890
      %v7968 = vunpack.c.l.b16 %v7891
      %v7969 = vunpack.c.h.b16 %v7891
      %v7970 = vunpack.c.l.b16 %v7892
      %v7971 = vunpack.c.h.b16 %v7892
      %v7972 = vunpack.c.l.b16 %v7893
      %v7973 = vunpack.c.h.b16 %v7893
      %v7974 = vunpack.c.l.b16 %v7894
      %v7975 = vunpack.c.h.b16 %v7894
      %v7976 = vunpack.c.l.b16 %v7895
      %v7977 = vunpack.c.h.b16 %v7895
      %v7978 = vunpack.c.l.b16 %v7896
      %v7979 = vunpack.c.h.b16 %v7896
      %v7980 = vunpack.c.l.b16 %v7897
      %v7981 = vunpack.c.h.b16 %v7897
      %v7982 = vunpack.c.l.b16 %v7898
      %v7983 = vunpack.c.h.b16 %v7898
      %v7984 = vunpack.c.l.b16 %v7899
      %v7985 = vunpack.c.h.b16 %v7899
      %v7986 = vunpack.c.l.b16 %v7900
      %v7987 = vunpack.c.h.b16 %v7900
      %v7988 = vunpack.c.l.b16 %v7901
      %v7989 = vunpack.c.h.b16 %v7901
      %v7990 = vunpack.c.l.b16 %v7902
      %v7991 = vunpack.c.h.b16 %v7902
      %v7992 = vunpack.c.l.b16 %v7903
      %v7993 = vunpack.c.h.b16 %v7903
      %v7994 = vunpack.c.l.b16 %v7904
      %v7995 = vunpack.c.h.b16 %v7904
      %v7996 = vunpack.c.l.b16 %v7905
      %v7997 = vunpack.c.h.b16 %v7905
      %v7998 = vunpack.c.l.b16 %v7906
      %v7999 = vunpack.c.h.b16 %v7906
      %v8000 = vunpack.c.l.b16 %v7907
      %v8001 = vunpack.c.h.b16 %v7907
      %v8002 = vunpack.c.l.b16 %v7908
      %v8003 = vunpack.c.h.b16 %v7908
      %v8004 = vunpack.c.l.b16 %v7909
      %v8005 = vunpack.c.h.b16 %v7909
      %v8006 = vpack.c.b16 %v7944, %v7942
      %v8007 = vpack.c.b16 %v7945, %v7943
      %v8008 = vpack.c.b16 %v7948, %v7946
      %v8009 = vpack.c.b16 %v7949, %v7947
      %v8010 = vpack.c.b16 %v7952, %v7950
      %v8011 = vpack.c.b16 %v7953, %v7951
      %v8012 = vpack.c.b16 %v7956, %v7954
      %v8013 = vpack.c.b16 %v7957, %v7955
      %v8014 = vpack.c.b16 %v7960, %v7958
      %v8015 = vpack.c.b16 %v7961, %v7959
      %v8016 = vpack.c.b16 %v7964, %v7962
      %v8017 = vpack.c.b16 %v7965, %v7963
      %v8018 = vpack.c.b16 %v7968, %v7966
      %v8019 = vpack.c.b16 %v7969, %v7967
      %v8020 = vpack.c.b16 %v7972, %v7970
      %v8021 = vpack.c.b16 %v7973, %v7971
      %v8022 = vpack.c.b16 %v7976, %v7974
      %v8023 = vpack.c.b16 %v7977, %v7975
      %v8024 = vpack.c.b16 %v7980, %v7978
      %v8025 = vpack.c.b16 %v7981, %v7979
      %v8026 = vpack.c.b16 %v7984, %v7982
      %v8027 = vpack.c.b16 %v7985, %v7983
      %v8028 = vpack.c.b16 %v7988, %v7986
      %v8029 = vpack.c.b16 %v7989, %v7987
      %v8030 = vpack.c.b16 %v7992, %v7990
      %v8031 = vpack.c.b16 %v7993, %v7991
      %v8032 = vpack.c.b16 %v7996, %v7994
      %v8033 = vpack.c.b16 %v7997, %v7995
      %v8034 = vpack.c.b16 %v8000, %v7998
      %v8035 = vpack.c.b16 %v8001, %v7999
      %v8036 = vpack.c.b16 %v8004, %v8002
      %v8037 = vpack.c.b16 %v8005, %v8003
      %8070 = vmatprep.subr.bf16.mxu0 0
      %8071 = vmatpush1.bf16.msra.mxu0 %v7108
      %8072 = vmatprep.subr.bf16.mxu0 0
      %8073 = vmatpush1.bf16.msra.mxu0 %v7112
      %8074 = vmatprep.subr.bf16.mxu0 0
      %8075 = vmatpush1.bf16.msra.mxu0 %v7116
      %8076 = vmatprep.subr.bf16.mxu0 0
      %8077 = vmatpush1.bf16.msra.mxu0 %v7120
      %8078 = vmatprep.subr.bf16.mxu0 0
      %8079 = vmatpush1.bf16.msra.mxu0 %v7124
      %8080 = vmatprep.subr.bf16.mxu0 0
      %8081 = vmatpush1.bf16.msra.mxu0 %v7128
      %8082 = vmatprep.subr.bf16.mxu0 0
      %8083 = vmatpush1.bf16.msra.mxu0 %v7132
      %8084 = vmatprep.subr.bf16.mxu0 0
      %8085 = vmatpush1.bf16.msra.mxu0 %v7136
      %8086 = vmatprep.subr.bf16.mxu0 0
      %8087 = vmatpush1.bf16.msra.mxu0 %v7140
      %8088 = vmatprep.subr.bf16.mxu0 0
      %8089 = vmatpush1.bf16.msra.mxu0 %v7144
      %8090 = vmatprep.subr.bf16.mxu0 0
      %8091 = vmatpush1.bf16.msra.mxu0 %v7148
      %8092 = vmatprep.subr.bf16.mxu0 0
      %8093 = vmatpush1.bf16.msra.mxu0 %v7152
      %8094 = vmatprep.subr.bf16.mxu0 0
      %8095 = vmatpush1.bf16.msra.mxu0 %v7156
      %8096 = vmatprep.subr.bf16.mxu0 0
      %8097 = vmatpush1.bf16.msra.mxu0 %v7160
      %8098 = vmatprep.subr.bf16.mxu0 0
      %8099 = vmatpush1.bf16.msra.mxu0 %v7164
      %8100 = vmatprep.subr.bf16.mxu0 0
      %8101 = vmatpush1.bf16.msra.mxu0 %v7168
      %8102 = vmatprep.mubr.bf16.mxu0 %v8007
      %8103 = vmatmul.mubr.bf16.gmra.mrb[0].mxu0 %v8006
      %v8104 = vpop.f32.mrb[0].mxu0
      %v8105 = vadd.f32 0.0, %v8104
      %v8106 = vpop.f32.mrb[0].mxu0
      %v8107 = vpop.f32.mrb[0].mxu0
      %v8108 = vadd.f32 0.0, %v8107
      %v8109 = vpop.f32.mrb[0].mxu0
      %8110 = vmatprep.mubr.bf16.mxu0 %v8009
      %8111 = vmatmul.mubr.bf16.gmra.mrb[0].mxu0 %v8008
      %v8112 = vpop.f32.mrb[0].mxu0
      %v8113 = vadd.f32 0.0, %v8112
      %v8114 = vpop.f32.mrb[0].mxu0
      %v8115 = vpop.f32.mrb[0].mxu0
      %v8116 = vadd.f32 0.0, %v8115
      %v8117 = vpop.f32.mrb[0].mxu0
      %8118 = vmatprep.mubr.bf16.mxu0 %v8011
      %8119 = vmatmul.mubr.bf16.gmra.mrb[0].mxu0 %v8010
      %v8120 = vpop.f32.mrb[0].mxu0
      %v8121 = vadd.f32 0.0, %v8120
      %v8122 = vpop.f32.mrb[0].mxu0
      %v8123 = vpop.f32.mrb[0].mxu0
      %v8124 = vadd.f32 0.0, %v8123
      %v8125 = vpop.f32.mrb[0].mxu0
      %8126 = vmatprep.mubr.bf16.mxu0 %v8013
      %8127 = vmatmul.mubr.bf16.gmra.mrb[0].mxu0 %v8012
      %v8128 = vpop.f32.mrb[0].mxu0
      %v8129 = vadd.f32 0.0, %v8128
      %v8130 = vpop.f32.mrb[0].mxu0
      %v8131 = vpop.f32.mrb[0].mxu0
      %v8132 = vadd.f32 0.0, %v8131
      %v8133 = vpop.f32.mrb[0].mxu0
      %8134 = vmatprep.mubr.bf16.mxu0 %v8015
      %8135 = vmatmul.mubr.bf16.gmra.mrb[0].mxu0 %v8014
      %v8136 = vpop.f32.mrb[0].mxu0
      %v8137 = vadd.f32 0.0, %v8136
      %v8138 = vpop.f32.mrb[0].mxu0
      %v8139 = vpop.f32.mrb[0].mxu0
      %v8140 = vadd.f32 0.0, %v8139
      %v8141 = vpop.f32.mrb[0].mxu0
      %8142 = vmatprep.mubr.bf16.mxu0 %v8017
      %8143 = vmatmul.mubr.bf16.gmra.mrb[0].mxu0 %v8016
      %v8144 = vpop.f32.mrb[0].mxu0
      %v8145 = vadd.f32 0.0, %v8144
      %v8146 = vpop.f32.mrb[0].mxu0
      %v8147 = vpop.f32.mrb[0].mxu0
      %v8148 = vadd.f32 0.0, %v8147
      %v8149 = vpop.f32.mrb[0].mxu0
      %8150 = vmatprep.mubr.bf16.mxu0 %v8019
      %8151 = vmatmul.mubr.bf16.gmra.mrb[0].mxu0 %v8018
      %v8152 = vpop.f32.mrb[0].mxu0
      %v8153 = vadd.f32 0.0, %v8152
      %v8154 = vpop.f32.mrb[0].mxu0
      %v8155 = vpop.f32.mrb[0].mxu0
      %v8156 = vadd.f32 0.0, %v8155
      %v8157 = vpop.f32.mrb[0].mxu0
      %8158 = vmatprep.mubr.bf16.mxu0 %v8021
      %8159 = vmatmul.mubr.bf16.gmra.mrb[0].mxu0 %v8020
      %v8160 = vpop.f32.mrb[0].mxu0
      %v8161 = vadd.f32 0.0, %v8160
      %v8162 = vpop.f32.mrb[0].mxu0
      %v8163 = vpop.f32.mrb[0].mxu0
      %v8164 = vadd.f32 0.0, %v8163
      %v8165 = vpop.f32.mrb[0].mxu0
      %8166 = vmatprep.mubr.bf16.mxu0 %v8023
      %8167 = vmatmul.mubr.bf16.gmra.mrb[0].mxu0 %v8022
      %v8168 = vpop.f32.mrb[0].mxu0
      %v8169 = vadd.f32 0.0, %v8168
      %v8170 = vpop.f32.mrb[0].mxu0
      %v8171 = vpop.f32.mrb[0].mxu0
      %v8172 = vadd.f32 0.0, %v8171
      %v8173 = vpop.f32.mrb[0].mxu0
      %8174 = vmatprep.mubr.bf16.mxu0 %v8025
      %8175 = vmatmul.mubr.bf16.gmra.mrb[0].mxu0 %v8024
      %v8176 = vpop.f32.mrb[0].mxu0
      %v8177 = vadd.f32 0.0, %v8176
      %v8178 = vpop.f32.mrb[0].mxu0
      %v8179 = vpop.f32.mrb[0].mxu0
      %v8180 = vadd.f32 0.0, %v8179
      %v8181 = vpop.f32.mrb[0].mxu0
      %8182 = vmatprep.mubr.bf16.mxu0 %v8027
      %8183 = vmatmul.mubr.bf16.gmra.mrb[0].mxu0 %v8026
      %v8184 = vpop.f32.mrb[0].mxu0
      %v8185 = vadd.f32 0.0, %v8184
      %v8186 = vpop.f32.mrb[0].mxu0
      %v8187 = vpop.f32.mrb[0].mxu0
      %v8188 = vadd.f32 0.0, %v8187
      %v8189 = vpop.f32.mrb[0].mxu0
      %8190 = vmatprep.mubr.bf16.mxu0 %v8029
      %8191 = vmatmul.mubr.bf16.gmra.mrb[0].mxu0 %v8028
      %v8192 = vpop.f32.mrb[0].mxu0
      %v8193 = vadd.f32 0.0, %v8192
      %v8194 = vpop.f32.mrb[0].mxu0
      %v8195 = vpop.f32.mrb[0].mxu0
      %v8196 = vadd.f32 0.0, %v8195
      %v8197 = vpop.f32.mrb[0].mxu0
      %8198 = vmatprep.mubr.bf16.mxu0 %v8031
      %8199 = vmatmul.mubr.bf16.gmra.mrb[0].mxu0 %v8030
      %v8200 = vpop.f32.mrb[0].mxu0
      %v8201 = vadd.f32 0.0, %v8200
      %v8202 = vpop.f32.mrb[0].mxu0
      %v8203 = vpop.f32.mrb[0].mxu0
      %v8204 = vadd.f32 0.0, %v8203
      %v8205 = vpop.f32.mrb[0].mxu0
      %8206 = vmatprep.mubr.bf16.mxu0 %v8033
      %8207 = vmatmul.mubr.bf16.gmra.mrb[0].mxu0 %v8032
      %v8208 = vpop.f32.mrb[0].mxu0
      %v8209 = vadd.f32 0.0, %v8208
      %v8210 = vpop.f32.mrb[0].mxu0
      %v8211 = vpop.f32.mrb[0].mxu0
      %v8212 = vadd.f32 0.0, %v8211
      %v8213 = vpop.f32.mrb[0].mxu0
      %8214 = vmatprep.mubr.bf16.mxu0 %v8035
      %8215 = vmatmul.mubr.bf16.gmra.mrb[0].mxu0 %v8034
      %v8216 = vpop.f32.mrb[0].mxu0
      %v8217 = vadd.f32 0.0, %v8216
      %v8218 = vpop.f32.mrb[0].mxu0
      %v8219 = vpop.f32.mrb[0].mxu0
      %v8220 = vadd.f32 0.0, %v8219
      %v8221 = vpop.f32.mrb[0].mxu0
      %8222 = vmatprep.mubr.bf16.mxu0 %v8037
      %8223 = vmatmul.mubr.bf16.gmra.mrb[0].mxu0 %v8036
      %v8224 = vpop.f32.mrb[0].mxu0
      %v8225 = vadd.f32 0.0, %v8224
      %v8226 = vpop.f32.mrb[0].mxu0
      %v8227 = vpop.f32.mrb[0].mxu0
      %v8228 = vadd.f32 0.0, %v8227
      %v8229 = vpop.f32.mrb[0].mxu0
      %8230 = vdwg.mxu0
      %v8231 = vadd.f32 %v7751, %v8105
      %v8232 = vadd.f32 %v7754, %v8108
      %v8233 = vadd.f32 %v7759, %v8113
      %v8234 = vadd.f32 %v7762, %v8116
      %v8235 = vadd.f32 %v7767, %v8121
      %v8236 = vadd.f32 %v7770, %v8124
      %v8237 = vadd.f32 %v7775, %v8129
      %v8238 = vadd.f32 %v7778, %v8132
      %v8239 = vadd.f32 %v7783, %v8137
      %v8240 = vadd.f32 %v7786, %v8140
      %v8241 = vadd.f32 %v7791, %v8145
      %v8242 = vadd.f32 %v7794, %v8148
      %v8243 = vadd.f32 %v7799, %v8153
      %v8244 = vadd.f32 %v7802, %v8156
      %v8245 = vadd.f32 %v7807, %v8161
      %v8246 = vadd.f32 %v7810, %v8164
      %v8247 = vadd.f32 %v7815, %v8169
      %v8248 = vadd.f32 %v7818, %v8172
      %v8249 = vadd.f32 %v7823, %v8177
      %v8250 = vadd.f32 %v7826, %v8180
      %v8251 = vadd.f32 %v7831, %v8185
      %v8252 = vadd.f32 %v7834, %v8188
      %v8253 = vadd.f32 %v7839, %v8193
      %v8254 = vadd.f32 %v7842, %v8196
      %v8255 = vadd.f32 %v7847, %v8201
      %v8256 = vadd.f32 %v7850, %v8204
      %v8257 = vadd.f32 %v7855, %v8209
      %v8258 = vadd.f32 %v7858, %v8212
      %v8259 = vadd.f32 %v7863, %v8217
      %v8260 = vadd.f32 %v7866, %v8220
      %v8261 = vadd.f32 %v7871, %v8225
      %v8262 = vadd.f32 %v7874, %v8228
      %s8263 = scalar_lea.vmem %s4, 768
      %v8264 = vld [vmem:[%s8263] sm:$0xff]
      %v8265 = vld [vmem:[%s8263 + $0x8] sm:$0xff]
      %v8266 = vld [vmem:[%s8263 + $0x10] sm:$0xff]
      %v8267 = vld [vmem:[%s8263 + $0x18] sm:$0xff]
      %v8268 = vld [vmem:[%s8263 + $0x20] sm:$0xff]
      %v8269 = vld [vmem:[%s8263 + $0x28] sm:$0xff]
      %v8270 = vld [vmem:[%s8263 + $0x30] sm:$0xff]
      %v8271 = vld [vmem:[%s8263 + $0x38] sm:$0xff]
      %v8272 = vld [vmem:[%s8263 + $0x40] sm:$0xff]
      %v8273 = vld [vmem:[%s8263 + $0x48] sm:$0xff]
      %v8274 = vld [vmem:[%s8263 + $0x50] sm:$0xff]
      %v8275 = vld [vmem:[%s8263 + $0x58] sm:$0xff]
      %v8276 = vld [vmem:[%s8263 + $0x60] sm:$0xff]
      %v8277 = vld [vmem:[%s8263 + $0x68] sm:$0xff]
      %v8278 = vld [vmem:[%s8263 + $0x70] sm:$0xff]
      %v8279 = vld [vmem:[%s8263 + $0x78] sm:$0xff]
      %v8280 = vld [vmem:[%s8263 + $0x80] sm:$0xff]
      %v8281 = vld [vmem:[%s8263 + $0x88] sm:$0xff]
      %v8282 = vld [vmem:[%s8263 + $0x90] sm:$0xff]
      %v8283 = vld [vmem:[%s8263 + $0x98] sm:$0xff]
      %v8284 = vld [vmem:[%s8263 + $0xa0] sm:$0xff]
      %v8285 = vld [vmem:[%s8263 + $0xa8] sm:$0xff]
      %v8286 = vld [vmem:[%s8263 + $0xb0] sm:$0xff]
      %v8287 = vld [vmem:[%s8263 + $0xb8] sm:$0xff]
      %v8288 = vld [vmem:[%s8263 + $0xc0] sm:$0xff]
      %v8289 = vld [vmem:[%s8263 + $0xc8] sm:$0xff]
      %v8290 = vld [vmem:[%s8263 + $0xd0] sm:$0xff]
      %v8291 = vld [vmem:[%s8263 + $0xd8] sm:$0xff]
      %v8292 = vld [vmem:[%s8263 + $0xe0] sm:$0xff]
      %v8293 = vld [vmem:[%s8263 + $0xe8] sm:$0xff]
      %v8294 = vld [vmem:[%s8263 + $0xf0] sm:$0xff]
      %v8295 = vld [vmem:[%s8263 + $0xf8] sm:$0xff]
      %v8328 = vunpack.c.l.b16 %v8264
      %v8329 = vunpack.c.h.b16 %v8264
      %v8330 = vunpack.c.l.b16 %v8265
      %v8331 = vunpack.c.h.b16 %v8265
      %v8332 = vunpack.c.l.b16 %v8266
      %v8333 = vunpack.c.h.b16 %v8266
      %v8334 = vunpack.c.l.b16 %v8267
      %v8335 = vunpack.c.h.b16 %v8267
      %v8336 = vunpack.c.l.b16 %v8268
      %v8337 = vunpack.c.h.b16 %v8268
      %v8338 = vunpack.c.l.b16 %v8269
      %v8339 = vunpack.c.h.b16 %v8269
      %v8340 = vunpack.c.l.b16 %v8270
      %v8341 = vunpack.c.h.b16 %v8270
      %v8342 = vunpack.c.l.b16 %v8271
      %v8343 = vunpack.c.h.b16 %v8271
      %v8344 = vunpack.c.l.b16 %v8272
      %v8345 = vunpack.c.h.b16 %v8272
      %v8346 = vunpack.c.l.b16 %v8273
      %v8347 = vunpack.c.h.b16 %v8273
      %v8348 = vunpack.c.l.b16 %v8274
      %v8349 = vunpack.c.h.b16 %v8274
      %v8350 = vunpack.c.l.b16 %v8275
      %v8351 = vunpack.c.h.b16 %v8275
      %v8352 = vunpack.c.l.b16 %v8276
      %v8353 = vunpack.c.h.b16 %v8276
      %v8354 = vunpack.c.l.b16 %v8277
      %v8355 = vunpack.c.h.b16 %v8277
      %v8356 = vunpack.c.l.b16 %v8278
      %v8357 = vunpack.c.h.b16 %v8278
      %v8358 = vunpack.c.l.b16 %v8279
      %v8359 = vunpack.c.h.b16 %v8279
      %v8360 = vunpack.c.l.b16 %v8280
      %v8361 = vunpack.c.h.b16 %v8280
      %v8362 = vunpack.c.l.b16 %v8281
      %v8363 = vunpack.c.h.b16 %v8281
      %v8364 = vunpack.c.l.b16 %v8282
      %v8365 = vunpack.c.h.b16 %v8282
      %v8366 = vunpack.c.l.b16 %v8283
      %v8367 = vunpack.c.h.b16 %v8283
      %v8368 = vunpack.c.l.b16 %v8284
      %v8369 = vunpack.c.h.b16 %v8284
      %v8370 = vunpack.c.l.b16 %v8285
      %v8371 = vunpack.c.h.b16 %v8285
      %v8372 = vunpack.c.l.b16 %v8286
      %v8373 = vunpack.c.h.b16 %v8286
      %v8374 = vunpack.c.l.b16 %v8287
      %v8375 = vunpack.c.h.b16 %v8287
      %v8376 = vunpack.c.l.b16 %v8288
      %v8377 = vunpack.c.h.b16 %v8288
      %v8378 = vunpack.c.l.b16 %v8289
      %v8379 = vunpack.c.h.b16 %v8289
      %v8380 = vunpack.c.l.b16 %v8290
      %v8381 = vunpack.c.h.b16 %v8290
      %v8382 = vunpack.c.l.b16 %v8291
      %v8383 = vunpack.c.h.b16 %v8291
      %v8384 = vunpack.c.l.b16 %v8292
      %v8385 = vunpack.c.h.b16 %v8292
      %v8386 = vunpack.c.l.b16 %v8293
      %v8387 = vunpack.c.h.b16 %v8293
      %v8388 = vunpack.c.l.b16 %v8294
      %v8389 = vunpack.c.h.b16 %v8294
      %v8390 = vunpack.c.l.b16 %v8295
      %v8391 = vunpack.c.h.b16 %v8295
      %v8392 = vpack.c.b16 %v8330, %v8328
      %v8393 = vpack.c.b16 %v8331, %v8329
      %v8394 = vpack.c.b16 %v8334, %v8332
      %v8395 = vpack.c.b16 %v8335, %v8333
      %v8396 = vpack.c.b16 %v8338, %v8336
      %v8397 = vpack.c.b16 %v8339, %v8337
      %v8398 = vpack.c.b16 %v8342, %v8340
      %v8399 = vpack.c.b16 %v8343, %v8341
      %v8400 = vpack.c.b16 %v8346, %v8344
      %v8401 = vpack.c.b16 %v8347, %v8345
      %v8402 = vpack.c.b16 %v8350, %v8348
      %v8403 = vpack.c.b16 %v8351, %v8349
      %v8404 = vpack.c.b16 %v8354, %v8352
      %v8405 = vpack.c.b16 %v8355, %v8353
      %v8406 = vpack.c.b16 %v8358, %v8356
      %v8407 = vpack.c.b16 %v8359, %v8357
      %v8408 = vpack.c.b16 %v8362, %v8360
      %v8409 = vpack.c.b16 %v8363, %v8361
      %v8410 = vpack.c.b16 %v8366, %v8364
      %v8411 = vpack.c.b16 %v8367, %v8365
      %v8412 = vpack.c.b16 %v8370, %v8368
      %v8413 = vpack.c.b16 %v8371, %v8369
      %v8414 = vpack.c.b16 %v8374, %v8372
      %v8415 = vpack.c.b16 %v8375, %v8373
      %v8416 = vpack.c.b16 %v8378, %v8376
      %v8417 = vpack.c.b16 %v8379, %v8377
      %v8418 = vpack.c.b16 %v8382, %v8380
      %v8419 = vpack.c.b16 %v8383, %v8381
      %v8420 = vpack.c.b16 %v8386, %v8384
      %v8421 = vpack.c.b16 %v8387, %v8385
      %v8422 = vpack.c.b16 %v8390, %v8388
      %v8423 = vpack.c.b16 %v8391, %v8389
      %8456 = vmatprep.subr.bf16.mxu0 0
      %8457 = vmatpush1.bf16.msra.mxu0 %v7109
      %8458 = vmatprep.subr.bf16.mxu0 0
      %8459 = vmatpush1.bf16.msra.mxu0 %v7113
      %8460 = vmatprep.subr.bf16.mxu0 0
      %8461 = vmatpush1.bf16.msra.mxu0 %v7117
      %8462 = vmatprep.subr.bf16.mxu0 0
      %8463 = vmatpush1.bf16.msra.mxu0 %v7121
      %8464 = vmatprep.subr.bf16.mxu0 0
      %8465 = vmatpush1.bf16.msra.mxu0 %v7125
      %8466 = vmatprep.subr.bf16.mxu0 0
      %8467 = vmatpush1.bf16.msra.mxu0 %v7129
      %8468 = vmatprep.subr.bf16.mxu0 0
      %8469 = vmatpush1.bf16.msra.mxu0 %v7133
      %8470 = vmatprep.subr.bf16.mxu0 0
      %8471 = vmatpush1.bf16.msra.mxu0 %v7137
      %8472 = vmatprep.subr.bf16.mxu0 0
      %8473 = vmatpush1.bf16.msra.mxu0 %v7141
      %8474 = vmatprep.subr.bf16.mxu0 0
      %8475 = vmatpush1.bf16.msra.mxu0 %v7145
      %8476 = vmatprep.subr.bf16.mxu0 0
      %8477 = vmatpush1.bf16.msra.mxu0 %v7149
      %8478 = vmatprep.subr.bf16.mxu0 0
      %8479 = vmatpush1.bf16.msra.mxu0 %v7153
      %8480 = vmatprep.subr.bf16.mxu0 0
      %8481 = vmatpush1.bf16.msra.mxu0 %v7157
      %8482 = vmatprep.subr.bf16.mxu0 0
      %8483 = vmatpush1.bf16.msra.mxu0 %v7161
      %8484 = vmatprep.subr.bf16.mxu0 0
      %8485 = vmatpush1.bf16.msra.mxu0 %v7165
      %8486 = vmatprep.subr.bf16.mxu0 0
      %8487 = vmatpush1.bf16.msra.mxu0 %v7169
      %8488 = vmatprep.mubr.bf16.mxu0 %v8393
      %8489 = vmatmul.mubr.bf16.gmra.mrb[0].mxu0 %v8392
      %v8490 = vpop.f32.mrb[0].mxu0
      %v8491 = vadd.f32 0.0, %v8490
      %v8492 = vpop.f32.mrb[0].mxu0
      %v8493 = vpop.f32.mrb[0].mxu0
      %v8494 = vadd.f32 0.0, %v8493
      %v8495 = vpop.f32.mrb[0].mxu0
      %8496 = vmatprep.mubr.bf16.mxu0 %v8395
      %8497 = vmatmul.mubr.bf16.gmra.mrb[0].mxu0 %v8394
      %v8498 = vpop.f32.mrb[0].mxu0
      %v8499 = vadd.f32 0.0, %v8498
      %v8500 = vpop.f32.mrb[0].mxu0
      %v8501 = vpop.f32.mrb[0].mxu0
      %v8502 = vadd.f32 0.0, %v8501
      %v8503 = vpop.f32.mrb[0].mxu0
      %8504 = vmatprep.mubr.bf16.mxu0 %v8397
      %8505 = vmatmul.mubr.bf16.gmra.mrb[0].mxu0 %v8396
      %v8506 = vpop.f32.mrb[0].mxu0
      %v8507 = vadd.f32 0.0, %v8506
      %v8508 = vpop.f32.mrb[0].mxu0
      %v8509 = vpop.f32.mrb[0].mxu0
      %v8510 = vadd.f32 0.0, %v8509
      %v8511 = vpop.f32.mrb[0].mxu0
      %8512 = vmatprep.mubr.bf16.mxu0 %v8399
      %8513 = vmatmul.mubr.bf16.gmra.mrb[0].mxu0 %v8398
      %v8514 = vpop.f32.mrb[0].mxu0
      %v8515 = vadd.f32 0.0, %v8514
      %v8516 = vpop.f32.mrb[0].mxu0
      %v8517 = vpop.f32.mrb[0].mxu0
      %v8518 = vadd.f32 0.0, %v8517
      %v8519 = vpop.f32.mrb[0].mxu0
      %8520 = vmatprep.mubr.bf16.mxu0 %v8401
      %8521 = vmatmul.mubr.bf16.gmra.mrb[0].mxu0 %v8400
      %v8522 = vpop.f32.mrb[0].mxu0
      %v8523 = vadd.f32 0.0, %v8522
      %v8524 = vpop.f32.mrb[0].mxu0
      %v8525 = vpop.f32.mrb[0].mxu0
      %v8526 = vadd.f32 0.0, %v8525
      %v8527 = vpop.f32.mrb[0].mxu0
      %8528 = vmatprep.mubr.bf16.mxu0 %v8403
      %8529 = vmatmul.mubr.bf16.gmra.mrb[0].mxu0 %v8402
      %v8530 = vpop.f32.mrb[0].mxu0
      %v8531 = vadd.f32 0.0, %v8530
      %v8532 = vpop.f32.mrb[0].mxu0
      %v8533 = vpop.f32.mrb[0].mxu0
      %v8534 = vadd.f32 0.0, %v8533
      %v8535 = vpop.f32.mrb[0].mxu0
      %8536 = vmatprep.mubr.bf16.mxu0 %v8405
      %8537 = vmatmul.mubr.bf16.gmra.mrb[0].mxu0 %v8404
      %v8538 = vpop.f32.mrb[0].mxu0
      %v8539 = vadd.f32 0.0, %v8538
      %v8540 = vpop.f32.mrb[0].mxu0
      %v8541 = vpop.f32.mrb[0].mxu0
      %v8542 = vadd.f32 0.0, %v8541
      %v8543 = vpop.f32.mrb[0].mxu0
      %8544 = vmatprep.mubr.bf16.mxu0 %v8407
      %8545 = vmatmul.mubr.bf16.gmra.mrb[0].mxu0 %v8406
      %v8546 = vpop.f32.mrb[0].mxu0
      %v8547 = vadd.f32 0.0, %v8546
      %v8548 = vpop.f32.mrb[0].mxu0
      %v8549 = vpop.f32.mrb[0].mxu0
      %v8550 = vadd.f32 0.0, %v8549
      %v8551 = vpop.f32.mrb[0].mxu0
      %8552 = vmatprep.mubr.bf16.mxu0 %v8409
      %8553 = vmatmul.mubr.bf16.gmra.mrb[0].mxu0 %v8408
      %v8554 = vpop.f32.mrb[0].mxu0
      %v8555 = vadd.f32 0.0, %v8554
      %v8556 = vpop.f32.mrb[0].mxu0
      %v8557 = vpop.f32.mrb[0].mxu0
      %v8558 = vadd.f32 0.0, %v8557
      %v8559 = vpop.f32.mrb[0].mxu0
      %8560 = vmatprep.mubr.bf16.mxu0 %v8411
      %8561 = vmatmul.mubr.bf16.gmra.mrb[0].mxu0 %v8410
      %v8562 = vpop.f32.mrb[0].mxu0
      %v8563 = vadd.f32 0.0, %v8562
      %v8564 = vpop.f32.mrb[0].mxu0
      %v8565 = vpop.f32.mrb[0].mxu0
      %v8566 = vadd.f32 0.0, %v8565
      %v8567 = vpop.f32.mrb[0].mxu0
      %8568 = vmatprep.mubr.bf16.mxu0 %v8413
      %8569 = vmatmul.mubr.bf16.gmra.mrb[0].mxu0 %v8412
      %v8570 = vpop.f32.mrb[0].mxu0
      %v8571 = vadd.f32 0.0, %v8570
      %v8572 = vpop.f32.mrb[0].mxu0
      %v8573 = vpop.f32.mrb[0].mxu0
      %v8574 = vadd.f32 0.0, %v8573
      %v8575 = vpop.f32.mrb[0].mxu0
      %8576 = vmatprep.mubr.bf16.mxu0 %v8415
      %8577 = vmatmul.mubr.bf16.gmra.mrb[0].mxu0 %v8414
      %v8578 = vpop.f32.mrb[0].mxu0
      %v8579 = vadd.f32 0.0, %v8578
      %v8580 = vpop.f32.mrb[0].mxu0
      %v8581 = vpop.f32.mrb[0].mxu0
      %v8582 = vadd.f32 0.0, %v8581
      %v8583 = vpop.f32.mrb[0].mxu0
      %8584 = vmatprep.mubr.bf16.mxu0 %v8417
      %8585 = vmatmul.mubr.bf16.gmra.mrb[0].mxu0 %v8416
      %v8586 = vpop.f32.mrb[0].mxu0
      %v8587 = vadd.f32 0.0, %v8586
      %v8588 = vpop.f32.mrb[0].mxu0
      %v8589 = vpop.f32.mrb[0].mxu0
      %v8590 = vadd.f32 0.0, %v8589
      %v8591 = vpop.f32.mrb[0].mxu0
      %8592 = vmatprep.mubr.bf16.mxu0 %v8419
      %8593 = vmatmul.mubr.bf16.gmra.mrb[0].mxu0 %v8418
      %v8594 = vpop.f32.mrb[0].mxu0
      %v8595 = vadd.f32 0.0, %v8594
      %v8596 = vpop.f32.mrb[0].mxu0
      %v8597 = vpop.f32.mrb[0].mxu0
      %v8598 = vadd.f32 0.0, %v8597
      %v8599 = vpop.f32.mrb[0].mxu0
      %8600 = vmatprep.mubr.bf16.mxu0 %v8421
      %8601 = vmatmul.mubr.bf16.gmra.mrb[0].mxu0 %v8420
      %v8602 = vpop.f32.mrb[0].mxu0
      %v8603 = vadd.f32 0.0, %v8602
      %v8604 = vpop.f32.mrb[0].mxu0
      %v8605 = vpop.f32.mrb[0].mxu0
      %v8606 = vadd.f32 0.0, %v8605
      %v8607 = vpop.f32.mrb[0].mxu0
      %8608 = vmatprep.mubr.bf16.mxu0 %v8423
      %8609 = vmatmul.mubr.bf16.gmra.mrb[0].mxu0 %v8422
      %v8610 = vpop.f32.mrb[0].mxu0
      %v8611 = vadd.f32 0.0, %v8610
      %v8612 = vpop.f32.mrb[0].mxu0
      %v8613 = vpop.f32.mrb[0].mxu0
      %v8614 = vadd.f32 0.0, %v8613
      %v8615 = vpop.f32.mrb[0].mxu0
      %8616 = vdwg.mxu0
      %v8617 = vadd.f32 %v8231, %v8491
      %v8618 = vadd.f32 %v8232, %v8494
      %v8619 = vadd.f32 %v8233, %v8499
      %v8620 = vadd.f32 %v8234, %v8502
      %v8621 = vadd.f32 %v8235, %v8507
      %v8622 = vadd.f32 %v8236, %v8510
      %v8623 = vadd.f32 %v8237, %v8515
      %v8624 = vadd.f32 %v8238, %v8518
      %v8625 = vadd.f32 %v8239, %v8523
      %v8626 = vadd.f32 %v8240, %v8526
      %v8627 = vadd.f32 %v8241, %v8531
      %v8628 = vadd.f32 %v8242, %v8534
      %v8629 = vadd.f32 %v8243, %v8539
      %v8630 = vadd.f32 %v8244, %v8542
      %v8631 = vadd.f32 %v8245, %v8547
      %v8632 = vadd.f32 %v8246, %v8550
      %v8633 = vadd.f32 %v8247, %v8555
      %v8634 = vadd.f32 %v8248, %v8558
      %v8635 = vadd.f32 %v8249, %v8563
      %v8636 = vadd.f32 %v8250, %v8566
      %v8637 = vadd.f32 %v8251, %v8571
      %v8638 = vadd.f32 %v8252, %v8574
      %v8639 = vadd.f32 %v8253, %v8579
      %v8640 = vadd.f32 %v8254, %v8582
      %v8641 = vadd.f32 %v8255, %v8587
      %v8642 = vadd.f32 %v8256, %v8590
      %v8643 = vadd.f32 %v8257, %v8595
      %v8644 = vadd.f32 %v8258, %v8598
      %v8645 = vadd.f32 %v8259, %v8603
      %v8646 = vadd.f32 %v8260, %v8606
      %v8647 = vadd.f32 %v8261, %v8611
      %v8648 = vadd.f32 %v8262, %v8614
      %8649 = vset.pattern.permute.xlu0 3
      %8650 = vperm.xlu0 %8649, %v491
      %v8651 = vpop.permute.xlu0 %8650
      %8653 = vset.pattern.permute.xlu0 3
      %8654 = vperm.xlu0 %8653, %v492
      %v8655 = vpop.permute.xlu0 %8654
      %8657 = vset.pattern.permute.xlu0 3
      %8658 = vperm.xlu0 %8657, %v493
      %v8659 = vpop.permute.xlu0 %8658
      %8661 = vset.pattern.permute.xlu0 3
      %8662 = vperm.xlu0 %8661, %v494
      %v8663 = vpop.permute.xlu0 %8662
      %8665 = vset.pattern.permute.xlu0 3
      %8666 = vperm.xlu0 %8665, %v495
      %v8667 = vpop.permute.xlu0 %8666
      %8669 = vset.pattern.permute.xlu0 3
      %8670 = vperm.xlu0 %8669, %v496
      %v8671 = vpop.permute.xlu0 %8670
      %8673 = vset.pattern.permute.xlu0 3
      %8674 = vperm.xlu0 %8673, %v497
      %v8675 = vpop.permute.xlu0 %8674
      %8677 = vset.pattern.permute.xlu0 3
      %8678 = vperm.xlu0 %8677, %v498
      %v8679 = vpop.permute.xlu0 %8678
      %8681 = vset.pattern.permute.xlu0 3
      %8682 = vperm.xlu0 %8681, %v499
      %v8683 = vpop.permute.xlu0 %8682
      %8685 = vset.pattern.permute.xlu0 3
      %8686 = vperm.xlu0 %8685, %v500
      %v8687 = vpop.permute.xlu0 %8686
      %8689 = vset.pattern.permute.xlu0 3
      %8690 = vperm.xlu0 %8689, %v501
      %v8691 = vpop.permute.xlu0 %8690
      %8693 = vset.pattern.permute.xlu0 3
      %8694 = vperm.xlu0 %8693, %v502
      %v8695 = vpop.permute.xlu0 %8694
      %8697 = vset.pattern.permute.xlu0 3
      %8698 = vperm.xlu0 %8697, %v503
      %v8699 = vpop.permute.xlu0 %8698
      %8701 = vset.pattern.permute.xlu0 3
      %8702 = vperm.xlu0 %8701, %v504
      %v8703 = vpop.permute.xlu0 %8702
      %8705 = vset.pattern.permute.xlu0 3
      %8706 = vperm.xlu0 %8705, %v505
      %v8707 = vpop.permute.xlu0 %8706
      %8709 = vset.pattern.permute.xlu0 3
      %8710 = vperm.xlu0 %8709, %v506
      %v8711 = vpop.permute.xlu0 %8710
      %8713 = vset.pattern.permute.xlu0 3
      %8714 = vperm.xlu0 %8713, %v507
      %v8715 = vpop.permute.xlu0 %8714
      %8717 = vset.pattern.permute.xlu0 3
      %8718 = vperm.xlu0 %8717, %v508
      %v8719 = vpop.permute.xlu0 %8718
      %8721 = vset.pattern.permute.xlu0 3
      %8722 = vperm.xlu0 %8721, %v509
      %v8723 = vpop.permute.xlu0 %8722
      %8725 = vset.pattern.permute.xlu0 3
      %8726 = vperm.xlu0 %8725, %v510
      %v8727 = vpop.permute.xlu0 %8726
      %8729 = vset.pattern.permute.xlu0 3
      %8730 = vperm.xlu0 %8729, %v511
      %v8731 = vpop.permute.xlu0 %8730
      %8733 = vset.pattern.permute.xlu0 3
      %8734 = vperm.xlu0 %8733, %v512
      %v8735 = vpop.permute.xlu0 %8734
      %8737 = vset.pattern.permute.xlu0 3
      %8738 = vperm.xlu0 %8737, %v513
      %v8739 = vpop.permute.xlu0 %8738
      %8741 = vset.pattern.permute.xlu0 3
      %8742 = vperm.xlu0 %8741, %v514
      %v8743 = vpop.permute.xlu0 %8742
      %8745 = vset.pattern.permute.xlu0 3
      %8746 = vperm.xlu0 %8745, %v515
      %v8747 = vpop.permute.xlu0 %8746
      %8749 = vset.pattern.permute.xlu0 3
      %8750 = vperm.xlu0 %8749, %v516
      %v8751 = vpop.permute.xlu0 %8750
      %8753 = vset.pattern.permute.xlu0 3
      %8754 = vperm.xlu0 %8753, %v517
      %v8755 = vpop.permute.xlu0 %8754
      %8757 = vset.pattern.permute.xlu0 3
      %8758 = vperm.xlu0 %8757, %v518
      %v8759 = vpop.permute.xlu0 %8758
      %8761 = vset.pattern.permute.xlu0 3
      %8762 = vperm.xlu0 %8761, %v519
      %v8763 = vpop.permute.xlu0 %8762
      %8765 = vset.pattern.permute.xlu0 3
      %8766 = vperm.xlu0 %8765, %v520
      %v8767 = vpop.permute.xlu0 %8766
      %8769 = vset.pattern.permute.xlu0 3
      %8770 = vperm.xlu0 %8769, %v521
      %v8771 = vpop.permute.xlu0 %8770
      %8773 = vset.pattern.permute.xlu0 3
      %8774 = vperm.xlu0 %8773, %v522
      %v8775 = vpop.permute.xlu0 %8774
      %v8777 = vadd.f32 %v8617, %v8651
      %v8778 = vadd.f32 %v8618, %v8655
      %v8779 = vadd.f32 %v8619, %v8659
      %v8780 = vadd.f32 %v8620, %v8663
      %v8781 = vadd.f32 %v8621, %v8667
      %v8782 = vadd.f32 %v8622, %v8671
      %v8783 = vadd.f32 %v8623, %v8675
      %v8784 = vadd.f32 %v8624, %v8679
      %v8785 = vadd.f32 %v8625, %v8683
      %v8786 = vadd.f32 %v8626, %v8687
      %v8787 = vadd.f32 %v8627, %v8691
      %v8788 = vadd.f32 %v8628, %v8695
      %v8789 = vadd.f32 %v8629, %v8699
      %v8790 = vadd.f32 %v8630, %v8703
      %v8791 = vadd.f32 %v8631, %v8707
      %v8792 = vadd.f32 %v8632, %v8711
      %v8793 = vadd.f32 %v8633, %v8715
      %v8794 = vadd.f32 %v8634, %v8719
      %v8795 = vadd.f32 %v8635, %v8723
      %v8796 = vadd.f32 %v8636, %v8727
      %v8797 = vadd.f32 %v8637, %v8731
      %v8798 = vadd.f32 %v8638, %v8735
      %v8799 = vadd.f32 %v8639, %v8739
      %v8800 = vadd.f32 %v8640, %v8743
      %v8801 = vadd.f32 %v8641, %v8747
      %v8802 = vadd.f32 %v8642, %v8751
      %v8803 = vadd.f32 %v8643, %v8755
      %v8804 = vadd.f32 %v8644, %v8759
      %v8805 = vadd.f32 %v8645, %v8763
      %v8806 = vadd.f32 %v8646, %v8767
      %v8807 = vadd.f32 %v8647, %v8771
      %v8808 = vadd.f32 %v8648, %v8775
      %v8809 = vmax.f32 %v8777, 0.0
      %v8810 = vmax.f32 %v8778, 0.0
      %v8811 = vmax.f32 %v8779, 0.0
      %v8812 = vmax.f32 %v8780, 0.0
      %v8813 = vmax.f32 %v8781, 0.0
      %v8814 = vmax.f32 %v8782, 0.0
      %v8815 = vmax.f32 %v8783, 0.0
      %v8816 = vmax.f32 %v8784, 0.0
      %v8817 = vmax.f32 %v8785, 0.0
      %v8818 = vmax.f32 %v8786, 0.0
      %v8819 = vmax.f32 %v8787, 0.0
      %v8820 = vmax.f32 %v8788, 0.0
      %v8821 = vmax.f32 %v8789, 0.0
      %v8822 = vmax.f32 %v8790, 0.0
      %v8823 = vmax.f32 %v8791, 0.0
      %v8824 = vmax.f32 %v8792, 0.0
      %v8825 = vmax.f32 %v8793, 0.0
      %v8826 = vmax.f32 %v8794, 0.0
      %v8827 = vmax.f32 %v8795, 0.0
      %v8828 = vmax.f32 %v8796, 0.0
      %v8829 = vmax.f32 %v8797, 0.0
      %v8830 = vmax.f32 %v8798, 0.0
      %v8831 = vmax.f32 %v8799, 0.0
      %v8832 = vmax.f32 %v8800, 0.0
      %v8833 = vmax.f32 %v8801, 0.0
      %v8834 = vmax.f32 %v8802, 0.0
      %v8835 = vmax.f32 %v8803, 0.0
      %v8836 = vmax.f32 %v8804, 0.0
      %v8837 = vmax.f32 %v8805, 0.0
      %v8838 = vmax.f32 %v8806, 0.0
      %v8839 = vmax.f32 %v8807, 0.0
      %v8840 = vmax.f32 %v8808, 0.0
      %v8841 = vpack.c.bf16 %v8810, %v8809
      %v8842 = vpack.c.bf16 %v8812, %v8811
      %v8843 = vpack.c.bf16 %v8814, %v8813
      %v8844 = vpack.c.bf16 %v8816, %v8815
      %v8845 = vpack.c.bf16 %v8818, %v8817
      %v8846 = vpack.c.bf16 %v8820, %v8819
      %v8847 = vpack.c.bf16 %v8822, %v8821
      %v8848 = vpack.c.bf16 %v8824, %v8823
      %v8849 = vpack.c.bf16 %v8826, %v8825
      %v8850 = vpack.c.bf16 %v8828, %v8827
      %v8851 = vpack.c.bf16 %v8830, %v8829
      %v8852 = vpack.c.bf16 %v8832, %v8831
      %v8853 = vpack.c.bf16 %v8834, %v8833
      %v8854 = vpack.c.bf16 %v8836, %v8835
      %v8855 = vpack.c.bf16 %v8838, %v8837
      %v8856 = vpack.c.bf16 %v8840, %v8839
      %v8873 = vunpack.c.l.b16 %v8841
      %v8874 = vunpack.c.h.b16 %v8841
      %v8875 = vunpack.c.l.b16 %v8842
      %v8876 = vunpack.c.h.b16 %v8842
      %v8877 = vunpack.c.l.b16 %v8843
      %v8878 = vunpack.c.h.b16 %v8843
      %v8879 = vunpack.c.l.b16 %v8844
      %v8880 = vunpack.c.h.b16 %v8844
      %v8881 = vunpack.c.l.b16 %v8845
      %v8882 = vunpack.c.h.b16 %v8845
      %v8883 = vunpack.c.l.b16 %v8846
      %v8884 = vunpack.c.h.b16 %v8846
      %v8885 = vunpack.c.l.b16 %v8847
      %v8886 = vunpack.c.h.b16 %v8847
      %v8887 = vunpack.c.l.b16 %v8848
      %v8888 = vunpack.c.h.b16 %v8848
      %v8889 = vunpack.c.l.b16 %v8849
      %v8890 = vunpack.c.h.b16 %v8849
      %v8891 = vunpack.c.l.b16 %v8850
      %v8892 = vunpack.c.h.b16 %v8850
      %v8893 = vunpack.c.l.b16 %v8851
      %v8894 = vunpack.c.h.b16 %v8851
      %v8895 = vunpack.c.l.b16 %v8852
      %v8896 = vunpack.c.h.b16 %v8852
      %v8897 = vunpack.c.l.b16 %v8853
      %v8898 = vunpack.c.h.b16 %v8853
      %v8899 = vunpack.c.l.b16 %v8854
      %v8900 = vunpack.c.h.b16 %v8854
      %v8901 = vunpack.c.l.b16 %v8855
      %v8902 = vunpack.c.h.b16 %v8855
      %v8903 = vunpack.c.l.b16 %v8856
      %v8904 = vunpack.c.h.b16 %v8856
      %v8905 = vpack.c.b16 %v8873, %v8873
      %v8906 = vpack.c.b16 %v8874, %v8874
      %v8907 = vpack.c.b16 %v8875, %v8875
      %v8908 = vpack.c.b16 %v8876, %v8876
      %v8909 = vpack.c.b16 %v8877, %v8877
      %v8910 = vpack.c.b16 %v8878, %v8878
      %v8911 = vpack.c.b16 %v8879, %v8879
      %v8912 = vpack.c.b16 %v8880, %v8880
      %v8913 = vpack.c.b16 %v8881, %v8881
      %v8914 = vpack.c.b16 %v8882, %v8882
      %v8915 = vpack.c.b16 %v8883, %v8883
      %v8916 = vpack.c.b16 %v8884, %v8884
      %v8917 = vpack.c.b16 %v8885, %v8885
      %v8918 = vpack.c.b16 %v8886, %v8886
      %v8919 = vpack.c.b16 %v8887, %v8887
      %v8920 = vpack.c.b16 %v8888, %v8888
      %v8921 = vpack.c.b16 %v8889, %v8889
      %v8922 = vpack.c.b16 %v8890, %v8890
      %v8923 = vpack.c.b16 %v8891, %v8891
      %v8924 = vpack.c.b16 %v8892, %v8892
      %v8925 = vpack.c.b16 %v8893, %v8893
      %v8926 = vpack.c.b16 %v8894, %v8894
      %v8927 = vpack.c.b16 %v8895, %v8895
      %v8928 = vpack.c.b16 %v8896, %v8896
      %v8929 = vpack.c.b16 %v8897, %v8897
      %v8930 = vpack.c.b16 %v8898, %v8898
      %v8931 = vpack.c.b16 %v8899, %v8899
      %v8932 = vpack.c.b16 %v8900, %v8900
      %v8933 = vpack.c.b16 %v8901, %v8901
      %v8934 = vpack.c.b16 %v8902, %v8902
      %v8935 = vpack.c.b16 %v8903, %v8903
      %v8936 = vpack.c.b16 %v8904, %v8904
      %vm8969 = vcmask 27648
      %8970 = vst.msk [vmem:[%s484] sm:$0xf] %vm8969, %v8905
      %8971 = vst.msk [vmem:[%s484 + $0x4] sm:$0xf] %vm8969, %v8906
      %8972 = vst.msk [vmem:[%s484 + $0x8] sm:$0xf] %vm8969, %v8907
      %8973 = vst.msk [vmem:[%s484 + $0xc] sm:$0xf] %vm8969, %v8908
      %8974 = vst.msk [vmem:[%s484 + $0x10] sm:$0xf] %vm8969, %v8909
      %8975 = vst.msk [vmem:[%s484 + $0x14] sm:$0xf] %vm8969, %v8910
      %8976 = vst.msk [vmem:[%s484 + $0x18] sm:$0xf] %vm8969, %v8911
      %8977 = vst.msk [vmem:[%s484 + $0x1c] sm:$0xf] %vm8969, %v8912
      %8978 = vst.msk [vmem:[%s484 + $0x20] sm:$0xf] %vm8969, %v8913
      %8979 = vst.msk [vmem:[%s484 + $0x24] sm:$0xf] %vm8969, %v8914
      %8980 = vst.msk [vmem:[%s484 + $0x28] sm:$0xf] %vm8969, %v8915
      %8981 = vst.msk [vmem:[%s484 + $0x2c] sm:$0xf] %vm8969, %v8916
      %8982 = vst.msk [vmem:[%s484 + $0x30] sm:$0xf] %vm8969, %v8917
      %8983 = vst.msk [vmem:[%s484 + $0x34] sm:$0xf] %vm8969, %v8918
      %8984 = vst.msk [vmem:[%s484 + $0x38] sm:$0xf] %vm8969, %v8919
      %8985 = vst.msk [vmem:[%s484 + $0x3c] sm:$0xf] %vm8969, %v8920
      %8986 = vst.msk [vmem:[%s484 + $0x40] sm:$0xf] %vm8969, %v8921
      %8987 = vst.msk [vmem:[%s484 + $0x44] sm:$0xf] %vm8969, %v8922
      %8988 = vst.msk [vmem:[%s484 + $0x48] sm:$0xf] %vm8969, %v8923
      %8989 = vst.msk [vmem:[%s484 + $0x4c] sm:$0xf] %vm8969, %v8924
      %8990 = vst.msk [vmem:[%s484 + $0x50] sm:$0xf] %vm8969, %v8925
      %8991 = vst.msk [vmem:[%s484 + $0x54] sm:$0xf] %vm8969, %v8926
      %8992 = vst.msk [vmem:[%s484 + $0x58] sm:$0xf] %vm8969, %v8927
      %8993 = vst.msk [vmem:[%s484 + $0x5c] sm:$0xf] %vm8969, %v8928
      %8994 = vst.msk [vmem:[%s484 + $0x60] sm:$0xf] %vm8969, %v8929
      %8995 = vst.msk [vmem:[%s484 + $0x64] sm:$0xf] %vm8969, %v8930
      %8996 = vst.msk [vmem:[%s484 + $0x68] sm:$0xf] %vm8969, %v8931
      %8997 = vst.msk [vmem:[%s484 + $0x6c] sm:$0xf] %vm8969, %v8932
      %8998 = vst.msk [vmem:[%s484 + $0x70] sm:$0xf] %vm8969, %v8933
      %8999 = vst.msk [vmem:[%s484 + $0x74] sm:$0xf] %vm8969, %v8934
      %9000 = vst.msk [vmem:[%s484 + $0x78] sm:$0xf] %vm8969, %v8935
      %9001 = vst.msk [vmem:[%s484 + $0x7c] sm:$0xf] %vm8969, %v8936
      %v9002 = vunpack.c.l.bf16 %v8841
      %v9003 = vunpack.c.h.bf16 %v8841
      %v9004 = vunpack.c.l.bf16 %v8842
      %v9005 = vunpack.c.h.bf16 %v8842
      %v9006 = vunpack.c.l.bf16 %v8843
      %v9007 = vunpack.c.h.bf16 %v8843
      %v9008 = vunpack.c.l.bf16 %v8844
      %v9009 = vunpack.c.h.bf16 %v8844
      %v9010 = vunpack.c.l.bf16 %v8845
      %v9011 = vunpack.c.h.bf16 %v8845
      %v9012 = vunpack.c.l.bf16 %v8846
      %v9013 = vunpack.c.h.bf16 %v8846
      %v9014 = vunpack.c.l.bf16 %v8847
      %v9015 = vunpack.c.h.bf16 %v8847
      %v9016 = vunpack.c.l.bf16 %v8848
      %v9017 = vunpack.c.h.bf16 %v8848
      %v9018 = vunpack.c.l.bf16 %v8849
      %v9019 = vunpack.c.h.bf16 %v8849
      %v9020 = vunpack.c.l.bf16 %v8850
      %v9021 = vunpack.c.h.bf16 %v8850
      %v9022 = vunpack.c.l.bf16 %v8851
      %v9023 = vunpack.c.h.bf16 %v8851
      %v9024 = vunpack.c.l.bf16 %v8852
      %v9025 = vunpack.c.h.bf16 %v8852
      %v9026 = vunpack.c.l.bf16 %v8853
      %v9027 = vunpack.c.h.bf16 %v8853
      %v9028 = vunpack.c.l.bf16 %v8854
      %v9029 = vunpack.c.h.bf16 %v8854
      %v9030 = vunpack.c.l.bf16 %v8855
      %v9031 = vunpack.c.h.bf16 %v8855
      %v9032 = vunpack.c.l.bf16 %v8856
      %v9033 = vunpack.c.h.bf16 %v8856
      %vm9034 = vcmask 31744
      %v9035 = vsel %vm9034, %v9002, 0.0
      %9036 = vadd.xlane.f32.xlu0 %v9035
      %v9037 = vpop.xlane.xlu0 %9036
      %v9038 = vsel %vm9034, %v9003, 0.0
      %9039 = vadd.xlane.f32.xlu0 %v9038
      %v9040 = vpop.xlane.xlu0 %9039
      %v9041 = vsel %vm9034, %v9004, 0.0
      %9042 = vadd.xlane.f32.xlu0 %v9041
      %v9043 = vpop.xlane.xlu0 %9042
      %v9044 = vsel %vm9034, %v9005, 0.0
      %9045 = vadd.xlane.f32.xlu0 %v9044
      %v9046 = vpop.xlane.xlu0 %9045
      %v9047 = vsel %vm9034, %v9006, 0.0
      %9048 = vadd.xlane.f32.xlu0 %v9047
      %v9049 = vpop.xlane.xlu0 %9048
      %v9050 = vsel %vm9034, %v9007, 0.0
      %9051 = vadd.xlane.f32.xlu0 %v9050
      %v9052 = vpop.xlane.xlu0 %9051
      %v9053 = vsel %vm9034, %v9008, 0.0
      %9054 = vadd.xlane.f32.xlu0 %v9053
      %v9055 = vpop.xlane.xlu0 %9054
      %v9056 = vsel %vm9034, %v9009, 0.0
      %9057 = vadd.xlane.f32.xlu0 %v9056
      %v9058 = vpop.xlane.xlu0 %9057
      %v9059 = vsel %vm9034, %v9010, 0.0
      %9060 = vadd.xlane.f32.xlu0 %v9059
      %v9061 = vpop.xlane.xlu0 %9060
      %v9062 = vsel %vm9034, %v9011, 0.0
      %9063 = vadd.xlane.f32.xlu0 %v9062
      %v9064 = vpop.xlane.xlu0 %9063
      %v9065 = vsel %vm9034, %v9012, 0.0
      %9066 = vadd.xlane.f32.xlu0 %v9065
      %v9067 = vpop.xlane.xlu0 %9066
      %v9068 = vsel %vm9034, %v9013, 0.0
      %9069 = vadd.xlane.f32.xlu0 %v9068
      %v9070 = vpop.xlane.xlu0 %9069
      %v9071 = vsel %vm9034, %v9014, 0.0
      %9072 = vadd.xlane.f32.xlu0 %v9071
      %v9073 = vpop.xlane.xlu0 %9072
      %v9074 = vsel %vm9034, %v9015, 0.0
      %9075 = vadd.xlane.f32.xlu0 %v9074
      %v9076 = vpop.xlane.xlu0 %9075
      %v9077 = vsel %vm9034, %v9016, 0.0
      %9078 = vadd.xlane.f32.xlu0 %v9077
      %v9079 = vpop.xlane.xlu0 %9078
      %v9080 = vsel %vm9034, %v9017, 0.0
      %9081 = vadd.xlane.f32.xlu0 %v9080
      %v9082 = vpop.xlane.xlu0 %9081
      %v9083 = vsel %vm9034, %v9018, 0.0
      %9084 = vadd.xlane.f32.xlu0 %v9083
      %v9085 = vpop.xlane.xlu0 %9084
      %v9086 = vsel %vm9034, %v9019, 0.0
      %9087 = vadd.xlane.f32.xlu0 %v9086
      %v9088 = vpop.xlane.xlu0 %9087
      %v9089 = vsel %vm9034, %v9020, 0.0
      %9090 = vadd.xlane.f32.xlu0 %v9089
      %v9091 = vpop.xlane.xlu0 %9090
      %v9092 = vsel %vm9034, %v9021, 0.0
      %9093 = vadd.xlane.f32.xlu0 %v9092
      %v9094 = vpop.xlane.xlu0 %9093
      %v9095 = vsel %vm9034, %v9022, 0.0
      %9096 = vadd.xlane.f32.xlu0 %v9095
      %v9097 = vpop.xlane.xlu0 %9096
      %v9098 = vsel %vm9034, %v9023, 0.0
      %9099 = vadd.xlane.f32.xlu0 %v9098
      %v9100 = vpop.xlane.xlu0 %9099
      %v9101 = vsel %vm9034, %v9024, 0.0
      %9102 = vadd.xlane.f32.xlu0 %v9101
      %v9103 = vpop.xlane.xlu0 %9102
      %v9104 = vsel %vm9034, %v9025, 0.0
      %9105 = vadd.xlane.f32.xlu0 %v9104
      %v9106 = vpop.xlane.xlu0 %9105
      %v9107 = vsel %vm9034, %v9026, 0.0
      %9108 = vadd.xlane.f32.xlu0 %v9107
      %v9109 = vpop.xlane.xlu0 %9108
      %v9110 = vsel %vm9034, %v9027, 0.0
      %9111 = vadd.xlane.f32.xlu0 %v9110
      %v9112 = vpop.xlane.xlu0 %9111
      %v9113 = vsel %vm9034, %v9028, 0.0
      %9114 = vadd.xlane.f32.xlu0 %v9113
      %v9115 = vpop.xlane.xlu0 %9114
      %v9116 = vsel %vm9034, %v9029, 0.0
      %9117 = vadd.xlane.f32.xlu0 %v9116
      %v9118 = vpop.xlane.xlu0 %9117
      %v9119 = vsel %vm9034, %v9030, 0.0
      %9120 = vadd.xlane.f32.xlu0 %v9119
      %v9121 = vpop.xlane.xlu0 %9120
      %v9122 = vsel %vm9034, %v9031, 0.0
      %9123 = vadd.xlane.f32.xlu0 %v9122
      %v9124 = vpop.xlane.xlu0 %9123
      %v9125 = vsel %vm9034, %v9032, 0.0
      %9126 = vadd.xlane.f32.xlu0 %v9125
      %v9127 = vpop.xlane.xlu0 %9126
      %v9128 = vsel %vm9034, %v9033, 0.0
      %9129 = vadd.xlane.f32.xlu0 %v9128
      %v9130 = vpop.xlane.xlu0 %9129
      %v9131 = vrcp.pop 4.0
      %v9132 = vmul.f32 %v9037, %v9131
      %v9133 = vmul.f32 %v9040, %v9131
      %v9134 = vmul.f32 %v9043, %v9131
      %v9135 = vmul.f32 %v9046, %v9131
      %v9136 = vmul.f32 %v9049, %v9131
      %v9137 = vmul.f32 %v9052, %v9131
      %v9138 = vmul.f32 %v9055, %v9131
      %v9139 = vmul.f32 %v9058, %v9131
      %v9140 = vmul.f32 %v9061, %v9131
      %v9141 = vmul.f32 %v9064, %v9131
      %v9142 = vmul.f32 %v9067, %v9131
      %v9143 = vmul.f32 %v9070, %v9131
      %v9144 = vmul.f32 %v9073, %v9131
      %v9145 = vmul.f32 %v9076, %v9131
      %v9146 = vmul.f32 %v9079, %v9131
      %v9147 = vmul.f32 %v9082, %v9131
      %v9148 = vmul.f32 %v9085, %v9131
      %v9149 = vmul.f32 %v9088, %v9131
      %v9150 = vmul.f32 %v9091, %v9131
      %v9151 = vmul.f32 %v9094, %v9131
      %v9152 = vmul.f32 %v9097, %v9131
      %v9153 = vmul.f32 %v9100, %v9131
      %v9154 = vmul.f32 %v9103, %v9131
      %v9155 = vmul.f32 %v9106, %v9131
      %v9156 = vmul.f32 %v9109, %v9131
      %v9157 = vmul.f32 %v9112, %v9131
      %v9158 = vmul.f32 %v9115, %v9131
      %v9159 = vmul.f32 %v9118, %v9131
      %v9160 = vmul.f32 %v9121, %v9131
      %v9161 = vmul.f32 %v9124, %v9131
      %v9162 = vmul.f32 %v9127, %v9131
      %v9163 = vmul.f32 %v9130, %v9131
      %vm9164 = vcmask 7168
      %9165 = vst.msk [vmem:[%s489] sm:$0xff] %vm9164, %v9132
      %9166 = vst.msk [vmem:[%s489 + $0x8] sm:$0xff] %vm9164, %v9133
      %9167 = vst.msk [vmem:[%s489 + $0x10] sm:$0xff] %vm9164, %v9134
      %9168 = vst.msk [vmem:[%s489 + $0x18] sm:$0xff] %vm9164, %v9135
      %9169 = vst.msk [vmem:[%s489 + $0x20] sm:$0xff] %vm9164, %v9136
      %9170 = vst.msk [vmem:[%s489 + $0x28] sm:$0xff] %vm9164, %v9137
      %9171 = vst.msk [vmem:[%s489 + $0x30] sm:$0xff] %vm9164, %v9138
      %9172 = vst.msk [vmem:[%s489 + $0x38] sm:$0xff] %vm9164, %v9139
      %9173 = vst.msk [vmem:[%s489 + $0x40] sm:$0xff] %vm9164, %v9140
      %9174 = vst.msk [vmem:[%s489 + $0x48] sm:$0xff] %vm9164, %v9141
      %9175 = vst.msk [vmem:[%s489 + $0x50] sm:$0xff] %vm9164, %v9142
      %9176 = vst.msk [vmem:[%s489 + $0x58] sm:$0xff] %vm9164, %v9143
      %9177 = vst.msk [vmem:[%s489 + $0x60] sm:$0xff] %vm9164, %v9144
      %9178 = vst.msk [vmem:[%s489 + $0x68] sm:$0xff] %vm9164, %v9145
      %9179 = vst.msk [vmem:[%s489 + $0x70] sm:$0xff] %vm9164, %v9146
      %9180 = vst.msk [vmem:[%s489 + $0x78] sm:$0xff] %vm9164, %v9147
      %9181 = vst.msk [vmem:[%s489 + $0x80] sm:$0xff] %vm9164, %v9148
      %9182 = vst.msk [vmem:[%s489 + $0x88] sm:$0xff] %vm9164, %v9149
      %9183 = vst.msk [vmem:[%s489 + $0x90] sm:$0xff] %vm9164, %v9150
      %9184 = vst.msk [vmem:[%s489 + $0x98] sm:$0xff] %vm9164, %v9151
      %9185 = vst.msk [vmem:[%s489 + $0xa0] sm:$0xff] %vm9164, %v9152
      %9186 = vst.msk [vmem:[%s489 + $0xa8] sm:$0xff] %vm9164, %v9153
      %9187 = vst.msk [vmem:[%s489 + $0xb0] sm:$0xff] %vm9164, %v9154
      %9188 = vst.msk [vmem:[%s489 + $0xb8] sm:$0xff] %vm9164, %v9155
      %9189 = vst.msk [vmem:[%s489 + $0xc0] sm:$0xff] %vm9164, %v9156
      %9190 = vst.msk [vmem:[%s489 + $0xc8] sm:$0xff] %vm9164, %v9157
      %9191 = vst.msk [vmem:[%s489 + $0xd0] sm:$0xff] %vm9164, %v9158
      %9192 = vst.msk [vmem:[%s489 + $0xd8] sm:$0xff] %vm9164, %v9159
      %9193 = vst.msk [vmem:[%s489 + $0xe0] sm:$0xff] %vm9164, %v9160
      %9194 = vst.msk [vmem:[%s489 + $0xe8] sm:$0xff] %vm9164, %v9161
      %9195 = vst.msk [vmem:[%s489 + $0xf0] sm:$0xff] %vm9164, %v9162
      %9196 = vst.msk [vmem:[%s489 + $0xf8] sm:$0xff] %vm9164, %v9163
      %p9197 = scmp.lt.s32.totalorder %s25, 1
      %s9198 = scalar_select %p9197, %s25, 1
      %s9199 = smul.addr %s9198, 64
      %s9200 = smul.addr %s9199, 4
      %s9201 = scalar_lea.vmem %s9, %s9200
      %p9202 = scmp.lt.s32.totalorder %s25, 1
      %s9203 = scalar_select %p9202, %s25, 1
      %s9204 = smul.addr %s9203, 32
      %s9205 = smul.addr %s9204, 4
      %s9206 = scalar_lea.vmem %s10, %s9205
      %p9207 = scmp.lt.s32.totalorder %s25, 1
      %s9208 = scalar_select %p9207, %s25, 1
      %s9209 = smul.addr %s9208, 32
      %s9210 = smul.addr %s9209, 4
      %s9211 = scalar_lea.vmem %s11, %s9210
      %p9212 = scmp.lt.s32.totalorder %s25, 1
      %s9213 = scalar_select %p9212, %s25, 1
      %s9214 = smul.addr %s9213, 32
      %s9215 = smul.addr %s9214, 4
      %s9216 = scalar_lea.vmem %s12, %s9215
      %p9217 = scmp.lt.s32.totalorder %s25, 1
      %s9218 = scalar_select %p9217, %s25, 1
      %s9219 = smul.addr %s9218, 32
      %s9220 = smul.addr %s9219, 8
      %s9221 = scalar_lea.vmem %s13, %s9220
      // Predicated region
      $region57: #{regression_fpn_forward.1} parent=55 // pred_check
        %p9222 = pneg %p237
      $region58: #{regression_fpn_forward.1} parent=55 // pred_check_branch
        %9224 = sbr.rel (%p9222) target = $region60
      $region59: #{regression_fpn_forward.1} parent=55 // pred_region
        _
      $region60: #{regression_fpn_forward.1} parent=55 // pred_fallthru
        _
      // Predicated region
      $region61: #{regression_fpn_forward.1} parent=55 // pred_check
        %p9225 = pneg %p263
      $region62: #{regression_fpn_forward.1} parent=55 // pred_check_branch
        %9227 = sbr.rel (%p9225) target = $region64
      $region63: #{regression_fpn_forward.1} parent=55 // pred_region
        _
      $region64: #{regression_fpn_forward.1} parent=55 // pred_fallthru
        _
      // Predicated region
      $region65: #{regression_fpn_forward.1} parent=55 // pred_check
        %p9228 = pneg %p289
      $region66: #{regression_fpn_forward.1} parent=55 // pred_check_branch
        %9230 = sbr.rel (%p9228) target = $region68
      $region67: #{regression_fpn_forward.1} parent=55 // pred_region
        _
      $region68: #{regression_fpn_forward.1} parent=55 // pred_fallthru
        _
      // Predicated region
      $region69: #{regression_fpn_forward.1} parent=55 // pred_check
        %p9231 = pneg %p315
      $region70: #{regression_fpn_forward.1} parent=55 // pred_check_branch
        %9233 = sbr.rel (%p9231) target = $region72
      $region71: #{regression_fpn_forward.1} parent=55 // pred_region
        _
      $region72: #{regression_fpn_forward.1} parent=55 // pred_fallthru
        _
      // Predicated region
      $region73: #{regression_fpn_forward.1} parent=55 // pred_check
        %p9234 = pneg %p341
      $region74: #{regression_fpn_forward.1} parent=55 // pred_check_branch
        %9236 = sbr.rel (%p9234) target = $region76
      $region75: #{regression_fpn_forward.1} parent=55 // pred_region
        _
      $region76: #{regression_fpn_forward.1} parent=55 // pred_fallthru
        _
    $region56: #{regression_fpn_forward.1} parent=5 // pred_fallthru
      _
    %p9237 = scmp.le.s32.totalorder 2, %s20
    // Predicated region
    $region77: #{regression_fpn_forward.1} parent=5 // pred_check
      %p9238 = pneg %p9237
    $region78: #{regression_fpn_forward.1} parent=5 // pred_check_branch
      %9240 = sbr.rel (%p9238) target = $region80
    $region79: #{regression_fpn_forward.1} parent=5 // pred_region
      %s9241 = ssub.s32 %s20, 2
      // Predicated region
      $region81: #{regression_fpn_forward.1} parent=79 // pred_check
        %p9242 = pneg %p243
      $region82: #{regression_fpn_forward.1} parent=79 // pred_check_branch
        %9244 = sbr.rel (%p9242) target = $region84
      $region83: #{regression_fpn_forward.1} parent=79 // pred_region
        %p9245 = scmp.lt.s32.totalorder %s26, 1
        %s9246 = scalar_select %p9245, %s26, 1
        %s9247 = smul.addr %s9246, 64
        %s9248 = smul.addr %s9247, 4
        %s9249 = scalar_lea.vmem %s9, %s9248
      $region84: #{regression_fpn_forward.1} parent=79 // pred_fallthru
        _
      // Predicated region
      $region85: #{regression_fpn_forward.1} parent=79 // pred_check
        %p9250 = pneg %p269
      $region86: #{regression_fpn_forward.1} parent=79 // pred_check_branch
        %9252 = sbr.rel (%p9250) target = $region88
      $region87: #{regression_fpn_forward.1} parent=79 // pred_region
        %p9253 = scmp.lt.s32.totalorder %s26, 1
        %s9254 = scalar_select %p9253, %s26, 1
        %s9255 = smul.addr %s9254, 32
        %s9256 = smul.addr %s9255, 4
        %s9257 = scalar_lea.vmem %s10, %s9256
      $region88: #{regression_fpn_forward.1} parent=79 // pred_fallthru
        _
      // Predicated region
      $region89: #{regression_fpn_forward.1} parent=79 // pred_check
        %p9258 = pneg %p295
      $region90: #{regression_fpn_forward.1} parent=79 // pred_check_branch
        %9260 = sbr.rel (%p9258) target = $region92
      $region91: #{regression_fpn_forward.1} parent=79 // pred_region
        %p9261 = scmp.lt.s32.totalorder %s26, 1
        %s9262 = scalar_select %p9261, %s26, 1
        %s9263 = smul.addr %s9262, 32
        %s9264 = smul.addr %s9263, 4
        %s9265 = scalar_lea.vmem %s11, %s9264
      $region92: #{regression_fpn_forward.1} parent=79 // pred_fallthru
        _
      // Predicated region
      $region93: #{regression_fpn_forward.1} parent=79 // pred_check
        %p9266 = pneg %p321
      $region94: #{regression_fpn_forward.1} parent=79 // pred_check_branch
        %9268 = sbr.rel (%p9266) target = $region96
      $region95: #{regression_fpn_forward.1} parent=79 // pred_region
        %p9269 = scmp.lt.s32.totalorder %s26, 1
        %s9270 = scalar_select %p9269, %s26, 1
        %s9271 = smul.addr %s9270, 32
        %s9272 = smul.addr %s9271, 4
        %s9273 = scalar_lea.vmem %s12, %s9272
      $region96: #{regression_fpn_forward.1} parent=79 // pred_fallthru
        _
      // Predicated region
      $region97: #{regression_fpn_forward.1} parent=79 // pred_check
        %p9274 = pneg %p347
      $region98: #{regression_fpn_forward.1} parent=79 // pred_check_branch
        %9276 = sbr.rel (%p9274) target = $region100
      $region99: #{regression_fpn_forward.1} parent=79 // pred_region
        %p9277 = scmp.lt.s32.totalorder %s26, 1
        %s9278 = scalar_select %p9277, %s26, 1
        %s9279 = smul.addr %s9278, 32
        %s9280 = smul.addr %s9279, 8
        %s9281 = scalar_lea.vmem %s13, %s9280
      $region100: #{regression_fpn_forward.1} parent=79 // pred_fallthru
        _
    $region80: #{regression_fpn_forward.1} parent=5 // pred_fallthru
      _
  $region6: #{regression_fpn_forward.1} parent=0 // loop_footer
    %s24 = sadd.s32 1, %s20
  $region7: #{regression_fpn_forward.1} parent=0 // loop_footer_branch
    %19 = sbr.rel target = $region3
  $region8: #{regression_fpn_forward.1} parent=0 // loop_exit
    _

</llo_original>
